<compile_context>
chip_gen: v6e
topology: v6e:2x2x1
jax: 0.10.0
libtpu: 0.0.40
codegen_flags: <defaults>
</compile_context>

<pallas_src>
import functools

import jax
import jax.numpy as jnp
from jax.experimental import pallas as pl
from jax.experimental.pallas import tpu as pltpu

LANES = 128


def _round_up(x, m):
    return (x + m - 1) // m * m


# ------------------------------- fused kernel ------------------------------- #

def _basic_block_kernel(x_ref, w1_ref, b1_ref, w2_ref, b2_ref, wsc_ref, bsc_ref,
                        o_ref, xpad_ref, h1pad_ref, *, stride, row_tile,
                        identity_sc):
    """Whole BasicBlock for one batch item; all intermediates stay in VMEM."""
    h_in, w_in, cp_in = x_ref.shape[1], x_ref.shape[2], x_ref.shape[3]
    h_out, w_out, cp_out = o_ref.shape[1], o_ref.shape[2], o_ref.shape[3]
    mm_dtype = w1_ref.dtype          # bf16 on v6e/v7x fast path, f32 otherwise

    # ---- stage the zero-padded input in VMEM (replaces wrapper-side jnp.pad) --
    xpad_ref[...] = jnp.zeros_like(xpad_ref)
    xpad_ref[1:h_in + 1, 1:w_in + 1, :] = x_ref[0].astype(xpad_ref.dtype)
    h1pad_ref[...] = jnp.zeros_like(h1pad_ref)

    # hoisted epilogue constants (tiny, but keeps them out of the row loops)
    b1 = b1_ref[...]
    b2 = b2_ref[...]
    bsc = None if identity_sc else bsc_ref[...]

    def conv3x3_rows(src_ref, w_ref, r0, nrows, s):
        """3x3 conv for output rows [r0, r0+nrows); returns f32 (nrows*w_out, cout)."""
        cin = src_ref.shape[-1]
        acc = jnp.zeros((nrows * w_out, w_ref.shape[-1]), jnp.float32)
        for kh in range(3):
            for kw in range(3):
                if s == 1:
                    patch = src_ref[pl.ds(r0 + kh, nrows), pl.ds(kw, w_out), :]
                else:
                    # TODO(synk): for stride 2, deinterleave rows/cols up front
                    # (4 dense sub-convs) or use a strided DMA instead of
                    # in-kernel strided slicing.
                    win = src_ref[pl.ds(r0 * s + kh, (nrows - 1) * s + 1),
                                  pl.ds(kw, (w_out - 1) * s + 1), :]
                    patch = win[::s, ::s, :]
                acc = acc + jnp.dot(
                    patch.reshape(nrows * w_out, cin).astype(mm_dtype),
                    w_ref[kh, kw],
                    preferred_element_type=jnp.float32)
        return acc

    # ---- phase 1: h1 = ReLU(conv1(x) + bn1_bias)  (scale folded into w1) ------
    for r0 in range(0, h_out, row_tile):
        nr = min(row_tile, h_out - r0)
        acc1 = conv3x3_rows(xpad_ref, w1_ref, r0, nr, stride)
        y1 = jnp.maximum(acc1 + b1, 0.0)
        h1pad_ref[1 + r0:1 + r0 + nr, 1:1 + w_out, :] = (
            y1.reshape(nr, w_out, cp_out).astype(h1pad_ref.dtype))

    # ---- phase 2: out = ReLU(conv2(h1) + bn2_bias) + shortcut(x) --------------
    for r0 in range(0, h_out, row_tile):
        nr = min(row_tile, h_out - r0)
        acc2 = conv3x3_rows(h1pad_ref, w2_ref, r0, nr, 1)
        y2 = jnp.maximum(acc2 + b2, 0.0)

        # shortcut tile read from the already-staged (padded) input
        if stride == 1:
            xsc = xpad_ref[pl.ds(1 + r0, nr), pl.ds(1, w_out), :]
        else:
            win = xpad_ref[pl.ds(1 + r0 * stride, (nr - 1) * stride + 1),
                           pl.ds(1, (w_out - 1) * stride + 1), :]
            xsc = win[::stride, ::stride, :]
        xsc = xsc.reshape(nr * w_out, cp_in)

        if identity_sc:
            # identity shortcut: plain add, no MXU work, full f32 precision
            sc = xsc.astype(jnp.float32)
        else:
            # projection shortcut: folded Conv1x1 + BN as a 1x1 matmul
            sc = jnp.dot(xsc.astype(mm_dtype), wsc_ref[...],
                         preferred_element_type=jnp.float32) + bsc

        out_tile = (y2 + sc).reshape(nr, w_out, cp_out)
        o_ref[0, r0:r0 + nr, :, :] = out_tile.astype(o_ref.dtype)


# ------------------------------ wrapper ------------------------------------- #

def _fold_bn(gamma, beta, mean, var, eps=1e-5):
    scale = gamma / jnp.sqrt(var + eps)
    return scale, beta - mean * scale


def basic_block_forward(x_nchw, params, stride=1, *,
                        compute_dtype=jnp.float32, row_tile=None):
    """Pallas implementation of BasicBlock.forward. Input/output are NCHW f32."""
    n, cin, h, w = x_nchw.shape
    planes = params["w1"].shape[0]
    h_out = (h + 2 - 3) // stride + 1
    w_out = (w + 2 - 3) // stride + 1

    cp_in = max(LANES, _round_up(cin, LANES))
    cp_out = max(LANES, _round_up(planes, LANES))

    # pick a row tile so each matmul's M-dim ~ 128 rows (full MXU tile, ~16 vregs)
    if row_tile is None:
        row_tile = max(1, min(h_out, max(1, 128 // w_out)))
    row_tile = min(row_tile, h_out)

    # NCHW -> NHWC (channels on the 128-lane axis); pad channels so every store
    # and matmul is lane-dense. Realistic ResNet stages are already aligned.
    x = jnp.transpose(x_nchw, (0, 2, 3, 1))
    if cp_in != cin:
        x = jnp.pad(x, ((0, 0), (0, 0), (0, 0), (0, cp_in - cin)))
    x = x.astype(compute_dtype)

    def prep_conv(w_oihw, bn, ci, cpi):
        scale, bias = _fold_bn(*bn)
        w_hwio = jnp.transpose(w_oihw, (2, 3, 1, 0)) * scale     # fold BN scale
        kh, kw = w_hwio.shape[0], w_hwio.shape[1]
        w_p = jnp.zeros((kh, kw, cpi, cp_out), jnp.float32)
        w_p = w_p.at[:, :, :ci, :planes].set(w_hwio)
        b_p = jnp.zeros((1, cp_out), jnp.float32).at[0, :planes].set(bias)
        return w_p.astype(compute_dtype), b_p

    w1p, b1p = prep_conv(params["w1"], params["bn1"], cin, cp_in)
    w2p, b2p = prep_conv(params["w2"], params["bn2"], planes, cp_out)

    if "wsc" in params:                      # projection shortcut (1x1 conv + BN)
        wsc4, bscp = prep_conv(params["wsc"], params["bnsc"], cin, cp_in)
        wscp = wsc4[0, 0]
        identity_sc = False
    else:                                    # identity shortcut: direct add in-kernel
        assert stride == 1 and cin == planes
        wscp = jnp.zeros((cp_in, cp_out), compute_dtype)   # unused by kernel
        bscp = jnp.zeros((1, cp_out), jnp.float32)         # unused by kernel
        identity_sc = True

    kernel = functools.partial(_basic_block_kernel, stride=stride,
                               row_tile=row_tile, identity_sc=identity_sc)

    out = pl.pallas_call(
        kernel,
        out_shape=jax.ShapeDtypeStruct((n, h_out, w_out, cp_out), jnp.float32),
        grid=(n,),
        in_specs=[
            pl.BlockSpec((1, h, w, cp_in), lambda i: (i, 0, 0, 0)),
            pl.BlockSpec((3, 3, cp_in, cp_out), lambda i: (0, 0, 0, 0)),
            pl.BlockSpec((1, cp_out), lambda i: (0, 0)),
            pl.BlockSpec((3, 3, cp_out, cp_out), lambda i: (0, 0, 0, 0)),
            pl.BlockSpec((1, cp_out), lambda i: (0, 0)),
            pl.BlockSpec((cp_in, cp_out), lambda i: (0, 0)),
            pl.BlockSpec((1, cp_out), lambda i: (0, 0)),
        ],
        out_specs=pl.BlockSpec((1, h_out, w_out, cp_out), lambda i: (i, 0, 0, 0)),
        scratch_shapes=[
            pltpu.VMEM((h + 2, w + 2, cp_in), jnp.float32),           # padded x
            pltpu.VMEM((h_out + 2, w_out + 2, cp_out), jnp.float32),  # padded h1
        ],
        compiler_params=pltpu.CompilerParams(
            dimension_semantics=("parallel",),
            vmem_limit_bytes=32 * 1024 * 1024,
        ),
    )(x, w1p, b1p, w2p, b2p, wscp, bscp)

    out = out[..., :planes]                   # drop channel padding
    return jnp.transpose(out, (0, 3, 1, 2))   # NHWC -> NCHW


# --------------------------- params + reference ----------------------------- #

def init_params(key, in_planes, planes, stride):
    keys = jax.random.split(key, 16)

    def bn_params(k0, k1, k2, k3, c):
        return (1.0 + 0.1 * jax.random.normal(k0, (c,), jnp.float32),   # gamma
                0.1 * jax.random.normal(k1, (c,), jnp.float32),          # beta
                0.1 * jax.random.normal(k2, (c,), jnp.float32),          # running_mean
                jax.random.uniform(k3, (c,), jnp.float32, 0.5, 1.5))     # running_var

    p = {
        "w1": 0.1 * jax.random.normal(keys[0], (planes, in_planes, 3, 3), jnp.float32),
        "bn1": bn_params(keys[1], keys[2], keys[3], keys[4], planes),
        "w2": 0.1 * jax.random.normal(keys[5], (planes, planes, 3, 3), jnp.float32),
        "bn2": bn_params(keys[6], keys[7], keys[8], keys[9], planes),
    }
    if stride != 1 or in_planes != planes:
        p["wsc"] = 0.1 * jax.random.normal(keys[10], (planes, in_planes, 1, 1),
                                           jnp.float32)
        p["bnsc"] = bn_params(keys[11], keys[12], keys[13], keys[14], planes)
    return p


def reference_forward(x_nchw, params, stride=1, eps=1e-5):
    """Plain-JAX (XLA conv, full f32 precision) reference for correctness."""
    def conv(x, w, s, pad):
        return jax.lax.conv_general_dilated(
            x, w, (s, s), [(pad, pad), (pad, pad)],
            dimension_numbers=("NCHW", "OIHW", "NCHW"),
            precision=jax.lax.Precision.HIGHEST)

    def bn(x, gamma, beta, mean, var):
        sc = gamma / jnp.sqrt(var + eps)
        return x * sc.reshape(1, -1, 1, 1) + (beta - mean * sc).reshape(1, -1, 1, 1)

    h1 = jax.nn.relu(bn(conv(x_nchw, params["w1"], stride, 1), *params["bn1"]))
    h2 = jax.nn.relu(bn(conv(h1, params["w2"], 1, 1), *params["bn2"]))
    if "wsc" in params:
        sc = bn(conv(x_nchw, params["wsc"], stride, 0), *params["bnsc"])
    else:
        sc = x_nchw
    return h2 + sc


# ---------------------------------- main ------------------------------------ #

if __name__ == "__main__":
    key = jax.random.PRNGKey(0)
    k_xa, k_xb, k_pa, k_pb = jax.random.split(key, 4)

    # -- config A: channel-expanding block (projection shortcut), stride 1 -----
    in_planes, planes, stride = 4, 8, 1
    x_a = jax.random.normal(k_xa, (2, in_planes, 16, 16), jnp.float32)   # NCHW
    params_a = init_params(k_pa, in_planes, planes, stride)
    ref_a = jax.block_until_ready(reference_forward(x_a, params_a, stride=stride))

    # f32 matmul operands: tight tolerance (actual error ~1e-5; any layout /
    # indexing bug shows up as O(1)).
    out_f32 = jax.block_until_ready(
        basic_block_forward(x_a, params_a, stride=stride,
                            compute_dtype=jnp.float32))
    assert out_f32.shape == ref_a.shape == (2, planes, 16, 16)
    err_f32 = float(jnp.max(jnp.abs(out_f32 - ref_a)))
    assert err_f32 < 1e-3, f"f32 mismatch vs reference: max abs err = {err_f32}"

    # bf16 matmul operands (v6e / v7x fast path); f32 accumulation + epilogue.
    out_bf16 = jax.block_until_ready(
        basic_block_forward(x_a, params_a, stride=stride,
                            compute_dtype=jnp.bfloat16))
    bf16_ok = bool(jnp.all(jnp.abs(out_bf16 - ref_a) <= 3e-2 + 3e-2 * jnp.abs(ref_a)))
    assert bf16_ok, "bf16 mismatch vs reference"

    # -- config B: identity shortcut (in_planes == planes, stride 1) -----------
    x_b = jax.random.normal(k_xb, (2, planes, 16, 16), jnp.float32)
    params_b = init_params(k_pb, planes, planes, 1)
    ref_b = jax.block_until_ready(reference_forward(x_b, params_b, stride=1))
    out_b = jax.block_until_ready(
        basic_block_forward(x_b, params_b, stride=1, compute_dtype=jnp.float32))
    err_b = float(jnp.max(jnp.abs(out_b - ref_b)))
    assert err_b < 1e-3, f"identity-shortcut mismatch: max abs err = {err_b}"

    print("KERNEL_OK")
</pallas_src>

<mosaic_0001>
module attributes {stable_mosaic.version = 11 : i64} {
  func.func @_basic_block_kernel(%arg0: i32, %arg1: memref<1x16x16x128xf32, #tpu.memory_space<vmem>>, %arg2: memref<3x3x128x128xf32, #tpu.memory_space<vmem>>, %arg3: memref<1x128xf32, #tpu.memory_space<vmem>>, %arg4: memref<3x3x128x128xf32, #tpu.memory_space<vmem>>, %arg5: memref<1x128xf32, #tpu.memory_space<vmem>>, %arg6: memref<128x128xf32, #tpu.memory_space<vmem>>, %arg7: memref<1x128xf32, #tpu.memory_space<vmem>>, %arg8: memref<1x16x16x128xf32, #tpu.memory_space<vmem>>, %arg9: memref<18x18x128xf32, #tpu.memory_space<vmem>>, %arg10: memref<18x18x128xf32, #tpu.memory_space<vmem>>) attributes {dimension_semantics = [#tpu.dimension_semantics<parallel>], iteration_bounds = array<i64: 2>, scalar_prefetch = 0 : i64, scratch_operands = 2 : i64, tpu.core_type = #tpu.core_type<tc>, window_params = [{transform_indices = @transform_0, window_bounds = array<i64: 1, 16, 16, 128>}, {pipeline_mode = #tpu.pipeline_mode<synchronous>, transform_indices = @transform_1, window_bounds = array<i64: 3, 3, 128, 128>}, {pipeline_mode = #tpu.pipeline_mode<synchronous>, transform_indices = @transform_2, window_bounds = array<i64: 1, 128>}, {pipeline_mode = #tpu.pipeline_mode<synchronous>, transform_indices = @transform_3, window_bounds = array<i64: 3, 3, 128, 128>}, {pipeline_mode = #tpu.pipeline_mode<synchronous>, transform_indices = @transform_4, window_bounds = array<i64: 1, 128>}, {pipeline_mode = #tpu.pipeline_mode<synchronous>, transform_indices = @transform_5, window_bounds = array<i64: 128, 128>}, {pipeline_mode = #tpu.pipeline_mode<synchronous>, transform_indices = @transform_6, window_bounds = array<i64: 1, 128>}, {transform_indices = @transform_7, window_bounds = array<i64: 1, 16, 16, 128>}]} {
    %cst = arith.constant 0.000000e+00 : f32
    %0 = vector.broadcast %cst : f32 to vector<18x18x128xf32>
    %c0 = arith.constant 0 : index
    %c0_0 = arith.constant 0 : index
    %c0_1 = arith.constant 0 : index
    %1 = vector.load %arg9[%c0, %c0_0, %c0_1] : memref<18x18x128xf32, #tpu.memory_space<vmem>>, vector<18x18x128xf32>
    tpu.vector_store %arg9[%c0, %c0_0, %c0_1], %0 {strides = array<i32>} : memref<18x18x128xf32, #tpu.memory_space<vmem>>, vector<18x18x128xf32>,
    %c0_2 = arith.constant 0 : index
    %c0_3 = arith.constant 0 : index
    %c0_4 = arith.constant 0 : index
    %c0_5 = arith.constant 0 : index
    %2 = vector.load %arg1[%c0_2, %c0_3, %c0_4, %c0_5] : memref<1x16x16x128xf32, #tpu.memory_space<vmem>>, vector<1x16x16x128xf32>
    %3 = vector.shape_cast %2 : vector<1x16x16x128xf32> to vector<16x16x128xf32>
    %c1 = arith.constant 1 : index
    %c1_6 = arith.constant 1 : index
    %c0_7 = arith.constant 0 : index
    %4 = vector.load %arg9[%c1, %c1_6, %c0_7] : memref<18x18x128xf32, #tpu.memory_space<vmem>>, vector<16x16x128xf32>
    tpu.vector_store %arg9[%c1, %c1_6, %c0_7], %3 {strides = array<i32>} : memref<18x18x128xf32, #tpu.memory_space<vmem>>, vector<16x16x128xf32>,
    %cst_8 = arith.constant 0.000000e+00 : f32
    %5 = vector.broadcast %cst_8 : f32 to vector<18x18x128xf32>
    %c0_9 = arith.constant 0 : index
    %c0_10 = arith.constant 0 : index
    %c0_11 = arith.constant 0 : index
    %6 = vector.load %arg10[%c0_9, %c0_10, %c0_11] : memref<18x18x128xf32, #tpu.memory_space<vmem>>, vector<18x18x128xf32>
    tpu.vector_store %arg10[%c0_9, %c0_10, %c0_11], %5 {strides = array<i32>} : memref<18x18x128xf32, #tpu.memory_space<vmem>>, vector<18x18x128xf32>,
    %c0_12 = arith.constant 0 : index
    %c0_13 = arith.constant 0 : index
    %7 = vector.load %arg3[%c0_12, %c0_13] : memref<1x128xf32, #tpu.memory_space<vmem>>, vector<1x128xf32>
    %c0_14 = arith.constant 0 : index
    %c0_15 = arith.constant 0 : index
    %8 = vector.load %arg5[%c0_14, %c0_15] : memref<1x128xf32, #tpu.memory_space<vmem>>, vector<1x128xf32>
    %c0_16 = arith.constant 0 : index
    %c0_17 = arith.constant 0 : index
    %9 = vector.load %arg7[%c0_16, %c0_17] : memref<1x128xf32, #tpu.memory_space<vmem>>, vector<1x128xf32>
    %cst_18 = arith.constant 0.000000e+00 : f32
    %10 = vector.broadcast %cst_18 : f32 to vector<128x128xf32>
    %c0_19 = arith.constant 0 : index
    %c0_20 = arith.constant 0 : index
    %c0_21 = arith.constant 0 : index
    %11 = vector.load %arg9[%c0_19, %c0_20, %c0_21] : memref<18x18x128xf32, #tpu.memory_space<vmem>>, vector<8x16x128xf32>
    %12 = vector.shape_cast %11 : vector<8x16x128xf32> to vector<128x128xf32>
    %c0_22 = arith.constant 0 : index
    %c0_23 = arith.constant 0 : index
    %c0_24 = arith.constant 0 : index
    %c0_25 = arith.constant 0 : index
    %13 = vector.load %arg2[%c0_22, %c0_23, %c0_24, %c0_25] : memref<3x3x128x128xf32, #tpu.memory_space<vmem>>, vector<1x1x128x128xf32>
    %14 = vector.shape_cast %13 : vector<1x1x128x128xf32> to vector<128x128xf32>
    %cst_26 = arith.constant dense<0.000000e+00> : vector<128x128xf32>
    %15 = tpu.matmul %12, %14, %cst_26 {dimension_numbers = #tpu.dot_dimension_numbers<[1], [0], [0], [1], [0, 0, 1, 1], [], []>} : vector<128x128xf32>, vector<128x128xf32>, vector<128x128xf32> -> vector<128x128xf32>
    %16 = arith.addf %10, %15 : vector<128x128xf32>
    %c0_27 = arith.constant 0 : index
    %c1_28 = arith.constant 1 : index
    %c0_29 = arith.constant 0 : index
    %17 = vector.load %arg9[%c0_27, %c1_28, %c0_29] : memref<18x18x128xf32, #tpu.memory_space<vmem>>, vector<8x16x128xf32>
    %18 = vector.shape_cast %17 : vector<8x16x128xf32> to vector<128x128xf32>
    %c0_30 = arith.constant 0 : index
    %c1_31 = arith.constant 1 : index
    %c0_32 = arith.constant 0 : index
    %c0_33 = arith.constant 0 : index
    %19 = vector.load %arg2[%c0_30, %c1_31, %c0_32, %c0_33] : memref<3x3x128x128xf32, #tpu.memory_space<vmem>>, vector<1x1x128x128xf32>
    %20 = vector.shape_cast %19 : vector<1x1x128x128xf32> to vector<128x128xf32>
    %cst_34 = arith.constant dense<0.000000e+00> : vector<128x128xf32>
    %21 = tpu.matmul %18, %20, %cst_34 {dimension_numbers = #tpu.dot_dimension_numbers<[1], [0], [0], [1], [0, 0, 1, 1], [], []>} : vector<128x128xf32>, vector<128x128xf32>, vector<128x128xf32> -> vector<128x128xf32>
    %22 = arith.addf %16, %21 : vector<128x128xf32>
    %c0_35 = arith.constant 0 : index
    %c2 = arith.constant 2 : index
    %c0_36 = arith.constant 0 : index
    %23 = vector.load %arg9[%c0_35, %c2, %c0_36] : memref<18x18x128xf32, #tpu.memory_space<vmem>>, vector<8x16x128xf32>
    %24 = vector.shape_cast %23 : vector<8x16x128xf32> to vector<128x128xf32>
    %c0_37 = arith.constant 0 : index
    %c2_38 = arith.constant 2 : index
    %c0_39 = arith.constant 0 : index
    %c0_40 = arith.constant 0 : index
    %25 = vector.load %arg2[%c0_37, %c2_38, %c0_39, %c0_40] : memref<3x3x128x128xf32, #tpu.memory_space<vmem>>, vector<1x1x128x128xf32>
    %26 = vector.shape_cast %25 : vector<1x1x128x128xf32> to vector<128x128xf32>
    %cst_41 = arith.constant dense<0.000000e+00> : vector<128x128xf32>
    %27 = tpu.matmul %24, %26, %cst_41 {dimension_numbers = #tpu.dot_dimension_numbers<[1], [0], [0], [1], [0, 0, 1, 1], [], []>} : vector<128x128xf32>, vector<128x128xf32>, vector<128x128xf32> -> vector<128x128xf32>
    %28 = arith.addf %22, %27 : vector<128x128xf32>
    %c1_42 = arith.constant 1 : index
    %c0_43 = arith.constant 0 : index
    %c0_44 = arith.constant 0 : index
    %29 = vector.load %arg9[%c1_42, %c0_43, %c0_44] : memref<18x18x128xf32, #tpu.memory_space<vmem>>, vector<8x16x128xf32>
    %30 = vector.shape_cast %29 : vector<8x16x128xf32> to vector<128x128xf32>
    %c1_45 = arith.constant 1 : index
    %c0_46 = arith.constant 0 : index
    %c0_47 = arith.constant 0 : index
    %c0_48 = arith.constant 0 : index
    %31 = vector.load %arg2[%c1_45, %c0_46, %c0_47, %c0_48] : memref<3x3x128x128xf32, #tpu.memory_space<vmem>>, vector<1x1x128x128xf32>
    %32 = vector.shape_cast %31 : vector<1x1x128x128xf32> to vector<128x128xf32>
    %cst_49 = arith.constant dense<0.000000e+00> : vector<128x128xf32>
    %33 = tpu.matmul %30, %32, %cst_49 {dimension_numbers = #tpu.dot_dimension_numbers<[1], [0], [0], [1], [0, 0, 1, 1], [], []>} : vector<128x128xf32>, vector<128x128xf32>, vector<128x128xf32> -> vector<128x128xf32>
    %34 = arith.addf %28, %33 : vector<128x128xf32>
    %c1_50 = arith.constant 1 : index
    %c1_51 = arith.constant 1 : index
    %c0_52 = arith.constant 0 : index
    %35 = vector.load %arg9[%c1_50, %c1_51, %c0_52] : memref<18x18x128xf32, #tpu.memory_space<vmem>>, vector<8x16x128xf32>
    %36 = vector.shape_cast %35 : vector<8x16x128xf32> to vector<128x128xf32>
    %c1_53 = arith.constant 1 : index
    %c1_54 = arith.constant 1 : index
    %c0_55 = arith.constant 0 : index
    %c0_56 = arith.constant 0 : index
    %37 = vector.load %arg2[%c1_53, %c1_54, %c0_55, %c0_56] : memref<3x3x128x128xf32, #tpu.memory_space<vmem>>, vector<1x1x128x128xf32>
    %38 = vector.shape_cast %37 : vector<1x1x128x128xf32> to vector<128x128xf32>
    %cst_57 = arith.constant dense<0.000000e+00> : vector<128x128xf32>
    %39 = tpu.matmul %36, %38, %cst_57 {dimension_numbers = #tpu.dot_dimension_numbers<[1], [0], [0], [1], [0, 0, 1, 1], [], []>} : vector<128x128xf32>, vector<128x128xf32>, vector<128x128xf32> -> vector<128x128xf32>
    %40 = arith.addf %34, %39 : vector<128x128xf32>
    %c1_58 = arith.constant 1 : index
    %c2_59 = arith.constant 2 : index
    %c0_60 = arith.constant 0 : index
    %41 = vector.load %arg9[%c1_58, %c2_59, %c0_60] : memref<18x18x128xf32, #tpu.memory_space<vmem>>, vector<8x16x128xf32>
    %42 = vector.shape_cast %41 : vector<8x16x128xf32> to vector<128x128xf32>
    %c1_61 = arith.constant 1 : index
    %c2_62 = arith.constant 2 : index
    %c0_63 = arith.constant 0 : index
    %c0_64 = arith.constant 0 : index
    %43 = vector.load %arg2[%c1_61, %c2_62, %c0_63, %c0_64] : memref<3x3x128x128xf32, #tpu.memory_space<vmem>>, vector<1x1x128x128xf32>
    %44 = vector.shape_cast %43 : vector<1x1x128x128xf32> to vector<128x128xf32>
    %cst_65 = arith.constant dense<0.000000e+00> : vector<128x128xf32>
    %45 = tpu.matmul %42, %44, %cst_65 {dimension_numbers = #tpu.dot_dimension_numbers<[1], [0], [0], [1], [0, 0, 1, 1], [], []>} : vector<128x128xf32>, vector<128x128xf32>, vector<128x128xf32> -> vector<128x128xf32>
    %46 = arith.addf %40, %45 : vector<128x128xf32>
    %c2_66 = arith.constant 2 : index
    %c0_67 = arith.constant 0 : index
    %c0_68 = arith.constant 0 : index
    %47 = vector.load %arg9[%c2_66, %c0_67, %c0_68] : memref<18x18x128xf32, #tpu.memory_space<vmem>>, vector<8x16x128xf32>
    %48 = vector.shape_cast %47 : vector<8x16x128xf32> to vector<128x128xf32>
    %c2_69 = arith.constant 2 : index
    %c0_70 = arith.constant 0 : index
    %c0_71 = arith.constant 0 : index
    %c0_72 = arith.constant 0 : index
    %49 = vector.load %arg2[%c2_69, %c0_70, %c0_71, %c0_72] : memref<3x3x128x128xf32, #tpu.memory_space<vmem>>, vector<1x1x128x128xf32>
    %50 = vector.shape_cast %49 : vector<1x1x128x128xf32> to vector<128x128xf32>
    %cst_73 = arith.constant dense<0.000000e+00> : vector<128x128xf32>
    %51 = tpu.matmul %48, %50, %cst_73 {dimension_numbers = #tpu.dot_dimension_numbers<[1], [0], [0], [1], [0, 0, 1, 1], [], []>} : vector<128x128xf32>, vector<128x128xf32>, vector<128x128xf32> -> vector<128x128xf32>
    %52 = arith.addf %46, %51 : vector<128x128xf32>
    %c2_74 = arith.constant 2 : index
    %c1_75 = arith.constant 1 : index
    %c0_76 = arith.constant 0 : index
    %53 = vector.load %arg9[%c2_74, %c1_75, %c0_76] : memref<18x18x128xf32, #tpu.memory_space<vmem>>, vector<8x16x128xf32>
    %54 = vector.shape_cast %53 : vector<8x16x128xf32> to vector<128x128xf32>
    %c2_77 = arith.constant 2 : index
    %c1_78 = arith.constant 1 : index
    %c0_79 = arith.constant 0 : index
    %c0_80 = arith.constant 0 : index
    %55 = vector.load %arg2[%c2_77, %c1_78, %c0_79, %c0_80] : memref<3x3x128x128xf32, #tpu.memory_space<vmem>>, vector<1x1x128x128xf32>
    %56 = vector.shape_cast %55 : vector<1x1x128x128xf32> to vector<128x128xf32>
    %cst_81 = arith.constant dense<0.000000e+00> : vector<128x128xf32>
    %57 = tpu.matmul %54, %56, %cst_81 {dimension_numbers = #tpu.dot_dimension_numbers<[1], [0], [0], [1], [0, 0, 1, 1], [], []>} : vector<128x128xf32>, vector<128x128xf32>, vector<128x128xf32> -> vector<128x128xf32>
    %58 = arith.addf %52, %57 : vector<128x128xf32>
    %c2_82 = arith.constant 2 : index
    %c2_83 = arith.constant 2 : index
    %c0_84 = arith.constant 0 : index
    %59 = vector.load %arg9[%c2_82, %c2_83, %c0_84] : memref<18x18x128xf32, #tpu.memory_space<vmem>>, vector<8x16x128xf32>
    %60 = vector.shape_cast %59 : vector<8x16x128xf32> to vector<128x128xf32>
    %c2_85 = arith.constant 2 : index
    %c2_86 = arith.constant 2 : index
    %c0_87 = arith.constant 0 : index
    %c0_88 = arith.constant 0 : index
    %61 = vector.load %arg2[%c2_85, %c2_86, %c0_87, %c0_88] : memref<3x3x128x128xf32, #tpu.memory_space<vmem>>, vector<1x1x128x128xf32>
    %62 = vector.shape_cast %61 : vector<1x1x128x128xf32> to vector<128x128xf32>
    %cst_89 = arith.constant dense<0.000000e+00> : vector<128x128xf32>
    %63 = tpu.matmul %60, %62, %cst_89 {dimension_numbers = #tpu.dot_dimension_numbers<[1], [0], [0], [1], [0, 0, 1, 1], [], []>} : vector<128x128xf32>, vector<128x128xf32>, vector<128x128xf32> -> vector<128x128xf32>
    %64 = arith.addf %58, %63 : vector<128x128xf32>
    %65 = vector.broadcast %7 : vector<1x128xf32> to vector<128x128xf32>
    %66 = arith.addf %64, %65 : vector<128x128xf32>
    %cst_90 = arith.constant 0.000000e+00 : f32
    %67 = vector.broadcast %cst_90 : f32 to vector<128x128xf32>
    %68 = arith.maximumf %66, %67 : vector<128x128xf32>
    %69 = vector.shape_cast %68 : vector<128x128xf32> to vector<8x16x128xf32>
    %c1_91 = arith.constant 1 : index
    %c1_92 = arith.constant 1 : index
    %c0_93 = arith.constant 0 : index
    %70 = vector.load %arg10[%c1_91, %c1_92, %c0_93] : memref<18x18x128xf32, #tpu.memory_space<vmem>>, vector<8x16x128xf32>
    tpu.vector_store %arg10[%c1_91, %c1_92, %c0_93], %69 {strides = array<i32>} : memref<18x18x128xf32, #tpu.memory_space<vmem>>, vector<8x16x128xf32>,
    %cst_94 = arith.constant 0.000000e+00 : f32
    %71 = vector.broadcast %cst_94 : f32 to vector<128x128xf32>
    %c8 = arith.constant 8 : index
    %c0_95 = arith.constant 0 : index
    %c0_96 = arith.constant 0 : index
    %72 = vector.load %arg9[%c8, %c0_95, %c0_96] : memref<18x18x128xf32, #tpu.memory_space<vmem>>, vector<8x16x128xf32>
    %73 = vector.shape_cast %72 : vector<8x16x128xf32> to vector<128x128xf32>
    %c0_97 = arith.constant 0 : index
    %c0_98 = arith.constant 0 : index
    %c0_99 = arith.constant 0 : index
    %c0_100 = arith.constant 0 : index
    %74 = vector.load %arg2[%c0_97, %c0_98, %c0_99, %c0_100] : memref<3x3x128x128xf32, #tpu.memory_space<vmem>>, vector<1x1x128x128xf32>
    %75 = vector.shape_cast %74 : vector<1x1x128x128xf32> to vector<128x128xf32>
    %cst_101 = arith.constant dense<0.000000e+00> : vector<128x128xf32>
    %76 = tpu.matmul %73, %75, %cst_101 {dimension_numbers = #tpu.dot_dimension_numbers<[1], [0], [0], [1], [0, 0, 1, 1], [], []>} : vector<128x128xf32>, vector<128x128xf32>, vector<128x128xf32> -> vector<128x128xf32>
    %77 = arith.addf %71, %76 : vector<128x128xf32>
    %c8_102 = arith.constant 8 : index
    %c1_103 = arith.constant 1 : index
    %c0_104 = arith.constant 0 : index
    %78 = vector.load %arg9[%c8_102, %c1_103, %c0_104] : memref<18x18x128xf32, #tpu.memory_space<vmem>>, vector<8x16x128xf32>
    %79 = vector.shape_cast %78 : vector<8x16x128xf32> to vector<128x128xf32>
    %c0_105 = arith.constant 0 : index
    %c1_106 = arith.constant 1 : index
    %c0_107 = arith.constant 0 : index
    %c0_108 = arith.constant 0 : index
    %80 = vector.load %arg2[%c0_105, %c1_106, %c0_107, %c0_108] : memref<3x3x128x128xf32, #tpu.memory_space<vmem>>, vector<1x1x128x128xf32>
    %81 = vector.shape_cast %80 : vector<1x1x128x128xf32> to vector<128x128xf32>
    %cst_109 = arith.constant dense<0.000000e+00> : vector<128x128xf32>
    %82 = tpu.matmul %79, %81, %cst_109 {dimension_numbers = #tpu.dot_dimension_numbers<[1], [0], [0], [1], [0, 0, 1, 1], [], []>} : vector<128x128xf32>, vector<128x128xf32>, vector<128x128xf32> -> vector<128x128xf32>
    %83 = arith.addf %77, %82 : vector<128x128xf32>
    %c8_110 = arith.constant 8 : index
    %c2_111 = arith.constant 2 : index
    %c0_112 = arith.constant 0 : index
    %84 = vector.load %arg9[%c8_110, %c2_111, %c0_112] : memref<18x18x128xf32, #tpu.memory_space<vmem>>, vector<8x16x128xf32>
    %85 = vector.shape_cast %84 : vector<8x16x128xf32> to vector<128x128xf32>
    %c0_113 = arith.constant 0 : index
    %c2_114 = arith.constant 2 : index
    %c0_115 = arith.constant 0 : index
    %c0_116 = arith.constant 0 : index
    %86 = vector.load %arg2[%c0_113, %c2_114, %c0_115, %c0_116] : memref<3x3x128x128xf32, #tpu.memory_space<vmem>>, vector<1x1x128x128xf32>
    %87 = vector.shape_cast %86 : vector<1x1x128x128xf32> to vector<128x128xf32>
    %cst_117 = arith.constant dense<0.000000e+00> : vector<128x128xf32>
    %88 = tpu.matmul %85, %87, %cst_117 {dimension_numbers = #tpu.dot_dimension_numbers<[1], [0], [0], [1], [0, 0, 1, 1], [], []>} : vector<128x128xf32>, vector<128x128xf32>, vector<128x128xf32> -> vector<128x128xf32>
    %89 = arith.addf %83, %88 : vector<128x128xf32>
    %c9 = arith.constant 9 : index
    %c0_118 = arith.constant 0 : index
    %c0_119 = arith.constant 0 : index
    %90 = vector.load %arg9[%c9, %c0_118, %c0_119] : memref<18x18x128xf32, #tpu.memory_space<vmem>>, vector<8x16x128xf32>
    %91 = vector.shape_cast %90 : vector<8x16x128xf32> to vector<128x128xf32>
    %c1_120 = arith.constant 1 : index
    %c0_121 = arith.constant 0 : index
    %c0_122 = arith.constant 0 : index
    %c0_123 = arith.constant 0 : index
    %92 = vector.load %arg2[%c1_120, %c0_121, %c0_122, %c0_123] : memref<3x3x128x128xf32, #tpu.memory_space<vmem>>, vector<1x1x128x128xf32>
    %93 = vector.shape_cast %92 : vector<1x1x128x128xf32> to vector<128x128xf32>
    %cst_124 = arith.constant dense<0.000000e+00> : vector<128x128xf32>
    %94 = tpu.matmul %91, %93, %cst_124 {dimension_numbers = #tpu.dot_dimension_numbers<[1], [0], [0], [1], [0, 0, 1, 1], [], []>} : vector<128x128xf32>, vector<128x128xf32>, vector<128x128xf32> -> vector<128x128xf32>
    %95 = arith.addf %89, %94 : vector<128x128xf32>
    %c9_125 = arith.constant 9 : index
    %c1_126 = arith.constant 1 : index
    %c0_127 = arith.constant 0 : index
    %96 = vector.load %arg9[%c9_125, %c1_126, %c0_127] : memref<18x18x128xf32, #tpu.memory_space<vmem>>, vector<8x16x128xf32>
    %97 = vector.shape_cast %96 : vector<8x16x128xf32> to vector<128x128xf32>
    %c1_128 = arith.constant 1 : index
    %c1_129 = arith.constant 1 : index
    %c0_130 = arith.constant 0 : index
    %c0_131 = arith.constant 0 : index
    %98 = vector.load %arg2[%c1_128, %c1_129, %c0_130, %c0_131] : memref<3x3x128x128xf32, #tpu.memory_space<vmem>>, vector<1x1x128x128xf32>
    %99 = vector.shape_cast %98 : vector<1x1x128x128xf32> to vector<128x128xf32>
    %cst_132 = arith.constant dense<0.000000e+00> : vector<128x128xf32>
    %100 = tpu.matmul %97, %99, %cst_132 {dimension_numbers = #tpu.dot_dimension_numbers<[1], [0], [0], [1], [0, 0, 1, 1], [], []>} : vector<128x128xf32>, vector<128x128xf32>, vector<128x128xf32> -> vector<128x128xf32>
    %101 = arith.addf %95, %100 : vector<128x128xf32>
    %c9_133 = arith.constant 9 : index
    %c2_134 = arith.constant 2 : index
    %c0_135 = arith.constant 0 : index
    %102 = vector.load %arg9[%c9_133, %c2_134, %c0_135] : memref<18x18x128xf32, #tpu.memory_space<vmem>>, vector<8x16x128xf32>
    %103 = vector.shape_cast %102 : vector<8x16x128xf32> to vector<128x128xf32>
    %c1_136 = arith.constant 1 : index
    %c2_137 = arith.constant 2 : index
    %c0_138 = arith.constant 0 : index
    %c0_139 = arith.constant 0 : index
    %104 = vector.load %arg2[%c1_136, %c2_137, %c0_138, %c0_139] : memref<3x3x128x128xf32, #tpu.memory_space<vmem>>, vector<1x1x128x128xf32>
    %105 = vector.shape_cast %104 : vector<1x1x128x128xf32> to vector<128x128xf32>
    %cst_140 = arith.constant dense<0.000000e+00> : vector<128x128xf32>
    %106 = tpu.matmul %103, %105, %cst_140 {dimension_numbers = #tpu.dot_dimension_numbers<[1], [0], [0], [1], [0, 0, 1, 1], [], []>} : vector<128x128xf32>, vector<128x128xf32>, vector<128x128xf32> -> vector<128x128xf32>
    %107 = arith.addf %101, %106 : vector<128x128xf32>
    %c10 = arith.constant 10 : index
    %c0_141 = arith.constant 0 : index
    %c0_142 = arith.constant 0 : index
    %108 = vector.load %arg9[%c10, %c0_141, %c0_142] : memref<18x18x128xf32, #tpu.memory_space<vmem>>, vector<8x16x128xf32>
    %109 = vector.shape_cast %108 : vector<8x16x128xf32> to vector<128x128xf32>
    %c2_143 = arith.constant 2 : index
    %c0_144 = arith.constant 0 : index
    %c0_145 = arith.constant 0 : index
    %c0_146 = arith.constant 0 : index
    %110 = vector.load %arg2[%c2_143, %c0_144, %c0_145, %c0_146] : memref<3x3x128x128xf32, #tpu.memory_space<vmem>>, vector<1x1x128x128xf32>
    %111 = vector.shape_cast %110 : vector<1x1x128x128xf32> to vector<128x128xf32>
    %cst_147 = arith.constant dense<0.000000e+00> : vector<128x128xf32>
    %112 = tpu.matmul %109, %111, %cst_147 {dimension_numbers = #tpu.dot_dimension_numbers<[1], [0], [0], [1], [0, 0, 1, 1], [], []>} : vector<128x128xf32>, vector<128x128xf32>, vector<128x128xf32> -> vector<128x128xf32>
    %113 = arith.addf %107, %112 : vector<128x128xf32>
    %c10_148 = arith.constant 10 : index
    %c1_149 = arith.constant 1 : index
    %c0_150 = arith.constant 0 : index
    %114 = vector.load %arg9[%c10_148, %c1_149, %c0_150] : memref<18x18x128xf32, #tpu.memory_space<vmem>>, vector<8x16x128xf32>
    %115 = vector.shape_cast %114 : vector<8x16x128xf32> to vector<128x128xf32>
    %c2_151 = arith.constant 2 : index
    %c1_152 = arith.constant 1 : index
    %c0_153 = arith.constant 0 : index
    %c0_154 = arith.constant 0 : index
    %116 = vector.load %arg2[%c2_151, %c1_152, %c0_153, %c0_154] : memref<3x3x128x128xf32, #tpu.memory_space<vmem>>, vector<1x1x128x128xf32>
    %117 = vector.shape_cast %116 : vector<1x1x128x128xf32> to vector<128x128xf32>
    %cst_155 = arith.constant dense<0.000000e+00> : vector<128x128xf32>
    %118 = tpu.matmul %115, %117, %cst_155 {dimension_numbers = #tpu.dot_dimension_numbers<[1], [0], [0], [1], [0, 0, 1, 1], [], []>} : vector<128x128xf32>, vector<128x128xf32>, vector<128x128xf32> -> vector<128x128xf32>
    %119 = arith.addf %113, %118 : vector<128x128xf32>
    %c10_156 = arith.constant 10 : index
    %c2_157 = arith.constant 2 : index
    %c0_158 = arith.constant 0 : index
    %120 = vector.load %arg9[%c10_156, %c2_157, %c0_158] : memref<18x18x128xf32, #tpu.memory_space<vmem>>, vector<8x16x128xf32>
    %121 = vector.shape_cast %120 : vector<8x16x128xf32> to vector<128x128xf32>
    %c2_159 = arith.constant 2 : index
    %c2_160 = arith.constant 2 : index
    %c0_161 = arith.constant 0 : index
    %c0_162 = arith.constant 0 : index
    %122 = vector.load %arg2[%c2_159, %c2_160, %c0_161, %c0_162] : memref<3x3x128x128xf32, #tpu.memory_space<vmem>>, vector<1x1x128x128xf32>
    %123 = vector.shape_cast %122 : vector<1x1x128x128xf32> to vector<128x128xf32>
    %cst_163 = arith.constant dense<0.000000e+00> : vector<128x128xf32>
    %124 = tpu.matmul %121, %123, %cst_163 {dimension_numbers = #tpu.dot_dimension_numbers<[1], [0], [0], [1], [0, 0, 1, 1], [], []>} : vector<128x128xf32>, vector<128x128xf32>, vector<128x128xf32> -> vector<128x128xf32>
    %125 = arith.addf %119, %124 : vector<128x128xf32>
    %126 = vector.broadcast %7 : vector<1x128xf32> to vector<128x128xf32>
    %127 = arith.addf %125, %126 : vector<128x128xf32>
    %cst_164 = arith.constant 0.000000e+00 : f32
    %128 = vector.broadcast %cst_164 : f32 to vector<128x128xf32>
    %129 = arith.maximumf %127, %128 : vector<128x128xf32>
    %130 = vector.shape_cast %129 : vector<128x128xf32> to vector<8x16x128xf32>
    %c9_165 = arith.constant 9 : index
    %c1_166 = arith.constant 1 : index
    %c0_167 = arith.constant 0 : index
    %131 = vector.load %arg10[%c9_165, %c1_166, %c0_167] : memref<18x18x128xf32, #tpu.memory_space<vmem>>, vector<8x16x128xf32>
    tpu.vector_store %arg10[%c9_165, %c1_166, %c0_167], %130 {strides = array<i32>} : memref<18x18x128xf32, #tpu.memory_space<vmem>>, vector<8x16x128xf32>,
    %cst_168 = arith.constant 0.000000e+00 : f32
    %132 = vector.broadcast %cst_168 : f32 to vector<128x128xf32>
    %c0_169 = arith.constant 0 : index
    %c0_170 = arith.constant 0 : index
    %c0_171 = arith.constant 0 : index
    %133 = vector.load %arg10[%c0_169, %c0_170, %c0_171] : memref<18x18x128xf32, #tpu.memory_space<vmem>>, vector<8x16x128xf32>
    %134 = vector.shape_cast %133 : vector<8x16x128xf32> to vector<128x128xf32>
    %c0_172 = arith.constant 0 : index
    %c0_173 = arith.constant 0 : index
    %c0_174 = arith.constant 0 : index
    %c0_175 = arith.constant 0 : index
    %135 = vector.load %arg4[%c0_172, %c0_173, %c0_174, %c0_175] : memref<3x3x128x128xf32, #tpu.memory_space<vmem>>, vector<1x1x128x128xf32>
    %136 = vector.shape_cast %135 : vector<1x1x128x128xf32> to vector<128x128xf32>
    %cst_176 = arith.constant dense<0.000000e+00> : vector<128x128xf32>
    %137 = tpu.matmul %134, %136, %cst_176 {dimension_numbers = #tpu.dot_dimension_numbers<[1], [0], [0], [1], [0, 0, 1, 1], [], []>} : vector<128x128xf32>, vector<128x128xf32>, vector<128x128xf32> -> vector<128x128xf32>
    %138 = arith.addf %132, %137 : vector<128x128xf32>
    %c0_177 = arith.constant 0 : index
    %c1_178 = arith.constant 1 : index
    %c0_179 = arith.constant 0 : index
    %139 = vector.load %arg10[%c0_177, %c1_178, %c0_179] : memref<18x18x128xf32, #tpu.memory_space<vmem>>, vector<8x16x128xf32>
    %140 = vector.shape_cast %139 : vector<8x16x128xf32> to vector<128x128xf32>
    %c0_180 = arith.constant 0 : index
    %c1_181 = arith.constant 1 : index
    %c0_182 = arith.constant 0 : index
    %c0_183 = arith.constant 0 : index
    %141 = vector.load %arg4[%c0_180, %c1_181, %c0_182, %c0_183] : memref<3x3x128x128xf32, #tpu.memory_space<vmem>>, vector<1x1x128x128xf32>
    %142 = vector.shape_cast %141 : vector<1x1x128x128xf32> to vector<128x128xf32>
    %cst_184 = arith.constant dense<0.000000e+00> : vector<128x128xf32>
    %143 = tpu.matmul %140, %142, %cst_184 {dimension_numbers = #tpu.dot_dimension_numbers<[1], [0], [0], [1], [0, 0, 1, 1], [], []>} : vector<128x128xf32>, vector<128x128xf32>, vector<128x128xf32> -> vector<128x128xf32>
    %144 = arith.addf %138, %143 : vector<128x128xf32>
    %c0_185 = arith.constant 0 : index
    %c2_186 = arith.constant 2 : index
    %c0_187 = arith.constant 0 : index
    %145 = vector.load %arg10[%c0_185, %c2_186, %c0_187] : memref<18x18x128xf32, #tpu.memory_space<vmem>>, vector<8x16x128xf32>
    %146 = vector.shape_cast %145 : vector<8x16x128xf32> to vector<128x128xf32>
    %c0_188 = arith.constant 0 : index
    %c2_189 = arith.constant 2 : index
    %c0_190 = arith.constant 0 : index
    %c0_191 = arith.constant 0 : index
    %147 = vector.load %arg4[%c0_188, %c2_189, %c0_190, %c0_191] : memref<3x3x128x128xf32, #tpu.memory_space<vmem>>, vector<1x1x128x128xf32>
    %148 = vector.shape_cast %147 : vector<1x1x128x128xf32> to vector<128x128xf32>
    %cst_192 = arith.constant dense<0.000000e+00> : vector<128x128xf32>
    %149 = tpu.matmul %146, %148, %cst_192 {dimension_numbers = #tpu.dot_dimension_numbers<[1], [0], [0], [1], [0, 0, 1, 1], [], []>} : vector<128x128xf32>, vector<128x128xf32>, vector<128x128xf32> -> vector<128x128xf32>
    %150 = arith.addf %144, %149 : vector<128x128xf32>
    %c1_193 = arith.constant 1 : index
    %c0_194 = arith.constant 0 : index
    %c0_195 = arith.constant 0 : index
    %151 = vector.load %arg10[%c1_193, %c0_194, %c0_195] : memref<18x18x128xf32, #tpu.memory_space<vmem>>, vector<8x16x128xf32>
    %152 = vector.shape_cast %151 : vector<8x16x128xf32> to vector<128x128xf32>
    %c1_196 = arith.constant 1 : index
    %c0_197 = arith.constant 0 : index
    %c0_198 = arith.constant 0 : index
    %c0_199 = arith.constant 0 : index
    %153 = vector.load %arg4[%c1_196, %c0_197, %c0_198, %c0_199] : memref<3x3x128x128xf32, #tpu.memory_space<vmem>>, vector<1x1x128x128xf32>
    %154 = vector.shape_cast %153 : vector<1x1x128x128xf32> to vector<128x128xf32>
    %cst_200 = arith.constant dense<0.000000e+00> : vector<128x128xf32>
    %155 = tpu.matmul %152, %154, %cst_200 {dimension_numbers = #tpu.dot_dimension_numbers<[1], [0], [0], [1], [0, 0, 1, 1], [], []>} : vector<128x128xf32>, vector<128x128xf32>, vector<128x128xf32> -> vector<128x128xf32>
    %156 = arith.addf %150, %155 : vector<128x128xf32>
    %c1_201 = arith.constant 1 : index
    %c1_202 = arith.constant 1 : index
    %c0_203 = arith.constant 0 : index
    %157 = vector.load %arg10[%c1_201, %c1_202, %c0_203] : memref<18x18x128xf32, #tpu.memory_space<vmem>>, vector<8x16x128xf32>
    %158 = vector.shape_cast %157 : vector<8x16x128xf32> to vector<128x128xf32>
    %c1_204 = arith.constant 1 : index
    %c1_205 = arith.constant 1 : index
    %c0_206 = arith.constant 0 : index
    %c0_207 = arith.constant 0 : index
    %159 = vector.load %arg4[%c1_204, %c1_205, %c0_206, %c0_207] : memref<3x3x128x128xf32, #tpu.memory_space<vmem>>, vector<1x1x128x128xf32>
    %160 = vector.shape_cast %159 : vector<1x1x128x128xf32> to vector<128x128xf32>
    %cst_208 = arith.constant dense<0.000000e+00> : vector<128x128xf32>
    %161 = tpu.matmul %158, %160, %cst_208 {dimension_numbers = #tpu.dot_dimension_numbers<[1], [0], [0], [1], [0, 0, 1, 1], [], []>} : vector<128x128xf32>, vector<128x128xf32>, vector<128x128xf32> -> vector<128x128xf32>
    %162 = arith.addf %156, %161 : vector<128x128xf32>
    %c1_209 = arith.constant 1 : index
    %c2_210 = arith.constant 2 : index
    %c0_211 = arith.constant 0 : index
    %163 = vector.load %arg10[%c1_209, %c2_210, %c0_211] : memref<18x18x128xf32, #tpu.memory_space<vmem>>, vector<8x16x128xf32>
    %164 = vector.shape_cast %163 : vector<8x16x128xf32> to vector<128x128xf32>
    %c1_212 = arith.constant 1 : index
    %c2_213 = arith.constant 2 : index
    %c0_214 = arith.constant 0 : index
    %c0_215 = arith.constant 0 : index
    %165 = vector.load %arg4[%c1_212, %c2_213, %c0_214, %c0_215] : memref<3x3x128x128xf32, #tpu.memory_space<vmem>>, vector<1x1x128x128xf32>
    %166 = vector.shape_cast %165 : vector<1x1x128x128xf32> to vector<128x128xf32>
    %cst_216 = arith.constant dense<0.000000e+00> : vector<128x128xf32>
    %167 = tpu.matmul %164, %166, %cst_216 {dimension_numbers = #tpu.dot_dimension_numbers<[1], [0], [0], [1], [0, 0, 1, 1], [], []>} : vector<128x128xf32>, vector<128x128xf32>, vector<128x128xf32> -> vector<128x128xf32>
    %168 = arith.addf %162, %167 : vector<128x128xf32>
    %c2_217 = arith.constant 2 : index
    %c0_218 = arith.constant 0 : index
    %c0_219 = arith.constant 0 : index
    %169 = vector.load %arg10[%c2_217, %c0_218, %c0_219] : memref<18x18x128xf32, #tpu.memory_space<vmem>>, vector<8x16x128xf32>
    %170 = vector.shape_cast %169 : vector<8x16x128xf32> to vector<128x128xf32>
    %c2_220 = arith.constant 2 : index
    %c0_221 = arith.constant 0 : index
    %c0_222 = arith.constant 0 : index
    %c0_223 = arith.constant 0 : index
    %171 = vector.load %arg4[%c2_220, %c0_221, %c0_222, %c0_223] : memref<3x3x128x128xf32, #tpu.memory_space<vmem>>, vector<1x1x128x128xf32>
    %172 = vector.shape_cast %171 : vector<1x1x128x128xf32> to vector<128x128xf32>
    %cst_224 = arith.constant dense<0.000000e+00> : vector<128x128xf32>
    %173 = tpu.matmul %170, %172, %cst_224 {dimension_numbers = #tpu.dot_dimension_numbers<[1], [0], [0], [1], [0, 0, 1, 1], [], []>} : vector<128x128xf32>, vector<128x128xf32>, vector<128x128xf32> -> vector<128x128xf32>
    %174 = arith.addf %168, %173 : vector<128x128xf32>
    %c2_225 = arith.constant 2 : index
    %c1_226 = arith.constant 1 : index
    %c0_227 = arith.constant 0 : index
    %175 = vector.load %arg10[%c2_225, %c1_226, %c0_227] : memref<18x18x128xf32, #tpu.memory_space<vmem>>, vector<8x16x128xf32>
    %176 = vector.shape_cast %175 : vector<8x16x128xf32> to vector<128x128xf32>
    %c2_228 = arith.constant 2 : index
    %c1_229 = arith.constant 1 : index
    %c0_230 = arith.constant 0 : index
    %c0_231 = arith.constant 0 : index
    %177 = vector.load %arg4[%c2_228, %c1_229, %c0_230, %c0_231] : memref<3x3x128x128xf32, #tpu.memory_space<vmem>>, vector<1x1x128x128xf32>
    %178 = vector.shape_cast %177 : vector<1x1x128x128xf32> to vector<128x128xf32>
    %cst_232 = arith.constant dense<0.000000e+00> : vector<128x128xf32>
    %179 = tpu.matmul %176, %178, %cst_232 {dimension_numbers = #tpu.dot_dimension_numbers<[1], [0], [0], [1], [0, 0, 1, 1], [], []>} : vector<128x128xf32>, vector<128x128xf32>, vector<128x128xf32> -> vector<128x128xf32>
    %180 = arith.addf %174, %179 : vector<128x128xf32>
    %c2_233 = arith.constant 2 : index
    %c2_234 = arith.constant 2 : index
    %c0_235 = arith.constant 0 : index
    %181 = vector.load %arg10[%c2_233, %c2_234, %c0_235] : memref<18x18x128xf32, #tpu.memory_space<vmem>>, vector<8x16x128xf32>
    %182 = vector.shape_cast %181 : vector<8x16x128xf32> to vector<128x128xf32>
    %c2_236 = arith.constant 2 : index
    %c2_237 = arith.constant 2 : index
    %c0_238 = arith.constant 0 : index
    %c0_239 = arith.constant 0 : index
    %183 = vector.load %arg4[%c2_236, %c2_237, %c0_238, %c0_239] : memref<3x3x128x128xf32, #tpu.memory_space<vmem>>, vector<1x1x128x128xf32>
    %184 = vector.shape_cast %183 : vector<1x1x128x128xf32> to vector<128x128xf32>
    %cst_240 = arith.constant dense<0.000000e+00> : vector<128x128xf32>
    %185 = tpu.matmul %182, %184, %cst_240 {dimension_numbers = #tpu.dot_dimension_numbers<[1], [0], [0], [1], [0, 0, 1, 1], [], []>} : vector<128x128xf32>, vector<128x128xf32>, vector<128x128xf32> -> vector<128x128xf32>
    %186 = arith.addf %180, %185 : vector<128x128xf32>
    %187 = vector.broadcast %8 : vector<1x128xf32> to vector<128x128xf32>
    %188 = arith.addf %186, %187 : vector<128x128xf32>
    %cst_241 = arith.constant 0.000000e+00 : f32
    %189 = vector.broadcast %cst_241 : f32 to vector<128x128xf32>
    %190 = arith.maximumf %188, %189 : vector<128x128xf32>
    %c1_242 = arith.constant 1 : index
    %c1_243 = arith.constant 1 : index
    %c0_244 = arith.constant 0 : index
    %191 = vector.load %arg9[%c1_242, %c1_243, %c0_244] : memref<18x18x128xf32, #tpu.memory_space<vmem>>, vector<8x16x128xf32>
    %192 = vector.shape_cast %191 : vector<8x16x128xf32> to vector<128x128xf32>
    %c0_245 = arith.constant 0 : index
    %c0_246 = arith.constant 0 : index
    %193 = vector.load %arg6[%c0_245, %c0_246] : memref<128x128xf32, #tpu.memory_space<vmem>>, vector<128x128xf32>
    %cst_247 = arith.constant dense<0.000000e+00> : vector<128x128xf32>
    %194 = tpu.matmul %192, %193, %cst_247 {dimension_numbers = #tpu.dot_dimension_numbers<[1], [0], [0], [1], [0, 0, 1, 1], [], []>} : vector<128x128xf32>, vector<128x128xf32>, vector<128x128xf32> -> vector<128x128xf32>
    %195 = vector.broadcast %9 : vector<1x128xf32> to vector<128x128xf32>
    %196 = arith.addf %194, %195 : vector<128x128xf32>
    %197 = arith.addf %190, %196 : vector<128x128xf32>
    %198 = vector.shape_cast %197 : vector<128x128xf32> to vector<8x16x128xf32>
    %c0_248 = arith.constant 0 : index
    %c0_249 = arith.constant 0 : index
    %c0_250 = arith.constant 0 : index
    %c0_251 = arith.constant 0 : index
    %199 = vector.load %arg8[%c0_248, %c0_249, %c0_250, %c0_251] : memref<1x16x16x128xf32, #tpu.memory_space<vmem>>, vector<1x8x16x128xf32>
    %200 = vector.shape_cast %199 : vector<1x8x16x128xf32> to vector<8x16x128xf32>
    %201 = vector.shape_cast %198 : vector<8x16x128xf32> to vector<1x8x16x128xf32>
    tpu.vector_store %arg8[%c0_248, %c0_249, %c0_250, %c0_251], %201 {strides = array<i32>} : memref<1x16x16x128xf32, #tpu.memory_space<vmem>>, vector<1x8x16x128xf32>,
    %cst_252 = arith.constant 0.000000e+00 : f32
    %202 = vector.broadcast %cst_252 : f32 to vector<128x128xf32>
    %c8_253 = arith.constant 8 : index
    %c0_254 = arith.constant 0 : index
    %c0_255 = arith.constant 0 : index
    %203 = vector.load %arg10[%c8_253, %c0_254, %c0_255] : memref<18x18x128xf32, #tpu.memory_space<vmem>>, vector<8x16x128xf32>
    %204 = vector.shape_cast %203 : vector<8x16x128xf32> to vector<128x128xf32>
    %c0_256 = arith.constant 0 : index
    %c0_257 = arith.constant 0 : index
    %c0_258 = arith.constant 0 : index
    %c0_259 = arith.constant 0 : index
    %205 = vector.load %arg4[%c0_256, %c0_257, %c0_258, %c0_259] : memref<3x3x128x128xf32, #tpu.memory_space<vmem>>, vector<1x1x128x128xf32>
    %206 = vector.shape_cast %205 : vector<1x1x128x128xf32> to vector<128x128xf32>
    %cst_260 = arith.constant dense<0.000000e+00> : vector<128x128xf32>
    %207 = tpu.matmul %204, %206, %cst_260 {dimension_numbers = #tpu.dot_dimension_numbers<[1], [0], [0], [1], [0, 0, 1, 1], [], []>} : vector<128x128xf32>, vector<128x128xf32>, vector<128x128xf32> -> vector<128x128xf32>
    %208 = arith.addf %202, %207 : vector<128x128xf32>
    %c8_261 = arith.constant 8 : index
    %c1_262 = arith.constant 1 : index
    %c0_263 = arith.constant 0 : index
    %209 = vector.load %arg10[%c8_261, %c1_262, %c0_263] : memref<18x18x128xf32, #tpu.memory_space<vmem>>, vector<8x16x128xf32>
    %210 = vector.shape_cast %209 : vector<8x16x128xf32> to vector<128x128xf32>
    %c0_264 = arith.constant 0 : index
    %c1_265 = arith.constant 1 : index
    %c0_266 = arith.constant 0 : index
    %c0_267 = arith.constant 0 : index
    %211 = vector.load %arg4[%c0_264, %c1_265, %c0_266, %c0_267] : memref<3x3x128x128xf32, #tpu.memory_space<vmem>>, vector<1x1x128x128xf32>
    %212 = vector.shape_cast %211 : vector<1x1x128x128xf32> to vector<128x128xf32>
    %cst_268 = arith.constant dense<0.000000e+00> : vector<128x128xf32>
    %213 = tpu.matmul %210, %212, %cst_268 {dimension_numbers = #tpu.dot_dimension_numbers<[1], [0], [0], [1], [0, 0, 1, 1], [], []>} : vector<128x128xf32>, vector<128x128xf32>, vector<128x128xf32> -> vector<128x128xf32>
    %214 = arith.addf %208, %213 : vector<128x128xf32>
    %c8_269 = arith.constant 8 : index
    %c2_270 = arith.constant 2 : index
    %c0_271 = arith.constant 0 : index
    %215 = vector.load %arg10[%c8_269, %c2_270, %c0_271] : memref<18x18x128xf32, #tpu.memory_space<vmem>>, vector<8x16x128xf32>
    %216 = vector.shape_cast %215 : vector<8x16x128xf32> to vector<128x128xf32>
    %c0_272 = arith.constant 0 : index
    %c2_273 = arith.constant 2 : index
    %c0_274 = arith.constant 0 : index
    %c0_275 = arith.constant 0 : index
    %217 = vector.load %arg4[%c0_272, %c2_273, %c0_274, %c0_275] : memref<3x3x128x128xf32, #tpu.memory_space<vmem>>, vector<1x1x128x128xf32>
    %218 = vector.shape_cast %217 : vector<1x1x128x128xf32> to vector<128x128xf32>
    %cst_276 = arith.constant dense<0.000000e+00> : vector<128x128xf32>
    %219 = tpu.matmul %216, %218, %cst_276 {dimension_numbers = #tpu.dot_dimension_numbers<[1], [0], [0], [1], [0, 0, 1, 1], [], []>} : vector<128x128xf32>, vector<128x128xf32>, vector<128x128xf32> -> vector<128x128xf32>
    %220 = arith.addf %214, %219 : vector<128x128xf32>
    %c9_277 = arith.constant 9 : index
    %c0_278 = arith.constant 0 : index
    %c0_279 = arith.constant 0 : index
    %221 = vector.load %arg10[%c9_277, %c0_278, %c0_279] : memref<18x18x128xf32, #tpu.memory_space<vmem>>, vector<8x16x128xf32>
    %222 = vector.shape_cast %221 : vector<8x16x128xf32> to vector<128x128xf32>
    %c1_280 = arith.constant 1 : index
    %c0_281 = arith.constant 0 : index
    %c0_282 = arith.constant 0 : index
    %c0_283 = arith.constant 0 : index
    %223 = vector.load %arg4[%c1_280, %c0_281, %c0_282, %c0_283] : memref<3x3x128x128xf32, #tpu.memory_space<vmem>>, vector<1x1x128x128xf32>
    %224 = vector.shape_cast %223 : vector<1x1x128x128xf32> to vector<128x128xf32>
    %cst_284 = arith.constant dense<0.000000e+00> : vector<128x128xf32>
    %225 = tpu.matmul %222, %224, %cst_284 {dimension_numbers = #tpu.dot_dimension_numbers<[1], [0], [0], [1], [0, 0, 1, 1], [], []>} : vector<128x128xf32>, vector<128x128xf32>, vector<128x128xf32> -> vector<128x128xf32>
    %226 = arith.addf %220, %225 : vector<128x128xf32>
    %c9_285 = arith.constant 9 : index
    %c1_286 = arith.constant 1 : index
    %c0_287 = arith.constant 0 : index
    %227 = vector.load %arg10[%c9_285, %c1_286, %c0_287] : memref<18x18x128xf32, #tpu.memory_space<vmem>>, vector<8x16x128xf32>
    %228 = vector.shape_cast %227 : vector<8x16x128xf32> to vector<128x128xf32>
    %c1_288 = arith.constant 1 : index
    %c1_289 = arith.constant 1 : index
    %c0_290 = arith.constant 0 : index
    %c0_291 = arith.constant 0 : index
    %229 = vector.load %arg4[%c1_288, %c1_289, %c0_290, %c0_291] : memref<3x3x128x128xf32, #tpu.memory_space<vmem>>, vector<1x1x128x128xf32>
    %230 = vector.shape_cast %229 : vector<1x1x128x128xf32> to vector<128x128xf32>
    %cst_292 = arith.constant dense<0.000000e+00> : vector<128x128xf32>
    %231 = tpu.matmul %228, %230, %cst_292 {dimension_numbers = #tpu.dot_dimension_numbers<[1], [0], [0], [1], [0, 0, 1, 1], [], []>} : vector<128x128xf32>, vector<128x128xf32>, vector<128x128xf32> -> vector<128x128xf32>
    %232 = arith.addf %226, %231 : vector<128x128xf32>
    %c9_293 = arith.constant 9 : index
    %c2_294 = arith.constant 2 : index
    %c0_295 = arith.constant 0 : index
    %233 = vector.load %arg10[%c9_293, %c2_294, %c0_295] : memref<18x18x128xf32, #tpu.memory_space<vmem>>, vector<8x16x128xf32>
    %234 = vector.shape_cast %233 : vector<8x16x128xf32> to vector<128x128xf32>
    %c1_296 = arith.constant 1 : index
    %c2_297 = arith.constant 2 : index
    %c0_298 = arith.constant 0 : index
    %c0_299 = arith.constant 0 : index
    %235 = vector.load %arg4[%c1_296, %c2_297, %c0_298, %c0_299] : memref<3x3x128x128xf32, #tpu.memory_space<vmem>>, vector<1x1x128x128xf32>
    %236 = vector.shape_cast %235 : vector<1x1x128x128xf32> to vector<128x128xf32>
    %cst_300 = arith.constant dense<0.000000e+00> : vector<128x128xf32>
    %237 = tpu.matmul %234, %236, %cst_300 {dimension_numbers = #tpu.dot_dimension_numbers<[1], [0], [0], [1], [0, 0, 1, 1], [], []>} : vector<128x128xf32>, vector<128x128xf32>, vector<128x128xf32> -> vector<128x128xf32>
    %238 = arith.addf %232, %237 : vector<128x128xf32>
    %c10_301 = arith.constant 10 : index
    %c0_302 = arith.constant 0 : index
    %c0_303 = arith.constant 0 : index
    %239 = vector.load %arg10[%c10_301, %c0_302, %c0_303] : memref<18x18x128xf32, #tpu.memory_space<vmem>>, vector<8x16x128xf32>
    %240 = vector.shape_cast %239 : vector<8x16x128xf32> to vector<128x128xf32>
    %c2_304 = arith.constant 2 : index
    %c0_305 = arith.constant 0 : index
    %c0_306 = arith.constant 0 : index
    %c0_307 = arith.constant 0 : index
    %241 = vector.load %arg4[%c2_304, %c0_305, %c0_306, %c0_307] : memref<3x3x128x128xf32, #tpu.memory_space<vmem>>, vector<1x1x128x128xf32>
    %242 = vector.shape_cast %241 : vector<1x1x128x128xf32> to vector<128x128xf32>
    %cst_308 = arith.constant dense<0.000000e+00> : vector<128x128xf32>
    %243 = tpu.matmul %240, %242, %cst_308 {dimension_numbers = #tpu.dot_dimension_numbers<[1], [0], [0], [1], [0, 0, 1, 1], [], []>} : vector<128x128xf32>, vector<128x128xf32>, vector<128x128xf32> -> vector<128x128xf32>
    %244 = arith.addf %238, %243 : vector<128x128xf32>
    %c10_309 = arith.constant 10 : index
    %c1_310 = arith.constant 1 : index
    %c0_311 = arith.constant 0 : index
    %245 = vector.load %arg10[%c10_309, %c1_310, %c0_311] : memref<18x18x128xf32, #tpu.memory_space<vmem>>, vector<8x16x128xf32>
    %246 = vector.shape_cast %245 : vector<8x16x128xf32> to vector<128x128xf32>
    %c2_312 = arith.constant 2 : index
    %c1_313 = arith.constant 1 : index
    %c0_314 = arith.constant 0 : index
    %c0_315 = arith.constant 0 : index
    %247 = vector.load %arg4[%c2_312, %c1_313, %c0_314, %c0_315] : memref<3x3x128x128xf32, #tpu.memory_space<vmem>>, vector<1x1x128x128xf32>
    %248 = vector.shape_cast %247 : vector<1x1x128x128xf32> to vector<128x128xf32>
    %cst_316 = arith.constant dense<0.000000e+00> : vector<128x128xf32>
    %249 = tpu.matmul %246, %248, %cst_316 {dimension_numbers = #tpu.dot_dimension_numbers<[1], [0], [0], [1], [0, 0, 1, 1], [], []>} : vector<128x128xf32>, vector<128x128xf32>, vector<128x128xf32> -> vector<128x128xf32>
    %250 = arith.addf %244, %249 : vector<128x128xf32>
    %c10_317 = arith.constant 10 : index
    %c2_318 = arith.constant 2 : index
    %c0_319 = arith.constant 0 : index
    %251 = vector.load %arg10[%c10_317, %c2_318, %c0_319] : memref<18x18x128xf32, #tpu.memory_space<vmem>>, vector<8x16x128xf32>
    %252 = vector.shape_cast %251 : vector<8x16x128xf32> to vector<128x128xf32>
    %c2_320 = arith.constant 2 : index
    %c2_321 = arith.constant 2 : index
    %c0_322 = arith.constant 0 : index
    %c0_323 = arith.constant 0 : index
    %253 = vector.load %arg4[%c2_320, %c2_321, %c0_322, %c0_323] : memref<3x3x128x128xf32, #tpu.memory_space<vmem>>, vector<1x1x128x128xf32>
    %254 = vector.shape_cast %253 : vector<1x1x128x128xf32> to vector<128x128xf32>
    %cst_324 = arith.constant dense<0.000000e+00> : vector<128x128xf32>
    %255 = tpu.matmul %252, %254, %cst_324 {dimension_numbers = #tpu.dot_dimension_numbers<[1], [0], [0], [1], [0, 0, 1, 1], [], []>} : vector<128x128xf32>, vector<128x128xf32>, vector<128x128xf32> -> vector<128x128xf32>
    %256 = arith.addf %250, %255 : vector<128x128xf32>
    %257 = vector.broadcast %8 : vector<1x128xf32> to vector<128x128xf32>
    %258 = arith.addf %256, %257 : vector<128x128xf32>
    %cst_325 = arith.constant 0.000000e+00 : f32
    %259 = vector.broadcast %cst_325 : f32 to vector<128x128xf32>
    %260 = arith.maximumf %258, %259 : vector<128x128xf32>
    %c9_326 = arith.constant 9 : index
    %c1_327 = arith.constant 1 : index
    %c0_328 = arith.constant 0 : index
    %261 = vector.load %arg9[%c9_326, %c1_327, %c0_328] : memref<18x18x128xf32, #tpu.memory_space<vmem>>, vector<8x16x128xf32>
    %262 = vector.shape_cast %261 : vector<8x16x128xf32> to vector<128x128xf32>
    %c0_329 = arith.constant 0 : index
    %c0_330 = arith.constant 0 : index
    %263 = vector.load %arg6[%c0_329, %c0_330] : memref<128x128xf32, #tpu.memory_space<vmem>>, vector<128x128xf32>
    %cst_331 = arith.constant dense<0.000000e+00> : vector<128x128xf32>
    %264 = tpu.matmul %262, %263, %cst_331 {dimension_numbers = #tpu.dot_dimension_numbers<[1], [0], [0], [1], [0, 0, 1, 1], [], []>} : vector<128x128xf32>, vector<128x128xf32>, vector<128x128xf32> -> vector<128x128xf32>
    %265 = vector.broadcast %9 : vector<1x128xf32> to vector<128x128xf32>
    %266 = arith.addf %264, %265 : vector<128x128xf32>
    %267 = arith.addf %260, %266 : vector<128x128xf32>
    %268 = vector.shape_cast %267 : vector<128x128xf32> to vector<8x16x128xf32>
    %c0_332 = arith.constant 0 : index
    %c8_333 = arith.constant 8 : index
    %c0_334 = arith.constant 0 : index
    %c0_335 = arith.constant 0 : index
    %269 = vector.load %arg8[%c0_332, %c8_333, %c0_334, %c0_335] : memref<1x16x16x128xf32, #tpu.memory_space<vmem>>, vector<1x8x16x128xf32>
    %270 = vector.shape_cast %269 : vector<1x8x16x128xf32> to vector<8x16x128xf32>
    %271 = vector.shape_cast %268 : vector<8x16x128xf32> to vector<1x8x16x128xf32>
    tpu.vector_store %arg8[%c0_332, %c8_333, %c0_334, %c0_335], %271 {strides = array<i32>} : memref<1x16x16x128xf32, #tpu.memory_space<vmem>>, vector<1x8x16x128xf32>,
    return
  }
  func.func @transform_0(%arg0: i32) -> (i32, i32, i32, i32) {
    %c0_i32 = arith.constant 0 : i32
    %c0_i32_0 = arith.constant 0 : i32
    %c0_i32_1 = arith.constant 0 : i32
    %c0_i32_2 = arith.constant 0 : i32
    return %arg0, %c0_i32, %c0_i32_0, %c0_i32_1 : i32, i32, i32, i32
  }
  func.func @transform_1(%arg0: i32) -> (i32, i32, i32, i32) {
    %c0_i32 = arith.constant 0 : i32
    %c0_i32_0 = arith.constant 0 : i32
    %c0_i32_1 = arith.constant 0 : i32
    %c0_i32_2 = arith.constant 0 : i32
    %c0_i32_3 = arith.constant 0 : i32
    return %c0_i32, %c0_i32_0, %c0_i32_1, %c0_i32_2 : i32, i32, i32, i32
  }
  func.func @transform_2(%arg0: i32) -> (i32, i32) {
    %c0_i32 = arith.constant 0 : i32
    %c0_i32_0 = arith.constant 0 : i32
    %c0_i32_1 = arith.constant 0 : i32
    return %c0_i32, %c0_i32_0 : i32, i32
  }
  func.func @transform_3(%arg0: i32) -> (i32, i32, i32, i32) {
    %c0_i32 = arith.constant 0 : i32
    %c0_i32_0 = arith.constant 0 : i32
    %c0_i32_1 = arith.constant 0 : i32
    %c0_i32_2 = arith.constant 0 : i32
    %c0_i32_3 = arith.constant 0 : i32
    return %c0_i32, %c0_i32_0, %c0_i32_1, %c0_i32_2 : i32, i32, i32, i32
  }
  func.func @transform_4(%arg0: i32) -> (i32, i32) {
    %c0_i32 = arith.constant 0 : i32
    %c0_i32_0 = arith.constant 0 : i32
    %c0_i32_1 = arith.constant 0 : i32
    return %c0_i32, %c0_i32_0 : i32, i32
  }
  func.func @transform_5(%arg0: i32) -> (i32, i32) {
    %c0_i32 = arith.constant 0 : i32
    %c0_i32_0 = arith.constant 0 : i32
    %c0_i32_1 = arith.constant 0 : i32
    return %c0_i32, %c0_i32_0 : i32, i32
  }
  func.func @transform_6(%arg0: i32) -> (i32, i32) {
    %c0_i32 = arith.constant 0 : i32
    %c0_i32_0 = arith.constant 0 : i32
    %c0_i32_1 = arith.constant 0 : i32
    return %c0_i32, %c0_i32_0 : i32, i32
  }
  func.func @transform_7(%arg0: i32) -> (i32, i32, i32, i32) {
    %c0_i32 = arith.constant 0 : i32
    %c0_i32_0 = arith.constant 0 : i32
    %c0_i32_1 = arith.constant 0 : i32
    %c0_i32_2 = arith.constant 0 : i32
    return %arg0, %c0_i32, %c0_i32_0, %c0_i32_1 : i32, i32, i32, i32
  }
}

</mosaic_0001>

<llo_original>
// kernel: tpu_custom_call.1
$region0: #{tpu_custom_call.1}
  #allocation0 [shape = 'u32[]', space=smem, size = 0x4, offset = 0x4, fixed_abs, tag = 'smem constant byte address 0x4 - core index']
  #allocation1 [shape = 'u32[144,128]{1,0:T(1,128)}', space=vmem, size = 0x12000, scoped, tag = 'internal scratch']
  #allocation2 [shape = 'f32[18,18,128]{2,1,0:T(8,128)}', space=vmem, size = 0x36000, scoped, tag = 'scratch operand']
  #allocation3 [shape = 'f32[18,18,128]{2,1,0:T(8,128)}', space=vmem, size = 0x36000, scoped, tag = 'scratch operand']
  %s0 = inlined_call_operand.hbm [shape: f32[2,16,16,128], index: 0, kind: input, shape index: {}]
  %s1 = inlined_call_operand.hbm [shape: f32[3,3,128,128], index: 1, kind: input, shape index: {}]
  %s2 = inlined_call_operand.vmem [shape: f32[1,128], index: 2, kind: input, shape index: {}]
  %s3 = inlined_call_operand.hbm [shape: f32[3,3,128,128], index: 3, kind: input, shape index: {}]
  %s4 = inlined_call_operand.vmem [shape: f32[1,128], index: 4, kind: input, shape index: {}]
  %s5 = inlined_call_operand.hbm [shape: f32[128,128], index: 5, kind: input, shape index: {}]
  %s6 = inlined_call_operand.vmem [shape: f32[1,128], index: 6, kind: input, shape index: {}]
  %s7 = inlined_call_operand.hbm [shape: f32[2,16,16,128], index: 7, kind: output, shape index: {}]
  %s8 = sld [smem:[#allocation0]]
  $region77: #{tpu_custom_call.1} parent=0
    _
  %s10 = ssub.s32 1, %s8
  %s11 = scalar_select 0, %s10, %s8
  $region1: #{tpu_custom_call.1} parent=0
    #allocation4 [shape = 'u8[262144]{0}', space=vmem, size = 0x40000, scoped, tag = 'input window, operand 0']
    #allocation5 [shape = 's32[2]{0}', space=sflag, size = 0x8, scoped, tag = 'scoped memory for tpu_custom_call.1']
    #allocation6 [shape = 's32[2]{0}', space=sflag, size = 0x8, scoped, tag = 'scoped memory for tpu_custom_call.1']
    #allocation7 [shape = 'u8[589824]{0}', space=vmem, size = 0x90000, scoped, tag = 'input window, operand 1, single buffered']
    #allocation8 [shape = 's32[1]{0}', space=sflag, size = 0x4, scoped, tag = 'scoped memory for tpu_custom_call.1']
    #allocation9 [shape = 'u8[589824]{0}', space=vmem, size = 0x90000, scoped, tag = 'input window, operand 3, single buffered']
    #allocation10 [shape = 'u8[65536]{0}', space=vmem, size = 0x10000, scoped, tag = 'input window, operand 5, single buffered']
    #allocation11 [shape = 's32[1]{0}', space=sflag, size = 0x4, scoped, tag = 'scoped memory for tpu_custom_call.1']
    #allocation12 [shape = 'u8[262144]{0}', space=vmem, size = 0x40000, scoped, tag = 'output window, operand 0']
    %12 = vsyncpa [#allocation5], 0
    %s13 = scalar_lea.sflag [#allocation5], 1
    %14 = vsyncpa %s13, 0
    %15 = vsyncpa [#allocation8], 0
    %16 = vsyncpa [#allocation11], 0
    %17 = vsyncpa [#allocation6], 0
    %s18 = scalar_lea.sflag [#allocation6], 1
    %19 = vsyncpa %s18, 0
    loop: start=0, step=1, limit=4
    $region2: #{tpu_custom_call.1} parent=1 // loop_pre_header
      _
    $region3: #{tpu_custom_call.1} parent=1 // loop_header
      %s21 = sphi 0, %s25
      %p22 = scmp.ge.s32.totalorder %s21, 4
      %s31 = sphi 0, %s33
      %s34 = sphi 0, %s31
      %s35 = sphi 0, %s34
      %s51 = sphi 0, %s35
      %s55 = sphi 0, %s55
      %s57 = sphi 0, %s55
      %s58 = sphi 0, %s57
      %s72 = sphi 0, %s58
      %s76 = sphi 0, %s76
      %s78 = sphi 0, %s76
      %s79 = sphi 0, %s78
      %s93 = sphi 0, %s79
      %s97 = sphi 0, %s97
      %s99 = sphi 0, %s97
      %s100 = sphi 0, %s99
      %s114 = sphi 0, %s100
      %s118 = sphi 0, %s118
      %s120 = sphi 0, %s118
      %s121 = sphi 0, %s120
      %s135 = sphi 0, %s121
      %s139 = sphi 0, %s139
      %s141 = sphi 0, %s139
      %s142 = sphi 0, %s141
      %s156 = sphi 0, %s142
      %s160 = sphi 0, %s160
      %s162 = sphi 0, %s160
      %s163 = sphi 0, %s162
      %s177 = sphi 0, %s163
      %s183 = sphi 0, %s185
      %s186 = sphi 0, %s183
      %s187 = sphi 0, %s186
      %s203 = sphi 0, %s187
    $region4: #{tpu_custom_call.1} parent=1 // loop_header_branch
      %24 = sbr.rel (%p22) target = $region8
    $region5: #{tpu_custom_call.1} parent=1 // loop_body
      %s26 = ssub.s32 %s21, 1
      %s27 = ssub.s32 %s21, 2
      %s28 = sadd.s32 %s21, 1
      %s29 = ssub.s32 %s21, %s28
      %p30 = scmp.eq.s32.totalorder %s29, 0
      %s32 = sadd.s32 %s31, 1
      %s33 = scalar_select %p30, %s31, %s32
      %p36 = pneg %p30
      %p37 = scmp.eq.s32.totalorder %s21, 1
      %p38 = por %p36, %p37
      %p39 = scmp.ne.s32.totalorder %s31, %s34
      %p40 = scmp.eq.s32.totalorder %s21, 0
      %p41 = por %p39, %p40
      %p42 = scmp.ne.s32.totalorder %s31, %s34
      %p43 = scmp.eq.s32.totalorder %s26, 1
      %p44 = por %p42, %p43
      %p45 = scmp.ne.s32.totalorder %s34, %s35
      %p46 = scmp.eq.s32.totalorder %s26, 0
      %p47 = por %p45, %p46
      %p48 = scmp.ne.s32.totalorder %s34, %s35
      %p49 = scmp.eq.s32.totalorder %s27, 1
      %p50 = por %p48, %p49
      %p52 = scmp.ne.s32.totalorder %s35, %s51
      %p53 = scmp.eq.s32.totalorder %s27, 0
      %p54 = por %p52, %p53
      %s56 = sadd.s32 %s55, 1
      %p59 = scmp.eq.s32.totalorder %s21, 1
      %p60 = scmp.ne.s32.totalorder %s55, %s57
      %p61 = scmp.eq.s32.totalorder %s21, 0
      %p62 = por %p60, %p61
      %p63 = scmp.ne.s32.totalorder %s55, %s57
      %p64 = scmp.eq.s32.totalorder %s26, 1
      %p65 = por %p63, %p64
      %p66 = scmp.ne.s32.totalorder %s57, %s58
      %p67 = scmp.eq.s32.totalorder %s26, 0
      %p68 = por %p66, %p67
      %p69 = scmp.ne.s32.totalorder %s57, %s58
      %p70 = scmp.eq.s32.totalorder %s27, 1
      %p71 = por %p69, %p70
      %p73 = scmp.ne.s32.totalorder %s58, %s72
      %p74 = scmp.eq.s32.totalorder %s27, 0
      %p75 = por %p73, %p74
      %s77 = sadd.s32 %s76, 1
      %p80 = scmp.eq.s32.totalorder %s21, 1
      %p81 = scmp.ne.s32.totalorder %s76, %s78
      %p82 = scmp.eq.s32.totalorder %s21, 0
      %p83 = por %p81, %p82
      %p84 = scmp.ne.s32.totalorder %s76, %s78
      %p85 = scmp.eq.s32.totalorder %s26, 1
      %p86 = por %p84, %p85
      %p87 = scmp.ne.s32.totalorder %s78, %s79
      %p88 = scmp.eq.s32.totalorder %s26, 0
      %p89 = por %p87, %p88
      %p90 = scmp.ne.s32.totalorder %s78, %s79
      %p91 = scmp.eq.s32.totalorder %s27, 1
      %p92 = por %p90, %p91
      %p94 = scmp.ne.s32.totalorder %s79, %s93
      %p95 = scmp.eq.s32.totalorder %s27, 0
      %p96 = por %p94, %p95
      %s98 = sadd.s32 %s97, 1
      %p101 = scmp.eq.s32.totalorder %s21, 1
      %p102 = scmp.ne.s32.totalorder %s97, %s99
      %p103 = scmp.eq.s32.totalorder %s21, 0
      %p104 = por %p102, %p103
      %p105 = scmp.ne.s32.totalorder %s97, %s99
      %p106 = scmp.eq.s32.totalorder %s26, 1
      %p107 = por %p105, %p106
      %p108 = scmp.ne.s32.totalorder %s99, %s100
      %p109 = scmp.eq.s32.totalorder %s26, 0
      %p110 = por %p108, %p109
      %p111 = scmp.ne.s32.totalorder %s99, %s100
      %p112 = scmp.eq.s32.totalorder %s27, 1
      %p113 = por %p111, %p112
      %p115 = scmp.ne.s32.totalorder %s100, %s114
      %p116 = scmp.eq.s32.totalorder %s27, 0
      %p117 = por %p115, %p116
      %s119 = sadd.s32 %s118, 1
      %p122 = scmp.eq.s32.totalorder %s21, 1
      %p123 = scmp.ne.s32.totalorder %s118, %s120
      %p124 = scmp.eq.s32.totalorder %s21, 0
      %p125 = por %p123, %p124
      %p126 = scmp.ne.s32.totalorder %s118, %s120
      %p127 = scmp.eq.s32.totalorder %s26, 1
      %p128 = por %p126, %p127
      %p129 = scmp.ne.s32.totalorder %s120, %s121
      %p130 = scmp.eq.s32.totalorder %s26, 0
      %p131 = por %p129, %p130
      %p132 = scmp.ne.s32.totalorder %s120, %s121
      %p133 = scmp.eq.s32.totalorder %s27, 1
      %p134 = por %p132, %p133
      %p136 = scmp.ne.s32.totalorder %s121, %s135
      %p137 = scmp.eq.s32.totalorder %s27, 0
      %p138 = por %p136, %p137
      %s140 = sadd.s32 %s139, 1
      %p143 = scmp.eq.s32.totalorder %s21, 1
      %p144 = scmp.ne.s32.totalorder %s139, %s141
      %p145 = scmp.eq.s32.totalorder %s21, 0
      %p146 = por %p144, %p145
      %p147 = scmp.ne.s32.totalorder %s139, %s141
      %p148 = scmp.eq.s32.totalorder %s26, 1
      %p149 = por %p147, %p148
      %p150 = scmp.ne.s32.totalorder %s141, %s142
      %p151 = scmp.eq.s32.totalorder %s26, 0
      %p152 = por %p150, %p151
      %p153 = scmp.ne.s32.totalorder %s141, %s142
      %p154 = scmp.eq.s32.totalorder %s27, 1
      %p155 = por %p153, %p154
      %p157 = scmp.ne.s32.totalorder %s142, %s156
      %p158 = scmp.eq.s32.totalorder %s27, 0
      %p159 = por %p157, %p158
      %s161 = sadd.s32 %s160, 1
      %p164 = scmp.eq.s32.totalorder %s21, 1
      %p165 = scmp.ne.s32.totalorder %s160, %s162
      %p166 = scmp.eq.s32.totalorder %s21, 0
      %p167 = por %p165, %p166
      %p168 = scmp.ne.s32.totalorder %s160, %s162
      %p169 = scmp.eq.s32.totalorder %s26, 1
      %p170 = por %p168, %p169
      %p171 = scmp.ne.s32.totalorder %s162, %s163
      %p172 = scmp.eq.s32.totalorder %s26, 0
      %p173 = por %p171, %p172
      %p174 = scmp.ne.s32.totalorder %s162, %s163
      %p175 = scmp.eq.s32.totalorder %s27, 1
      %p176 = por %p174, %p175
      %p178 = scmp.ne.s32.totalorder %s163, %s177
      %p179 = scmp.eq.s32.totalorder %s27, 0
      %p180 = por %p178, %p179
      %s181 = ssub.s32 %s21, %s28
      %p182 = scmp.eq.s32.totalorder %s181, 0
      %s184 = sadd.s32 %s183, 1
      %s185 = scalar_select %p182, %s183, %s184
      %p188 = pneg %p182
      %p189 = scmp.eq.s32.totalorder %s21, 1
      %p190 = por %p188, %p189
      %p191 = scmp.ne.s32.totalorder %s183, %s186
      %p192 = scmp.eq.s32.totalorder %s21, 0
      %p193 = por %p191, %p192
      %p194 = scmp.ne.s32.totalorder %s183, %s186
      %p195 = scmp.eq.s32.totalorder %s26, 1
      %p196 = por %p194, %p195
      %p197 = scmp.ne.s32.totalorder %s186, %s187
      %p198 = scmp.eq.s32.totalorder %s26, 0
      %p199 = por %p197, %p198
      %p200 = scmp.ne.s32.totalorder %s186, %s187
      %p201 = scmp.eq.s32.totalorder %s27, 1
      %p202 = por %p200, %p201
      %p204 = scmp.ne.s32.totalorder %s187, %s203
      %p205 = scmp.eq.s32.totalorder %s27, 0
      %p206 = por %p204, %p205
      %p207 = scmp.le.s32.totalorder 1, %s21
      %p208 = scmp.lt.s32.totalorder %s21, 3
      %p209 = pnand %p207, %p208
      %p210 = pneg %p209
      // Predicated region
      $region9: #{tpu_custom_call.1} parent=5 // pred_check
        _
      $region10: #{tpu_custom_call.1} parent=5 // pred_check_branch
        %212 = sbr.rel (%p209) target = $region12
      $region11: #{tpu_custom_call.1} parent=5 // pred_region
        %s213 = ssub.s32 %s21, 1
        // Predicated region
        $region13: #{tpu_custom_call.1} parent=11 // pred_check
          %p214 = pneg %p68
        $region14: #{tpu_custom_call.1} parent=11 // pred_check_branch
          %216 = sbr.rel (%p214) target = $region16
        $region15: #{tpu_custom_call.1} parent=11 // pred_region
          %s218 = ssub.s32 18432, 18432
          %219 = vsyncadd [#allocation8], %s218
          %s220 = sshll.u32 [#allocation7], 4
          %s221 = int_to_ptr.vmem [resolvable:$true] %s220
          %226 = dma.hbm_to_vmem [thread:$0]  %s1, 18432, %s221, [#allocation8], 128, 128, 8
        $region16: #{tpu_custom_call.1} parent=11 // pred_fallthru
          _
        // Predicated region
        $region17: #{tpu_custom_call.1} parent=11 // pred_check
          %p227 = pneg %p89
        $region18: #{tpu_custom_call.1} parent=11 // pred_check_branch
          %229 = sbr.rel (%p227) target = $region20
        $region19: #{tpu_custom_call.1} parent=11 // pred_region
          _
        $region20: #{tpu_custom_call.1} parent=11 // pred_fallthru
          _
        // Predicated region
        $region21: #{tpu_custom_call.1} parent=11 // pred_check
          %p230 = pneg %p110
        $region22: #{tpu_custom_call.1} parent=11 // pred_check_branch
          %232 = sbr.rel (%p230) target = $region24
        $region23: #{tpu_custom_call.1} parent=11 // pred_region
          %s234 = ssub.s32 18432, 18432
          %235 = vsyncadd [#allocation8], %s234
          %s236 = sshll.u32 [#allocation9], 4
          %s237 = int_to_ptr.vmem [resolvable:$true] %s236
          %242 = dma.hbm_to_vmem [thread:$0]  %s3, 18432, %s237, [#allocation8], 128, 128, 8
        $region24: #{tpu_custom_call.1} parent=11 // pred_fallthru
          _
        // Predicated region
        $region25: #{tpu_custom_call.1} parent=11 // pred_check
          %p243 = pneg %p131
        $region26: #{tpu_custom_call.1} parent=11 // pred_check_branch
          %245 = sbr.rel (%p243) target = $region28
        $region27: #{tpu_custom_call.1} parent=11 // pred_region
          _
        $region28: #{tpu_custom_call.1} parent=11 // pred_fallthru
          _
        // Predicated region
        $region29: #{tpu_custom_call.1} parent=11 // pred_check
          %p246 = pneg %p152
        $region30: #{tpu_custom_call.1} parent=11 // pred_check_branch
          %248 = sbr.rel (%p246) target = $region32
        $region31: #{tpu_custom_call.1} parent=11 // pred_region
          %s250 = ssub.s32 2048, 2048
          %251 = vsyncadd [#allocation11], %s250
          %s252 = sshll.u32 [#allocation10], 4
          %s253 = int_to_ptr.vmem [resolvable:$true] %s252
          %258 = dma.hbm_to_vmem [thread:$0]  %s5, 2048, %s253, [#allocation11], 128, 128, 8
        $region32: #{tpu_custom_call.1} parent=11 // pred_fallthru
          _
        // Predicated region
        $region33: #{tpu_custom_call.1} parent=11 // pred_check
          %p259 = pneg %p173
        $region34: #{tpu_custom_call.1} parent=11 // pred_check_branch
          %261 = sbr.rel (%p259) target = $region36
        $region35: #{tpu_custom_call.1} parent=11 // pred_region
          _
        $region36: #{tpu_custom_call.1} parent=11 // pred_fallthru
          _
      $region12: #{tpu_custom_call.1} parent=5 // pred_fallthru
        _
      %p262 = scmp.lt.s32.totalorder %s21, 2
      // Predicated region
      $region37: #{tpu_custom_call.1} parent=5 // pred_check
        %p263 = pneg %p262
      $region38: #{tpu_custom_call.1} parent=5 // pred_check_branch
        %265 = sbr.rel (%p263) target = $region40
      $region39: #{tpu_custom_call.1} parent=5 // pred_region
        // Predicated region
        $region41: #{tpu_custom_call.1} parent=39 // pred_check
          %p266 = pneg %p41
        $region42: #{tpu_custom_call.1} parent=39 // pred_check_branch
          %268 = sbr.rel (%p266) target = $region44
        $region43: #{tpu_custom_call.1} parent=39 // pred_region
          %s269 = sand.u32 %s31, 1
          %s270 = scalar_lea.sflag [#allocation5], %s269
          %s271 = sand.u32 %s31, 1
          %s272 = smul.addr %s271, 256
          %s273 = scalar_lea.vmem [#allocation4], %s272
          %s275 = ssub.s32 4096, 4096
          %276 = vsyncadd %s270, %s275
          %s277 = smul.addr %s21, 32
          %s278 = smul.addr %s277, 128
          %s279 = scalar_lea.hbm %s0, %s278
          %s280 = sshll.u32 %s273, 4
          %s281 = int_to_ptr.vmem [resolvable:$true] %s280
          %286 = dma.hbm_to_vmem [thread:$0]  %s279, 4096, %s281, %s270, 128, 128, 8
        $region44: #{tpu_custom_call.1} parent=39 // pred_fallthru
          _
      $region40: #{tpu_custom_call.1} parent=5 // pred_fallthru
        _
      %p287 = scmp.le.s32.totalorder 1, %s21
      %p288 = scmp.lt.s32.totalorder %s21, 3
      %p289 = pnand %p287, %p288
      %p290 = pneg %p289
      // Predicated region
      $region45: #{tpu_custom_call.1} parent=5 // pred_check
        _
      $region46: #{tpu_custom_call.1} parent=5 // pred_check_branch
        %292 = sbr.rel (%p289) target = $region48
      $region47: #{tpu_custom_call.1} parent=5 // pred_region
        %s293 = ssub.s32 %s21, 1
        %s294 = sand.u32 %s34, 1
        %s295 = scalar_lea.sflag [#allocation5], %s294
        %s296 = sand.u32 %s34, 1
        %s297 = smul.addr %s296, 256
        %s298 = scalar_lea.vmem [#allocation4], %s297
        // Predicated region
        $region49: #{tpu_custom_call.1} parent=47 // pred_check
          %p299 = pneg %p47
        $region50: #{tpu_custom_call.1} parent=47 // pred_check_branch
          %301 = sbr.rel (%p299) target = $region52
        $region51: #{tpu_custom_call.1} parent=47 // pred_region
          %302 = dma.done %s295, 4096
        $region52: #{tpu_custom_call.1} parent=47 // pred_fallthru
          _
        // Predicated region
        $region53: #{tpu_custom_call.1} parent=47 // pred_check
          %p303 = pneg %p68
        $region54: #{tpu_custom_call.1} parent=47 // pred_check_branch
          %305 = sbr.rel (%p303) target = $region56
        $region55: #{tpu_custom_call.1} parent=47 // pred_region
          %306 = dma.done [#allocation8], 18432
        $region56: #{tpu_custom_call.1} parent=47 // pred_fallthru
          _
        // Predicated region
        $region57: #{tpu_custom_call.1} parent=47 // pred_check
          %p307 = pneg %p110
        $region58: #{tpu_custom_call.1} parent=47 // pred_check_branch
          %309 = sbr.rel (%p307) target = $region60
        $region59: #{tpu_custom_call.1} parent=47 // pred_region
          %310 = dma.done [#allocation8], 18432
        $region60: #{tpu_custom_call.1} parent=47 // pred_fallthru
          _
        // Predicated region
        $region61: #{tpu_custom_call.1} parent=47 // pred_check
          %p311 = pneg %p152
        $region62: #{tpu_custom_call.1} parent=47 // pred_check_branch
          %313 = sbr.rel (%p311) target = $region64
        $region63: #{tpu_custom_call.1} parent=47 // pred_region
          %314 = dma.done [#allocation11], 2048
        $region64: #{tpu_custom_call.1} parent=47 // pred_fallthru
          _
        %s315 = sand.u32 %s34, 1
        %s316 = scalar_lea.sflag [#allocation5], %s315
        %s317 = sand.u32 %s34, 1
        %s318 = smul.addr %s317, 256
        %s319 = scalar_lea.vmem [#allocation4], %s318
        %p320 = pneg %p47
        %p321 = pneg %p44
        %p322 = pneg %p68
        %p323 = pneg %p65
        %p324 = pneg %p89
        %p325 = pneg %p86
        %p326 = pneg %p110
        %p327 = pneg %p107
        %p328 = pneg %p131
        %p329 = pneg %p128
        %p330 = pneg %p152
        %p331 = pneg %p149
        %p332 = pneg %p173
        %p333 = pneg %p170
        %p334 = pneg %p199
        %p335 = pneg %p196
        %s336 = sand.u32 %s186, 1
        %s337 = scalar_lea.sflag [#allocation6], %s336
        %s338 = sand.u32 %s186, 1
        %s339 = smul.addr %s338, 256
        %s340 = scalar_lea.vmem [#allocation12], %s339
        %341 = vst [vmem:[#allocation2] sm:$0xff] 0.0
        %342 = vst [vmem:[#allocation2 + $0x8] sm:$0xff] 0.0
        %343 = vst [vmem:[#allocation2 + $0x10] sm:$0x3] 0.0
        %344 = vst [vmem:[#allocation2 + $0x18] sm:$0xff] 0.0
        %345 = vst [vmem:[#allocation2 + $0x20] sm:$0xff] 0.0
        %346 = vst [vmem:[#allocation2 + $0x28] sm:$0x3] 0.0
        %347 = vst [vmem:[#allocation2 + $0x30] sm:$0xff] 0.0
        %348 = vst [vmem:[#allocation2 + $0x38] sm:$0xff] 0.0
        %349 = vst [vmem:[#allocation2 + $0x40] sm:$0x3] 0.0
        %350 = vst [vmem:[#allocation2 + $0x48] sm:$0xff] 0.0
        %351 = vst [vmem:[#allocation2 + $0x50] sm:$0xff] 0.0
        %352 = vst [vmem:[#allocation2 + $0x58] sm:$0x3] 0.0
        %353 = vst [vmem:[#allocation2 + $0x60] sm:$0xff] 0.0
        %354 = vst [vmem:[#allocation2 + $0x68] sm:$0xff] 0.0
        %355 = vst [vmem:[#allocation2 + $0x70] sm:$0x3] 0.0
        %356 = vst [vmem:[#allocation2 + $0x78] sm:$0xff] 0.0
        %357 = vst [vmem:[#allocation2 + $0x80] sm:$0xff] 0.0
        %358 = vst [vmem:[#allocation2 + $0x88] sm:$0x3] 0.0
        %359 = vst [vmem:[#allocation2 + $0x90] sm:$0xff] 0.0
        %360 = vst [vmem:[#allocation2 + $0x98] sm:$0xff] 0.0
        %361 = vst [vmem:[#allocation2 + $0xa0] sm:$0x3] 0.0
        %362 = vst [vmem:[#allocation2 + $0xa8] sm:$0xff] 0.0
        %363 = vst [vmem:[#allocation2 + $0xb0] sm:$0xff] 0.0
        %364 = vst [vmem:[#allocation2 + $0xb8] sm:$0x3] 0.0
        %365 = vst [vmem:[#allocation2 + $0xc0] sm:$0xff] 0.0
        %366 = vst [vmem:[#allocation2 + $0xc8] sm:$0xff] 0.0
        %367 = vst [vmem:[#allocation2 + $0xd0] sm:$0x3] 0.0
        %368 = vst [vmem:[#allocation2 + $0xd8] sm:$0xff] 0.0
        %369 = vst [vmem:[#allocation2 + $0xe0] sm:$0xff] 0.0
        %370 = vst [vmem:[#allocation2 + $0xe8] sm:$0x3] 0.0
        %371 = vst [vmem:[#allocation2 + $0xf0] sm:$0xff] 0.0
        %372 = vst [vmem:[#allocation2 + $0xf8] sm:$0xff] 0.0
        %373 = vst [vmem:[#allocation2 + $0x100] sm:$0x3] 0.0
        %374 = vst [vmem:[#allocation2 + $0x108] sm:$0xff] 0.0
        %375 = vst [vmem:[#allocation2 + $0x110] sm:$0xff] 0.0
        %376 = vst [vmem:[#allocation2 + $0x118] sm:$0x3] 0.0
        %377 = vst [vmem:[#allocation2 + $0x120] sm:$0xff] 0.0
        %378 = vst [vmem:[#allocation2 + $0x128] sm:$0xff] 0.0
        %379 = vst [vmem:[#allocation2 + $0x130] sm:$0x3] 0.0
        %380 = vst [vmem:[#allocation2 + $0x138] sm:$0xff] 0.0
        %381 = vst [vmem:[#allocation2 + $0x140] sm:$0xff] 0.0
        %382 = vst [vmem:[#allocation2 + $0x148] sm:$0x3] 0.0
        %383 = vst [vmem:[#allocation2 + $0x150] sm:$0xff] 0.0
        %384 = vst [vmem:[#allocation2 + $0x158] sm:$0xff] 0.0
        %385 = vst [vmem:[#allocation2 + $0x160] sm:$0x3] 0.0
        %386 = vst [vmem:[#allocation2 + $0x168] sm:$0xff] 0.0
        %387 = vst [vmem:[#allocation2 + $0x170] sm:$0xff] 0.0
        %388 = vst [vmem:[#allocation2 + $0x178] sm:$0x3] 0.0
        %389 = vst [vmem:[#allocation2 + $0x180] sm:$0xff] 0.0
        %390 = vst [vmem:[#allocation2 + $0x188] sm:$0xff] 0.0
        %391 = vst [vmem:[#allocation2 + $0x190] sm:$0x3] 0.0
        %392 = vst [vmem:[#allocation2 + $0x198] sm:$0xff] 0.0
        %393 = vst [vmem:[#allocation2 + $0x1a0] sm:$0xff] 0.0
        %394 = vst [vmem:[#allocation2 + $0x1a8] sm:$0x3] 0.0
        %v395 = vld [vmem:[%s298] sm:$0xff]
        %v396 = vld [vmem:[%s298 + $0x8] sm:$0xff]
        %v397 = vld [vmem:[%s298 + $0x10] sm:$0xff]
        %v398 = vld [vmem:[%s298 + $0x18] sm:$0xff]
        %v399 = vld [vmem:[%s298 + $0x20] sm:$0xff]
        %v400 = vld [vmem:[%s298 + $0x28] sm:$0xff]
        %v401 = vld [vmem:[%s298 + $0x30] sm:$0xff]
        %v402 = vld [vmem:[%s298 + $0x38] sm:$0xff]
        %v403 = vld [vmem:[%s298 + $0x40] sm:$0xff]
        %v404 = vld [vmem:[%s298 + $0x48] sm:$0xff]
        %v405 = vld [vmem:[%s298 + $0x50] sm:$0xff]
        %v406 = vld [vmem:[%s298 + $0x58] sm:$0xff]
        %v407 = vld [vmem:[%s298 + $0x60] sm:$0xff]
        %v408 = vld [vmem:[%s298 + $0x68] sm:$0xff]
        %v409 = vld [vmem:[%s298 + $0x70] sm:$0xff]
        %v410 = vld [vmem:[%s298 + $0x78] sm:$0xff]
        %v411 = vld [vmem:[%s298 + $0x80] sm:$0xff]
        %v412 = vld [vmem:[%s298 + $0x88] sm:$0xff]
        %v413 = vld [vmem:[%s298 + $0x90] sm:$0xff]
        %v414 = vld [vmem:[%s298 + $0x98] sm:$0xff]
        %v415 = vld [vmem:[%s298 + $0xa0] sm:$0xff]
        %v416 = vld [vmem:[%s298 + $0xa8] sm:$0xff]
        %v417 = vld [vmem:[%s298 + $0xb0] sm:$0xff]
        %v418 = vld [vmem:[%s298 + $0xb8] sm:$0xff]
        %v419 = vld [vmem:[%s298 + $0xc0] sm:$0xff]
        %v420 = vld [vmem:[%s298 + $0xc8] sm:$0xff]
        %v421 = vld [vmem:[%s298 + $0xd0] sm:$0xff]
        %v422 = vld [vmem:[%s298 + $0xd8] sm:$0xff]
        %v423 = vld [vmem:[%s298 + $0xe0] sm:$0xff]
        %v424 = vld [vmem:[%s298 + $0xe8] sm:$0xff]
        %v425 = vld [vmem:[%s298 + $0xf0] sm:$0xff]
        %v426 = vld [vmem:[%s298 + $0xf8] sm:$0xff]
        %s427 = scalar_lea.vmem [#allocation2], 24
        %428 = vst [vmem:[%s427 + $0x1] sm:$0xff] %v395
        %429 = vst [vmem:[%s427 + $0x9] sm:$0xff] %v396
        %430 = vst [vmem:[%s427 + $0x19] sm:$0xff] %v397
        %431 = vst [vmem:[%s427 + $0x21] sm:$0xff] %v398
        %432 = vst [vmem:[%s427 + $0x31] sm:$0xff] %v399
        %433 = vst [vmem:[%s427 + $0x39] sm:$0xff] %v400
        %434 = vst [vmem:[%s427 + $0x49] sm:$0xff] %v401
        %435 = vst [vmem:[%s427 + $0x51] sm:$0xff] %v402
        %436 = vst [vmem:[%s427 + $0x61] sm:$0xff] %v403
        %437 = vst [vmem:[%s427 + $0x69] sm:$0xff] %v404
        %438 = vst [vmem:[%s427 + $0x79] sm:$0xff] %v405
        %439 = vst [vmem:[%s427 + $0x81] sm:$0xff] %v406
        %440 = vst [vmem:[%s427 + $0x91] sm:$0xff] %v407
        %441 = vst [vmem:[%s427 + $0x99] sm:$0xff] %v408
        %442 = vst [vmem:[%s427 + $0xa9] sm:$0xff] %v409
        %443 = vst [vmem:[%s427 + $0xb1] sm:$0xff] %v410
        %444 = vst [vmem:[%s427 + $0xc1] sm:$0xff] %v411
        %445 = vst [vmem:[%s427 + $0xc9] sm:$0xff] %v412
        %446 = vst [vmem:[%s427 + $0xd9] sm:$0xff] %v413
        %447 = vst [vmem:[%s427 + $0xe1] sm:$0xff] %v414
        %448 = vst [vmem:[%s427 + $0xf1] sm:$0xff] %v415
        %449 = vst [vmem:[%s427 + $0xf9] sm:$0xff] %v416
        %450 = vst [vmem:[%s427 + $0x109] sm:$0xff] %v417
        %451 = vst [vmem:[%s427 + $0x111] sm:$0xff] %v418
        %452 = vst [vmem:[%s427 + $0x121] sm:$0xff] %v419
        %453 = vst [vmem:[%s427 + $0x129] sm:$0xff] %v420
        %454 = vst [vmem:[%s427 + $0x139] sm:$0xff] %v421
        %455 = vst [vmem:[%s427 + $0x141] sm:$0xff] %v422
        %456 = vst [vmem:[%s427 + $0x151] sm:$0xff] %v423
        %457 = vst [vmem:[%s427 + $0x159] sm:$0xff] %v424
        %458 = vst [vmem:[%s427 + $0x169] sm:$0xff] %v425
        %459 = vst [vmem:[%s427 + $0x171] sm:$0xff] %v426
        %460 = vst [vmem:[#allocation3] sm:$0xff] 0.0
        %461 = vst [vmem:[#allocation3 + $0x8] sm:$0xff] 0.0
        %462 = vst [vmem:[#allocation3 + $0x10] sm:$0x3] 0.0
        %463 = vst [vmem:[#allocation3 + $0x18] sm:$0xff] 0.0
        %464 = vst [vmem:[#allocation3 + $0x20] sm:$0xff] 0.0
        %465 = vst [vmem:[#allocation3 + $0x28] sm:$0x3] 0.0
        %466 = vst [vmem:[#allocation3 + $0x30] sm:$0xff] 0.0
        %467 = vst [vmem:[#allocation3 + $0x38] sm:$0xff] 0.0
        %468 = vst [vmem:[#allocation3 + $0x40] sm:$0x3] 0.0
        %469 = vst [vmem:[#allocation3 + $0x48] sm:$0xff] 0.0
        %470 = vst [vmem:[#allocation3 + $0x50] sm:$0xff] 0.0
        %471 = vst [vmem:[#allocation3 + $0x58] sm:$0x3] 0.0
        %472 = vst [vmem:[#allocation3 + $0x60] sm:$0xff] 0.0
        %473 = vst [vmem:[#allocation3 + $0x68] sm:$0xff] 0.0
        %474 = vst [vmem:[#allocation3 + $0x70] sm:$0x3] 0.0
        %475 = vst [vmem:[#allocation3 + $0x78] sm:$0xff] 0.0
        %476 = vst [vmem:[#allocation3 + $0x80] sm:$0xff] 0.0
        %477 = vst [vmem:[#allocation3 + $0x88] sm:$0x3] 0.0
        %478 = vst [vmem:[#allocation3 + $0x90] sm:$0xff] 0.0
        %479 = vst [vmem:[#allocation3 + $0x98] sm:$0xff] 0.0
        %480 = vst [vmem:[#allocation3 + $0xa0] sm:$0x3] 0.0
        %481 = vst [vmem:[#allocation3 + $0xa8] sm:$0xff] 0.0
        %482 = vst [vmem:[#allocation3 + $0xb0] sm:$0xff] 0.0
        %483 = vst [vmem:[#allocation3 + $0xb8] sm:$0x3] 0.0
        %484 = vst [vmem:[#allocation3 + $0xc0] sm:$0xff] 0.0
        %485 = vst [vmem:[#allocation3 + $0xc8] sm:$0xff] 0.0
        %486 = vst [vmem:[#allocation3 + $0xd0] sm:$0x3] 0.0
        %487 = vst [vmem:[#allocation3 + $0xd8] sm:$0xff] 0.0
        %488 = vst [vmem:[#allocation3 + $0xe0] sm:$0xff] 0.0
        %489 = vst [vmem:[#allocation3 + $0xe8] sm:$0x3] 0.0
        %490 = vst [vmem:[#allocation3 + $0xf0] sm:$0xff] 0.0
        %491 = vst [vmem:[#allocation3 + $0xf8] sm:$0xff] 0.0
        %492 = vst [vmem:[#allocation3 + $0x100] sm:$0x3] 0.0
        %493 = vst [vmem:[#allocation3 + $0x108] sm:$0xff] 0.0
        %494 = vst [vmem:[#allocation3 + $0x110] sm:$0xff] 0.0
        %495 = vst [vmem:[#allocation3 + $0x118] sm:$0x3] 0.0
        %496 = vst [vmem:[#allocation3 + $0x120] sm:$0xff] 0.0
        %497 = vst [vmem:[#allocation3 + $0x128] sm:$0xff] 0.0
        %498 = vst [vmem:[#allocation3 + $0x130] sm:$0x3] 0.0
        %499 = vst [vmem:[#allocation3 + $0x138] sm:$0xff] 0.0
        %500 = vst [vmem:[#allocation3 + $0x140] sm:$0xff] 0.0
        %501 = vst [vmem:[#allocation3 + $0x148] sm:$0x3] 0.0
        %502 = vst [vmem:[#allocation3 + $0x150] sm:$0xff] 0.0
        %503 = vst [vmem:[#allocation3 + $0x158] sm:$0xff] 0.0
        %504 = vst [vmem:[#allocation3 + $0x160] sm:$0x3] 0.0
        %505 = vst [vmem:[#allocation3 + $0x168] sm:$0xff] 0.0
        %506 = vst [vmem:[#allocation3 + $0x170] sm:$0xff] 0.0
        %507 = vst [vmem:[#allocation3 + $0x178] sm:$0x3] 0.0
        %508 = vst [vmem:[#allocation3 + $0x180] sm:$0xff] 0.0
        %509 = vst [vmem:[#allocation3 + $0x188] sm:$0xff] 0.0
        %510 = vst [vmem:[#allocation3 + $0x190] sm:$0x3] 0.0
        %511 = vst [vmem:[#allocation3 + $0x198] sm:$0xff] 0.0
        %512 = vst [vmem:[#allocation3 + $0x1a0] sm:$0xff] 0.0
        %513 = vst [vmem:[#allocation3 + $0x1a8] sm:$0x3] 0.0
        %v514 = vld [vmem:[%s2] sm:$0x1]
        %v515 = vld [vmem:[%s4] sm:$0x1]
        %v516 = vld [vmem:[%s6] sm:$0x1]
        %v517 = vld [vmem:[#allocation2] sm:$0xff]
        %v518 = vld [vmem:[#allocation2 + $0x8] sm:$0xff]
        %v519 = vld [vmem:[#allocation2 + $0x18] sm:$0xff]
        %v520 = vld [vmem:[#allocation2 + $0x20] sm:$0xff]
        %v521 = vld [vmem:[#allocation2 + $0x30] sm:$0xff]
        %v522 = vld [vmem:[#allocation2 + $0x38] sm:$0xff]
        %v523 = vld [vmem:[#allocation2 + $0x48] sm:$0xff]
        %v524 = vld [vmem:[#allocation2 + $0x50] sm:$0xff]
        %v525 = vld [vmem:[#allocation2 + $0x60] sm:$0xff]
        %v526 = vld [vmem:[#allocation2 + $0x68] sm:$0xff]
        %v527 = vld [vmem:[#allocation2 + $0x78] sm:$0xff]
        %v528 = vld [vmem:[#allocation2 + $0x80] sm:$0xff]
        %v529 = vld [vmem:[#allocation2 + $0x90] sm:$0xff]
        %v530 = vld [vmem:[#allocation2 + $0x98] sm:$0xff]
        %v531 = vld [vmem:[#allocation2 + $0xa8] sm:$0xff]
        %v532 = vld [vmem:[#allocation2 + $0xb0] sm:$0xff]
        %v533 = vld [vmem:[#allocation7] sm:$0xff]
        %v534 = vld [vmem:[#allocation7 + $0x8] sm:$0xff]
        %v535 = vld [vmem:[#allocation7 + $0x10] sm:$0xff]
        %v536 = vld [vmem:[#allocation7 + $0x18] sm:$0xff]
        %v537 = vld [vmem:[#allocation7 + $0x20] sm:$0xff]
        %v538 = vld [vmem:[#allocation7 + $0x28] sm:$0xff]
        %v539 = vld [vmem:[#allocation7 + $0x30] sm:$0xff]
        %v540 = vld [vmem:[#allocation7 + $0x38] sm:$0xff]
        %v541 = vld [vmem:[#allocation7 + $0x40] sm:$0xff]
        %v542 = vld [vmem:[#allocation7 + $0x48] sm:$0xff]
        %v543 = vld [vmem:[#allocation7 + $0x50] sm:$0xff]
        %v544 = vld [vmem:[#allocation7 + $0x58] sm:$0xff]
        %v545 = vld [vmem:[#allocation7 + $0x60] sm:$0xff]
        %v546 = vld [vmem:[#allocation7 + $0x68] sm:$0xff]
        %v547 = vld [vmem:[#allocation7 + $0x70] sm:$0xff]
        %v548 = vld [vmem:[#allocation7 + $0x78] sm:$0xff]
        %v549 = vld [vmem:[#allocation2 + $0x1] sm:$0xff]
        %v550 = vld [vmem:[#allocation2 + $0x9] sm:$0xff]
        %v551 = vld [vmem:[#allocation2 + $0x19] sm:$0xff]
        %v552 = vld [vmem:[#allocation2 + $0x21] sm:$0xff]
        %v553 = vld [vmem:[#allocation2 + $0x31] sm:$0xff]
        %v554 = vld [vmem:[#allocation2 + $0x39] sm:$0xff]
        %v555 = vld [vmem:[#allocation2 + $0x49] sm:$0xff]
        %v556 = vld [vmem:[#allocation2 + $0x51] sm:$0xff]
        %v557 = vld [vmem:[#allocation2 + $0x61] sm:$0xff]
        %v558 = vld [vmem:[#allocation2 + $0x69] sm:$0xff]
        %v559 = vld [vmem:[#allocation2 + $0x79] sm:$0xff]
        %v560 = vld [vmem:[#allocation2 + $0x81] sm:$0xff]
        %v561 = vld [vmem:[#allocation2 + $0x91] sm:$0xff]
        %v562 = vld [vmem:[#allocation2 + $0x99] sm:$0xff]
        %v563 = vld [vmem:[#allocation2 + $0xa9] sm:$0xff]
        %v564 = vld [vmem:[#allocation2 + $0xb1] sm:$0xff]
        %s565 = scalar_lea.vmem [#allocation7], 128
        %v566 = vld [vmem:[%s565] sm:$0xff]
        %v567 = vld [vmem:[%s565 + $0x8] sm:$0xff]
        %v568 = vld [vmem:[%s565 + $0x10] sm:$0xff]
        %v569 = vld [vmem:[%s565 + $0x18] sm:$0xff]
        %v570 = vld [vmem:[%s565 + $0x20] sm:$0xff]
        %v571 = vld [vmem:[%s565 + $0x28] sm:$0xff]
        %v572 = vld [vmem:[%s565 + $0x30] sm:$0xff]
        %v573 = vld [vmem:[%s565 + $0x38] sm:$0xff]
        %v574 = vld [vmem:[%s565 + $0x40] sm:$0xff]
        %v575 = vld [vmem:[%s565 + $0x48] sm:$0xff]
        %v576 = vld [vmem:[%s565 + $0x50] sm:$0xff]
        %v577 = vld [vmem:[%s565 + $0x58] sm:$0xff]
        %v578 = vld [vmem:[%s565 + $0x60] sm:$0xff]
        %v579 = vld [vmem:[%s565 + $0x68] sm:$0xff]
        %v580 = vld [vmem:[%s565 + $0x70] sm:$0xff]
        %v581 = vld [vmem:[%s565 + $0x78] sm:$0xff]
        %582 = vmatprep.subr.mxu0 0.0
        %583 = vmatpush1.msra.mxu0 %v581
        %584 = vmatprep.subr.mxu0 0.0
        %585 = vmatpush1.msra.mxu0 %v580
        %586 = vmatprep.subr.mxu0 0.0
        %587 = vmatpush1.msra.mxu0 %v579
        %588 = vmatprep.subr.mxu0 0.0
        %589 = vmatpush1.msra.mxu0 %v578
        %590 = vmatprep.subr.mxu0 0.0
        %591 = vmatpush1.msra.mxu0 %v577
        %592 = vmatprep.subr.mxu0 0.0
        %593 = vmatpush1.msra.mxu0 %v576
        %594 = vmatprep.subr.mxu0 0.0
        %595 = vmatpush1.msra.mxu0 %v575
        %596 = vmatprep.subr.mxu0 0.0
        %597 = vmatpush1.msra.mxu0 %v574
        %598 = vmatprep.subr.mxu0 0.0
        %599 = vmatpush1.msra.mxu0 %v573
        %600 = vmatprep.subr.mxu0 0.0
        %601 = vmatpush1.msra.mxu0 %v572
        %602 = vmatprep.subr.mxu0 0.0
        %603 = vmatpush1.msra.mxu0 %v571
        %604 = vmatprep.subr.mxu0 0.0
        %605 = vmatpush1.msra.mxu0 %v570
        %606 = vmatprep.subr.mxu0 0.0
        %607 = vmatpush1.msra.mxu0 %v569
        %608 = vmatprep.subr.mxu0 0.0
        %609 = vmatpush1.msra.mxu0 %v568
        %610 = vmatprep.subr.mxu0 0.0
        %611 = vmatpush1.msra.mxu0 %v567
        %612 = vmatprep.subr.mxu0 0.0
        %613 = vmatpush1.msra.mxu0 %v566
        %614 = vmatprep.subr.mxu0 0.0
        %615 = vmatpush2.msra.mxu0 0.0
        %616 = vmatprep.subr.mxu0 0.0
        %617 = vmatpush2.msra.mxu0 0.0
        %618 = vmatprep.subr.mxu0 0.0
        %619 = vmatpush2.msra.mxu0 0.0
        %620 = vmatprep.subr.mxu0 0.0
        %621 = vmatpush2.msra.mxu0 0.0
        %622 = vmatprep.subr.mxu0 0.0
        %623 = vmatpush2.msra.mxu0 0.0
        %624 = vmatprep.subr.mxu0 0.0
        %625 = vmatpush2.msra.mxu0 0.0
        %626 = vmatprep.subr.mxu0 0.0
        %627 = vmatpush2.msra.mxu0 0.0
        %628 = vmatprep.subr.mxu0 0.0
        %629 = vmatpush2.msra.mxu0 0.0
        %630 = vmatprep.subr.mxu0 0.0
        %631 = vmatpush2.msra.mxu0 0.0
        %632 = vmatprep.subr.mxu0 0.0
        %633 = vmatpush2.msra.mxu0 0.0
        %634 = vmatprep.subr.mxu0 0.0
        %635 = vmatpush2.msra.mxu0 0.0
        %636 = vmatprep.subr.mxu0 0.0
        %637 = vmatpush2.msra.mxu0 0.0
        %638 = vmatprep.subr.mxu0 0.0
        %639 = vmatpush2.msra.mxu0 0.0
        %640 = vmatprep.subr.mxu0 0.0
        %641 = vmatpush2.msra.mxu0 0.0
        %642 = vmatprep.subr.mxu0 0.0
        %643 = vmatpush2.msra.mxu0 0.0
        %644 = vmatprep.subr.mxu0 0.0
        %645 = vmatpush2.msra.mxu0 0.0
        %646 = vmatprep.mubr.f32.mxu0 0.0
        %647 = vmatmul.mubr.f32.gmra.mxu0 %v549
        %v648 = vpop.f32.mrf.mxu0
        %v649 = vadd.f32 0.0, %v648
        %v650 = vpop.f32.mrf.mxu0
        %651 = vmatprep.mubr.f32.mxu0 0.0
        %652 = vmatmul.mubr.f32.gmra.mxu0 %v550
        %v653 = vpop.f32.mrf.mxu0
        %v654 = vadd.f32 0.0, %v653
        %v655 = vpop.f32.mrf.mxu0
        %656 = vmatprep.mubr.f32.mxu0 0.0
        %657 = vmatmul.mubr.f32.gmra.mxu0 %v551
        %v658 = vpop.f32.mrf.mxu0
        %v659 = vadd.f32 0.0, %v658
        %v660 = vpop.f32.mrf.mxu0
        %661 = vmatprep.mubr.f32.mxu0 0.0
        %662 = vmatmul.mubr.f32.gmra.mxu0 %v552
        %v663 = vpop.f32.mrf.mxu0
        %v664 = vadd.f32 0.0, %v663
        %v665 = vpop.f32.mrf.mxu0
        %666 = vmatprep.mubr.f32.mxu0 0.0
        %667 = vmatmul.mubr.f32.gmra.mxu0 %v553
        %v668 = vpop.f32.mrf.mxu0
        %v669 = vadd.f32 0.0, %v668
        %v670 = vpop.f32.mrf.mxu0
        %671 = vmatprep.mubr.f32.mxu0 0.0
        %672 = vmatmul.mubr.f32.gmra.mxu0 %v554
        %v673 = vpop.f32.mrf.mxu0
        %v674 = vadd.f32 0.0, %v673
        %v675 = vpop.f32.mrf.mxu0
        %676 = vmatprep.mubr.f32.mxu0 0.0
        %677 = vmatmul.mubr.f32.gmra.mxu0 %v555
        %v678 = vpop.f32.mrf.mxu0
        %v679 = vadd.f32 0.0, %v678
        %v680 = vpop.f32.mrf.mxu0
        %681 = vmatprep.mubr.f32.mxu0 0.0
        %682 = vmatmul.mubr.f32.gmra.mxu0 %v556
        %v683 = vpop.f32.mrf.mxu0
        %v684 = vadd.f32 0.0, %v683
        %v685 = vpop.f32.mrf.mxu0
        %686 = vmatprep.mubr.f32.mxu0 0.0
        %687 = vmatmul.mubr.f32.gmra.mxu0 %v557
        %v688 = vpop.f32.mrf.mxu0
        %v689 = vadd.f32 0.0, %v688
        %v690 = vpop.f32.mrf.mxu0
        %691 = vmatprep.mubr.f32.mxu0 0.0
        %692 = vmatmul.mubr.f32.gmra.mxu0 %v558
        %v693 = vpop.f32.mrf.mxu0
        %v694 = vadd.f32 0.0, %v693
        %v695 = vpop.f32.mrf.mxu0
        %696 = vmatprep.mubr.f32.mxu0 0.0
        %697 = vmatmul.mubr.f32.gmra.mxu0 %v559
        %v698 = vpop.f32.mrf.mxu0
        %v699 = vadd.f32 0.0, %v698
        %v700 = vpop.f32.mrf.mxu0
        %701 = vmatprep.mubr.f32.mxu0 0.0
        %702 = vmatmul.mubr.f32.gmra.mxu0 %v560
        %v703 = vpop.f32.mrf.mxu0
        %v704 = vadd.f32 0.0, %v703
        %v705 = vpop.f32.mrf.mxu0
        %706 = vmatprep.mubr.f32.mxu0 0.0
        %707 = vmatmul.mubr.f32.gmra.mxu0 %v561
        %v708 = vpop.f32.mrf.mxu0
        %v709 = vadd.f32 0.0, %v708
        %v710 = vpop.f32.mrf.mxu0
        %711 = vmatprep.mubr.f32.mxu0 0.0
        %712 = vmatmul.mubr.f32.gmra.mxu0 %v562
        %v713 = vpop.f32.mrf.mxu0
        %v714 = vadd.f32 0.0, %v713
        %v715 = vpop.f32.mrf.mxu0
        %716 = vmatprep.mubr.f32.mxu0 0.0
        %717 = vmatmul.mubr.f32.gmra.mxu0 %v563
        %v718 = vpop.f32.mrf.mxu0
        %v719 = vadd.f32 0.0, %v718
        %v720 = vpop.f32.mrf.mxu0
        %721 = vmatprep.mubr.f32.mxu0 0.0
        %722 = vmatmul.mubr.f32.gmra.mxu0 %v564
        %v723 = vpop.f32.mrf.mxu0
        %v724 = vadd.f32 0.0, %v723
        %v725 = vpop.f32.mrf.mxu0
        %726 = vdwg.mxu0
        %727 = vmatprep.subr.mxu0 0.0
        %728 = vmatpush1.msra.mxu0 %v548
        %729 = vmatprep.subr.mxu0 0.0
        %730 = vmatpush1.msra.mxu0 %v547
        %731 = vmatprep.subr.mxu0 0.0
        %732 = vmatpush1.msra.mxu0 %v546
        %733 = vmatprep.subr.mxu0 0.0
        %734 = vmatpush1.msra.mxu0 %v545
        %735 = vmatprep.subr.mxu0 0.0
        %736 = vmatpush1.msra.mxu0 %v544
        %737 = vmatprep.subr.mxu0 0.0
        %738 = vmatpush1.msra.mxu0 %v543
        %739 = vmatprep.subr.mxu0 0.0
        %740 = vmatpush1.msra.mxu0 %v542
        %741 = vmatprep.subr.mxu0 0.0
        %742 = vmatpush1.msra.mxu0 %v541
        %743 = vmatprep.subr.mxu0 0.0
        %744 = vmatpush1.msra.mxu0 %v540
        %745 = vmatprep.subr.mxu0 0.0
        %746 = vmatpush1.msra.mxu0 %v539
        %747 = vmatprep.subr.mxu0 0.0
        %748 = vmatpush1.msra.mxu0 %v538
        %749 = vmatprep.subr.mxu0 0.0
        %750 = vmatpush1.msra.mxu0 %v537
        %751 = vmatprep.subr.mxu0 0.0
        %752 = vmatpush1.msra.mxu0 %v536
        %753 = vmatprep.subr.mxu0 0.0
        %754 = vmatpush1.msra.mxu0 %v535
        %755 = vmatprep.subr.mxu0 0.0
        %756 = vmatpush1.msra.mxu0 %v534
        %757 = vmatprep.subr.mxu0 0.0
        %758 = vmatpush1.msra.mxu0 %v533
        %759 = vmatprep.subr.mxu0 0.0
        %760 = vmatpush2.msra.mxu0 0.0
        %761 = vmatprep.subr.mxu0 0.0
        %762 = vmatpush2.msra.mxu0 0.0
        %763 = vmatprep.subr.mxu0 0.0
        %764 = vmatpush2.msra.mxu0 0.0
        %765 = vmatprep.subr.mxu0 0.0
        %766 = vmatpush2.msra.mxu0 0.0
        %767 = vmatprep.subr.mxu0 0.0
        %768 = vmatpush2.msra.mxu0 0.0
        %769 = vmatprep.subr.mxu0 0.0
        %770 = vmatpush2.msra.mxu0 0.0
        %771 = vmatprep.subr.mxu0 0.0
        %772 = vmatpush2.msra.mxu0 0.0
        %773 = vmatprep.subr.mxu0 0.0
        %774 = vmatpush2.msra.mxu0 0.0
        %775 = vmatprep.subr.mxu0 0.0
        %776 = vmatpush2.msra.mxu0 0.0
        %777 = vmatprep.subr.mxu0 0.0
        %778 = vmatpush2.msra.mxu0 0.0
        %779 = vmatprep.subr.mxu0 0.0
        %780 = vmatpush2.msra.mxu0 0.0
        %781 = vmatprep.subr.mxu0 0.0
        %782 = vmatpush2.msra.mxu0 0.0
        %783 = vmatprep.subr.mxu0 0.0
        %784 = vmatpush2.msra.mxu0 0.0
        %785 = vmatprep.subr.mxu0 0.0
        %786 = vmatpush2.msra.mxu0 0.0
        %787 = vmatprep.subr.mxu0 0.0
        %788 = vmatpush2.msra.mxu0 0.0
        %789 = vmatprep.subr.mxu0 0.0
        %790 = vmatpush2.msra.mxu0 0.0
        %791 = vmatprep.mubr.f32.mxu0 0.0
        %792 = vmatmul.mubr.f32.gmra.mxu0 %v517
        %v793 = vpop.f32.mrf.mxu0
        %v794 = vadd.f32 %v649, %v793
        %v795 = vpop.f32.mrf.mxu0
        %796 = vmatprep.mubr.f32.mxu0 0.0
        %797 = vmatmul.mubr.f32.gmra.mxu0 %v518
        %v798 = vpop.f32.mrf.mxu0
        %v799 = vadd.f32 %v654, %v798
        %v800 = vpop.f32.mrf.mxu0
        %801 = vmatprep.mubr.f32.mxu0 0.0
        %802 = vmatmul.mubr.f32.gmra.mxu0 %v519
        %v803 = vpop.f32.mrf.mxu0
        %v804 = vadd.f32 %v659, %v803
        %v805 = vpop.f32.mrf.mxu0
        %806 = vmatprep.mubr.f32.mxu0 0.0
        %807 = vmatmul.mubr.f32.gmra.mxu0 %v520
        %v808 = vpop.f32.mrf.mxu0
        %v809 = vadd.f32 %v664, %v808
        %v810 = vpop.f32.mrf.mxu0
        %811 = vmatprep.mubr.f32.mxu0 0.0
        %812 = vmatmul.mubr.f32.gmra.mxu0 %v521
        %v813 = vpop.f32.mrf.mxu0
        %v814 = vadd.f32 %v669, %v813
        %v815 = vpop.f32.mrf.mxu0
        %816 = vmatprep.mubr.f32.mxu0 0.0
        %817 = vmatmul.mubr.f32.gmra.mxu0 %v522
        %v818 = vpop.f32.mrf.mxu0
        %v819 = vadd.f32 %v674, %v818
        %v820 = vpop.f32.mrf.mxu0
        %821 = vmatprep.mubr.f32.mxu0 0.0
        %822 = vmatmul.mubr.f32.gmra.mxu0 %v523
        %v823 = vpop.f32.mrf.mxu0
        %v824 = vadd.f32 %v679, %v823
        %v825 = vpop.f32.mrf.mxu0
        %826 = vmatprep.mubr.f32.mxu0 0.0
        %827 = vmatmul.mubr.f32.gmra.mxu0 %v524
        %v828 = vpop.f32.mrf.mxu0
        %v829 = vadd.f32 %v684, %v828
        %v830 = vpop.f32.mrf.mxu0
        %831 = vmatprep.mubr.f32.mxu0 0.0
        %832 = vmatmul.mubr.f32.gmra.mxu0 %v525
        %v833 = vpop.f32.mrf.mxu0
        %v834 = vadd.f32 %v689, %v833
        %v835 = vpop.f32.mrf.mxu0
        %836 = vmatprep.mubr.f32.mxu0 0.0
        %837 = vmatmul.mubr.f32.gmra.mxu0 %v526
        %v838 = vpop.f32.mrf.mxu0
        %v839 = vadd.f32 %v694, %v838
        %v840 = vpop.f32.mrf.mxu0
        %841 = vmatprep.mubr.f32.mxu0 0.0
        %842 = vmatmul.mubr.f32.gmra.mxu0 %v527
        %v843 = vpop.f32.mrf.mxu0
        %v844 = vadd.f32 %v699, %v843
        %v845 = vpop.f32.mrf.mxu0
        %846 = vmatprep.mubr.f32.mxu0 0.0
        %847 = vmatmul.mubr.f32.gmra.mxu0 %v528
        %v848 = vpop.f32.mrf.mxu0
        %v849 = vadd.f32 %v704, %v848
        %v850 = vpop.f32.mrf.mxu0
        %851 = vmatprep.mubr.f32.mxu0 0.0
        %852 = vmatmul.mubr.f32.gmra.mxu0 %v529
        %v853 = vpop.f32.mrf.mxu0
        %v854 = vadd.f32 %v709, %v853
        %v855 = vpop.f32.mrf.mxu0
        %856 = vmatprep.mubr.f32.mxu0 0.0
        %857 = vmatmul.mubr.f32.gmra.mxu0 %v530
        %v858 = vpop.f32.mrf.mxu0
        %v859 = vadd.f32 %v714, %v858
        %v860 = vpop.f32.mrf.mxu0
        %861 = vmatprep.mubr.f32.mxu0 0.0
        %862 = vmatmul.mubr.f32.gmra.mxu0 %v531
        %v863 = vpop.f32.mrf.mxu0
        %v864 = vadd.f32 %v719, %v863
        %v865 = vpop.f32.mrf.mxu0
        %866 = vmatprep.mubr.f32.mxu0 0.0
        %867 = vmatmul.mubr.f32.gmra.mxu0 %v532
        %v868 = vpop.f32.mrf.mxu0
        %v869 = vadd.f32 %v724, %v868
        %v870 = vpop.f32.mrf.mxu0
        %871 = vdwg.mxu0
        %v872 = vld [vmem:[#allocation2 + $0x2] sm:$0xff]
        %v873 = vld [vmem:[#allocation2 + $0xa] sm:$0xff]
        %v874 = vld [vmem:[#allocation2 + $0x1a] sm:$0xff]
        %v875 = vld [vmem:[#allocation2 + $0x22] sm:$0xff]
        %v876 = vld [vmem:[#allocation2 + $0x32] sm:$0xff]
        %v877 = vld [vmem:[#allocation2 + $0x3a] sm:$0xff]
        %v878 = vld [vmem:[#allocation2 + $0x4a] sm:$0xff]
        %v879 = vld [vmem:[#allocation2 + $0x52] sm:$0xff]
        %v880 = vld [vmem:[#allocation2 + $0x62] sm:$0xff]
        %v881 = vld [vmem:[#allocation2 + $0x6a] sm:$0xff]
        %v882 = vld [vmem:[#allocation2 + $0x7a] sm:$0xff]
        %v883 = vld [vmem:[#allocation2 + $0x82] sm:$0xff]
        %v884 = vld [vmem:[#allocation2 + $0x92] sm:$0xff]
        %v885 = vld [vmem:[#allocation2 + $0x9a] sm:$0xff]
        %v886 = vld [vmem:[#allocation2 + $0xaa] sm:$0xff]
        %v887 = vld [vmem:[#allocation2 + $0xb2] sm:$0xff]
        %s888 = scalar_lea.vmem [#allocation7], 256
        %v889 = vld [vmem:[%s888] sm:$0xff]
        %v890 = vld [vmem:[%s888 + $0x8] sm:$0xff]
        %v891 = vld [vmem:[%s888 + $0x10] sm:$0xff]
        %v892 = vld [vmem:[%s888 + $0x18] sm:$0xff]
        %v893 = vld [vmem:[%s888 + $0x20] sm:$0xff]
        %v894 = vld [vmem:[%s888 + $0x28] sm:$0xff]
        %v895 = vld [vmem:[%s888 + $0x30] sm:$0xff]
        %v896 = vld [vmem:[%s888 + $0x38] sm:$0xff]
        %v897 = vld [vmem:[%s888 + $0x40] sm:$0xff]
        %v898 = vld [vmem:[%s888 + $0x48] sm:$0xff]
        %v899 = vld [vmem:[%s888 + $0x50] sm:$0xff]
        %v900 = vld [vmem:[%s888 + $0x58] sm:$0xff]
        %v901 = vld [vmem:[%s888 + $0x60] sm:$0xff]
        %v902 = vld [vmem:[%s888 + $0x68] sm:$0xff]
        %v903 = vld [vmem:[%s888 + $0x70] sm:$0xff]
        %v904 = vld [vmem:[%s888 + $0x78] sm:$0xff]
        %905 = vmatprep.subr.mxu0 0.0
        %906 = vmatpush1.msra.mxu0 %v904
        %907 = vmatprep.subr.mxu0 0.0
        %908 = vmatpush1.msra.mxu0 %v903
        %909 = vmatprep.subr.mxu0 0.0
        %910 = vmatpush1.msra.mxu0 %v902
        %911 = vmatprep.subr.mxu0 0.0
        %912 = vmatpush1.msra.mxu0 %v901
        %913 = vmatprep.subr.mxu0 0.0
        %914 = vmatpush1.msra.mxu0 %v900
        %915 = vmatprep.subr.mxu0 0.0
        %916 = vmatpush1.msra.mxu0 %v899
        %917 = vmatprep.subr.mxu0 0.0
        %918 = vmatpush1.msra.mxu0 %v898
        %919 = vmatprep.subr.mxu0 0.0
        %920 = vmatpush1.msra.mxu0 %v897
        %921 = vmatprep.subr.mxu0 0.0
        %922 = vmatpush1.msra.mxu0 %v896
        %923 = vmatprep.subr.mxu0 0.0
        %924 = vmatpush1.msra.mxu0 %v895
        %925 = vmatprep.subr.mxu0 0.0
        %926 = vmatpush1.msra.mxu0 %v894
        %927 = vmatprep.subr.mxu0 0.0
        %928 = vmatpush1.msra.mxu0 %v893
        %929 = vmatprep.subr.mxu0 0.0
        %930 = vmatpush1.msra.mxu0 %v892
        %931 = vmatprep.subr.mxu0 0.0
        %932 = vmatpush1.msra.mxu0 %v891
        %933 = vmatprep.subr.mxu0 0.0
        %934 = vmatpush1.msra.mxu0 %v890
        %935 = vmatprep.subr.mxu0 0.0
        %936 = vmatpush1.msra.mxu0 %v889
        %937 = vmatprep.subr.mxu0 0.0
        %938 = vmatpush2.msra.mxu0 0.0
        %939 = vmatprep.subr.mxu0 0.0
        %940 = vmatpush2.msra.mxu0 0.0
        %941 = vmatprep.subr.mxu0 0.0
        %942 = vmatpush2.msra.mxu0 0.0
        %943 = vmatprep.subr.mxu0 0.0
        %944 = vmatpush2.msra.mxu0 0.0
        %945 = vmatprep.subr.mxu0 0.0
        %946 = vmatpush2.msra.mxu0 0.0
        %947 = vmatprep.subr.mxu0 0.0
        %948 = vmatpush2.msra.mxu0 0.0
        %949 = vmatprep.subr.mxu0 0.0
        %950 = vmatpush2.msra.mxu0 0.0
        %951 = vmatprep.subr.mxu0 0.0
        %952 = vmatpush2.msra.mxu0 0.0
        %953 = vmatprep.subr.mxu0 0.0
        %954 = vmatpush2.msra.mxu0 0.0
        %955 = vmatprep.subr.mxu0 0.0
        %956 = vmatpush2.msra.mxu0 0.0
        %957 = vmatprep.subr.mxu0 0.0
        %958 = vmatpush2.msra.mxu0 0.0
        %959 = vmatprep.subr.mxu0 0.0
        %960 = vmatpush2.msra.mxu0 0.0
        %961 = vmatprep.subr.mxu0 0.0
        %962 = vmatpush2.msra.mxu0 0.0
        %963 = vmatprep.subr.mxu0 0.0
        %964 = vmatpush2.msra.mxu0 0.0
        %965 = vmatprep.subr.mxu0 0.0
        %966 = vmatpush2.msra.mxu0 0.0
        %967 = vmatprep.subr.mxu0 0.0
        %968 = vmatpush2.msra.mxu0 0.0
        %969 = vmatprep.mubr.f32.mxu0 0.0
        %970 = vmatmul.mubr.f32.gmra.mxu0 %v872
        %v971 = vpop.f32.mrf.mxu0
        %v972 = vadd.f32 0.0, %v971
        %v973 = vpop.f32.mrf.mxu0
        %974 = vmatprep.mubr.f32.mxu0 0.0
        %975 = vmatmul.mubr.f32.gmra.mxu0 %v873
        %v976 = vpop.f32.mrf.mxu0
        %v977 = vadd.f32 0.0, %v976
        %v978 = vpop.f32.mrf.mxu0
        %979 = vmatprep.mubr.f32.mxu0 0.0
        %980 = vmatmul.mubr.f32.gmra.mxu0 %v874
        %v981 = vpop.f32.mrf.mxu0
        %v982 = vadd.f32 0.0, %v981
        %v983 = vpop.f32.mrf.mxu0
        %984 = vmatprep.mubr.f32.mxu0 0.0
        %985 = vmatmul.mubr.f32.gmra.mxu0 %v875
        %v986 = vpop.f32.mrf.mxu0
        %v987 = vadd.f32 0.0, %v986
        %v988 = vpop.f32.mrf.mxu0
        %989 = vmatprep.mubr.f32.mxu0 0.0
        %990 = vmatmul.mubr.f32.gmra.mxu0 %v876
        %v991 = vpop.f32.mrf.mxu0
        %v992 = vadd.f32 0.0, %v991
        %v993 = vpop.f32.mrf.mxu0
        %994 = vmatprep.mubr.f32.mxu0 0.0
        %995 = vmatmul.mubr.f32.gmra.mxu0 %v877
        %v996 = vpop.f32.mrf.mxu0
        %v997 = vadd.f32 0.0, %v996
        %v998 = vpop.f32.mrf.mxu0
        %999 = vmatprep.mubr.f32.mxu0 0.0
        %1000 = vmatmul.mubr.f32.gmra.mxu0 %v878
        %v1001 = vpop.f32.mrf.mxu0
        %v1002 = vadd.f32 0.0, %v1001
        %v1003 = vpop.f32.mrf.mxu0
        %1004 = vmatprep.mubr.f32.mxu0 0.0
        %1005 = vmatmul.mubr.f32.gmra.mxu0 %v879
        %v1006 = vpop.f32.mrf.mxu0
        %v1007 = vadd.f32 0.0, %v1006
        %v1008 = vpop.f32.mrf.mxu0
        %1009 = vmatprep.mubr.f32.mxu0 0.0
        %1010 = vmatmul.mubr.f32.gmra.mxu0 %v880
        %v1011 = vpop.f32.mrf.mxu0
        %v1012 = vadd.f32 0.0, %v1011
        %v1013 = vpop.f32.mrf.mxu0
        %1014 = vmatprep.mubr.f32.mxu0 0.0
        %1015 = vmatmul.mubr.f32.gmra.mxu0 %v881
        %v1016 = vpop.f32.mrf.mxu0
        %v1017 = vadd.f32 0.0, %v1016
        %v1018 = vpop.f32.mrf.mxu0
        %1019 = vmatprep.mubr.f32.mxu0 0.0
        %1020 = vmatmul.mubr.f32.gmra.mxu0 %v882
        %v1021 = vpop.f32.mrf.mxu0
        %v1022 = vadd.f32 0.0, %v1021
        %v1023 = vpop.f32.mrf.mxu0
        %1024 = vmatprep.mubr.f32.mxu0 0.0
        %1025 = vmatmul.mubr.f32.gmra.mxu0 %v883
        %v1026 = vpop.f32.mrf.mxu0
        %v1027 = vadd.f32 0.0, %v1026
        %v1028 = vpop.f32.mrf.mxu0
        %1029 = vmatprep.mubr.f32.mxu0 0.0
        %1030 = vmatmul.mubr.f32.gmra.mxu0 %v884
        %v1031 = vpop.f32.mrf.mxu0
        %v1032 = vadd.f32 0.0, %v1031
        %v1033 = vpop.f32.mrf.mxu0
        %1034 = vmatprep.mubr.f32.mxu0 0.0
        %1035 = vmatmul.mubr.f32.gmra.mxu0 %v885
        %v1036 = vpop.f32.mrf.mxu0
        %v1037 = vadd.f32 0.0, %v1036
        %v1038 = vpop.f32.mrf.mxu0
        %1039 = vmatprep.mubr.f32.mxu0 0.0
        %1040 = vmatmul.mubr.f32.gmra.mxu0 %v886
        %v1041 = vpop.f32.mrf.mxu0
        %v1042 = vadd.f32 0.0, %v1041
        %v1043 = vpop.f32.mrf.mxu0
        %1044 = vmatprep.mubr.f32.mxu0 0.0
        %1045 = vmatmul.mubr.f32.gmra.mxu0 %v887
        %v1046 = vpop.f32.mrf.mxu0
        %v1047 = vadd.f32 0.0, %v1046
        %v1048 = vpop.f32.mrf.mxu0
        %1049 = vdwg.mxu0
        %v1050 = vadd.f32 %v794, %v972
        %v1051 = vadd.f32 %v799, %v977
        %v1052 = vadd.f32 %v804, %v982
        %v1053 = vadd.f32 %v809, %v987
        %v1054 = vadd.f32 %v814, %v992
        %v1055 = vadd.f32 %v819, %v997
        %v1056 = vadd.f32 %v824, %v1002
        %v1057 = vadd.f32 %v829, %v1007
        %v1058 = vadd.f32 %v834, %v1012
        %v1059 = vadd.f32 %v839, %v1017
        %v1060 = vadd.f32 %v844, %v1022
        %v1061 = vadd.f32 %v849, %v1027
        %v1062 = vadd.f32 %v854, %v1032
        %v1063 = vadd.f32 %v859, %v1037
        %v1064 = vadd.f32 %v864, %v1042
        %v1065 = vadd.f32 %v869, %v1047
        %v1066 = vld [vmem:[%s427] sm:$0xff]
        %v1067 = vld [vmem:[%s427 + $0x8] sm:$0xff]
        %v1068 = vld [vmem:[%s427 + $0x18] sm:$0xff]
        %v1069 = vld [vmem:[%s427 + $0x20] sm:$0xff]
        %v1070 = vld [vmem:[%s427 + $0x30] sm:$0xff]
        %v1071 = vld [vmem:[%s427 + $0x38] sm:$0xff]
        %v1072 = vld [vmem:[%s427 + $0x48] sm:$0xff]
        %v1073 = vld [vmem:[%s427 + $0x50] sm:$0xff]
        %v1074 = vld [vmem:[%s427 + $0x60] sm:$0xff]
        %v1075 = vld [vmem:[%s427 + $0x68] sm:$0xff]
        %v1076 = vld [vmem:[%s427 + $0x78] sm:$0xff]
        %v1077 = vld [vmem:[%s427 + $0x80] sm:$0xff]
        %v1078 = vld [vmem:[%s427 + $0x90] sm:$0xff]
        %v1079 = vld [vmem:[%s427 + $0x98] sm:$0xff]
        %v1080 = vld [vmem:[%s427 + $0xa8] sm:$0xff]
        %v1081 = vld [vmem:[%s427 + $0xb0] sm:$0xff]
        %s1082 = scalar_lea.vmem [#allocation7], 384
        %v1083 = vld [vmem:[%s1082] sm:$0xff]
        %v1084 = vld [vmem:[%s1082 + $0x8] sm:$0xff]
        %v1085 = vld [vmem:[%s1082 + $0x10] sm:$0xff]
        %v1086 = vld [vmem:[%s1082 + $0x18] sm:$0xff]
        %v1087 = vld [vmem:[%s1082 + $0x20] sm:$0xff]
        %v1088 = vld [vmem:[%s1082 + $0x28] sm:$0xff]
        %v1089 = vld [vmem:[%s1082 + $0x30] sm:$0xff]
        %v1090 = vld [vmem:[%s1082 + $0x38] sm:$0xff]
        %v1091 = vld [vmem:[%s1082 + $0x40] sm:$0xff]
        %v1092 = vld [vmem:[%s1082 + $0x48] sm:$0xff]
        %v1093 = vld [vmem:[%s1082 + $0x50] sm:$0xff]
        %v1094 = vld [vmem:[%s1082 + $0x58] sm:$0xff]
        %v1095 = vld [vmem:[%s1082 + $0x60] sm:$0xff]
        %v1096 = vld [vmem:[%s1082 + $0x68] sm:$0xff]
        %v1097 = vld [vmem:[%s1082 + $0x70] sm:$0xff]
        %v1098 = vld [vmem:[%s1082 + $0x78] sm:$0xff]
        %1099 = vmatprep.subr.mxu0 0.0
        %1100 = vmatpush1.msra.mxu0 %v1098
        %1101 = vmatprep.subr.mxu0 0.0
        %1102 = vmatpush1.msra.mxu0 %v1097
        %1103 = vmatprep.subr.mxu0 0.0
        %1104 = vmatpush1.msra.mxu0 %v1096
        %1105 = vmatprep.subr.mxu0 0.0
        %1106 = vmatpush1.msra.mxu0 %v1095
        %1107 = vmatprep.subr.mxu0 0.0
        %1108 = vmatpush1.msra.mxu0 %v1094
        %1109 = vmatprep.subr.mxu0 0.0
        %1110 = vmatpush1.msra.mxu0 %v1093
        %1111 = vmatprep.subr.mxu0 0.0
        %1112 = vmatpush1.msra.mxu0 %v1092
        %1113 = vmatprep.subr.mxu0 0.0
        %1114 = vmatpush1.msra.mxu0 %v1091
        %1115 = vmatprep.subr.mxu0 0.0
        %1116 = vmatpush1.msra.mxu0 %v1090
        %1117 = vmatprep.subr.mxu0 0.0
        %1118 = vmatpush1.msra.mxu0 %v1089
        %1119 = vmatprep.subr.mxu0 0.0
        %1120 = vmatpush1.msra.mxu0 %v1088
        %1121 = vmatprep.subr.mxu0 0.0
        %1122 = vmatpush1.msra.mxu0 %v1087
        %1123 = vmatprep.subr.mxu0 0.0
        %1124 = vmatpush1.msra.mxu0 %v1086
        %1125 = vmatprep.subr.mxu0 0.0
        %1126 = vmatpush1.msra.mxu0 %v1085
        %1127 = vmatprep.subr.mxu0 0.0
        %1128 = vmatpush1.msra.mxu0 %v1084
        %1129 = vmatprep.subr.mxu0 0.0
        %1130 = vmatpush1.msra.mxu0 %v1083
        %1131 = vmatprep.subr.mxu0 0.0
        %1132 = vmatpush2.msra.mxu0 0.0
        %1133 = vmatprep.subr.mxu0 0.0
        %1134 = vmatpush2.msra.mxu0 0.0
        %1135 = vmatprep.subr.mxu0 0.0
        %1136 = vmatpush2.msra.mxu0 0.0
        %1137 = vmatprep.subr.mxu0 0.0
        %1138 = vmatpush2.msra.mxu0 0.0
        %1139 = vmatprep.subr.mxu0 0.0
        %1140 = vmatpush2.msra.mxu0 0.0
        %1141 = vmatprep.subr.mxu0 0.0
        %1142 = vmatpush2.msra.mxu0 0.0
        %1143 = vmatprep.subr.mxu0 0.0
        %1144 = vmatpush2.msra.mxu0 0.0
        %1145 = vmatprep.subr.mxu0 0.0
        %1146 = vmatpush2.msra.mxu0 0.0
        %1147 = vmatprep.subr.mxu0 0.0
        %1148 = vmatpush2.msra.mxu0 0.0
        %1149 = vmatprep.subr.mxu0 0.0
        %1150 = vmatpush2.msra.mxu0 0.0
        %1151 = vmatprep.subr.mxu0 0.0
        %1152 = vmatpush2.msra.mxu0 0.0
        %1153 = vmatprep.subr.mxu0 0.0
        %1154 = vmatpush2.msra.mxu0 0.0
        %1155 = vmatprep.subr.mxu0 0.0
        %1156 = vmatpush2.msra.mxu0 0.0
        %1157 = vmatprep.subr.mxu0 0.0
        %1158 = vmatpush2.msra.mxu0 0.0
        %1159 = vmatprep.subr.mxu0 0.0
        %1160 = vmatpush2.msra.mxu0 0.0
        %1161 = vmatprep.subr.mxu0 0.0
        %1162 = vmatpush2.msra.mxu0 0.0
        %1163 = vmatprep.mubr.f32.mxu0 0.0
        %1164 = vmatmul.mubr.f32.gmra.mxu0 %v1066
        %v1165 = vpop.f32.mrf.mxu0
        %v1166 = vadd.f32 0.0, %v1165
        %v1167 = vpop.f32.mrf.mxu0
        %1168 = vmatprep.mubr.f32.mxu0 0.0
        %1169 = vmatmul.mubr.f32.gmra.mxu0 %v1067
        %v1170 = vpop.f32.mrf.mxu0
        %v1171 = vadd.f32 0.0, %v1170
        %v1172 = vpop.f32.mrf.mxu0
        %1173 = vmatprep.mubr.f32.mxu0 0.0
        %1174 = vmatmul.mubr.f32.gmra.mxu0 %v1068
        %v1175 = vpop.f32.mrf.mxu0
        %v1176 = vadd.f32 0.0, %v1175
        %v1177 = vpop.f32.mrf.mxu0
        %1178 = vmatprep.mubr.f32.mxu0 0.0
        %1179 = vmatmul.mubr.f32.gmra.mxu0 %v1069
        %v1180 = vpop.f32.mrf.mxu0
        %v1181 = vadd.f32 0.0, %v1180
        %v1182 = vpop.f32.mrf.mxu0
        %1183 = vmatprep.mubr.f32.mxu0 0.0
        %1184 = vmatmul.mubr.f32.gmra.mxu0 %v1070
        %v1185 = vpop.f32.mrf.mxu0
        %v1186 = vadd.f32 0.0, %v1185
        %v1187 = vpop.f32.mrf.mxu0
        %1188 = vmatprep.mubr.f32.mxu0 0.0
        %1189 = vmatmul.mubr.f32.gmra.mxu0 %v1071
        %v1190 = vpop.f32.mrf.mxu0
        %v1191 = vadd.f32 0.0, %v1190
        %v1192 = vpop.f32.mrf.mxu0
        %1193 = vmatprep.mubr.f32.mxu0 0.0
        %1194 = vmatmul.mubr.f32.gmra.mxu0 %v1072
        %v1195 = vpop.f32.mrf.mxu0
        %v1196 = vadd.f32 0.0, %v1195
        %v1197 = vpop.f32.mrf.mxu0
        %1198 = vmatprep.mubr.f32.mxu0 0.0
        %1199 = vmatmul.mubr.f32.gmra.mxu0 %v1073
        %v1200 = vpop.f32.mrf.mxu0
        %v1201 = vadd.f32 0.0, %v1200
        %v1202 = vpop.f32.mrf.mxu0
        %1203 = vmatprep.mubr.f32.mxu0 0.0
        %1204 = vmatmul.mubr.f32.gmra.mxu0 %v1074
        %v1205 = vpop.f32.mrf.mxu0
        %v1206 = vadd.f32 0.0, %v1205
        %v1207 = vpop.f32.mrf.mxu0
        %1208 = vmatprep.mubr.f32.mxu0 0.0
        %1209 = vmatmul.mubr.f32.gmra.mxu0 %v1075
        %v1210 = vpop.f32.mrf.mxu0
        %v1211 = vadd.f32 0.0, %v1210
        %v1212 = vpop.f32.mrf.mxu0
        %1213 = vmatprep.mubr.f32.mxu0 0.0
        %1214 = vmatmul.mubr.f32.gmra.mxu0 %v1076
        %v1215 = vpop.f32.mrf.mxu0
        %v1216 = vadd.f32 0.0, %v1215
        %v1217 = vpop.f32.mrf.mxu0
        %1218 = vmatprep.mubr.f32.mxu0 0.0
        %1219 = vmatmul.mubr.f32.gmra.mxu0 %v1077
        %v1220 = vpop.f32.mrf.mxu0
        %v1221 = vadd.f32 0.0, %v1220
        %v1222 = vpop.f32.mrf.mxu0
        %1223 = vmatprep.mubr.f32.mxu0 0.0
        %1224 = vmatmul.mubr.f32.gmra.mxu0 %v1078
        %v1225 = vpop.f32.mrf.mxu0
        %v1226 = vadd.f32 0.0, %v1225
        %v1227 = vpop.f32.mrf.mxu0
        %1228 = vmatprep.mubr.f32.mxu0 0.0
        %1229 = vmatmul.mubr.f32.gmra.mxu0 %v1079
        %v1230 = vpop.f32.mrf.mxu0
        %v1231 = vadd.f32 0.0, %v1230
        %v1232 = vpop.f32.mrf.mxu0
        %1233 = vmatprep.mubr.f32.mxu0 0.0
        %1234 = vmatmul.mubr.f32.gmra.mxu0 %v1080
        %v1235 = vpop.f32.mrf.mxu0
        %v1236 = vadd.f32 0.0, %v1235
        %v1237 = vpop.f32.mrf.mxu0
        %1238 = vmatprep.mubr.f32.mxu0 0.0
        %1239 = vmatmul.mubr.f32.gmra.mxu0 %v1081
        %v1240 = vpop.f32.mrf.mxu0
        %v1241 = vadd.f32 0.0, %v1240
        %v1242 = vpop.f32.mrf.mxu0
        %1243 = vdwg.mxu0
        %v1244 = vadd.f32 %v1050, %v1166
        %v1245 = vadd.f32 %v1051, %v1171
        %v1246 = vadd.f32 %v1052, %v1176
        %v1247 = vadd.f32 %v1053, %v1181
        %v1248 = vadd.f32 %v1054, %v1186
        %v1249 = vadd.f32 %v1055, %v1191
        %v1250 = vadd.f32 %v1056, %v1196
        %v1251 = vadd.f32 %v1057, %v1201
        %v1252 = vadd.f32 %v1058, %v1206
        %v1253 = vadd.f32 %v1059, %v1211
        %v1254 = vadd.f32 %v1060, %v1216
        %v1255 = vadd.f32 %v1061, %v1221
        %v1256 = vadd.f32 %v1062, %v1226
        %v1257 = vadd.f32 %v1063, %v1231
        %v1258 = vadd.f32 %v1064, %v1236
        %v1259 = vadd.f32 %v1065, %v1241
        %v1260 = vld [vmem:[%s427 + $0x1] sm:$0xff]
        %v1261 = vld [vmem:[%s427 + $0x9] sm:$0xff]
        %v1262 = vld [vmem:[%s427 + $0x19] sm:$0xff]
        %v1263 = vld [vmem:[%s427 + $0x21] sm:$0xff]
        %v1264 = vld [vmem:[%s427 + $0x31] sm:$0xff]
        %v1265 = vld [vmem:[%s427 + $0x39] sm:$0xff]
        %v1266 = vld [vmem:[%s427 + $0x49] sm:$0xff]
        %v1267 = vld [vmem:[%s427 + $0x51] sm:$0xff]
        %v1268 = vld [vmem:[%s427 + $0x61] sm:$0xff]
        %v1269 = vld [vmem:[%s427 + $0x69] sm:$0xff]
        %v1270 = vld [vmem:[%s427 + $0x79] sm:$0xff]
        %v1271 = vld [vmem:[%s427 + $0x81] sm:$0xff]
        %v1272 = vld [vmem:[%s427 + $0x91] sm:$0xff]
        %v1273 = vld [vmem:[%s427 + $0x99] sm:$0xff]
        %v1274 = vld [vmem:[%s427 + $0xa9] sm:$0xff]
        %v1275 = vld [vmem:[%s427 + $0xb1] sm:$0xff]
        %s1276 = scalar_lea.vmem [#allocation7], 512
        %v1277 = vld [vmem:[%s1276] sm:$0xff]
        %v1278 = vld [vmem:[%s1276 + $0x8] sm:$0xff]
        %v1279 = vld [vmem:[%s1276 + $0x10] sm:$0xff]
        %v1280 = vld [vmem:[%s1276 + $0x18] sm:$0xff]
        %v1281 = vld [vmem:[%s1276 + $0x20] sm:$0xff]
        %v1282 = vld [vmem:[%s1276 + $0x28] sm:$0xff]
        %v1283 = vld [vmem:[%s1276 + $0x30] sm:$0xff]
        %v1284 = vld [vmem:[%s1276 + $0x38] sm:$0xff]
        %v1285 = vld [vmem:[%s1276 + $0x40] sm:$0xff]
        %v1286 = vld [vmem:[%s1276 + $0x48] sm:$0xff]
        %v1287 = vld [vmem:[%s1276 + $0x50] sm:$0xff]
        %v1288 = vld [vmem:[%s1276 + $0x58] sm:$0xff]
        %v1289 = vld [vmem:[%s1276 + $0x60] sm:$0xff]
        %v1290 = vld [vmem:[%s1276 + $0x68] sm:$0xff]
        %v1291 = vld [vmem:[%s1276 + $0x70] sm:$0xff]
        %v1292 = vld [vmem:[%s1276 + $0x78] sm:$0xff]
        %1293 = vmatprep.subr.mxu0 0.0
        %1294 = vmatpush1.msra.mxu0 %v1292
        %1295 = vmatprep.subr.mxu0 0.0
        %1296 = vmatpush1.msra.mxu0 %v1291
        %1297 = vmatprep.subr.mxu0 0.0
        %1298 = vmatpush1.msra.mxu0 %v1290
        %1299 = vmatprep.subr.mxu0 0.0
        %1300 = vmatpush1.msra.mxu0 %v1289
        %1301 = vmatprep.subr.mxu0 0.0
        %1302 = vmatpush1.msra.mxu0 %v1288
        %1303 = vmatprep.subr.mxu0 0.0
        %1304 = vmatpush1.msra.mxu0 %v1287
        %1305 = vmatprep.subr.mxu0 0.0
        %1306 = vmatpush1.msra.mxu0 %v1286
        %1307 = vmatprep.subr.mxu0 0.0
        %1308 = vmatpush1.msra.mxu0 %v1285
        %1309 = vmatprep.subr.mxu0 0.0
        %1310 = vmatpush1.msra.mxu0 %v1284
        %1311 = vmatprep.subr.mxu0 0.0
        %1312 = vmatpush1.msra.mxu0 %v1283
        %1313 = vmatprep.subr.mxu0 0.0
        %1314 = vmatpush1.msra.mxu0 %v1282
        %1315 = vmatprep.subr.mxu0 0.0
        %1316 = vmatpush1.msra.mxu0 %v1281
        %1317 = vmatprep.subr.mxu0 0.0
        %1318 = vmatpush1.msra.mxu0 %v1280
        %1319 = vmatprep.subr.mxu0 0.0
        %1320 = vmatpush1.msra.mxu0 %v1279
        %1321 = vmatprep.subr.mxu0 0.0
        %1322 = vmatpush1.msra.mxu0 %v1278
        %1323 = vmatprep.subr.mxu0 0.0
        %1324 = vmatpush1.msra.mxu0 %v1277
        %1325 = vmatprep.subr.mxu0 0.0
        %1326 = vmatpush2.msra.mxu0 0.0
        %1327 = vmatprep.subr.mxu0 0.0
        %1328 = vmatpush2.msra.mxu0 0.0
        %1329 = vmatprep.subr.mxu0 0.0
        %1330 = vmatpush2.msra.mxu0 0.0
        %1331 = vmatprep.subr.mxu0 0.0
        %1332 = vmatpush2.msra.mxu0 0.0
        %1333 = vmatprep.subr.mxu0 0.0
        %1334 = vmatpush2.msra.mxu0 0.0
        %1335 = vmatprep.subr.mxu0 0.0
        %1336 = vmatpush2.msra.mxu0 0.0
        %1337 = vmatprep.subr.mxu0 0.0
        %1338 = vmatpush2.msra.mxu0 0.0
        %1339 = vmatprep.subr.mxu0 0.0
        %1340 = vmatpush2.msra.mxu0 0.0
        %1341 = vmatprep.subr.mxu0 0.0
        %1342 = vmatpush2.msra.mxu0 0.0
        %1343 = vmatprep.subr.mxu0 0.0
        %1344 = vmatpush2.msra.mxu0 0.0
        %1345 = vmatprep.subr.mxu0 0.0
        %1346 = vmatpush2.msra.mxu0 0.0
        %1347 = vmatprep.subr.mxu0 0.0
        %1348 = vmatpush2.msra.mxu0 0.0
        %1349 = vmatprep.subr.mxu0 0.0
        %1350 = vmatpush2.msra.mxu0 0.0
        %1351 = vmatprep.subr.mxu0 0.0
        %1352 = vmatpush2.msra.mxu0 0.0
        %1353 = vmatprep.subr.mxu0 0.0
        %1354 = vmatpush2.msra.mxu0 0.0
        %1355 = vmatprep.subr.mxu0 0.0
        %1356 = vmatpush2.msra.mxu0 0.0
        %1357 = vmatprep.mubr.f32.mxu0 0.0
        %1358 = vmatmul.mubr.f32.gmra.mxu0 %v1260
        %v1359 = vpop.f32.mrf.mxu0
        %v1360 = vadd.f32 0.0, %v1359
        %v1361 = vpop.f32.mrf.mxu0
        %1362 = vmatprep.mubr.f32.mxu0 0.0
        %1363 = vmatmul.mubr.f32.gmra.mxu0 %v1261
        %v1364 = vpop.f32.mrf.mxu0
        %v1365 = vadd.f32 0.0, %v1364
        %v1366 = vpop.f32.mrf.mxu0
        %1367 = vmatprep.mubr.f32.mxu0 0.0
        %1368 = vmatmul.mubr.f32.gmra.mxu0 %v1262
        %v1369 = vpop.f32.mrf.mxu0
        %v1370 = vadd.f32 0.0, %v1369
        %v1371 = vpop.f32.mrf.mxu0
        %1372 = vmatprep.mubr.f32.mxu0 0.0
        %1373 = vmatmul.mubr.f32.gmra.mxu0 %v1263
        %v1374 = vpop.f32.mrf.mxu0
        %v1375 = vadd.f32 0.0, %v1374
        %v1376 = vpop.f32.mrf.mxu0
        %1377 = vmatprep.mubr.f32.mxu0 0.0
        %1378 = vmatmul.mubr.f32.gmra.mxu0 %v1264
        %v1379 = vpop.f32.mrf.mxu0
        %v1380 = vadd.f32 0.0, %v1379
        %v1381 = vpop.f32.mrf.mxu0
        %1382 = vmatprep.mubr.f32.mxu0 0.0
        %1383 = vmatmul.mubr.f32.gmra.mxu0 %v1265
        %v1384 = vpop.f32.mrf.mxu0
        %v1385 = vadd.f32 0.0, %v1384
        %v1386 = vpop.f32.mrf.mxu0
        %1387 = vmatprep.mubr.f32.mxu0 0.0
        %1388 = vmatmul.mubr.f32.gmra.mxu0 %v1266
        %v1389 = vpop.f32.mrf.mxu0
        %v1390 = vadd.f32 0.0, %v1389
        %v1391 = vpop.f32.mrf.mxu0
        %1392 = vmatprep.mubr.f32.mxu0 0.0
        %1393 = vmatmul.mubr.f32.gmra.mxu0 %v1267
        %v1394 = vpop.f32.mrf.mxu0
        %v1395 = vadd.f32 0.0, %v1394
        %v1396 = vpop.f32.mrf.mxu0
        %1397 = vmatprep.mubr.f32.mxu0 0.0
        %1398 = vmatmul.mubr.f32.gmra.mxu0 %v1268
        %v1399 = vpop.f32.mrf.mxu0
        %v1400 = vadd.f32 0.0, %v1399
        %v1401 = vpop.f32.mrf.mxu0
        %1402 = vmatprep.mubr.f32.mxu0 0.0
        %1403 = vmatmul.mubr.f32.gmra.mxu0 %v1269
        %v1404 = vpop.f32.mrf.mxu0
        %v1405 = vadd.f32 0.0, %v1404
        %v1406 = vpop.f32.mrf.mxu0
        %1407 = vmatprep.mubr.f32.mxu0 0.0
        %1408 = vmatmul.mubr.f32.gmra.mxu0 %v1270
        %v1409 = vpop.f32.mrf.mxu0
        %v1410 = vadd.f32 0.0, %v1409
        %v1411 = vpop.f32.mrf.mxu0
        %1412 = vmatprep.mubr.f32.mxu0 0.0
        %1413 = vmatmul.mubr.f32.gmra.mxu0 %v1271
        %v1414 = vpop.f32.mrf.mxu0
        %v1415 = vadd.f32 0.0, %v1414
        %v1416 = vpop.f32.mrf.mxu0
        %1417 = vmatprep.mubr.f32.mxu0 0.0
        %1418 = vmatmul.mubr.f32.gmra.mxu0 %v1272
        %v1419 = vpop.f32.mrf.mxu0
        %v1420 = vadd.f32 0.0, %v1419
        %v1421 = vpop.f32.mrf.mxu0
        %1422 = vmatprep.mubr.f32.mxu0 0.0
        %1423 = vmatmul.mubr.f32.gmra.mxu0 %v1273
        %v1424 = vpop.f32.mrf.mxu0
        %v1425 = vadd.f32 0.0, %v1424
        %v1426 = vpop.f32.mrf.mxu0
        %1427 = vmatprep.mubr.f32.mxu0 0.0
        %1428 = vmatmul.mubr.f32.gmra.mxu0 %v1274
        %v1429 = vpop.f32.mrf.mxu0
        %v1430 = vadd.f32 0.0, %v1429
        %v1431 = vpop.f32.mrf.mxu0
        %1432 = vmatprep.mubr.f32.mxu0 0.0
        %1433 = vmatmul.mubr.f32.gmra.mxu0 %v1275
        %v1434 = vpop.f32.mrf.mxu0
        %v1435 = vadd.f32 0.0, %v1434
        %v1436 = vpop.f32.mrf.mxu0
        %1437 = vdwg.mxu0
        %v1438 = vadd.f32 %v1244, %v1360
        %v1439 = vadd.f32 %v1245, %v1365
        %v1440 = vadd.f32 %v1246, %v1370
        %v1441 = vadd.f32 %v1247, %v1375
        %v1442 = vadd.f32 %v1248, %v1380
        %v1443 = vadd.f32 %v1249, %v1385
        %v1444 = vadd.f32 %v1250, %v1390
        %v1445 = vadd.f32 %v1251, %v1395
        %v1446 = vadd.f32 %v1252, %v1400
        %v1447 = vadd.f32 %v1253, %v1405
        %v1448 = vadd.f32 %v1254, %v1410
        %v1449 = vadd.f32 %v1255, %v1415
        %v1450 = vadd.f32 %v1256, %v1420
        %v1451 = vadd.f32 %v1257, %v1425
        %v1452 = vadd.f32 %v1258, %v1430
        %v1453 = vadd.f32 %v1259, %v1435
        %v1454 = vld [vmem:[%s427 + $0x2] sm:$0xff]
        %v1455 = vld [vmem:[%s427 + $0xa] sm:$0xff]
        %v1456 = vld [vmem:[%s427 + $0x1a] sm:$0xff]
        %v1457 = vld [vmem:[%s427 + $0x22] sm:$0xff]
        %v1458 = vld [vmem:[%s427 + $0x32] sm:$0xff]
        %v1459 = vld [vmem:[%s427 + $0x3a] sm:$0xff]
        %v1460 = vld [vmem:[%s427 + $0x4a] sm:$0xff]
        %v1461 = vld [vmem:[%s427 + $0x52] sm:$0xff]
        %v1462 = vld [vmem:[%s427 + $0x62] sm:$0xff]
        %v1463 = vld [vmem:[%s427 + $0x6a] sm:$0xff]
        %v1464 = vld [vmem:[%s427 + $0x7a] sm:$0xff]
        %v1465 = vld [vmem:[%s427 + $0x82] sm:$0xff]
        %v1466 = vld [vmem:[%s427 + $0x92] sm:$0xff]
        %v1467 = vld [vmem:[%s427 + $0x9a] sm:$0xff]
        %v1468 = vld [vmem:[%s427 + $0xaa] sm:$0xff]
        %v1469 = vld [vmem:[%s427 + $0xb2] sm:$0xff]
        %s1470 = scalar_lea.vmem [#allocation7], 640
        %v1471 = vld [vmem:[%s1470] sm:$0xff]
        %v1472 = vld [vmem:[%s1470 + $0x8] sm:$0xff]
        %v1473 = vld [vmem:[%s1470 + $0x10] sm:$0xff]
        %v1474 = vld [vmem:[%s1470 + $0x18] sm:$0xff]
        %v1475 = vld [vmem:[%s1470 + $0x20] sm:$0xff]
        %v1476 = vld [vmem:[%s1470 + $0x28] sm:$0xff]
        %v1477 = vld [vmem:[%s1470 + $0x30] sm:$0xff]
        %v1478 = vld [vmem:[%s1470 + $0x38] sm:$0xff]
        %v1479 = vld [vmem:[%s1470 + $0x40] sm:$0xff]
        %v1480 = vld [vmem:[%s1470 + $0x48] sm:$0xff]
        %v1481 = vld [vmem:[%s1470 + $0x50] sm:$0xff]
        %v1482 = vld [vmem:[%s1470 + $0x58] sm:$0xff]
        %v1483 = vld [vmem:[%s1470 + $0x60] sm:$0xff]
        %v1484 = vld [vmem:[%s1470 + $0x68] sm:$0xff]
        %v1485 = vld [vmem:[%s1470 + $0x70] sm:$0xff]
        %v1486 = vld [vmem:[%s1470 + $0x78] sm:$0xff]
        %1487 = vmatprep.subr.mxu0 0.0
        %1488 = vmatpush1.msra.mxu0 %v1486
        %1489 = vmatprep.subr.mxu0 0.0
        %1490 = vmatpush1.msra.mxu0 %v1485
        %1491 = vmatprep.subr.mxu0 0.0
        %1492 = vmatpush1.msra.mxu0 %v1484
        %1493 = vmatprep.subr.mxu0 0.0
        %1494 = vmatpush1.msra.mxu0 %v1483
        %1495 = vmatprep.subr.mxu0 0.0
        %1496 = vmatpush1.msra.mxu0 %v1482
        %1497 = vmatprep.subr.mxu0 0.0
        %1498 = vmatpush1.msra.mxu0 %v1481
        %1499 = vmatprep.subr.mxu0 0.0
        %1500 = vmatpush1.msra.mxu0 %v1480
        %1501 = vmatprep.subr.mxu0 0.0
        %1502 = vmatpush1.msra.mxu0 %v1479
        %1503 = vmatprep.subr.mxu0 0.0
        %1504 = vmatpush1.msra.mxu0 %v1478
        %1505 = vmatprep.subr.mxu0 0.0
        %1506 = vmatpush1.msra.mxu0 %v1477
        %1507 = vmatprep.subr.mxu0 0.0
        %1508 = vmatpush1.msra.mxu0 %v1476
        %1509 = vmatprep.subr.mxu0 0.0
        %1510 = vmatpush1.msra.mxu0 %v1475
        %1511 = vmatprep.subr.mxu0 0.0
        %1512 = vmatpush1.msra.mxu0 %v1474
        %1513 = vmatprep.subr.mxu0 0.0
        %1514 = vmatpush1.msra.mxu0 %v1473
        %1515 = vmatprep.subr.mxu0 0.0
        %1516 = vmatpush1.msra.mxu0 %v1472
        %1517 = vmatprep.subr.mxu0 0.0
        %1518 = vmatpush1.msra.mxu0 %v1471
        %1519 = vmatprep.subr.mxu0 0.0
        %1520 = vmatpush2.msra.mxu0 0.0
        %1521 = vmatprep.subr.mxu0 0.0
        %1522 = vmatpush2.msra.mxu0 0.0
        %1523 = vmatprep.subr.mxu0 0.0
        %1524 = vmatpush2.msra.mxu0 0.0
        %1525 = vmatprep.subr.mxu0 0.0
        %1526 = vmatpush2.msra.mxu0 0.0
        %1527 = vmatprep.subr.mxu0 0.0
        %1528 = vmatpush2.msra.mxu0 0.0
        %1529 = vmatprep.subr.mxu0 0.0
        %1530 = vmatpush2.msra.mxu0 0.0
        %1531 = vmatprep.subr.mxu0 0.0
        %1532 = vmatpush2.msra.mxu0 0.0
        %1533 = vmatprep.subr.mxu0 0.0
        %1534 = vmatpush2.msra.mxu0 0.0
        %1535 = vmatprep.subr.mxu0 0.0
        %1536 = vmatpush2.msra.mxu0 0.0
        %1537 = vmatprep.subr.mxu0 0.0
        %1538 = vmatpush2.msra.mxu0 0.0
        %1539 = vmatprep.subr.mxu0 0.0
        %1540 = vmatpush2.msra.mxu0 0.0
        %1541 = vmatprep.subr.mxu0 0.0
        %1542 = vmatpush2.msra.mxu0 0.0
        %1543 = vmatprep.subr.mxu0 0.0
        %1544 = vmatpush2.msra.mxu0 0.0
        %1545 = vmatprep.subr.mxu0 0.0
        %1546 = vmatpush2.msra.mxu0 0.0
        %1547 = vmatprep.subr.mxu0 0.0
        %1548 = vmatpush2.msra.mxu0 0.0
        %1549 = vmatprep.subr.mxu0 0.0
        %1550 = vmatpush2.msra.mxu0 0.0
        %1551 = vmatprep.mubr.f32.mxu0 0.0
        %1552 = vmatmul.mubr.f32.gmra.mxu0 %v1454
        %v1553 = vpop.f32.mrf.mxu0
        %v1554 = vadd.f32 0.0, %v1553
        %v1555 = vpop.f32.mrf.mxu0
        %1556 = vmatprep.mubr.f32.mxu0 0.0
        %1557 = vmatmul.mubr.f32.gmra.mxu0 %v1455
        %v1558 = vpop.f32.mrf.mxu0
        %v1559 = vadd.f32 0.0, %v1558
        %v1560 = vpop.f32.mrf.mxu0
        %1561 = vmatprep.mubr.f32.mxu0 0.0
        %1562 = vmatmul.mubr.f32.gmra.mxu0 %v1456
        %v1563 = vpop.f32.mrf.mxu0
        %v1564 = vadd.f32 0.0, %v1563
        %v1565 = vpop.f32.mrf.mxu0
        %1566 = vmatprep.mubr.f32.mxu0 0.0
        %1567 = vmatmul.mubr.f32.gmra.mxu0 %v1457
        %v1568 = vpop.f32.mrf.mxu0
        %v1569 = vadd.f32 0.0, %v1568
        %v1570 = vpop.f32.mrf.mxu0
        %1571 = vmatprep.mubr.f32.mxu0 0.0
        %1572 = vmatmul.mubr.f32.gmra.mxu0 %v1458
        %v1573 = vpop.f32.mrf.mxu0
        %v1574 = vadd.f32 0.0, %v1573
        %v1575 = vpop.f32.mrf.mxu0
        %1576 = vmatprep.mubr.f32.mxu0 0.0
        %1577 = vmatmul.mubr.f32.gmra.mxu0 %v1459
        %v1578 = vpop.f32.mrf.mxu0
        %v1579 = vadd.f32 0.0, %v1578
        %v1580 = vpop.f32.mrf.mxu0
        %1581 = vmatprep.mubr.f32.mxu0 0.0
        %1582 = vmatmul.mubr.f32.gmra.mxu0 %v1460
        %v1583 = vpop.f32.mrf.mxu0
        %v1584 = vadd.f32 0.0, %v1583
        %v1585 = vpop.f32.mrf.mxu0
        %1586 = vmatprep.mubr.f32.mxu0 0.0
        %1587 = vmatmul.mubr.f32.gmra.mxu0 %v1461
        %v1588 = vpop.f32.mrf.mxu0
        %v1589 = vadd.f32 0.0, %v1588
        %v1590 = vpop.f32.mrf.mxu0
        %1591 = vmatprep.mubr.f32.mxu0 0.0
        %1592 = vmatmul.mubr.f32.gmra.mxu0 %v1462
        %v1593 = vpop.f32.mrf.mxu0
        %v1594 = vadd.f32 0.0, %v1593
        %v1595 = vpop.f32.mrf.mxu0
        %1596 = vmatprep.mubr.f32.mxu0 0.0
        %1597 = vmatmul.mubr.f32.gmra.mxu0 %v1463
        %v1598 = vpop.f32.mrf.mxu0
        %v1599 = vadd.f32 0.0, %v1598
        %v1600 = vpop.f32.mrf.mxu0
        %1601 = vmatprep.mubr.f32.mxu0 0.0
        %1602 = vmatmul.mubr.f32.gmra.mxu0 %v1464
        %v1603 = vpop.f32.mrf.mxu0
        %v1604 = vadd.f32 0.0, %v1603
        %v1605 = vpop.f32.mrf.mxu0
        %1606 = vmatprep.mubr.f32.mxu0 0.0
        %1607 = vmatmul.mubr.f32.gmra.mxu0 %v1465
        %v1608 = vpop.f32.mrf.mxu0
        %v1609 = vadd.f32 0.0, %v1608
        %v1610 = vpop.f32.mrf.mxu0
        %1611 = vmatprep.mubr.f32.mxu0 0.0
        %1612 = vmatmul.mubr.f32.gmra.mxu0 %v1466
        %v1613 = vpop.f32.mrf.mxu0
        %v1614 = vadd.f32 0.0, %v1613
        %v1615 = vpop.f32.mrf.mxu0
        %1616 = vmatprep.mubr.f32.mxu0 0.0
        %1617 = vmatmul.mubr.f32.gmra.mxu0 %v1467
        %v1618 = vpop.f32.mrf.mxu0
        %v1619 = vadd.f32 0.0, %v1618
        %v1620 = vpop.f32.mrf.mxu0
        %1621 = vmatprep.mubr.f32.mxu0 0.0
        %1622 = vmatmul.mubr.f32.gmra.mxu0 %v1468
        %v1623 = vpop.f32.mrf.mxu0
        %v1624 = vadd.f32 0.0, %v1623
        %v1625 = vpop.f32.mrf.mxu0
        %1626 = vmatprep.mubr.f32.mxu0 0.0
        %1627 = vmatmul.mubr.f32.gmra.mxu0 %v1469
        %v1628 = vpop.f32.mrf.mxu0
        %v1629 = vadd.f32 0.0, %v1628
        %v1630 = vpop.f32.mrf.mxu0
        %1631 = vdwg.mxu0
        %v1632 = vadd.f32 %v1438, %v1554
        %v1633 = vadd.f32 %v1439, %v1559
        %v1634 = vadd.f32 %v1440, %v1564
        %v1635 = vadd.f32 %v1441, %v1569
        %v1636 = vadd.f32 %v1442, %v1574
        %v1637 = vadd.f32 %v1443, %v1579
        %v1638 = vadd.f32 %v1444, %v1584
        %v1639 = vadd.f32 %v1445, %v1589
        %v1640 = vadd.f32 %v1446, %v1594
        %v1641 = vadd.f32 %v1447, %v1599
        %v1642 = vadd.f32 %v1448, %v1604
        %v1643 = vadd.f32 %v1449, %v1609
        %v1644 = vadd.f32 %v1450, %v1614
        %v1645 = vadd.f32 %v1451, %v1619
        %v1646 = vadd.f32 %v1452, %v1624
        %v1647 = vadd.f32 %v1453, %v1629
        %s1648 = scalar_lea.vmem [#allocation2], 48
        %v1649 = vld [vmem:[%s1648] sm:$0xff]
        %v1650 = vld [vmem:[%s1648 + $0x8] sm:$0xff]
        %v1651 = vld [vmem:[%s1648 + $0x18] sm:$0xff]
        %v1652 = vld [vmem:[%s1648 + $0x20] sm:$0xff]
        %v1653 = vld [vmem:[%s1648 + $0x30] sm:$0xff]
        %v1654 = vld [vmem:[%s1648 + $0x38] sm:$0xff]
        %v1655 = vld [vmem:[%s1648 + $0x48] sm:$0xff]
        %v1656 = vld [vmem:[%s1648 + $0x50] sm:$0xff]
        %v1657 = vld [vmem:[%s1648 + $0x60] sm:$0xff]
        %v1658 = vld [vmem:[%s1648 + $0x68] sm:$0xff]
        %v1659 = vld [vmem:[%s1648 + $0x78] sm:$0xff]
        %v1660 = vld [vmem:[%s1648 + $0x80] sm:$0xff]
        %v1661 = vld [vmem:[%s1648 + $0x90] sm:$0xff]
        %v1662 = vld [vmem:[%s1648 + $0x98] sm:$0xff]
        %v1663 = vld [vmem:[%s1648 + $0xa8] sm:$0xff]
        %v1664 = vld [vmem:[%s1648 + $0xb0] sm:$0xff]
        %s1665 = scalar_lea.vmem [#allocation7], 768
        %v1666 = vld [vmem:[%s1665] sm:$0xff]
        %v1667 = vld [vmem:[%s1665 + $0x8] sm:$0xff]
        %v1668 = vld [vmem:[%s1665 + $0x10] sm:$0xff]
        %v1669 = vld [vmem:[%s1665 + $0x18] sm:$0xff]
        %v1670 = vld [vmem:[%s1665 + $0x20] sm:$0xff]
        %v1671 = vld [vmem:[%s1665 + $0x28] sm:$0xff]
        %v1672 = vld [vmem:[%s1665 + $0x30] sm:$0xff]
        %v1673 = vld [vmem:[%s1665 + $0x38] sm:$0xff]
        %v1674 = vld [vmem:[%s1665 + $0x40] sm:$0xff]
        %v1675 = vld [vmem:[%s1665 + $0x48] sm:$0xff]
        %v1676 = vld [vmem:[%s1665 + $0x50] sm:$0xff]
        %v1677 = vld [vmem:[%s1665 + $0x58] sm:$0xff]
        %v1678 = vld [vmem:[%s1665 + $0x60] sm:$0xff]
        %v1679 = vld [vmem:[%s1665 + $0x68] sm:$0xff]
        %v1680 = vld [vmem:[%s1665 + $0x70] sm:$0xff]
        %v1681 = vld [vmem:[%s1665 + $0x78] sm:$0xff]
        %1682 = vmatprep.subr.mxu0 0.0
        %1683 = vmatpush1.msra.mxu0 %v1681
        %1684 = vmatprep.subr.mxu0 0.0
        %1685 = vmatpush1.msra.mxu0 %v1680
        %1686 = vmatprep.subr.mxu0 0.0
        %1687 = vmatpush1.msra.mxu0 %v1679
        %1688 = vmatprep.subr.mxu0 0.0
        %1689 = vmatpush1.msra.mxu0 %v1678
        %1690 = vmatprep.subr.mxu0 0.0
        %1691 = vmatpush1.msra.mxu0 %v1677
        %1692 = vmatprep.subr.mxu0 0.0
        %1693 = vmatpush1.msra.mxu0 %v1676
        %1694 = vmatprep.subr.mxu0 0.0
        %1695 = vmatpush1.msra.mxu0 %v1675
        %1696 = vmatprep.subr.mxu0 0.0
        %1697 = vmatpush1.msra.mxu0 %v1674
        %1698 = vmatprep.subr.mxu0 0.0
        %1699 = vmatpush1.msra.mxu0 %v1673
        %1700 = vmatprep.subr.mxu0 0.0
        %1701 = vmatpush1.msra.mxu0 %v1672
        %1702 = vmatprep.subr.mxu0 0.0
        %1703 = vmatpush1.msra.mxu0 %v1671
        %1704 = vmatprep.subr.mxu0 0.0
        %1705 = vmatpush1.msra.mxu0 %v1670
        %1706 = vmatprep.subr.mxu0 0.0
        %1707 = vmatpush1.msra.mxu0 %v1669
        %1708 = vmatprep.subr.mxu0 0.0
        %1709 = vmatpush1.msra.mxu0 %v1668
        %1710 = vmatprep.subr.mxu0 0.0
        %1711 = vmatpush1.msra.mxu0 %v1667
        %1712 = vmatprep.subr.mxu0 0.0
        %1713 = vmatpush1.msra.mxu0 %v1666
        %1714 = vmatprep.subr.mxu0 0.0
        %1715 = vmatpush2.msra.mxu0 0.0
        %1716 = vmatprep.subr.mxu0 0.0
        %1717 = vmatpush2.msra.mxu0 0.0
        %1718 = vmatprep.subr.mxu0 0.0
        %1719 = vmatpush2.msra.mxu0 0.0
        %1720 = vmatprep.subr.mxu0 0.0
        %1721 = vmatpush2.msra.mxu0 0.0
        %1722 = vmatprep.subr.mxu0 0.0
        %1723 = vmatpush2.msra.mxu0 0.0
        %1724 = vmatprep.subr.mxu0 0.0
        %1725 = vmatpush2.msra.mxu0 0.0
        %1726 = vmatprep.subr.mxu0 0.0
        %1727 = vmatpush2.msra.mxu0 0.0
        %1728 = vmatprep.subr.mxu0 0.0
        %1729 = vmatpush2.msra.mxu0 0.0
        %1730 = vmatprep.subr.mxu0 0.0
        %1731 = vmatpush2.msra.mxu0 0.0
        %1732 = vmatprep.subr.mxu0 0.0
        %1733 = vmatpush2.msra.mxu0 0.0
        %1734 = vmatprep.subr.mxu0 0.0
        %1735 = vmatpush2.msra.mxu0 0.0
        %1736 = vmatprep.subr.mxu0 0.0
        %1737 = vmatpush2.msra.mxu0 0.0
        %1738 = vmatprep.subr.mxu0 0.0
        %1739 = vmatpush2.msra.mxu0 0.0
        %1740 = vmatprep.subr.mxu0 0.0
        %1741 = vmatpush2.msra.mxu0 0.0
        %1742 = vmatprep.subr.mxu0 0.0
        %1743 = vmatpush2.msra.mxu0 0.0
        %1744 = vmatprep.subr.mxu0 0.0
        %1745 = vmatpush2.msra.mxu0 0.0
        %1746 = vmatprep.mubr.f32.mxu0 0.0
        %1747 = vmatmul.mubr.f32.gmra.mxu0 %v1649
        %v1748 = vpop.f32.mrf.mxu0
        %v1749 = vadd.f32 0.0, %v1748
        %v1750 = vpop.f32.mrf.mxu0
        %1751 = vmatprep.mubr.f32.mxu0 0.0
        %1752 = vmatmul.mubr.f32.gmra.mxu0 %v1650
        %v1753 = vpop.f32.mrf.mxu0
        %v1754 = vadd.f32 0.0, %v1753
        %v1755 = vpop.f32.mrf.mxu0
        %1756 = vmatprep.mubr.f32.mxu0 0.0
        %1757 = vmatmul.mubr.f32.gmra.mxu0 %v1651
        %v1758 = vpop.f32.mrf.mxu0
        %v1759 = vadd.f32 0.0, %v1758
        %v1760 = vpop.f32.mrf.mxu0
        %1761 = vmatprep.mubr.f32.mxu0 0.0
        %1762 = vmatmul.mubr.f32.gmra.mxu0 %v1652
        %v1763 = vpop.f32.mrf.mxu0
        %v1764 = vadd.f32 0.0, %v1763
        %v1765 = vpop.f32.mrf.mxu0
        %1766 = vmatprep.mubr.f32.mxu0 0.0
        %1767 = vmatmul.mubr.f32.gmra.mxu0 %v1653
        %v1768 = vpop.f32.mrf.mxu0
        %v1769 = vadd.f32 0.0, %v1768
        %v1770 = vpop.f32.mrf.mxu0
        %1771 = vmatprep.mubr.f32.mxu0 0.0
        %1772 = vmatmul.mubr.f32.gmra.mxu0 %v1654
        %v1773 = vpop.f32.mrf.mxu0
        %v1774 = vadd.f32 0.0, %v1773
        %v1775 = vpop.f32.mrf.mxu0
        %1776 = vmatprep.mubr.f32.mxu0 0.0
        %1777 = vmatmul.mubr.f32.gmra.mxu0 %v1655
        %v1778 = vpop.f32.mrf.mxu0
        %v1779 = vadd.f32 0.0, %v1778
        %v1780 = vpop.f32.mrf.mxu0
        %1781 = vmatprep.mubr.f32.mxu0 0.0
        %1782 = vmatmul.mubr.f32.gmra.mxu0 %v1656
        %v1783 = vpop.f32.mrf.mxu0
        %v1784 = vadd.f32 0.0, %v1783
        %v1785 = vpop.f32.mrf.mxu0
        %1786 = vmatprep.mubr.f32.mxu0 0.0
        %1787 = vmatmul.mubr.f32.gmra.mxu0 %v1657
        %v1788 = vpop.f32.mrf.mxu0
        %v1789 = vadd.f32 0.0, %v1788
        %v1790 = vpop.f32.mrf.mxu0
        %1791 = vmatprep.mubr.f32.mxu0 0.0
        %1792 = vmatmul.mubr.f32.gmra.mxu0 %v1658
        %v1793 = vpop.f32.mrf.mxu0
        %v1794 = vadd.f32 0.0, %v1793
        %v1795 = vpop.f32.mrf.mxu0
        %1796 = vmatprep.mubr.f32.mxu0 0.0
        %1797 = vmatmul.mubr.f32.gmra.mxu0 %v1659
        %v1798 = vpop.f32.mrf.mxu0
        %v1799 = vadd.f32 0.0, %v1798
        %v1800 = vpop.f32.mrf.mxu0
        %1801 = vmatprep.mubr.f32.mxu0 0.0
        %1802 = vmatmul.mubr.f32.gmra.mxu0 %v1660
        %v1803 = vpop.f32.mrf.mxu0
        %v1804 = vadd.f32 0.0, %v1803
        %v1805 = vpop.f32.mrf.mxu0
        %1806 = vmatprep.mubr.f32.mxu0 0.0
        %1807 = vmatmul.mubr.f32.gmra.mxu0 %v1661
        %v1808 = vpop.f32.mrf.mxu0
        %v1809 = vadd.f32 0.0, %v1808
        %v1810 = vpop.f32.mrf.mxu0
        %1811 = vmatprep.mubr.f32.mxu0 0.0
        %1812 = vmatmul.mubr.f32.gmra.mxu0 %v1662
        %v1813 = vpop.f32.mrf.mxu0
        %v1814 = vadd.f32 0.0, %v1813
        %v1815 = vpop.f32.mrf.mxu0
        %1816 = vmatprep.mubr.f32.mxu0 0.0
        %1817 = vmatmul.mubr.f32.gmra.mxu0 %v1663
        %v1818 = vpop.f32.mrf.mxu0
        %v1819 = vadd.f32 0.0, %v1818
        %v1820 = vpop.f32.mrf.mxu0
        %1821 = vmatprep.mubr.f32.mxu0 0.0
        %1822 = vmatmul.mubr.f32.gmra.mxu0 %v1664
        %v1823 = vpop.f32.mrf.mxu0
        %v1824 = vadd.f32 0.0, %v1823
        %v1825 = vpop.f32.mrf.mxu0
        %1826 = vdwg.mxu0
        %v1827 = vadd.f32 %v1632, %v1749
        %v1828 = vadd.f32 %v1633, %v1754
        %v1829 = vadd.f32 %v1634, %v1759
        %v1830 = vadd.f32 %v1635, %v1764
        %v1831 = vadd.f32 %v1636, %v1769
        %v1832 = vadd.f32 %v1637, %v1774
        %v1833 = vadd.f32 %v1638, %v1779
        %v1834 = vadd.f32 %v1639, %v1784
        %v1835 = vadd.f32 %v1640, %v1789
        %v1836 = vadd.f32 %v1641, %v1794
        %v1837 = vadd.f32 %v1642, %v1799
        %v1838 = vadd.f32 %v1643, %v1804
        %v1839 = vadd.f32 %v1644, %v1809
        %v1840 = vadd.f32 %v1645, %v1814
        %v1841 = vadd.f32 %v1646, %v1819
        %v1842 = vadd.f32 %v1647, %v1824
        %v1843 = vld [vmem:[%s1648 + $0x1] sm:$0xff]
        %v1844 = vld [vmem:[%s1648 + $0x9] sm:$0xff]
        %v1845 = vld [vmem:[%s1648 + $0x19] sm:$0xff]
        %v1846 = vld [vmem:[%s1648 + $0x21] sm:$0xff]
        %v1847 = vld [vmem:[%s1648 + $0x31] sm:$0xff]
        %v1848 = vld [vmem:[%s1648 + $0x39] sm:$0xff]
        %v1849 = vld [vmem:[%s1648 + $0x49] sm:$0xff]
        %v1850 = vld [vmem:[%s1648 + $0x51] sm:$0xff]
        %v1851 = vld [vmem:[%s1648 + $0x61] sm:$0xff]
        %v1852 = vld [vmem:[%s1648 + $0x69] sm:$0xff]
        %v1853 = vld [vmem:[%s1648 + $0x79] sm:$0xff]
        %v1854 = vld [vmem:[%s1648 + $0x81] sm:$0xff]
        %v1855 = vld [vmem:[%s1648 + $0x91] sm:$0xff]
        %v1856 = vld [vmem:[%s1648 + $0x99] sm:$0xff]
        %v1857 = vld [vmem:[%s1648 + $0xa9] sm:$0xff]
        %v1858 = vld [vmem:[%s1648 + $0xb1] sm:$0xff]
        %s1859 = scalar_lea.vmem [#allocation7], 896
        %v1860 = vld [vmem:[%s1859] sm:$0xff]
        %v1861 = vld [vmem:[%s1859 + $0x8] sm:$0xff]
        %v1862 = vld [vmem:[%s1859 + $0x10] sm:$0xff]
        %v1863 = vld [vmem:[%s1859 + $0x18] sm:$0xff]
        %v1864 = vld [vmem:[%s1859 + $0x20] sm:$0xff]
        %v1865 = vld [vmem:[%s1859 + $0x28] sm:$0xff]
        %v1866 = vld [vmem:[%s1859 + $0x30] sm:$0xff]
        %v1867 = vld [vmem:[%s1859 + $0x38] sm:$0xff]
        %v1868 = vld [vmem:[%s1859 + $0x40] sm:$0xff]
        %v1869 = vld [vmem:[%s1859 + $0x48] sm:$0xff]
        %v1870 = vld [vmem:[%s1859 + $0x50] sm:$0xff]
        %v1871 = vld [vmem:[%s1859 + $0x58] sm:$0xff]
        %v1872 = vld [vmem:[%s1859 + $0x60] sm:$0xff]
        %v1873 = vld [vmem:[%s1859 + $0x68] sm:$0xff]
        %v1874 = vld [vmem:[%s1859 + $0x70] sm:$0xff]
        %v1875 = vld [vmem:[%s1859 + $0x78] sm:$0xff]
        %1876 = vmatprep.subr.mxu0 0.0
        %1877 = vmatpush1.msra.mxu0 %v1875
        %1878 = vmatprep.subr.mxu0 0.0
        %1879 = vmatpush1.msra.mxu0 %v1874
        %1880 = vmatprep.subr.mxu0 0.0
        %1881 = vmatpush1.msra.mxu0 %v1873
        %1882 = vmatprep.subr.mxu0 0.0
        %1883 = vmatpush1.msra.mxu0 %v1872
        %1884 = vmatprep.subr.mxu0 0.0
        %1885 = vmatpush1.msra.mxu0 %v1871
        %1886 = vmatprep.subr.mxu0 0.0
        %1887 = vmatpush1.msra.mxu0 %v1870
        %1888 = vmatprep.subr.mxu0 0.0
        %1889 = vmatpush1.msra.mxu0 %v1869
        %1890 = vmatprep.subr.mxu0 0.0
        %1891 = vmatpush1.msra.mxu0 %v1868
        %1892 = vmatprep.subr.mxu0 0.0
        %1893 = vmatpush1.msra.mxu0 %v1867
        %1894 = vmatprep.subr.mxu0 0.0
        %1895 = vmatpush1.msra.mxu0 %v1866
        %1896 = vmatprep.subr.mxu0 0.0
        %1897 = vmatpush1.msra.mxu0 %v1865
        %1898 = vmatprep.subr.mxu0 0.0
        %1899 = vmatpush1.msra.mxu0 %v1864
        %1900 = vmatprep.subr.mxu0 0.0
        %1901 = vmatpush1.msra.mxu0 %v1863
        %1902 = vmatprep.subr.mxu0 0.0
        %1903 = vmatpush1.msra.mxu0 %v1862
        %1904 = vmatprep.subr.mxu0 0.0
        %1905 = vmatpush1.msra.mxu0 %v1861
        %1906 = vmatprep.subr.mxu0 0.0
        %1907 = vmatpush1.msra.mxu0 %v1860
        %1908 = vmatprep.subr.mxu0 0.0
        %1909 = vmatpush2.msra.mxu0 0.0
        %1910 = vmatprep.subr.mxu0 0.0
        %1911 = vmatpush2.msra.mxu0 0.0
        %1912 = vmatprep.subr.mxu0 0.0
        %1913 = vmatpush2.msra.mxu0 0.0
        %1914 = vmatprep.subr.mxu0 0.0
        %1915 = vmatpush2.msra.mxu0 0.0
        %1916 = vmatprep.subr.mxu0 0.0
        %1917 = vmatpush2.msra.mxu0 0.0
        %1918 = vmatprep.subr.mxu0 0.0
        %1919 = vmatpush2.msra.mxu0 0.0
        %1920 = vmatprep.subr.mxu0 0.0
        %1921 = vmatpush2.msra.mxu0 0.0
        %1922 = vmatprep.subr.mxu0 0.0
        %1923 = vmatpush2.msra.mxu0 0.0
        %1924 = vmatprep.subr.mxu0 0.0
        %1925 = vmatpush2.msra.mxu0 0.0
        %1926 = vmatprep.subr.mxu0 0.0
        %1927 = vmatpush2.msra.mxu0 0.0
        %1928 = vmatprep.subr.mxu0 0.0
        %1929 = vmatpush2.msra.mxu0 0.0
        %1930 = vmatprep.subr.mxu0 0.0
        %1931 = vmatpush2.msra.mxu0 0.0
        %1932 = vmatprep.subr.mxu0 0.0
        %1933 = vmatpush2.msra.mxu0 0.0
        %1934 = vmatprep.subr.mxu0 0.0
        %1935 = vmatpush2.msra.mxu0 0.0
        %1936 = vmatprep.subr.mxu0 0.0
        %1937 = vmatpush2.msra.mxu0 0.0
        %1938 = vmatprep.subr.mxu0 0.0
        %1939 = vmatpush2.msra.mxu0 0.0
        %1940 = vmatprep.mubr.f32.mxu0 0.0
        %1941 = vmatmul.mubr.f32.gmra.mxu0 %v1843
        %v1942 = vpop.f32.mrf.mxu0
        %v1943 = vadd.f32 0.0, %v1942
        %v1944 = vpop.f32.mrf.mxu0
        %1945 = vmatprep.mubr.f32.mxu0 0.0
        %1946 = vmatmul.mubr.f32.gmra.mxu0 %v1844
        %v1947 = vpop.f32.mrf.mxu0
        %v1948 = vadd.f32 0.0, %v1947
        %v1949 = vpop.f32.mrf.mxu0
        %1950 = vmatprep.mubr.f32.mxu0 0.0
        %1951 = vmatmul.mubr.f32.gmra.mxu0 %v1845
        %v1952 = vpop.f32.mrf.mxu0
        %v1953 = vadd.f32 0.0, %v1952
        %v1954 = vpop.f32.mrf.mxu0
        %1955 = vmatprep.mubr.f32.mxu0 0.0
        %1956 = vmatmul.mubr.f32.gmra.mxu0 %v1846
        %v1957 = vpop.f32.mrf.mxu0
        %v1958 = vadd.f32 0.0, %v1957
        %v1959 = vpop.f32.mrf.mxu0
        %1960 = vmatprep.mubr.f32.mxu0 0.0
        %1961 = vmatmul.mubr.f32.gmra.mxu0 %v1847
        %v1962 = vpop.f32.mrf.mxu0
        %v1963 = vadd.f32 0.0, %v1962
        %v1964 = vpop.f32.mrf.mxu0
        %1965 = vmatprep.mubr.f32.mxu0 0.0
        %1966 = vmatmul.mubr.f32.gmra.mxu0 %v1848
        %v1967 = vpop.f32.mrf.mxu0
        %v1968 = vadd.f32 0.0, %v1967
        %v1969 = vpop.f32.mrf.mxu0
        %1970 = vmatprep.mubr.f32.mxu0 0.0
        %1971 = vmatmul.mubr.f32.gmra.mxu0 %v1849
        %v1972 = vpop.f32.mrf.mxu0
        %v1973 = vadd.f32 0.0, %v1972
        %v1974 = vpop.f32.mrf.mxu0
        %1975 = vmatprep.mubr.f32.mxu0 0.0
        %1976 = vmatmul.mubr.f32.gmra.mxu0 %v1850
        %v1977 = vpop.f32.mrf.mxu0
        %v1978 = vadd.f32 0.0, %v1977
        %v1979 = vpop.f32.mrf.mxu0
        %1980 = vmatprep.mubr.f32.mxu0 0.0
        %1981 = vmatmul.mubr.f32.gmra.mxu0 %v1851
        %v1982 = vpop.f32.mrf.mxu0
        %v1983 = vadd.f32 0.0, %v1982
        %v1984 = vpop.f32.mrf.mxu0
        %1985 = vmatprep.mubr.f32.mxu0 0.0
        %1986 = vmatmul.mubr.f32.gmra.mxu0 %v1852
        %v1987 = vpop.f32.mrf.mxu0
        %v1988 = vadd.f32 0.0, %v1987
        %v1989 = vpop.f32.mrf.mxu0
        %1990 = vmatprep.mubr.f32.mxu0 0.0
        %1991 = vmatmul.mubr.f32.gmra.mxu0 %v1853
        %v1992 = vpop.f32.mrf.mxu0
        %v1993 = vadd.f32 0.0, %v1992
        %v1994 = vpop.f32.mrf.mxu0
        %1995 = vmatprep.mubr.f32.mxu0 0.0
        %1996 = vmatmul.mubr.f32.gmra.mxu0 %v1854
        %v1997 = vpop.f32.mrf.mxu0
        %v1998 = vadd.f32 0.0, %v1997
        %v1999 = vpop.f32.mrf.mxu0
        %2000 = vmatprep.mubr.f32.mxu0 0.0
        %2001 = vmatmul.mubr.f32.gmra.mxu0 %v1855
        %v2002 = vpop.f32.mrf.mxu0
        %v2003 = vadd.f32 0.0, %v2002
        %v2004 = vpop.f32.mrf.mxu0
        %2005 = vmatprep.mubr.f32.mxu0 0.0
        %2006 = vmatmul.mubr.f32.gmra.mxu0 %v1856
        %v2007 = vpop.f32.mrf.mxu0
        %v2008 = vadd.f32 0.0, %v2007
        %v2009 = vpop.f32.mrf.mxu0
        %2010 = vmatprep.mubr.f32.mxu0 0.0
        %2011 = vmatmul.mubr.f32.gmra.mxu0 %v1857
        %v2012 = vpop.f32.mrf.mxu0
        %v2013 = vadd.f32 0.0, %v2012
        %v2014 = vpop.f32.mrf.mxu0
        %2015 = vmatprep.mubr.f32.mxu0 0.0
        %2016 = vmatmul.mubr.f32.gmra.mxu0 %v1858
        %v2017 = vpop.f32.mrf.mxu0
        %v2018 = vadd.f32 0.0, %v2017
        %v2019 = vpop.f32.mrf.mxu0
        %2020 = vdwg.mxu0
        %v2021 = vadd.f32 %v1827, %v1943
        %v2022 = vadd.f32 %v1828, %v1948
        %v2023 = vadd.f32 %v1829, %v1953
        %v2024 = vadd.f32 %v1830, %v1958
        %v2025 = vadd.f32 %v1831, %v1963
        %v2026 = vadd.f32 %v1832, %v1968
        %v2027 = vadd.f32 %v1833, %v1973
        %v2028 = vadd.f32 %v1834, %v1978
        %v2029 = vadd.f32 %v1835, %v1983
        %v2030 = vadd.f32 %v1836, %v1988
        %v2031 = vadd.f32 %v1837, %v1993
        %v2032 = vadd.f32 %v1838, %v1998
        %v2033 = vadd.f32 %v1839, %v2003
        %v2034 = vadd.f32 %v1840, %v2008
        %v2035 = vadd.f32 %v1841, %v2013
        %v2036 = vadd.f32 %v1842, %v2018
        %v2037 = vld [vmem:[%s1648 + $0x2] sm:$0xff]
        %v2038 = vld [vmem:[%s1648 + $0xa] sm:$0xff]
        %v2039 = vld [vmem:[%s1648 + $0x1a] sm:$0xff]
        %v2040 = vld [vmem:[%s1648 + $0x22] sm:$0xff]
        %v2041 = vld [vmem:[%s1648 + $0x32] sm:$0xff]
        %v2042 = vld [vmem:[%s1648 + $0x3a] sm:$0xff]
        %v2043 = vld [vmem:[%s1648 + $0x4a] sm:$0xff]
        %v2044 = vld [vmem:[%s1648 + $0x52] sm:$0xff]
        %v2045 = vld [vmem:[%s1648 + $0x62] sm:$0xff]
        %v2046 = vld [vmem:[%s1648 + $0x6a] sm:$0xff]
        %v2047 = vld [vmem:[%s1648 + $0x7a] sm:$0xff]
        %v2048 = vld [vmem:[%s1648 + $0x82] sm:$0xff]
        %v2049 = vld [vmem:[%s1648 + $0x92] sm:$0xff]
        %v2050 = vld [vmem:[%s1648 + $0x9a] sm:$0xff]
        %v2051 = vld [vmem:[%s1648 + $0xaa] sm:$0xff]
        %v2052 = vld [vmem:[%s1648 + $0xb2] sm:$0xff]
        %s2053 = scalar_lea.vmem [#allocation7], 1024
        %v2054 = vld [vmem:[%s2053] sm:$0xff]
        %v2055 = vld [vmem:[%s2053 + $0x8] sm:$0xff]
        %v2056 = vld [vmem:[%s2053 + $0x10] sm:$0xff]
        %v2057 = vld [vmem:[%s2053 + $0x18] sm:$0xff]
        %v2058 = vld [vmem:[%s2053 + $0x20] sm:$0xff]
        %v2059 = vld [vmem:[%s2053 + $0x28] sm:$0xff]
        %v2060 = vld [vmem:[%s2053 + $0x30] sm:$0xff]
        %v2061 = vld [vmem:[%s2053 + $0x38] sm:$0xff]
        %v2062 = vld [vmem:[%s2053 + $0x40] sm:$0xff]
        %v2063 = vld [vmem:[%s2053 + $0x48] sm:$0xff]
        %v2064 = vld [vmem:[%s2053 + $0x50] sm:$0xff]
        %v2065 = vld [vmem:[%s2053 + $0x58] sm:$0xff]
        %v2066 = vld [vmem:[%s2053 + $0x60] sm:$0xff]
        %v2067 = vld [vmem:[%s2053 + $0x68] sm:$0xff]
        %v2068 = vld [vmem:[%s2053 + $0x70] sm:$0xff]
        %v2069 = vld [vmem:[%s2053 + $0x78] sm:$0xff]
        %2070 = vmatprep.subr.mxu0 0.0
        %2071 = vmatpush1.msra.mxu0 %v2069
        %2072 = vmatprep.subr.mxu0 0.0
        %2073 = vmatpush1.msra.mxu0 %v2068
        %2074 = vmatprep.subr.mxu0 0.0
        %2075 = vmatpush1.msra.mxu0 %v2067
        %2076 = vmatprep.subr.mxu0 0.0
        %2077 = vmatpush1.msra.mxu0 %v2066
        %2078 = vmatprep.subr.mxu0 0.0
        %2079 = vmatpush1.msra.mxu0 %v2065
        %2080 = vmatprep.subr.mxu0 0.0
        %2081 = vmatpush1.msra.mxu0 %v2064
        %2082 = vmatprep.subr.mxu0 0.0
        %2083 = vmatpush1.msra.mxu0 %v2063
        %2084 = vmatprep.subr.mxu0 0.0
        %2085 = vmatpush1.msra.mxu0 %v2062
        %2086 = vmatprep.subr.mxu0 0.0
        %2087 = vmatpush1.msra.mxu0 %v2061
        %2088 = vmatprep.subr.mxu0 0.0
        %2089 = vmatpush1.msra.mxu0 %v2060
        %2090 = vmatprep.subr.mxu0 0.0
        %2091 = vmatpush1.msra.mxu0 %v2059
        %2092 = vmatprep.subr.mxu0 0.0
        %2093 = vmatpush1.msra.mxu0 %v2058
        %2094 = vmatprep.subr.mxu0 0.0
        %2095 = vmatpush1.msra.mxu0 %v2057
        %2096 = vmatprep.subr.mxu0 0.0
        %2097 = vmatpush1.msra.mxu0 %v2056
        %2098 = vmatprep.subr.mxu0 0.0
        %2099 = vmatpush1.msra.mxu0 %v2055
        %2100 = vmatprep.subr.mxu0 0.0
        %2101 = vmatpush1.msra.mxu0 %v2054
        %2102 = vmatprep.subr.mxu0 0.0
        %2103 = vmatpush2.msra.mxu0 0.0
        %2104 = vmatprep.subr.mxu0 0.0
        %2105 = vmatpush2.msra.mxu0 0.0
        %2106 = vmatprep.subr.mxu0 0.0
        %2107 = vmatpush2.msra.mxu0 0.0
        %2108 = vmatprep.subr.mxu0 0.0
        %2109 = vmatpush2.msra.mxu0 0.0
        %2110 = vmatprep.subr.mxu0 0.0
        %2111 = vmatpush2.msra.mxu0 0.0
        %2112 = vmatprep.subr.mxu0 0.0
        %2113 = vmatpush2.msra.mxu0 0.0
        %2114 = vmatprep.subr.mxu0 0.0
        %2115 = vmatpush2.msra.mxu0 0.0
        %2116 = vmatprep.subr.mxu0 0.0
        %2117 = vmatpush2.msra.mxu0 0.0
        %2118 = vmatprep.subr.mxu0 0.0
        %2119 = vmatpush2.msra.mxu0 0.0
        %2120 = vmatprep.subr.mxu0 0.0
        %2121 = vmatpush2.msra.mxu0 0.0
        %2122 = vmatprep.subr.mxu0 0.0
        %2123 = vmatpush2.msra.mxu0 0.0
        %2124 = vmatprep.subr.mxu0 0.0
        %2125 = vmatpush2.msra.mxu0 0.0
        %2126 = vmatprep.subr.mxu0 0.0
        %2127 = vmatpush2.msra.mxu0 0.0
        %2128 = vmatprep.subr.mxu0 0.0
        %2129 = vmatpush2.msra.mxu0 0.0
        %2130 = vmatprep.subr.mxu0 0.0
        %2131 = vmatpush2.msra.mxu0 0.0
        %2132 = vmatprep.subr.mxu0 0.0
        %2133 = vmatpush2.msra.mxu0 0.0
        %2134 = vmatprep.mubr.f32.mxu0 0.0
        %2135 = vmatmul.mubr.f32.gmra.mxu0 %v2037
        %v2136 = vpop.f32.mrf.mxu0
        %v2137 = vadd.f32 0.0, %v2136
        %v2138 = vpop.f32.mrf.mxu0
        %2139 = vmatprep.mubr.f32.mxu0 0.0
        %2140 = vmatmul.mubr.f32.gmra.mxu0 %v2038
        %v2141 = vpop.f32.mrf.mxu0
        %v2142 = vadd.f32 0.0, %v2141
        %v2143 = vpop.f32.mrf.mxu0
        %2144 = vmatprep.mubr.f32.mxu0 0.0
        %2145 = vmatmul.mubr.f32.gmra.mxu0 %v2039
        %v2146 = vpop.f32.mrf.mxu0
        %v2147 = vadd.f32 0.0, %v2146
        %v2148 = vpop.f32.mrf.mxu0
        %2149 = vmatprep.mubr.f32.mxu0 0.0
        %2150 = vmatmul.mubr.f32.gmra.mxu0 %v2040
        %v2151 = vpop.f32.mrf.mxu0
        %v2152 = vadd.f32 0.0, %v2151
        %v2153 = vpop.f32.mrf.mxu0
        %2154 = vmatprep.mubr.f32.mxu0 0.0
        %2155 = vmatmul.mubr.f32.gmra.mxu0 %v2041
        %v2156 = vpop.f32.mrf.mxu0
        %v2157 = vadd.f32 0.0, %v2156
        %v2158 = vpop.f32.mrf.mxu0
        %2159 = vmatprep.mubr.f32.mxu0 0.0
        %2160 = vmatmul.mubr.f32.gmra.mxu0 %v2042
        %v2161 = vpop.f32.mrf.mxu0
        %v2162 = vadd.f32 0.0, %v2161
        %v2163 = vpop.f32.mrf.mxu0
        %2164 = vmatprep.mubr.f32.mxu0 0.0
        %2165 = vmatmul.mubr.f32.gmra.mxu0 %v2043
        %v2166 = vpop.f32.mrf.mxu0
        %v2167 = vadd.f32 0.0, %v2166
        %v2168 = vpop.f32.mrf.mxu0
        %2169 = vmatprep.mubr.f32.mxu0 0.0
        %2170 = vmatmul.mubr.f32.gmra.mxu0 %v2044
        %v2171 = vpop.f32.mrf.mxu0
        %v2172 = vadd.f32 0.0, %v2171
        %v2173 = vpop.f32.mrf.mxu0
        %2174 = vmatprep.mubr.f32.mxu0 0.0
        %2175 = vmatmul.mubr.f32.gmra.mxu0 %v2045
        %v2176 = vpop.f32.mrf.mxu0
        %v2177 = vadd.f32 0.0, %v2176
        %v2178 = vpop.f32.mrf.mxu0
        %2179 = vmatprep.mubr.f32.mxu0 0.0
        %2180 = vmatmul.mubr.f32.gmra.mxu0 %v2046
        %v2181 = vpop.f32.mrf.mxu0
        %v2182 = vadd.f32 0.0, %v2181
        %v2183 = vpop.f32.mrf.mxu0
        %2184 = vmatprep.mubr.f32.mxu0 0.0
        %2185 = vmatmul.mubr.f32.gmra.mxu0 %v2047
        %v2186 = vpop.f32.mrf.mxu0
        %v2187 = vadd.f32 0.0, %v2186
        %v2188 = vpop.f32.mrf.mxu0
        %2189 = vmatprep.mubr.f32.mxu0 0.0
        %2190 = vmatmul.mubr.f32.gmra.mxu0 %v2048
        %v2191 = vpop.f32.mrf.mxu0
        %v2192 = vadd.f32 0.0, %v2191
        %v2193 = vpop.f32.mrf.mxu0
        %2194 = vmatprep.mubr.f32.mxu0 0.0
        %2195 = vmatmul.mubr.f32.gmra.mxu0 %v2049
        %v2196 = vpop.f32.mrf.mxu0
        %v2197 = vadd.f32 0.0, %v2196
        %v2198 = vpop.f32.mrf.mxu0
        %2199 = vmatprep.mubr.f32.mxu0 0.0
        %2200 = vmatmul.mubr.f32.gmra.mxu0 %v2050
        %v2201 = vpop.f32.mrf.mxu0
        %v2202 = vadd.f32 0.0, %v2201
        %v2203 = vpop.f32.mrf.mxu0
        %2204 = vmatprep.mubr.f32.mxu0 0.0
        %2205 = vmatmul.mubr.f32.gmra.mxu0 %v2051
        %v2206 = vpop.f32.mrf.mxu0
        %v2207 = vadd.f32 0.0, %v2206
        %v2208 = vpop.f32.mrf.mxu0
        %2209 = vmatprep.mubr.f32.mxu0 0.0
        %2210 = vmatmul.mubr.f32.gmra.mxu0 %v2052
        %v2211 = vpop.f32.mrf.mxu0
        %v2212 = vadd.f32 0.0, %v2211
        %v2213 = vpop.f32.mrf.mxu0
        %2214 = vdwg.mxu0
        %v2215 = vadd.f32 %v2021, %v2137
        %v2216 = vadd.f32 %v2022, %v2142
        %v2217 = vadd.f32 %v2023, %v2147
        %v2218 = vadd.f32 %v2024, %v2152
        %v2219 = vadd.f32 %v2025, %v2157
        %v2220 = vadd.f32 %v2026, %v2162
        %v2221 = vadd.f32 %v2027, %v2167
        %v2222 = vadd.f32 %v2028, %v2172
        %v2223 = vadd.f32 %v2029, %v2177
        %v2224 = vadd.f32 %v2030, %v2182
        %v2225 = vadd.f32 %v2031, %v2187
        %v2226 = vadd.f32 %v2032, %v2192
        %v2227 = vadd.f32 %v2033, %v2197
        %v2228 = vadd.f32 %v2034, %v2202
        %v2229 = vadd.f32 %v2035, %v2207
        %v2230 = vadd.f32 %v2036, %v2212
        %v2232 = vlaneseq
        %v2233 = vshrl.u32 %v2232, 7
        %v2234 = vsub.s32 0, %v2233
        %v2235 = vrot.slane %v514, %v2234
        %v2237 = vadd.f32 %v2215, %v2235
        %v2238 = vadd.f32 %v2216, %v2235
        %v2239 = vadd.f32 %v2217, %v2235
        %v2240 = vadd.f32 %v2218, %v2235
        %v2241 = vadd.f32 %v2219, %v2235
        %v2242 = vadd.f32 %v2220, %v2235
        %v2243 = vadd.f32 %v2221, %v2235
        %v2244 = vadd.f32 %v2222, %v2235
        %v2245 = vadd.f32 %v2223, %v2235
        %v2246 = vadd.f32 %v2224, %v2235
        %v2247 = vadd.f32 %v2225, %v2235
        %v2248 = vadd.f32 %v2226, %v2235
        %v2249 = vadd.f32 %v2227, %v2235
        %v2250 = vadd.f32 %v2228, %v2235
        %v2251 = vadd.f32 %v2229, %v2235
        %v2252 = vadd.f32 %v2230, %v2235
        %v2253 = vmax.f32 %v2237, 0.0
        %v2254 = vmax.f32 %v2238, 0.0
        %v2255 = vmax.f32 %v2239, 0.0
        %v2256 = vmax.f32 %v2240, 0.0
        %v2257 = vmax.f32 %v2241, 0.0
        %v2258 = vmax.f32 %v2242, 0.0
        %v2259 = vmax.f32 %v2243, 0.0
        %v2260 = vmax.f32 %v2244, 0.0
        %v2261 = vmax.f32 %v2245, 0.0
        %v2262 = vmax.f32 %v2246, 0.0
        %v2263 = vmax.f32 %v2247, 0.0
        %v2264 = vmax.f32 %v2248, 0.0
        %v2265 = vmax.f32 %v2249, 0.0
        %v2266 = vmax.f32 %v2250, 0.0
        %v2267 = vmax.f32 %v2251, 0.0
        %v2268 = vmax.f32 %v2252, 0.0
        %s2269 = scalar_lea.vmem [#allocation3], 24
        %2270 = vst [vmem:[%s2269 + $0x1] sm:$0xff] %v2253
        %2271 = vst [vmem:[%s2269 + $0x9] sm:$0xff] %v2254
        %2272 = vst [vmem:[%s2269 + $0x19] sm:$0xff] %v2255
        %2273 = vst [vmem:[%s2269 + $0x21] sm:$0xff] %v2256
        %2274 = vst [vmem:[%s2269 + $0x31] sm:$0xff] %v2257
        %2275 = vst [vmem:[%s2269 + $0x39] sm:$0xff] %v2258
        %2276 = vst [vmem:[%s2269 + $0x49] sm:$0xff] %v2259
        %2277 = vst [vmem:[%s2269 + $0x51] sm:$0xff] %v2260
        %2278 = vst [vmem:[%s2269 + $0x61] sm:$0xff] %v2261
        %2279 = vst [vmem:[%s2269 + $0x69] sm:$0xff] %v2262
        %2280 = vst [vmem:[%s2269 + $0x79] sm:$0xff] %v2263
        %2281 = vst [vmem:[%s2269 + $0x81] sm:$0xff] %v2264
        %2282 = vst [vmem:[%s2269 + $0x91] sm:$0xff] %v2265
        %2283 = vst [vmem:[%s2269 + $0x99] sm:$0xff] %v2266
        %2284 = vst [vmem:[%s2269 + $0xa9] sm:$0xff] %v2267
        %2285 = vst [vmem:[%s2269 + $0xb1] sm:$0xff] %v2268
        %s2286 = scalar_lea.vmem [#allocation2], 192
        %v2287 = vld [vmem:[%s2286] sm:$0xff]
        %v2288 = vld [vmem:[%s2286 + $0x8] sm:$0xff]
        %v2289 = vld [vmem:[%s2286 + $0x18] sm:$0xff]
        %v2290 = vld [vmem:[%s2286 + $0x20] sm:$0xff]
        %v2291 = vld [vmem:[%s2286 + $0x30] sm:$0xff]
        %v2292 = vld [vmem:[%s2286 + $0x38] sm:$0xff]
        %v2293 = vld [vmem:[%s2286 + $0x48] sm:$0xff]
        %v2294 = vld [vmem:[%s2286 + $0x50] sm:$0xff]
        %v2295 = vld [vmem:[%s2286 + $0x60] sm:$0xff]
        %v2296 = vld [vmem:[%s2286 + $0x68] sm:$0xff]
        %v2297 = vld [vmem:[%s2286 + $0x78] sm:$0xff]
        %v2298 = vld [vmem:[%s2286 + $0x80] sm:$0xff]
        %v2299 = vld [vmem:[%s2286 + $0x90] sm:$0xff]
        %v2300 = vld [vmem:[%s2286 + $0x98] sm:$0xff]
        %v2301 = vld [vmem:[%s2286 + $0xa8] sm:$0xff]
        %v2302 = vld [vmem:[%s2286 + $0xb0] sm:$0xff]
        %v2303 = vld [vmem:[#allocation7] sm:$0xff]
        %v2304 = vld [vmem:[#allocation7 + $0x8] sm:$0xff]
        %v2305 = vld [vmem:[#allocation7 + $0x10] sm:$0xff]
        %v2306 = vld [vmem:[#allocation7 + $0x18] sm:$0xff]
        %v2307 = vld [vmem:[#allocation7 + $0x20] sm:$0xff]
        %v2308 = vld [vmem:[#allocation7 + $0x28] sm:$0xff]
        %v2309 = vld [vmem:[#allocation7 + $0x30] sm:$0xff]
        %v2310 = vld [vmem:[#allocation7 + $0x38] sm:$0xff]
        %v2311 = vld [vmem:[#allocation7 + $0x40] sm:$0xff]
        %v2312 = vld [vmem:[#allocation7 + $0x48] sm:$0xff]
        %v2313 = vld [vmem:[#allocation7 + $0x50] sm:$0xff]
        %v2314 = vld [vmem:[#allocation7 + $0x58] sm:$0xff]
        %v2315 = vld [vmem:[#allocation7 + $0x60] sm:$0xff]
        %v2316 = vld [vmem:[#allocation7 + $0x68] sm:$0xff]
        %v2317 = vld [vmem:[#allocation7 + $0x70] sm:$0xff]
        %v2318 = vld [vmem:[#allocation7 + $0x78] sm:$0xff]
        %v2319 = vld [vmem:[%s2286 + $0x1] sm:$0xff]
        %v2320 = vld [vmem:[%s2286 + $0x9] sm:$0xff]
        %v2321 = vld [vmem:[%s2286 + $0x19] sm:$0xff]
        %v2322 = vld [vmem:[%s2286 + $0x21] sm:$0xff]
        %v2323 = vld [vmem:[%s2286 + $0x31] sm:$0xff]
        %v2324 = vld [vmem:[%s2286 + $0x39] sm:$0xff]
        %v2325 = vld [vmem:[%s2286 + $0x49] sm:$0xff]
        %v2326 = vld [vmem:[%s2286 + $0x51] sm:$0xff]
        %v2327 = vld [vmem:[%s2286 + $0x61] sm:$0xff]
        %v2328 = vld [vmem:[%s2286 + $0x69] sm:$0xff]
        %v2329 = vld [vmem:[%s2286 + $0x79] sm:$0xff]
        %v2330 = vld [vmem:[%s2286 + $0x81] sm:$0xff]
        %v2331 = vld [vmem:[%s2286 + $0x91] sm:$0xff]
        %v2332 = vld [vmem:[%s2286 + $0x99] sm:$0xff]
        %v2333 = vld [vmem:[%s2286 + $0xa9] sm:$0xff]
        %v2334 = vld [vmem:[%s2286 + $0xb1] sm:$0xff]
        %v2335 = vld [vmem:[%s565] sm:$0xff]
        %v2336 = vld [vmem:[%s565 + $0x8] sm:$0xff]
        %v2337 = vld [vmem:[%s565 + $0x10] sm:$0xff]
        %v2338 = vld [vmem:[%s565 + $0x18] sm:$0xff]
        %v2339 = vld [vmem:[%s565 + $0x20] sm:$0xff]
        %v2340 = vld [vmem:[%s565 + $0x28] sm:$0xff]
        %v2341 = vld [vmem:[%s565 + $0x30] sm:$0xff]
        %v2342 = vld [vmem:[%s565 + $0x38] sm:$0xff]
        %v2343 = vld [vmem:[%s565 + $0x40] sm:$0xff]
        %v2344 = vld [vmem:[%s565 + $0x48] sm:$0xff]
        %v2345 = vld [vmem:[%s565 + $0x50] sm:$0xff]
        %v2346 = vld [vmem:[%s565 + $0x58] sm:$0xff]
        %v2347 = vld [vmem:[%s565 + $0x60] sm:$0xff]
        %v2348 = vld [vmem:[%s565 + $0x68] sm:$0xff]
        %v2349 = vld [vmem:[%s565 + $0x70] sm:$0xff]
        %v2350 = vld [vmem:[%s565 + $0x78] sm:$0xff]
        %2351 = vmatprep.subr.mxu0 0.0
        %2352 = vmatpush1.msra.mxu0 %v2350
        %2353 = vmatprep.subr.mxu0 0.0
        %2354 = vmatpush1.msra.mxu0 %v2349
        %2355 = vmatprep.subr.mxu0 0.0
        %2356 = vmatpush1.msra.mxu0 %v2348
        %2357 = vmatprep.subr.mxu0 0.0
        %2358 = vmatpush1.msra.mxu0 %v2347
        %2359 = vmatprep.subr.mxu0 0.0
        %2360 = vmatpush1.msra.mxu0 %v2346
        %2361 = vmatprep.subr.mxu0 0.0
        %2362 = vmatpush1.msra.mxu0 %v2345
        %2363 = vmatprep.subr.mxu0 0.0
        %2364 = vmatpush1.msra.mxu0 %v2344
        %2365 = vmatprep.subr.mxu0 0.0
        %2366 = vmatpush1.msra.mxu0 %v2343
        %2367 = vmatprep.subr.mxu0 0.0
        %2368 = vmatpush1.msra.mxu0 %v2342
        %2369 = vmatprep.subr.mxu0 0.0
        %2370 = vmatpush1.msra.mxu0 %v2341
        %2371 = vmatprep.subr.mxu0 0.0
        %2372 = vmatpush1.msra.mxu0 %v2340
        %2373 = vmatprep.subr.mxu0 0.0
        %2374 = vmatpush1.msra.mxu0 %v2339
        %2375 = vmatprep.subr.mxu0 0.0
        %2376 = vmatpush1.msra.mxu0 %v2338
        %2377 = vmatprep.subr.mxu0 0.0
        %2378 = vmatpush1.msra.mxu0 %v2337
        %2379 = vmatprep.subr.mxu0 0.0
        %2380 = vmatpush1.msra.mxu0 %v2336
        %2381 = vmatprep.subr.mxu0 0.0
        %2382 = vmatpush1.msra.mxu0 %v2335
        %2383 = vmatprep.subr.mxu0 0.0
        %2384 = vmatpush2.msra.mxu0 0.0
        %2385 = vmatprep.subr.mxu0 0.0
        %2386 = vmatpush2.msra.mxu0 0.0
        %2387 = vmatprep.subr.mxu0 0.0
        %2388 = vmatpush2.msra.mxu0 0.0
        %2389 = vmatprep.subr.mxu0 0.0
        %2390 = vmatpush2.msra.mxu0 0.0
        %2391 = vmatprep.subr.mxu0 0.0
        %2392 = vmatpush2.msra.mxu0 0.0
        %2393 = vmatprep.subr.mxu0 0.0
        %2394 = vmatpush2.msra.mxu0 0.0
        %2395 = vmatprep.subr.mxu0 0.0
        %2396 = vmatpush2.msra.mxu0 0.0
        %2397 = vmatprep.subr.mxu0 0.0
        %2398 = vmatpush2.msra.mxu0 0.0
        %2399 = vmatprep.subr.mxu0 0.0
        %2400 = vmatpush2.msra.mxu0 0.0
        %2401 = vmatprep.subr.mxu0 0.0
        %2402 = vmatpush2.msra.mxu0 0.0
        %2403 = vmatprep.subr.mxu0 0.0
        %2404 = vmatpush2.msra.mxu0 0.0
        %2405 = vmatprep.subr.mxu0 0.0
        %2406 = vmatpush2.msra.mxu0 0.0
        %2407 = vmatprep.subr.mxu0 0.0
        %2408 = vmatpush2.msra.mxu0 0.0
        %2409 = vmatprep.subr.mxu0 0.0
        %2410 = vmatpush2.msra.mxu0 0.0
        %2411 = vmatprep.subr.mxu0 0.0
        %2412 = vmatpush2.msra.mxu0 0.0
        %2413 = vmatprep.subr.mxu0 0.0
        %2414 = vmatpush2.msra.mxu0 0.0
        %2415 = vmatprep.mubr.f32.mxu0 0.0
        %2416 = vmatmul.mubr.f32.gmra.mxu0 %v2319
        %v2417 = vpop.f32.mrf.mxu0
        %v2418 = vadd.f32 0.0, %v2417
        %v2419 = vpop.f32.mrf.mxu0
        %2420 = vmatprep.mubr.f32.mxu0 0.0
        %2421 = vmatmul.mubr.f32.gmra.mxu0 %v2320
        %v2422 = vpop.f32.mrf.mxu0
        %v2423 = vadd.f32 0.0, %v2422
        %v2424 = vpop.f32.mrf.mxu0
        %2425 = vmatprep.mubr.f32.mxu0 0.0
        %2426 = vmatmul.mubr.f32.gmra.mxu0 %v2321
        %v2427 = vpop.f32.mrf.mxu0
        %v2428 = vadd.f32 0.0, %v2427
        %v2429 = vpop.f32.mrf.mxu0
        %2430 = vmatprep.mubr.f32.mxu0 0.0
        %2431 = vmatmul.mubr.f32.gmra.mxu0 %v2322
        %v2432 = vpop.f32.mrf.mxu0
        %v2433 = vadd.f32 0.0, %v2432
        %v2434 = vpop.f32.mrf.mxu0
        %2435 = vmatprep.mubr.f32.mxu0 0.0
        %2436 = vmatmul.mubr.f32.gmra.mxu0 %v2323
        %v2437 = vpop.f32.mrf.mxu0
        %v2438 = vadd.f32 0.0, %v2437
        %v2439 = vpop.f32.mrf.mxu0
        %2440 = vmatprep.mubr.f32.mxu0 0.0
        %2441 = vmatmul.mubr.f32.gmra.mxu0 %v2324
        %v2442 = vpop.f32.mrf.mxu0
        %v2443 = vadd.f32 0.0, %v2442
        %v2444 = vpop.f32.mrf.mxu0
        %2445 = vmatprep.mubr.f32.mxu0 0.0
        %2446 = vmatmul.mubr.f32.gmra.mxu0 %v2325
        %v2447 = vpop.f32.mrf.mxu0
        %v2448 = vadd.f32 0.0, %v2447
        %v2449 = vpop.f32.mrf.mxu0
        %2450 = vmatprep.mubr.f32.mxu0 0.0
        %2451 = vmatmul.mubr.f32.gmra.mxu0 %v2326
        %v2452 = vpop.f32.mrf.mxu0
        %v2453 = vadd.f32 0.0, %v2452
        %v2454 = vpop.f32.mrf.mxu0
        %2455 = vmatprep.mubr.f32.mxu0 0.0
        %2456 = vmatmul.mubr.f32.gmra.mxu0 %v2327
        %v2457 = vpop.f32.mrf.mxu0
        %v2458 = vadd.f32 0.0, %v2457
        %v2459 = vpop.f32.mrf.mxu0
        %2460 = vmatprep.mubr.f32.mxu0 0.0
        %2461 = vmatmul.mubr.f32.gmra.mxu0 %v2328
        %v2462 = vpop.f32.mrf.mxu0
        %v2463 = vadd.f32 0.0, %v2462
        %v2464 = vpop.f32.mrf.mxu0
        %2465 = vmatprep.mubr.f32.mxu0 0.0
        %2466 = vmatmul.mubr.f32.gmra.mxu0 %v2329
        %v2467 = vpop.f32.mrf.mxu0
        %v2468 = vadd.f32 0.0, %v2467
        %v2469 = vpop.f32.mrf.mxu0
        %2470 = vmatprep.mubr.f32.mxu0 0.0
        %2471 = vmatmul.mubr.f32.gmra.mxu0 %v2330
        %v2472 = vpop.f32.mrf.mxu0
        %v2473 = vadd.f32 0.0, %v2472
        %v2474 = vpop.f32.mrf.mxu0
        %2475 = vmatprep.mubr.f32.mxu0 0.0
        %2476 = vmatmul.mubr.f32.gmra.mxu0 %v2331
        %v2477 = vpop.f32.mrf.mxu0
        %v2478 = vadd.f32 0.0, %v2477
        %v2479 = vpop.f32.mrf.mxu0
        %2480 = vmatprep.mubr.f32.mxu0 0.0
        %2481 = vmatmul.mubr.f32.gmra.mxu0 %v2332
        %v2482 = vpop.f32.mrf.mxu0
        %v2483 = vadd.f32 0.0, %v2482
        %v2484 = vpop.f32.mrf.mxu0
        %2485 = vmatprep.mubr.f32.mxu0 0.0
        %2486 = vmatmul.mubr.f32.gmra.mxu0 %v2333
        %v2487 = vpop.f32.mrf.mxu0
        %v2488 = vadd.f32 0.0, %v2487
        %v2489 = vpop.f32.mrf.mxu0
        %2490 = vmatprep.mubr.f32.mxu0 0.0
        %2491 = vmatmul.mubr.f32.gmra.mxu0 %v2334
        %v2492 = vpop.f32.mrf.mxu0
        %v2493 = vadd.f32 0.0, %v2492
        %v2494 = vpop.f32.mrf.mxu0
        %2495 = vdwg.mxu0
        %2496 = vmatprep.subr.mxu0 0.0
        %2497 = vmatpush1.msra.mxu0 %v2318
        %2498 = vmatprep.subr.mxu0 0.0
        %2499 = vmatpush1.msra.mxu0 %v2317
        %2500 = vmatprep.subr.mxu0 0.0
        %2501 = vmatpush1.msra.mxu0 %v2316
        %2502 = vmatprep.subr.mxu0 0.0
        %2503 = vmatpush1.msra.mxu0 %v2315
        %2504 = vmatprep.subr.mxu0 0.0
        %2505 = vmatpush1.msra.mxu0 %v2314
        %2506 = vmatprep.subr.mxu0 0.0
        %2507 = vmatpush1.msra.mxu0 %v2313
        %2508 = vmatprep.subr.mxu0 0.0
        %2509 = vmatpush1.msra.mxu0 %v2312
        %2510 = vmatprep.subr.mxu0 0.0
        %2511 = vmatpush1.msra.mxu0 %v2311
        %2512 = vmatprep.subr.mxu0 0.0
        %2513 = vmatpush1.msra.mxu0 %v2310
        %2514 = vmatprep.subr.mxu0 0.0
        %2515 = vmatpush1.msra.mxu0 %v2309
        %2516 = vmatprep.subr.mxu0 0.0
        %2517 = vmatpush1.msra.mxu0 %v2308
        %2518 = vmatprep.subr.mxu0 0.0
        %2519 = vmatpush1.msra.mxu0 %v2307
        %2520 = vmatprep.subr.mxu0 0.0
        %2521 = vmatpush1.msra.mxu0 %v2306
        %2522 = vmatprep.subr.mxu0 0.0
        %2523 = vmatpush1.msra.mxu0 %v2305
        %2524 = vmatprep.subr.mxu0 0.0
        %2525 = vmatpush1.msra.mxu0 %v2304
        %2526 = vmatprep.subr.mxu0 0.0
        %2527 = vmatpush1.msra.mxu0 %v2303
        %2528 = vmatprep.subr.mxu0 0.0
        %2529 = vmatpush2.msra.mxu0 0.0
        %2530 = vmatprep.subr.mxu0 0.0
        %2531 = vmatpush2.msra.mxu0 0.0
        %2532 = vmatprep.subr.mxu0 0.0
        %2533 = vmatpush2.msra.mxu0 0.0
        %2534 = vmatprep.subr.mxu0 0.0
        %2535 = vmatpush2.msra.mxu0 0.0
        %2536 = vmatprep.subr.mxu0 0.0
        %2537 = vmatpush2.msra.mxu0 0.0
        %2538 = vmatprep.subr.mxu0 0.0
        %2539 = vmatpush2.msra.mxu0 0.0
        %2540 = vmatprep.subr.mxu0 0.0
        %2541 = vmatpush2.msra.mxu0 0.0
        %2542 = vmatprep.subr.mxu0 0.0
        %2543 = vmatpush2.msra.mxu0 0.0
        %2544 = vmatprep.subr.mxu0 0.0
        %2545 = vmatpush2.msra.mxu0 0.0
        %2546 = vmatprep.subr.mxu0 0.0
        %2547 = vmatpush2.msra.mxu0 0.0
        %2548 = vmatprep.subr.mxu0 0.0
        %2549 = vmatpush2.msra.mxu0 0.0
        %2550 = vmatprep.subr.mxu0 0.0
        %2551 = vmatpush2.msra.mxu0 0.0
        %2552 = vmatprep.subr.mxu0 0.0
        %2553 = vmatpush2.msra.mxu0 0.0
        %2554 = vmatprep.subr.mxu0 0.0
        %2555 = vmatpush2.msra.mxu0 0.0
        %2556 = vmatprep.subr.mxu0 0.0
        %2557 = vmatpush2.msra.mxu0 0.0
        %2558 = vmatprep.subr.mxu0 0.0
        %2559 = vmatpush2.msra.mxu0 0.0
        %2560 = vmatprep.mubr.f32.mxu0 0.0
        %2561 = vmatmul.mubr.f32.gmra.mxu0 %v2287
        %v2562 = vpop.f32.mrf.mxu0
        %v2563 = vadd.f32 %v2418, %v2562
        %v2564 = vpop.f32.mrf.mxu0
        %2565 = vmatprep.mubr.f32.mxu0 0.0
        %2566 = vmatmul.mubr.f32.gmra.mxu0 %v2288
        %v2567 = vpop.f32.mrf.mxu0
        %v2568 = vadd.f32 %v2423, %v2567
        %v2569 = vpop.f32.mrf.mxu0
        %2570 = vmatprep.mubr.f32.mxu0 0.0
        %2571 = vmatmul.mubr.f32.gmra.mxu0 %v2289
        %v2572 = vpop.f32.mrf.mxu0
        %v2573 = vadd.f32 %v2428, %v2572
        %v2574 = vpop.f32.mrf.mxu0
        %2575 = vmatprep.mubr.f32.mxu0 0.0
        %2576 = vmatmul.mubr.f32.gmra.mxu0 %v2290
        %v2577 = vpop.f32.mrf.mxu0
        %v2578 = vadd.f32 %v2433, %v2577
        %v2579 = vpop.f32.mrf.mxu0
        %2580 = vmatprep.mubr.f32.mxu0 0.0
        %2581 = vmatmul.mubr.f32.gmra.mxu0 %v2291
        %v2582 = vpop.f32.mrf.mxu0
        %v2583 = vadd.f32 %v2438, %v2582
        %v2584 = vpop.f32.mrf.mxu0
        %2585 = vmatprep.mubr.f32.mxu0 0.0
        %2586 = vmatmul.mubr.f32.gmra.mxu0 %v2292
        %v2587 = vpop.f32.mrf.mxu0
        %v2588 = vadd.f32 %v2443, %v2587
        %v2589 = vpop.f32.mrf.mxu0
        %2590 = vmatprep.mubr.f32.mxu0 0.0
        %2591 = vmatmul.mubr.f32.gmra.mxu0 %v2293
        %v2592 = vpop.f32.mrf.mxu0
        %v2593 = vadd.f32 %v2448, %v2592
        %v2594 = vpop.f32.mrf.mxu0
        %2595 = vmatprep.mubr.f32.mxu0 0.0
        %2596 = vmatmul.mubr.f32.gmra.mxu0 %v2294
        %v2597 = vpop.f32.mrf.mxu0
        %v2598 = vadd.f32 %v2453, %v2597
        %v2599 = vpop.f32.mrf.mxu0
        %2600 = vmatprep.mubr.f32.mxu0 0.0
        %2601 = vmatmul.mubr.f32.gmra.mxu0 %v2295
        %v2602 = vpop.f32.mrf.mxu0
        %v2603 = vadd.f32 %v2458, %v2602
        %v2604 = vpop.f32.mrf.mxu0
        %2605 = vmatprep.mubr.f32.mxu0 0.0
        %2606 = vmatmul.mubr.f32.gmra.mxu0 %v2296
        %v2607 = vpop.f32.mrf.mxu0
        %v2608 = vadd.f32 %v2463, %v2607
        %v2609 = vpop.f32.mrf.mxu0
        %2610 = vmatprep.mubr.f32.mxu0 0.0
        %2611 = vmatmul.mubr.f32.gmra.mxu0 %v2297
        %v2612 = vpop.f32.mrf.mxu0
        %v2613 = vadd.f32 %v2468, %v2612
        %v2614 = vpop.f32.mrf.mxu0
        %2615 = vmatprep.mubr.f32.mxu0 0.0
        %2616 = vmatmul.mubr.f32.gmra.mxu0 %v2298
        %v2617 = vpop.f32.mrf.mxu0
        %v2618 = vadd.f32 %v2473, %v2617
        %v2619 = vpop.f32.mrf.mxu0
        %2620 = vmatprep.mubr.f32.mxu0 0.0
        %2621 = vmatmul.mubr.f32.gmra.mxu0 %v2299
        %v2622 = vpop.f32.mrf.mxu0
        %v2623 = vadd.f32 %v2478, %v2622
        %v2624 = vpop.f32.mrf.mxu0
        %2625 = vmatprep.mubr.f32.mxu0 0.0
        %2626 = vmatmul.mubr.f32.gmra.mxu0 %v2300
        %v2627 = vpop.f32.mrf.mxu0
        %v2628 = vadd.f32 %v2483, %v2627
        %v2629 = vpop.f32.mrf.mxu0
        %2630 = vmatprep.mubr.f32.mxu0 0.0
        %2631 = vmatmul.mubr.f32.gmra.mxu0 %v2301
        %v2632 = vpop.f32.mrf.mxu0
        %v2633 = vadd.f32 %v2488, %v2632
        %v2634 = vpop.f32.mrf.mxu0
        %2635 = vmatprep.mubr.f32.mxu0 0.0
        %2636 = vmatmul.mubr.f32.gmra.mxu0 %v2302
        %v2637 = vpop.f32.mrf.mxu0
        %v2638 = vadd.f32 %v2493, %v2637
        %v2639 = vpop.f32.mrf.mxu0
        %2640 = vdwg.mxu0
        %v2641 = vld [vmem:[%s2286 + $0x2] sm:$0xff]
        %v2642 = vld [vmem:[%s2286 + $0xa] sm:$0xff]
        %v2643 = vld [vmem:[%s2286 + $0x1a] sm:$0xff]
        %v2644 = vld [vmem:[%s2286 + $0x22] sm:$0xff]
        %v2645 = vld [vmem:[%s2286 + $0x32] sm:$0xff]
        %v2646 = vld [vmem:[%s2286 + $0x3a] sm:$0xff]
        %v2647 = vld [vmem:[%s2286 + $0x4a] sm:$0xff]
        %v2648 = vld [vmem:[%s2286 + $0x52] sm:$0xff]
        %v2649 = vld [vmem:[%s2286 + $0x62] sm:$0xff]
        %v2650 = vld [vmem:[%s2286 + $0x6a] sm:$0xff]
        %v2651 = vld [vmem:[%s2286 + $0x7a] sm:$0xff]
        %v2652 = vld [vmem:[%s2286 + $0x82] sm:$0xff]
        %v2653 = vld [vmem:[%s2286 + $0x92] sm:$0xff]
        %v2654 = vld [vmem:[%s2286 + $0x9a] sm:$0xff]
        %v2655 = vld [vmem:[%s2286 + $0xaa] sm:$0xff]
        %v2656 = vld [vmem:[%s2286 + $0xb2] sm:$0xff]
        %v2657 = vld [vmem:[%s888] sm:$0xff]
        %v2658 = vld [vmem:[%s888 + $0x8] sm:$0xff]
        %v2659 = vld [vmem:[%s888 + $0x10] sm:$0xff]
        %v2660 = vld [vmem:[%s888 + $0x18] sm:$0xff]
        %v2661 = vld [vmem:[%s888 + $0x20] sm:$0xff]
        %v2662 = vld [vmem:[%s888 + $0x28] sm:$0xff]
        %v2663 = vld [vmem:[%s888 + $0x30] sm:$0xff]
        %v2664 = vld [vmem:[%s888 + $0x38] sm:$0xff]
        %v2665 = vld [vmem:[%s888 + $0x40] sm:$0xff]
        %v2666 = vld [vmem:[%s888 + $0x48] sm:$0xff]
        %v2667 = vld [vmem:[%s888 + $0x50] sm:$0xff]
        %v2668 = vld [vmem:[%s888 + $0x58] sm:$0xff]
        %v2669 = vld [vmem:[%s888 + $0x60] sm:$0xff]
        %v2670 = vld [vmem:[%s888 + $0x68] sm:$0xff]
        %v2671 = vld [vmem:[%s888 + $0x70] sm:$0xff]
        %v2672 = vld [vmem:[%s888 + $0x78] sm:$0xff]
        %2673 = vmatprep.subr.mxu0 0.0
        %2674 = vmatpush1.msra.mxu0 %v2672
        %2675 = vmatprep.subr.mxu0 0.0
        %2676 = vmatpush1.msra.mxu0 %v2671
        %2677 = vmatprep.subr.mxu0 0.0
        %2678 = vmatpush1.msra.mxu0 %v2670
        %2679 = vmatprep.subr.mxu0 0.0
        %2680 = vmatpush1.msra.mxu0 %v2669
        %2681 = vmatprep.subr.mxu0 0.0
        %2682 = vmatpush1.msra.mxu0 %v2668
        %2683 = vmatprep.subr.mxu0 0.0
        %2684 = vmatpush1.msra.mxu0 %v2667
        %2685 = vmatprep.subr.mxu0 0.0
        %2686 = vmatpush1.msra.mxu0 %v2666
        %2687 = vmatprep.subr.mxu0 0.0
        %2688 = vmatpush1.msra.mxu0 %v2665
        %2689 = vmatprep.subr.mxu0 0.0
        %2690 = vmatpush1.msra.mxu0 %v2664
        %2691 = vmatprep.subr.mxu0 0.0
        %2692 = vmatpush1.msra.mxu0 %v2663
        %2693 = vmatprep.subr.mxu0 0.0
        %2694 = vmatpush1.msra.mxu0 %v2662
        %2695 = vmatprep.subr.mxu0 0.0
        %2696 = vmatpush1.msra.mxu0 %v2661
        %2697 = vmatprep.subr.mxu0 0.0
        %2698 = vmatpush1.msra.mxu0 %v2660
        %2699 = vmatprep.subr.mxu0 0.0
        %2700 = vmatpush1.msra.mxu0 %v2659
        %2701 = vmatprep.subr.mxu0 0.0
        %2702 = vmatpush1.msra.mxu0 %v2658
        %2703 = vmatprep.subr.mxu0 0.0
        %2704 = vmatpush1.msra.mxu0 %v2657
        %2705 = vmatprep.subr.mxu0 0.0
        %2706 = vmatpush2.msra.mxu0 0.0
        %2707 = vmatprep.subr.mxu0 0.0
        %2708 = vmatpush2.msra.mxu0 0.0
        %2709 = vmatprep.subr.mxu0 0.0
        %2710 = vmatpush2.msra.mxu0 0.0
        %2711 = vmatprep.subr.mxu0 0.0
        %2712 = vmatpush2.msra.mxu0 0.0
        %2713 = vmatprep.subr.mxu0 0.0
        %2714 = vmatpush2.msra.mxu0 0.0
        %2715 = vmatprep.subr.mxu0 0.0
        %2716 = vmatpush2.msra.mxu0 0.0
        %2717 = vmatprep.subr.mxu0 0.0
        %2718 = vmatpush2.msra.mxu0 0.0
        %2719 = vmatprep.subr.mxu0 0.0
        %2720 = vmatpush2.msra.mxu0 0.0
        %2721 = vmatprep.subr.mxu0 0.0
        %2722 = vmatpush2.msra.mxu0 0.0
        %2723 = vmatprep.subr.mxu0 0.0
        %2724 = vmatpush2.msra.mxu0 0.0
        %2725 = vmatprep.subr.mxu0 0.0
        %2726 = vmatpush2.msra.mxu0 0.0
        %2727 = vmatprep.subr.mxu0 0.0
        %2728 = vmatpush2.msra.mxu0 0.0
        %2729 = vmatprep.subr.mxu0 0.0
        %2730 = vmatpush2.msra.mxu0 0.0
        %2731 = vmatprep.subr.mxu0 0.0
        %2732 = vmatpush2.msra.mxu0 0.0
        %2733 = vmatprep.subr.mxu0 0.0
        %2734 = vmatpush2.msra.mxu0 0.0
        %2735 = vmatprep.subr.mxu0 0.0
        %2736 = vmatpush2.msra.mxu0 0.0
        %2737 = vmatprep.mubr.f32.mxu0 0.0
        %2738 = vmatmul.mubr.f32.gmra.mxu0 %v2641
        %v2739 = vpop.f32.mrf.mxu0
        %v2740 = vadd.f32 0.0, %v2739
        %v2741 = vpop.f32.mrf.mxu0
        %2742 = vmatprep.mubr.f32.mxu0 0.0
        %2743 = vmatmul.mubr.f32.gmra.mxu0 %v2642
        %v2744 = vpop.f32.mrf.mxu0
        %v2745 = vadd.f32 0.0, %v2744
        %v2746 = vpop.f32.mrf.mxu0
        %2747 = vmatprep.mubr.f32.mxu0 0.0
        %2748 = vmatmul.mubr.f32.gmra.mxu0 %v2643
        %v2749 = vpop.f32.mrf.mxu0
        %v2750 = vadd.f32 0.0, %v2749
        %v2751 = vpop.f32.mrf.mxu0
        %2752 = vmatprep.mubr.f32.mxu0 0.0
        %2753 = vmatmul.mubr.f32.gmra.mxu0 %v2644
        %v2754 = vpop.f32.mrf.mxu0
        %v2755 = vadd.f32 0.0, %v2754
        %v2756 = vpop.f32.mrf.mxu0
        %2757 = vmatprep.mubr.f32.mxu0 0.0
        %2758 = vmatmul.mubr.f32.gmra.mxu0 %v2645
        %v2759 = vpop.f32.mrf.mxu0
        %v2760 = vadd.f32 0.0, %v2759
        %v2761 = vpop.f32.mrf.mxu0
        %2762 = vmatprep.mubr.f32.mxu0 0.0
        %2763 = vmatmul.mubr.f32.gmra.mxu0 %v2646
        %v2764 = vpop.f32.mrf.mxu0
        %v2765 = vadd.f32 0.0, %v2764
        %v2766 = vpop.f32.mrf.mxu0
        %2767 = vmatprep.mubr.f32.mxu0 0.0
        %2768 = vmatmul.mubr.f32.gmra.mxu0 %v2647
        %v2769 = vpop.f32.mrf.mxu0
        %v2770 = vadd.f32 0.0, %v2769
        %v2771 = vpop.f32.mrf.mxu0
        %2772 = vmatprep.mubr.f32.mxu0 0.0
        %2773 = vmatmul.mubr.f32.gmra.mxu0 %v2648
        %v2774 = vpop.f32.mrf.mxu0
        %v2775 = vadd.f32 0.0, %v2774
        %v2776 = vpop.f32.mrf.mxu0
        %2777 = vmatprep.mubr.f32.mxu0 0.0
        %2778 = vmatmul.mubr.f32.gmra.mxu0 %v2649
        %v2779 = vpop.f32.mrf.mxu0
        %v2780 = vadd.f32 0.0, %v2779
        %v2781 = vpop.f32.mrf.mxu0
        %2782 = vmatprep.mubr.f32.mxu0 0.0
        %2783 = vmatmul.mubr.f32.gmra.mxu0 %v2650
        %v2784 = vpop.f32.mrf.mxu0
        %v2785 = vadd.f32 0.0, %v2784
        %v2786 = vpop.f32.mrf.mxu0
        %2787 = vmatprep.mubr.f32.mxu0 0.0
        %2788 = vmatmul.mubr.f32.gmra.mxu0 %v2651
        %v2789 = vpop.f32.mrf.mxu0
        %v2790 = vadd.f32 0.0, %v2789
        %v2791 = vpop.f32.mrf.mxu0
        %2792 = vmatprep.mubr.f32.mxu0 0.0
        %2793 = vmatmul.mubr.f32.gmra.mxu0 %v2652
        %v2794 = vpop.f32.mrf.mxu0
        %v2795 = vadd.f32 0.0, %v2794
        %v2796 = vpop.f32.mrf.mxu0
        %2797 = vmatprep.mubr.f32.mxu0 0.0
        %2798 = vmatmul.mubr.f32.gmra.mxu0 %v2653
        %v2799 = vpop.f32.mrf.mxu0
        %v2800 = vadd.f32 0.0, %v2799
        %v2801 = vpop.f32.mrf.mxu0
        %2802 = vmatprep.mubr.f32.mxu0 0.0
        %2803 = vmatmul.mubr.f32.gmra.mxu0 %v2654
        %v2804 = vpop.f32.mrf.mxu0
        %v2805 = vadd.f32 0.0, %v2804
        %v2806 = vpop.f32.mrf.mxu0
        %2807 = vmatprep.mubr.f32.mxu0 0.0
        %2808 = vmatmul.mubr.f32.gmra.mxu0 %v2655
        %v2809 = vpop.f32.mrf.mxu0
        %v2810 = vadd.f32 0.0, %v2809
        %v2811 = vpop.f32.mrf.mxu0
        %2812 = vmatprep.mubr.f32.mxu0 0.0
        %2813 = vmatmul.mubr.f32.gmra.mxu0 %v2656
        %v2814 = vpop.f32.mrf.mxu0
        %v2815 = vadd.f32 0.0, %v2814
        %v2816 = vpop.f32.mrf.mxu0
        %2817 = vdwg.mxu0
        %v2818 = vadd.f32 %v2563, %v2740
        %v2819 = vadd.f32 %v2568, %v2745
        %v2820 = vadd.f32 %v2573, %v2750
        %v2821 = vadd.f32 %v2578, %v2755
        %v2822 = vadd.f32 %v2583, %v2760
        %v2823 = vadd.f32 %v2588, %v2765
        %v2824 = vadd.f32 %v2593, %v2770
        %v2825 = vadd.f32 %v2598, %v2775
        %v2826 = vadd.f32 %v2603, %v2780
        %v2827 = vadd.f32 %v2608, %v2785
        %v2828 = vadd.f32 %v2613, %v2790
        %v2829 = vadd.f32 %v2618, %v2795
        %v2830 = vadd.f32 %v2623, %v2800
        %v2831 = vadd.f32 %v2628, %v2805
        %v2832 = vadd.f32 %v2633, %v2810
        %v2833 = vadd.f32 %v2638, %v2815
        %s2834 = scalar_lea.vmem [#allocation2], 216
        %v2835 = vld [vmem:[%s2834] sm:$0xff]
        %v2836 = vld [vmem:[%s2834 + $0x8] sm:$0xff]
        %v2837 = vld [vmem:[%s2834 + $0x18] sm:$0xff]
        %v2838 = vld [vmem:[%s2834 + $0x20] sm:$0xff]
        %v2839 = vld [vmem:[%s2834 + $0x30] sm:$0xff]
        %v2840 = vld [vmem:[%s2834 + $0x38] sm:$0xff]
        %v2841 = vld [vmem:[%s2834 + $0x48] sm:$0xff]
        %v2842 = vld [vmem:[%s2834 + $0x50] sm:$0xff]
        %v2843 = vld [vmem:[%s2834 + $0x60] sm:$0xff]
        %v2844 = vld [vmem:[%s2834 + $0x68] sm:$0xff]
        %v2845 = vld [vmem:[%s2834 + $0x78] sm:$0xff]
        %v2846 = vld [vmem:[%s2834 + $0x80] sm:$0xff]
        %v2847 = vld [vmem:[%s2834 + $0x90] sm:$0xff]
        %v2848 = vld [vmem:[%s2834 + $0x98] sm:$0xff]
        %v2849 = vld [vmem:[%s2834 + $0xa8] sm:$0xff]
        %v2850 = vld [vmem:[%s2834 + $0xb0] sm:$0xff]
        %v2851 = vld [vmem:[%s1082] sm:$0xff]
        %v2852 = vld [vmem:[%s1082 + $0x8] sm:$0xff]
        %v2853 = vld [vmem:[%s1082 + $0x10] sm:$0xff]
        %v2854 = vld [vmem:[%s1082 + $0x18] sm:$0xff]
        %v2855 = vld [vmem:[%s1082 + $0x20] sm:$0xff]
        %v2856 = vld [vmem:[%s1082 + $0x28] sm:$0xff]
        %v2857 = vld [vmem:[%s1082 + $0x30] sm:$0xff]
        %v2858 = vld [vmem:[%s1082 + $0x38] sm:$0xff]
        %v2859 = vld [vmem:[%s1082 + $0x40] sm:$0xff]
        %v2860 = vld [vmem:[%s1082 + $0x48] sm:$0xff]
        %v2861 = vld [vmem:[%s1082 + $0x50] sm:$0xff]
        %v2862 = vld [vmem:[%s1082 + $0x58] sm:$0xff]
        %v2863 = vld [vmem:[%s1082 + $0x60] sm:$0xff]
        %v2864 = vld [vmem:[%s1082 + $0x68] sm:$0xff]
        %v2865 = vld [vmem:[%s1082 + $0x70] sm:$0xff]
        %v2866 = vld [vmem:[%s1082 + $0x78] sm:$0xff]
        %2867 = vmatprep.subr.mxu0 0.0
        %2868 = vmatpush1.msra.mxu0 %v2866
        %2869 = vmatprep.subr.mxu0 0.0
        %2870 = vmatpush1.msra.mxu0 %v2865
        %2871 = vmatprep.subr.mxu0 0.0
        %2872 = vmatpush1.msra.mxu0 %v2864
        %2873 = vmatprep.subr.mxu0 0.0
        %2874 = vmatpush1.msra.mxu0 %v2863
        %2875 = vmatprep.subr.mxu0 0.0
        %2876 = vmatpush1.msra.mxu0 %v2862
        %2877 = vmatprep.subr.mxu0 0.0
        %2878 = vmatpush1.msra.mxu0 %v2861
        %2879 = vmatprep.subr.mxu0 0.0
        %2880 = vmatpush1.msra.mxu0 %v2860
        %2881 = vmatprep.subr.mxu0 0.0
        %2882 = vmatpush1.msra.mxu0 %v2859
        %2883 = vmatprep.subr.mxu0 0.0
        %2884 = vmatpush1.msra.mxu0 %v2858
        %2885 = vmatprep.subr.mxu0 0.0
        %2886 = vmatpush1.msra.mxu0 %v2857
        %2887 = vmatprep.subr.mxu0 0.0
        %2888 = vmatpush1.msra.mxu0 %v2856
        %2889 = vmatprep.subr.mxu0 0.0
        %2890 = vmatpush1.msra.mxu0 %v2855
        %2891 = vmatprep.subr.mxu0 0.0
        %2892 = vmatpush1.msra.mxu0 %v2854
        %2893 = vmatprep.subr.mxu0 0.0
        %2894 = vmatpush1.msra.mxu0 %v2853
        %2895 = vmatprep.subr.mxu0 0.0
        %2896 = vmatpush1.msra.mxu0 %v2852
        %2897 = vmatprep.subr.mxu0 0.0
        %2898 = vmatpush1.msra.mxu0 %v2851
        %2899 = vmatprep.subr.mxu0 0.0
        %2900 = vmatpush2.msra.mxu0 0.0
        %2901 = vmatprep.subr.mxu0 0.0
        %2902 = vmatpush2.msra.mxu0 0.0
        %2903 = vmatprep.subr.mxu0 0.0
        %2904 = vmatpush2.msra.mxu0 0.0
        %2905 = vmatprep.subr.mxu0 0.0
        %2906 = vmatpush2.msra.mxu0 0.0
        %2907 = vmatprep.subr.mxu0 0.0
        %2908 = vmatpush2.msra.mxu0 0.0
        %2909 = vmatprep.subr.mxu0 0.0
        %2910 = vmatpush2.msra.mxu0 0.0
        %2911 = vmatprep.subr.mxu0 0.0
        %2912 = vmatpush2.msra.mxu0 0.0
        %2913 = vmatprep.subr.mxu0 0.0
        %2914 = vmatpush2.msra.mxu0 0.0
        %2915 = vmatprep.subr.mxu0 0.0
        %2916 = vmatpush2.msra.mxu0 0.0
        %2917 = vmatprep.subr.mxu0 0.0
        %2918 = vmatpush2.msra.mxu0 0.0
        %2919 = vmatprep.subr.mxu0 0.0
        %2920 = vmatpush2.msra.mxu0 0.0
        %2921 = vmatprep.subr.mxu0 0.0
        %2922 = vmatpush2.msra.mxu0 0.0
        %2923 = vmatprep.subr.mxu0 0.0
        %2924 = vmatpush2.msra.mxu0 0.0
        %2925 = vmatprep.subr.mxu0 0.0
        %2926 = vmatpush2.msra.mxu0 0.0
        %2927 = vmatprep.subr.mxu0 0.0
        %2928 = vmatpush2.msra.mxu0 0.0
        %2929 = vmatprep.subr.mxu0 0.0
        %2930 = vmatpush2.msra.mxu0 0.0
        %2931 = vmatprep.mubr.f32.mxu0 0.0
        %2932 = vmatmul.mubr.f32.gmra.mxu0 %v2835
        %v2933 = vpop.f32.mrf.mxu0
        %v2934 = vadd.f32 0.0, %v2933
        %v2935 = vpop.f32.mrf.mxu0
        %2936 = vmatprep.mubr.f32.mxu0 0.0
        %2937 = vmatmul.mubr.f32.gmra.mxu0 %v2836
        %v2938 = vpop.f32.mrf.mxu0
        %v2939 = vadd.f32 0.0, %v2938
        %v2940 = vpop.f32.mrf.mxu0
        %2941 = vmatprep.mubr.f32.mxu0 0.0
        %2942 = vmatmul.mubr.f32.gmra.mxu0 %v2837
        %v2943 = vpop.f32.mrf.mxu0
        %v2944 = vadd.f32 0.0, %v2943
        %v2945 = vpop.f32.mrf.mxu0
        %2946 = vmatprep.mubr.f32.mxu0 0.0
        %2947 = vmatmul.mubr.f32.gmra.mxu0 %v2838
        %v2948 = vpop.f32.mrf.mxu0
        %v2949 = vadd.f32 0.0, %v2948
        %v2950 = vpop.f32.mrf.mxu0
        %2951 = vmatprep.mubr.f32.mxu0 0.0
        %2952 = vmatmul.mubr.f32.gmra.mxu0 %v2839
        %v2953 = vpop.f32.mrf.mxu0
        %v2954 = vadd.f32 0.0, %v2953
        %v2955 = vpop.f32.mrf.mxu0
        %2956 = vmatprep.mubr.f32.mxu0 0.0
        %2957 = vmatmul.mubr.f32.gmra.mxu0 %v2840
        %v2958 = vpop.f32.mrf.mxu0
        %v2959 = vadd.f32 0.0, %v2958
        %v2960 = vpop.f32.mrf.mxu0
        %2961 = vmatprep.mubr.f32.mxu0 0.0
        %2962 = vmatmul.mubr.f32.gmra.mxu0 %v2841
        %v2963 = vpop.f32.mrf.mxu0
        %v2964 = vadd.f32 0.0, %v2963
        %v2965 = vpop.f32.mrf.mxu0
        %2966 = vmatprep.mubr.f32.mxu0 0.0
        %2967 = vmatmul.mubr.f32.gmra.mxu0 %v2842
        %v2968 = vpop.f32.mrf.mxu0
        %v2969 = vadd.f32 0.0, %v2968
        %v2970 = vpop.f32.mrf.mxu0
        %2971 = vmatprep.mubr.f32.mxu0 0.0
        %2972 = vmatmul.mubr.f32.gmra.mxu0 %v2843
        %v2973 = vpop.f32.mrf.mxu0
        %v2974 = vadd.f32 0.0, %v2973
        %v2975 = vpop.f32.mrf.mxu0
        %2976 = vmatprep.mubr.f32.mxu0 0.0
        %2977 = vmatmul.mubr.f32.gmra.mxu0 %v2844
        %v2978 = vpop.f32.mrf.mxu0
        %v2979 = vadd.f32 0.0, %v2978
        %v2980 = vpop.f32.mrf.mxu0
        %2981 = vmatprep.mubr.f32.mxu0 0.0
        %2982 = vmatmul.mubr.f32.gmra.mxu0 %v2845
        %v2983 = vpop.f32.mrf.mxu0
        %v2984 = vadd.f32 0.0, %v2983
        %v2985 = vpop.f32.mrf.mxu0
        %2986 = vmatprep.mubr.f32.mxu0 0.0
        %2987 = vmatmul.mubr.f32.gmra.mxu0 %v2846
        %v2988 = vpop.f32.mrf.mxu0
        %v2989 = vadd.f32 0.0, %v2988
        %v2990 = vpop.f32.mrf.mxu0
        %2991 = vmatprep.mubr.f32.mxu0 0.0
        %2992 = vmatmul.mubr.f32.gmra.mxu0 %v2847
        %v2993 = vpop.f32.mrf.mxu0
        %v2994 = vadd.f32 0.0, %v2993
        %v2995 = vpop.f32.mrf.mxu0
        %2996 = vmatprep.mubr.f32.mxu0 0.0
        %2997 = vmatmul.mubr.f32.gmra.mxu0 %v2848
        %v2998 = vpop.f32.mrf.mxu0
        %v2999 = vadd.f32 0.0, %v2998
        %v3000 = vpop.f32.mrf.mxu0
        %3001 = vmatprep.mubr.f32.mxu0 0.0
        %3002 = vmatmul.mubr.f32.gmra.mxu0 %v2849
        %v3003 = vpop.f32.mrf.mxu0
        %v3004 = vadd.f32 0.0, %v3003
        %v3005 = vpop.f32.mrf.mxu0
        %3006 = vmatprep.mubr.f32.mxu0 0.0
        %3007 = vmatmul.mubr.f32.gmra.mxu0 %v2850
        %v3008 = vpop.f32.mrf.mxu0
        %v3009 = vadd.f32 0.0, %v3008
        %v3010 = vpop.f32.mrf.mxu0
        %3011 = vdwg.mxu0
        %v3012 = vadd.f32 %v2818, %v2934
        %v3013 = vadd.f32 %v2819, %v2939
        %v3014 = vadd.f32 %v2820, %v2944
        %v3015 = vadd.f32 %v2821, %v2949
        %v3016 = vadd.f32 %v2822, %v2954
        %v3017 = vadd.f32 %v2823, %v2959
        %v3018 = vadd.f32 %v2824, %v2964
        %v3019 = vadd.f32 %v2825, %v2969
        %v3020 = vadd.f32 %v2826, %v2974
        %v3021 = vadd.f32 %v2827, %v2979
        %v3022 = vadd.f32 %v2828, %v2984
        %v3023 = vadd.f32 %v2829, %v2989
        %v3024 = vadd.f32 %v2830, %v2994
        %v3025 = vadd.f32 %v2831, %v2999
        %v3026 = vadd.f32 %v2832, %v3004
        %v3027 = vadd.f32 %v2833, %v3009
        %v3028 = vld [vmem:[%s2834 + $0x1] sm:$0xff]
        %v3029 = vld [vmem:[%s2834 + $0x9] sm:$0xff]
        %v3030 = vld [vmem:[%s2834 + $0x19] sm:$0xff]
        %v3031 = vld [vmem:[%s2834 + $0x21] sm:$0xff]
        %v3032 = vld [vmem:[%s2834 + $0x31] sm:$0xff]
        %v3033 = vld [vmem:[%s2834 + $0x39] sm:$0xff]
        %v3034 = vld [vmem:[%s2834 + $0x49] sm:$0xff]
        %v3035 = vld [vmem:[%s2834 + $0x51] sm:$0xff]
        %v3036 = vld [vmem:[%s2834 + $0x61] sm:$0xff]
        %v3037 = vld [vmem:[%s2834 + $0x69] sm:$0xff]
        %v3038 = vld [vmem:[%s2834 + $0x79] sm:$0xff]
        %v3039 = vld [vmem:[%s2834 + $0x81] sm:$0xff]
        %v3040 = vld [vmem:[%s2834 + $0x91] sm:$0xff]
        %v3041 = vld [vmem:[%s2834 + $0x99] sm:$0xff]
        %v3042 = vld [vmem:[%s2834 + $0xa9] sm:$0xff]
        %v3043 = vld [vmem:[%s2834 + $0xb1] sm:$0xff]
        %v3044 = vld [vmem:[%s1276] sm:$0xff]
        %v3045 = vld [vmem:[%s1276 + $0x8] sm:$0xff]
        %v3046 = vld [vmem:[%s1276 + $0x10] sm:$0xff]
        %v3047 = vld [vmem:[%s1276 + $0x18] sm:$0xff]
        %v3048 = vld [vmem:[%s1276 + $0x20] sm:$0xff]
        %v3049 = vld [vmem:[%s1276 + $0x28] sm:$0xff]
        %v3050 = vld [vmem:[%s1276 + $0x30] sm:$0xff]
        %v3051 = vld [vmem:[%s1276 + $0x38] sm:$0xff]
        %v3052 = vld [vmem:[%s1276 + $0x40] sm:$0xff]
        %v3053 = vld [vmem:[%s1276 + $0x48] sm:$0xff]
        %v3054 = vld [vmem:[%s1276 + $0x50] sm:$0xff]
        %v3055 = vld [vmem:[%s1276 + $0x58] sm:$0xff]
        %v3056 = vld [vmem:[%s1276 + $0x60] sm:$0xff]
        %v3057 = vld [vmem:[%s1276 + $0x68] sm:$0xff]
        %v3058 = vld [vmem:[%s1276 + $0x70] sm:$0xff]
        %v3059 = vld [vmem:[%s1276 + $0x78] sm:$0xff]
        %3060 = vmatprep.subr.mxu0 0.0
        %3061 = vmatpush1.msra.mxu0 %v3059
        %3062 = vmatprep.subr.mxu0 0.0
        %3063 = vmatpush1.msra.mxu0 %v3058
        %3064 = vmatprep.subr.mxu0 0.0
        %3065 = vmatpush1.msra.mxu0 %v3057
        %3066 = vmatprep.subr.mxu0 0.0
        %3067 = vmatpush1.msra.mxu0 %v3056
        %3068 = vmatprep.subr.mxu0 0.0
        %3069 = vmatpush1.msra.mxu0 %v3055
        %3070 = vmatprep.subr.mxu0 0.0
        %3071 = vmatpush1.msra.mxu0 %v3054
        %3072 = vmatprep.subr.mxu0 0.0
        %3073 = vmatpush1.msra.mxu0 %v3053
        %3074 = vmatprep.subr.mxu0 0.0
        %3075 = vmatpush1.msra.mxu0 %v3052
        %3076 = vmatprep.subr.mxu0 0.0
        %3077 = vmatpush1.msra.mxu0 %v3051
        %3078 = vmatprep.subr.mxu0 0.0
        %3079 = vmatpush1.msra.mxu0 %v3050
        %3080 = vmatprep.subr.mxu0 0.0
        %3081 = vmatpush1.msra.mxu0 %v3049
        %3082 = vmatprep.subr.mxu0 0.0
        %3083 = vmatpush1.msra.mxu0 %v3048
        %3084 = vmatprep.subr.mxu0 0.0
        %3085 = vmatpush1.msra.mxu0 %v3047
        %3086 = vmatprep.subr.mxu0 0.0
        %3087 = vmatpush1.msra.mxu0 %v3046
        %3088 = vmatprep.subr.mxu0 0.0
        %3089 = vmatpush1.msra.mxu0 %v3045
        %3090 = vmatprep.subr.mxu0 0.0
        %3091 = vmatpush1.msra.mxu0 %v3044
        %3092 = vmatprep.subr.mxu0 0.0
        %3093 = vmatpush2.msra.mxu0 0.0
        %3094 = vmatprep.subr.mxu0 0.0
        %3095 = vmatpush2.msra.mxu0 0.0
        %3096 = vmatprep.subr.mxu0 0.0
        %3097 = vmatpush2.msra.mxu0 0.0
        %3098 = vmatprep.subr.mxu0 0.0
        %3099 = vmatpush2.msra.mxu0 0.0
        %3100 = vmatprep.subr.mxu0 0.0
        %3101 = vmatpush2.msra.mxu0 0.0
        %3102 = vmatprep.subr.mxu0 0.0
        %3103 = vmatpush2.msra.mxu0 0.0
        %3104 = vmatprep.subr.mxu0 0.0
        %3105 = vmatpush2.msra.mxu0 0.0
        %3106 = vmatprep.subr.mxu0 0.0
        %3107 = vmatpush2.msra.mxu0 0.0
        %3108 = vmatprep.subr.mxu0 0.0
        %3109 = vmatpush2.msra.mxu0 0.0
        %3110 = vmatprep.subr.mxu0 0.0
        %3111 = vmatpush2.msra.mxu0 0.0
        %3112 = vmatprep.subr.mxu0 0.0
        %3113 = vmatpush2.msra.mxu0 0.0
        %3114 = vmatprep.subr.mxu0 0.0
        %3115 = vmatpush2.msra.mxu0 0.0
        %3116 = vmatprep.subr.mxu0 0.0
        %3117 = vmatpush2.msra.mxu0 0.0
        %3118 = vmatprep.subr.mxu0 0.0
        %3119 = vmatpush2.msra.mxu0 0.0
        %3120 = vmatprep.subr.mxu0 0.0
        %3121 = vmatpush2.msra.mxu0 0.0
        %3122 = vmatprep.subr.mxu0 0.0
        %3123 = vmatpush2.msra.mxu0 0.0
        %3124 = vmatprep.mubr.f32.mxu0 0.0
        %3125 = vmatmul.mubr.f32.gmra.mxu0 %v3028
        %v3126 = vpop.f32.mrf.mxu0
        %v3127 = vadd.f32 0.0, %v3126
        %v3128 = vpop.f32.mrf.mxu0
        %3129 = vmatprep.mubr.f32.mxu0 0.0
        %3130 = vmatmul.mubr.f32.gmra.mxu0 %v3029
        %v3131 = vpop.f32.mrf.mxu0
        %v3132 = vadd.f32 0.0, %v3131
        %v3133 = vpop.f32.mrf.mxu0
        %3134 = vmatprep.mubr.f32.mxu0 0.0
        %3135 = vmatmul.mubr.f32.gmra.mxu0 %v3030
        %v3136 = vpop.f32.mrf.mxu0
        %v3137 = vadd.f32 0.0, %v3136
        %v3138 = vpop.f32.mrf.mxu0
        %3139 = vmatprep.mubr.f32.mxu0 0.0
        %3140 = vmatmul.mubr.f32.gmra.mxu0 %v3031
        %v3141 = vpop.f32.mrf.mxu0
        %v3142 = vadd.f32 0.0, %v3141
        %v3143 = vpop.f32.mrf.mxu0
        %3144 = vmatprep.mubr.f32.mxu0 0.0
        %3145 = vmatmul.mubr.f32.gmra.mxu0 %v3032
        %v3146 = vpop.f32.mrf.mxu0
        %v3147 = vadd.f32 0.0, %v3146
        %v3148 = vpop.f32.mrf.mxu0
        %3149 = vmatprep.mubr.f32.mxu0 0.0
        %3150 = vmatmul.mubr.f32.gmra.mxu0 %v3033
        %v3151 = vpop.f32.mrf.mxu0
        %v3152 = vadd.f32 0.0, %v3151
        %v3153 = vpop.f32.mrf.mxu0
        %3154 = vmatprep.mubr.f32.mxu0 0.0
        %3155 = vmatmul.mubr.f32.gmra.mxu0 %v3034
        %v3156 = vpop.f32.mrf.mxu0
        %v3157 = vadd.f32 0.0, %v3156
        %v3158 = vpop.f32.mrf.mxu0
        %3159 = vmatprep.mubr.f32.mxu0 0.0
        %3160 = vmatmul.mubr.f32.gmra.mxu0 %v3035
        %v3161 = vpop.f32.mrf.mxu0
        %v3162 = vadd.f32 0.0, %v3161
        %v3163 = vpop.f32.mrf.mxu0
        %3164 = vmatprep.mubr.f32.mxu0 0.0
        %3165 = vmatmul.mubr.f32.gmra.mxu0 %v3036
        %v3166 = vpop.f32.mrf.mxu0
        %v3167 = vadd.f32 0.0, %v3166
        %v3168 = vpop.f32.mrf.mxu0
        %3169 = vmatprep.mubr.f32.mxu0 0.0
        %3170 = vmatmul.mubr.f32.gmra.mxu0 %v3037
        %v3171 = vpop.f32.mrf.mxu0
        %v3172 = vadd.f32 0.0, %v3171
        %v3173 = vpop.f32.mrf.mxu0
        %3174 = vmatprep.mubr.f32.mxu0 0.0
        %3175 = vmatmul.mubr.f32.gmra.mxu0 %v3038
        %v3176 = vpop.f32.mrf.mxu0
        %v3177 = vadd.f32 0.0, %v3176
        %v3178 = vpop.f32.mrf.mxu0
        %3179 = vmatprep.mubr.f32.mxu0 0.0
        %3180 = vmatmul.mubr.f32.gmra.mxu0 %v3039
        %v3181 = vpop.f32.mrf.mxu0
        %v3182 = vadd.f32 0.0, %v3181
        %v3183 = vpop.f32.mrf.mxu0
        %3184 = vmatprep.mubr.f32.mxu0 0.0
        %3185 = vmatmul.mubr.f32.gmra.mxu0 %v3040
        %v3186 = vpop.f32.mrf.mxu0
        %v3187 = vadd.f32 0.0, %v3186
        %v3188 = vpop.f32.mrf.mxu0
        %3189 = vmatprep.mubr.f32.mxu0 0.0
        %3190 = vmatmul.mubr.f32.gmra.mxu0 %v3041
        %v3191 = vpop.f32.mrf.mxu0
        %v3192 = vadd.f32 0.0, %v3191
        %v3193 = vpop.f32.mrf.mxu0
        %3194 = vmatprep.mubr.f32.mxu0 0.0
        %3195 = vmatmul.mubr.f32.gmra.mxu0 %v3042
        %v3196 = vpop.f32.mrf.mxu0
        %v3197 = vadd.f32 0.0, %v3196
        %v3198 = vpop.f32.mrf.mxu0
        %3199 = vmatprep.mubr.f32.mxu0 0.0
        %3200 = vmatmul.mubr.f32.gmra.mxu0 %v3043
        %v3201 = vpop.f32.mrf.mxu0
        %v3202 = vadd.f32 0.0, %v3201
        %v3203 = vpop.f32.mrf.mxu0
        %3204 = vdwg.mxu0
        %v3205 = vadd.f32 %v3012, %v3127
        %v3206 = vadd.f32 %v3013, %v3132
        %v3207 = vadd.f32 %v3014, %v3137
        %v3208 = vadd.f32 %v3015, %v3142
        %v3209 = vadd.f32 %v3016, %v3147
        %v3210 = vadd.f32 %v3017, %v3152
        %v3211 = vadd.f32 %v3018, %v3157
        %v3212 = vadd.f32 %v3019, %v3162
        %v3213 = vadd.f32 %v3020, %v3167
        %v3214 = vadd.f32 %v3021, %v3172
        %v3215 = vadd.f32 %v3022, %v3177
        %v3216 = vadd.f32 %v3023, %v3182
        %v3217 = vadd.f32 %v3024, %v3187
        %v3218 = vadd.f32 %v3025, %v3192
        %v3219 = vadd.f32 %v3026, %v3197
        %v3220 = vadd.f32 %v3027, %v3202
        %v3221 = vld [vmem:[%s2834 + $0x2] sm:$0xff]
        %v3222 = vld [vmem:[%s2834 + $0xa] sm:$0xff]
        %v3223 = vld [vmem:[%s2834 + $0x1a] sm:$0xff]
        %v3224 = vld [vmem:[%s2834 + $0x22] sm:$0xff]
        %v3225 = vld [vmem:[%s2834 + $0x32] sm:$0xff]
        %v3226 = vld [vmem:[%s2834 + $0x3a] sm:$0xff]
        %v3227 = vld [vmem:[%s2834 + $0x4a] sm:$0xff]
        %v3228 = vld [vmem:[%s2834 + $0x52] sm:$0xff]
        %v3229 = vld [vmem:[%s2834 + $0x62] sm:$0xff]
        %v3230 = vld [vmem:[%s2834 + $0x6a] sm:$0xff]
        %v3231 = vld [vmem:[%s2834 + $0x7a] sm:$0xff]
        %v3232 = vld [vmem:[%s2834 + $0x82] sm:$0xff]
        %v3233 = vld [vmem:[%s2834 + $0x92] sm:$0xff]
        %v3234 = vld [vmem:[%s2834 + $0x9a] sm:$0xff]
        %v3235 = vld [vmem:[%s2834 + $0xaa] sm:$0xff]
        %v3236 = vld [vmem:[%s2834 + $0xb2] sm:$0xff]
        %v3237 = vld [vmem:[%s1470] sm:$0xff]
        %v3238 = vld [vmem:[%s1470 + $0x8] sm:$0xff]
        %v3239 = vld [vmem:[%s1470 + $0x10] sm:$0xff]
        %v3240 = vld [vmem:[%s1470 + $0x18] sm:$0xff]
        %v3241 = vld [vmem:[%s1470 + $0x20] sm:$0xff]
        %v3242 = vld [vmem:[%s1470 + $0x28] sm:$0xff]
        %v3243 = vld [vmem:[%s1470 + $0x30] sm:$0xff]
        %v3244 = vld [vmem:[%s1470 + $0x38] sm:$0xff]
        %v3245 = vld [vmem:[%s1470 + $0x40] sm:$0xff]
        %v3246 = vld [vmem:[%s1470 + $0x48] sm:$0xff]
        %v3247 = vld [vmem:[%s1470 + $0x50] sm:$0xff]
        %v3248 = vld [vmem:[%s1470 + $0x58] sm:$0xff]
        %v3249 = vld [vmem:[%s1470 + $0x60] sm:$0xff]
        %v3250 = vld [vmem:[%s1470 + $0x68] sm:$0xff]
        %v3251 = vld [vmem:[%s1470 + $0x70] sm:$0xff]
        %v3252 = vld [vmem:[%s1470 + $0x78] sm:$0xff]
        %3253 = vmatprep.subr.mxu0 0.0
        %3254 = vmatpush1.msra.mxu0 %v3252
        %3255 = vmatprep.subr.mxu0 0.0
        %3256 = vmatpush1.msra.mxu0 %v3251
        %3257 = vmatprep.subr.mxu0 0.0
        %3258 = vmatpush1.msra.mxu0 %v3250
        %3259 = vmatprep.subr.mxu0 0.0
        %3260 = vmatpush1.msra.mxu0 %v3249
        %3261 = vmatprep.subr.mxu0 0.0
        %3262 = vmatpush1.msra.mxu0 %v3248
        %3263 = vmatprep.subr.mxu0 0.0
        %3264 = vmatpush1.msra.mxu0 %v3247
        %3265 = vmatprep.subr.mxu0 0.0
        %3266 = vmatpush1.msra.mxu0 %v3246
        %3267 = vmatprep.subr.mxu0 0.0
        %3268 = vmatpush1.msra.mxu0 %v3245
        %3269 = vmatprep.subr.mxu0 0.0
        %3270 = vmatpush1.msra.mxu0 %v3244
        %3271 = vmatprep.subr.mxu0 0.0
        %3272 = vmatpush1.msra.mxu0 %v3243
        %3273 = vmatprep.subr.mxu0 0.0
        %3274 = vmatpush1.msra.mxu0 %v3242
        %3275 = vmatprep.subr.mxu0 0.0
        %3276 = vmatpush1.msra.mxu0 %v3241
        %3277 = vmatprep.subr.mxu0 0.0
        %3278 = vmatpush1.msra.mxu0 %v3240
        %3279 = vmatprep.subr.mxu0 0.0
        %3280 = vmatpush1.msra.mxu0 %v3239
        %3281 = vmatprep.subr.mxu0 0.0
        %3282 = vmatpush1.msra.mxu0 %v3238
        %3283 = vmatprep.subr.mxu0 0.0
        %3284 = vmatpush1.msra.mxu0 %v3237
        %3285 = vmatprep.subr.mxu0 0.0
        %3286 = vmatpush2.msra.mxu0 0.0
        %3287 = vmatprep.subr.mxu0 0.0
        %3288 = vmatpush2.msra.mxu0 0.0
        %3289 = vmatprep.subr.mxu0 0.0
        %3290 = vmatpush2.msra.mxu0 0.0
        %3291 = vmatprep.subr.mxu0 0.0
        %3292 = vmatpush2.msra.mxu0 0.0
        %3293 = vmatprep.subr.mxu0 0.0
        %3294 = vmatpush2.msra.mxu0 0.0
        %3295 = vmatprep.subr.mxu0 0.0
        %3296 = vmatpush2.msra.mxu0 0.0
        %3297 = vmatprep.subr.mxu0 0.0
        %3298 = vmatpush2.msra.mxu0 0.0
        %3299 = vmatprep.subr.mxu0 0.0
        %3300 = vmatpush2.msra.mxu0 0.0
        %3301 = vmatprep.subr.mxu0 0.0
        %3302 = vmatpush2.msra.mxu0 0.0
        %3303 = vmatprep.subr.mxu0 0.0
        %3304 = vmatpush2.msra.mxu0 0.0
        %3305 = vmatprep.subr.mxu0 0.0
        %3306 = vmatpush2.msra.mxu0 0.0
        %3307 = vmatprep.subr.mxu0 0.0
        %3308 = vmatpush2.msra.mxu0 0.0
        %3309 = vmatprep.subr.mxu0 0.0
        %3310 = vmatpush2.msra.mxu0 0.0
        %3311 = vmatprep.subr.mxu0 0.0
        %3312 = vmatpush2.msra.mxu0 0.0
        %3313 = vmatprep.subr.mxu0 0.0
        %3314 = vmatpush2.msra.mxu0 0.0
        %3315 = vmatprep.subr.mxu0 0.0
        %3316 = vmatpush2.msra.mxu0 0.0
        %3317 = vmatprep.mubr.f32.mxu0 0.0
        %3318 = vmatmul.mubr.f32.gmra.mxu0 %v3221
        %v3319 = vpop.f32.mrf.mxu0
        %v3320 = vadd.f32 0.0, %v3319
        %v3321 = vpop.f32.mrf.mxu0
        %3322 = vmatprep.mubr.f32.mxu0 0.0
        %3323 = vmatmul.mubr.f32.gmra.mxu0 %v3222
        %v3324 = vpop.f32.mrf.mxu0
        %v3325 = vadd.f32 0.0, %v3324
        %v3326 = vpop.f32.mrf.mxu0
        %3327 = vmatprep.mubr.f32.mxu0 0.0
        %3328 = vmatmul.mubr.f32.gmra.mxu0 %v3223
        %v3329 = vpop.f32.mrf.mxu0
        %v3330 = vadd.f32 0.0, %v3329
        %v3331 = vpop.f32.mrf.mxu0
        %3332 = vmatprep.mubr.f32.mxu0 0.0
        %3333 = vmatmul.mubr.f32.gmra.mxu0 %v3224
        %v3334 = vpop.f32.mrf.mxu0
        %v3335 = vadd.f32 0.0, %v3334
        %v3336 = vpop.f32.mrf.mxu0
        %3337 = vmatprep.mubr.f32.mxu0 0.0
        %3338 = vmatmul.mubr.f32.gmra.mxu0 %v3225
        %v3339 = vpop.f32.mrf.mxu0
        %v3340 = vadd.f32 0.0, %v3339
        %v3341 = vpop.f32.mrf.mxu0
        %3342 = vmatprep.mubr.f32.mxu0 0.0
        %3343 = vmatmul.mubr.f32.gmra.mxu0 %v3226
        %v3344 = vpop.f32.mrf.mxu0
        %v3345 = vadd.f32 0.0, %v3344
        %v3346 = vpop.f32.mrf.mxu0
        %3347 = vmatprep.mubr.f32.mxu0 0.0
        %3348 = vmatmul.mubr.f32.gmra.mxu0 %v3227
        %v3349 = vpop.f32.mrf.mxu0
        %v3350 = vadd.f32 0.0, %v3349
        %v3351 = vpop.f32.mrf.mxu0
        %3352 = vmatprep.mubr.f32.mxu0 0.0
        %3353 = vmatmul.mubr.f32.gmra.mxu0 %v3228
        %v3354 = vpop.f32.mrf.mxu0
        %v3355 = vadd.f32 0.0, %v3354
        %v3356 = vpop.f32.mrf.mxu0
        %3357 = vmatprep.mubr.f32.mxu0 0.0
        %3358 = vmatmul.mubr.f32.gmra.mxu0 %v3229
        %v3359 = vpop.f32.mrf.mxu0
        %v3360 = vadd.f32 0.0, %v3359
        %v3361 = vpop.f32.mrf.mxu0
        %3362 = vmatprep.mubr.f32.mxu0 0.0
        %3363 = vmatmul.mubr.f32.gmra.mxu0 %v3230
        %v3364 = vpop.f32.mrf.mxu0
        %v3365 = vadd.f32 0.0, %v3364
        %v3366 = vpop.f32.mrf.mxu0
        %3367 = vmatprep.mubr.f32.mxu0 0.0
        %3368 = vmatmul.mubr.f32.gmra.mxu0 %v3231
        %v3369 = vpop.f32.mrf.mxu0
        %v3370 = vadd.f32 0.0, %v3369
        %v3371 = vpop.f32.mrf.mxu0
        %3372 = vmatprep.mubr.f32.mxu0 0.0
        %3373 = vmatmul.mubr.f32.gmra.mxu0 %v3232
        %v3374 = vpop.f32.mrf.mxu0
        %v3375 = vadd.f32 0.0, %v3374
        %v3376 = vpop.f32.mrf.mxu0
        %3377 = vmatprep.mubr.f32.mxu0 0.0
        %3378 = vmatmul.mubr.f32.gmra.mxu0 %v3233
        %v3379 = vpop.f32.mrf.mxu0
        %v3380 = vadd.f32 0.0, %v3379
        %v3381 = vpop.f32.mrf.mxu0
        %3382 = vmatprep.mubr.f32.mxu0 0.0
        %3383 = vmatmul.mubr.f32.gmra.mxu0 %v3234
        %v3384 = vpop.f32.mrf.mxu0
        %v3385 = vadd.f32 0.0, %v3384
        %v3386 = vpop.f32.mrf.mxu0
        %3387 = vmatprep.mubr.f32.mxu0 0.0
        %3388 = vmatmul.mubr.f32.gmra.mxu0 %v3235
        %v3389 = vpop.f32.mrf.mxu0
        %v3390 = vadd.f32 0.0, %v3389
        %v3391 = vpop.f32.mrf.mxu0
        %3392 = vmatprep.mubr.f32.mxu0 0.0
        %3393 = vmatmul.mubr.f32.gmra.mxu0 %v3236
        %v3394 = vpop.f32.mrf.mxu0
        %v3395 = vadd.f32 0.0, %v3394
        %v3396 = vpop.f32.mrf.mxu0
        %3397 = vdwg.mxu0
        %v3398 = vadd.f32 %v3205, %v3320
        %v3399 = vadd.f32 %v3206, %v3325
        %v3400 = vadd.f32 %v3207, %v3330
        %v3401 = vadd.f32 %v3208, %v3335
        %v3402 = vadd.f32 %v3209, %v3340
        %v3403 = vadd.f32 %v3210, %v3345
        %v3404 = vadd.f32 %v3211, %v3350
        %v3405 = vadd.f32 %v3212, %v3355
        %v3406 = vadd.f32 %v3213, %v3360
        %v3407 = vadd.f32 %v3214, %v3365
        %v3408 = vadd.f32 %v3215, %v3370
        %v3409 = vadd.f32 %v3216, %v3375
        %v3410 = vadd.f32 %v3217, %v3380
        %v3411 = vadd.f32 %v3218, %v3385
        %v3412 = vadd.f32 %v3219, %v3390
        %v3413 = vadd.f32 %v3220, %v3395
        %s3414 = scalar_lea.vmem [#allocation2], 240
        %v3415 = vld [vmem:[%s3414] sm:$0xff]
        %v3416 = vld [vmem:[%s3414 + $0x8] sm:$0xff]
        %v3417 = vld [vmem:[%s3414 + $0x18] sm:$0xff]
        %v3418 = vld [vmem:[%s3414 + $0x20] sm:$0xff]
        %v3419 = vld [vmem:[%s3414 + $0x30] sm:$0xff]
        %v3420 = vld [vmem:[%s3414 + $0x38] sm:$0xff]
        %v3421 = vld [vmem:[%s3414 + $0x48] sm:$0xff]
        %v3422 = vld [vmem:[%s3414 + $0x50] sm:$0xff]
        %v3423 = vld [vmem:[%s3414 + $0x60] sm:$0xff]
        %v3424 = vld [vmem:[%s3414 + $0x68] sm:$0xff]
        %v3425 = vld [vmem:[%s3414 + $0x78] sm:$0xff]
        %v3426 = vld [vmem:[%s3414 + $0x80] sm:$0xff]
        %v3427 = vld [vmem:[%s3414 + $0x90] sm:$0xff]
        %v3428 = vld [vmem:[%s3414 + $0x98] sm:$0xff]
        %v3429 = vld [vmem:[%s3414 + $0xa8] sm:$0xff]
        %v3430 = vld [vmem:[%s3414 + $0xb0] sm:$0xff]
        %v3431 = vld [vmem:[%s1665] sm:$0xff]
        %v3432 = vld [vmem:[%s1665 + $0x8] sm:$0xff]
        %v3433 = vld [vmem:[%s1665 + $0x10] sm:$0xff]
        %v3434 = vld [vmem:[%s1665 + $0x18] sm:$0xff]
        %v3435 = vld [vmem:[%s1665 + $0x20] sm:$0xff]
        %v3436 = vld [vmem:[%s1665 + $0x28] sm:$0xff]
        %v3437 = vld [vmem:[%s1665 + $0x30] sm:$0xff]
        %v3438 = vld [vmem:[%s1665 + $0x38] sm:$0xff]
        %v3439 = vld [vmem:[%s1665 + $0x40] sm:$0xff]
        %v3440 = vld [vmem:[%s1665 + $0x48] sm:$0xff]
        %v3441 = vld [vmem:[%s1665 + $0x50] sm:$0xff]
        %v3442 = vld [vmem:[%s1665 + $0x58] sm:$0xff]
        %v3443 = vld [vmem:[%s1665 + $0x60] sm:$0xff]
        %v3444 = vld [vmem:[%s1665 + $0x68] sm:$0xff]
        %v3445 = vld [vmem:[%s1665 + $0x70] sm:$0xff]
        %v3446 = vld [vmem:[%s1665 + $0x78] sm:$0xff]
        %3447 = vmatprep.subr.mxu0 0.0
        %3448 = vmatpush1.msra.mxu0 %v3446
        %3449 = vmatprep.subr.mxu0 0.0
        %3450 = vmatpush1.msra.mxu0 %v3445
        %3451 = vmatprep.subr.mxu0 0.0
        %3452 = vmatpush1.msra.mxu0 %v3444
        %3453 = vmatprep.subr.mxu0 0.0
        %3454 = vmatpush1.msra.mxu0 %v3443
        %3455 = vmatprep.subr.mxu0 0.0
        %3456 = vmatpush1.msra.mxu0 %v3442
        %3457 = vmatprep.subr.mxu0 0.0
        %3458 = vmatpush1.msra.mxu0 %v3441
        %3459 = vmatprep.subr.mxu0 0.0
        %3460 = vmatpush1.msra.mxu0 %v3440
        %3461 = vmatprep.subr.mxu0 0.0
        %3462 = vmatpush1.msra.mxu0 %v3439
        %3463 = vmatprep.subr.mxu0 0.0
        %3464 = vmatpush1.msra.mxu0 %v3438
        %3465 = vmatprep.subr.mxu0 0.0
        %3466 = vmatpush1.msra.mxu0 %v3437
        %3467 = vmatprep.subr.mxu0 0.0
        %3468 = vmatpush1.msra.mxu0 %v3436
        %3469 = vmatprep.subr.mxu0 0.0
        %3470 = vmatpush1.msra.mxu0 %v3435
        %3471 = vmatprep.subr.mxu0 0.0
        %3472 = vmatpush1.msra.mxu0 %v3434
        %3473 = vmatprep.subr.mxu0 0.0
        %3474 = vmatpush1.msra.mxu0 %v3433
        %3475 = vmatprep.subr.mxu0 0.0
        %3476 = vmatpush1.msra.mxu0 %v3432
        %3477 = vmatprep.subr.mxu0 0.0
        %3478 = vmatpush1.msra.mxu0 %v3431
        %3479 = vmatprep.subr.mxu0 0.0
        %3480 = vmatpush2.msra.mxu0 0.0
        %3481 = vmatprep.subr.mxu0 0.0
        %3482 = vmatpush2.msra.mxu0 0.0
        %3483 = vmatprep.subr.mxu0 0.0
        %3484 = vmatpush2.msra.mxu0 0.0
        %3485 = vmatprep.subr.mxu0 0.0
        %3486 = vmatpush2.msra.mxu0 0.0
        %3487 = vmatprep.subr.mxu0 0.0
        %3488 = vmatpush2.msra.mxu0 0.0
        %3489 = vmatprep.subr.mxu0 0.0
        %3490 = vmatpush2.msra.mxu0 0.0
        %3491 = vmatprep.subr.mxu0 0.0
        %3492 = vmatpush2.msra.mxu0 0.0
        %3493 = vmatprep.subr.mxu0 0.0
        %3494 = vmatpush2.msra.mxu0 0.0
        %3495 = vmatprep.subr.mxu0 0.0
        %3496 = vmatpush2.msra.mxu0 0.0
        %3497 = vmatprep.subr.mxu0 0.0
        %3498 = vmatpush2.msra.mxu0 0.0
        %3499 = vmatprep.subr.mxu0 0.0
        %3500 = vmatpush2.msra.mxu0 0.0
        %3501 = vmatprep.subr.mxu0 0.0
        %3502 = vmatpush2.msra.mxu0 0.0
        %3503 = vmatprep.subr.mxu0 0.0
        %3504 = vmatpush2.msra.mxu0 0.0
        %3505 = vmatprep.subr.mxu0 0.0
        %3506 = vmatpush2.msra.mxu0 0.0
        %3507 = vmatprep.subr.mxu0 0.0
        %3508 = vmatpush2.msra.mxu0 0.0
        %3509 = vmatprep.subr.mxu0 0.0
        %3510 = vmatpush2.msra.mxu0 0.0
        %3511 = vmatprep.mubr.f32.mxu0 0.0
        %3512 = vmatmul.mubr.f32.gmra.mxu0 %v3415
        %v3513 = vpop.f32.mrf.mxu0
        %v3514 = vadd.f32 0.0, %v3513
        %v3515 = vpop.f32.mrf.mxu0
        %3516 = vmatprep.mubr.f32.mxu0 0.0
        %3517 = vmatmul.mubr.f32.gmra.mxu0 %v3416
        %v3518 = vpop.f32.mrf.mxu0
        %v3519 = vadd.f32 0.0, %v3518
        %v3520 = vpop.f32.mrf.mxu0
        %3521 = vmatprep.mubr.f32.mxu0 0.0
        %3522 = vmatmul.mubr.f32.gmra.mxu0 %v3417
        %v3523 = vpop.f32.mrf.mxu0
        %v3524 = vadd.f32 0.0, %v3523
        %v3525 = vpop.f32.mrf.mxu0
        %3526 = vmatprep.mubr.f32.mxu0 0.0
        %3527 = vmatmul.mubr.f32.gmra.mxu0 %v3418
        %v3528 = vpop.f32.mrf.mxu0
        %v3529 = vadd.f32 0.0, %v3528
        %v3530 = vpop.f32.mrf.mxu0
        %3531 = vmatprep.mubr.f32.mxu0 0.0
        %3532 = vmatmul.mubr.f32.gmra.mxu0 %v3419
        %v3533 = vpop.f32.mrf.mxu0
        %v3534 = vadd.f32 0.0, %v3533
        %v3535 = vpop.f32.mrf.mxu0
        %3536 = vmatprep.mubr.f32.mxu0 0.0
        %3537 = vmatmul.mubr.f32.gmra.mxu0 %v3420
        %v3538 = vpop.f32.mrf.mxu0
        %v3539 = vadd.f32 0.0, %v3538
        %v3540 = vpop.f32.mrf.mxu0
        %3541 = vmatprep.mubr.f32.mxu0 0.0
        %3542 = vmatmul.mubr.f32.gmra.mxu0 %v3421
        %v3543 = vpop.f32.mrf.mxu0
        %v3544 = vadd.f32 0.0, %v3543
        %v3545 = vpop.f32.mrf.mxu0
        %3546 = vmatprep.mubr.f32.mxu0 0.0
        %3547 = vmatmul.mubr.f32.gmra.mxu0 %v3422
        %v3548 = vpop.f32.mrf.mxu0
        %v3549 = vadd.f32 0.0, %v3548
        %v3550 = vpop.f32.mrf.mxu0
        %3551 = vmatprep.mubr.f32.mxu0 0.0
        %3552 = vmatmul.mubr.f32.gmra.mxu0 %v3423
        %v3553 = vpop.f32.mrf.mxu0
        %v3554 = vadd.f32 0.0, %v3553
        %v3555 = vpop.f32.mrf.mxu0
        %3556 = vmatprep.mubr.f32.mxu0 0.0
        %3557 = vmatmul.mubr.f32.gmra.mxu0 %v3424
        %v3558 = vpop.f32.mrf.mxu0
        %v3559 = vadd.f32 0.0, %v3558
        %v3560 = vpop.f32.mrf.mxu0
        %3561 = vmatprep.mubr.f32.mxu0 0.0
        %3562 = vmatmul.mubr.f32.gmra.mxu0 %v3425
        %v3563 = vpop.f32.mrf.mxu0
        %v3564 = vadd.f32 0.0, %v3563
        %v3565 = vpop.f32.mrf.mxu0
        %3566 = vmatprep.mubr.f32.mxu0 0.0
        %3567 = vmatmul.mubr.f32.gmra.mxu0 %v3426
        %v3568 = vpop.f32.mrf.mxu0
        %v3569 = vadd.f32 0.0, %v3568
        %v3570 = vpop.f32.mrf.mxu0
        %3571 = vmatprep.mubr.f32.mxu0 0.0
        %3572 = vmatmul.mubr.f32.gmra.mxu0 %v3427
        %v3573 = vpop.f32.mrf.mxu0
        %v3574 = vadd.f32 0.0, %v3573
        %v3575 = vpop.f32.mrf.mxu0
        %3576 = vmatprep.mubr.f32.mxu0 0.0
        %3577 = vmatmul.mubr.f32.gmra.mxu0 %v3428
        %v3578 = vpop.f32.mrf.mxu0
        %v3579 = vadd.f32 0.0, %v3578
        %v3580 = vpop.f32.mrf.mxu0
        %3581 = vmatprep.mubr.f32.mxu0 0.0
        %3582 = vmatmul.mubr.f32.gmra.mxu0 %v3429
        %v3583 = vpop.f32.mrf.mxu0
        %v3584 = vadd.f32 0.0, %v3583
        %v3585 = vpop.f32.mrf.mxu0
        %3586 = vmatprep.mubr.f32.mxu0 0.0
        %3587 = vmatmul.mubr.f32.gmra.mxu0 %v3430
        %v3588 = vpop.f32.mrf.mxu0
        %v3589 = vadd.f32 0.0, %v3588
        %v3590 = vpop.f32.mrf.mxu0
        %3591 = vdwg.mxu0
        %v3592 = vadd.f32 %v3398, %v3514
        %v3593 = vadd.f32 %v3399, %v3519
        %v3594 = vadd.f32 %v3400, %v3524
        %v3595 = vadd.f32 %v3401, %v3529
        %v3596 = vadd.f32 %v3402, %v3534
        %v3597 = vadd.f32 %v3403, %v3539
        %v3598 = vadd.f32 %v3404, %v3544
        %v3599 = vadd.f32 %v3405, %v3549
        %v3600 = vadd.f32 %v3406, %v3554
        %v3601 = vadd.f32 %v3407, %v3559
        %v3602 = vadd.f32 %v3408, %v3564
        %v3603 = vadd.f32 %v3409, %v3569
        %v3604 = vadd.f32 %v3410, %v3574
        %v3605 = vadd.f32 %v3411, %v3579
        %v3606 = vadd.f32 %v3412, %v3584
        %v3607 = vadd.f32 %v3413, %v3589
        %v3608 = vld [vmem:[%s3414 + $0x1] sm:$0xff]
        %v3609 = vld [vmem:[%s3414 + $0x9] sm:$0xff]
        %v3610 = vld [vmem:[%s3414 + $0x19] sm:$0xff]
        %v3611 = vld [vmem:[%s3414 + $0x21] sm:$0xff]
        %v3612 = vld [vmem:[%s3414 + $0x31] sm:$0xff]
        %v3613 = vld [vmem:[%s3414 + $0x39] sm:$0xff]
        %v3614 = vld [vmem:[%s3414 + $0x49] sm:$0xff]
        %v3615 = vld [vmem:[%s3414 + $0x51] sm:$0xff]
        %v3616 = vld [vmem:[%s3414 + $0x61] sm:$0xff]
        %v3617 = vld [vmem:[%s3414 + $0x69] sm:$0xff]
        %v3618 = vld [vmem:[%s3414 + $0x79] sm:$0xff]
        %v3619 = vld [vmem:[%s3414 + $0x81] sm:$0xff]
        %v3620 = vld [vmem:[%s3414 + $0x91] sm:$0xff]
        %v3621 = vld [vmem:[%s3414 + $0x99] sm:$0xff]
        %v3622 = vld [vmem:[%s3414 + $0xa9] sm:$0xff]
        %v3623 = vld [vmem:[%s3414 + $0xb1] sm:$0xff]
        %v3624 = vld [vmem:[%s1859] sm:$0xff]
        %v3625 = vld [vmem:[%s1859 + $0x8] sm:$0xff]
        %v3626 = vld [vmem:[%s1859 + $0x10] sm:$0xff]
        %v3627 = vld [vmem:[%s1859 + $0x18] sm:$0xff]
        %v3628 = vld [vmem:[%s1859 + $0x20] sm:$0xff]
        %v3629 = vld [vmem:[%s1859 + $0x28] sm:$0xff]
        %v3630 = vld [vmem:[%s1859 + $0x30] sm:$0xff]
        %v3631 = vld [vmem:[%s1859 + $0x38] sm:$0xff]
        %v3632 = vld [vmem:[%s1859 + $0x40] sm:$0xff]
        %v3633 = vld [vmem:[%s1859 + $0x48] sm:$0xff]
        %v3634 = vld [vmem:[%s1859 + $0x50] sm:$0xff]
        %v3635 = vld [vmem:[%s1859 + $0x58] sm:$0xff]
        %v3636 = vld [vmem:[%s1859 + $0x60] sm:$0xff]
        %v3637 = vld [vmem:[%s1859 + $0x68] sm:$0xff]
        %v3638 = vld [vmem:[%s1859 + $0x70] sm:$0xff]
        %v3639 = vld [vmem:[%s1859 + $0x78] sm:$0xff]
        %3640 = vmatprep.subr.mxu0 0.0
        %3641 = vmatpush1.msra.mxu0 %v3639
        %3642 = vmatprep.subr.mxu0 0.0
        %3643 = vmatpush1.msra.mxu0 %v3638
        %3644 = vmatprep.subr.mxu0 0.0
        %3645 = vmatpush1.msra.mxu0 %v3637
        %3646 = vmatprep.subr.mxu0 0.0
        %3647 = vmatpush1.msra.mxu0 %v3636
        %3648 = vmatprep.subr.mxu0 0.0
        %3649 = vmatpush1.msra.mxu0 %v3635
        %3650 = vmatprep.subr.mxu0 0.0
        %3651 = vmatpush1.msra.mxu0 %v3634
        %3652 = vmatprep.subr.mxu0 0.0
        %3653 = vmatpush1.msra.mxu0 %v3633
        %3654 = vmatprep.subr.mxu0 0.0
        %3655 = vmatpush1.msra.mxu0 %v3632
        %3656 = vmatprep.subr.mxu0 0.0
        %3657 = vmatpush1.msra.mxu0 %v3631
        %3658 = vmatprep.subr.mxu0 0.0
        %3659 = vmatpush1.msra.mxu0 %v3630
        %3660 = vmatprep.subr.mxu0 0.0
        %3661 = vmatpush1.msra.mxu0 %v3629
        %3662 = vmatprep.subr.mxu0 0.0
        %3663 = vmatpush1.msra.mxu0 %v3628
        %3664 = vmatprep.subr.mxu0 0.0
        %3665 = vmatpush1.msra.mxu0 %v3627
        %3666 = vmatprep.subr.mxu0 0.0
        %3667 = vmatpush1.msra.mxu0 %v3626
        %3668 = vmatprep.subr.mxu0 0.0
        %3669 = vmatpush1.msra.mxu0 %v3625
        %3670 = vmatprep.subr.mxu0 0.0
        %3671 = vmatpush1.msra.mxu0 %v3624
        %3672 = vmatprep.subr.mxu0 0.0
        %3673 = vmatpush2.msra.mxu0 0.0
        %3674 = vmatprep.subr.mxu0 0.0
        %3675 = vmatpush2.msra.mxu0 0.0
        %3676 = vmatprep.subr.mxu0 0.0
        %3677 = vmatpush2.msra.mxu0 0.0
        %3678 = vmatprep.subr.mxu0 0.0
        %3679 = vmatpush2.msra.mxu0 0.0
        %3680 = vmatprep.subr.mxu0 0.0
        %3681 = vmatpush2.msra.mxu0 0.0
        %3682 = vmatprep.subr.mxu0 0.0
        %3683 = vmatpush2.msra.mxu0 0.0
        %3684 = vmatprep.subr.mxu0 0.0
        %3685 = vmatpush2.msra.mxu0 0.0
        %3686 = vmatprep.subr.mxu0 0.0
        %3687 = vmatpush2.msra.mxu0 0.0
        %3688 = vmatprep.subr.mxu0 0.0
        %3689 = vmatpush2.msra.mxu0 0.0
        %3690 = vmatprep.subr.mxu0 0.0
        %3691 = vmatpush2.msra.mxu0 0.0
        %3692 = vmatprep.subr.mxu0 0.0
        %3693 = vmatpush2.msra.mxu0 0.0
        %3694 = vmatprep.subr.mxu0 0.0
        %3695 = vmatpush2.msra.mxu0 0.0
        %3696 = vmatprep.subr.mxu0 0.0
        %3697 = vmatpush2.msra.mxu0 0.0
        %3698 = vmatprep.subr.mxu0 0.0
        %3699 = vmatpush2.msra.mxu0 0.0
        %3700 = vmatprep.subr.mxu0 0.0
        %3701 = vmatpush2.msra.mxu0 0.0
        %3702 = vmatprep.subr.mxu0 0.0
        %3703 = vmatpush2.msra.mxu0 0.0
        %3704 = vmatprep.mubr.f32.mxu0 0.0
        %3705 = vmatmul.mubr.f32.gmra.mxu0 %v3608
        %v3706 = vpop.f32.mrf.mxu0
        %v3707 = vadd.f32 0.0, %v3706
        %v3708 = vpop.f32.mrf.mxu0
        %3709 = vmatprep.mubr.f32.mxu0 0.0
        %3710 = vmatmul.mubr.f32.gmra.mxu0 %v3609
        %v3711 = vpop.f32.mrf.mxu0
        %v3712 = vadd.f32 0.0, %v3711
        %v3713 = vpop.f32.mrf.mxu0
        %3714 = vmatprep.mubr.f32.mxu0 0.0
        %3715 = vmatmul.mubr.f32.gmra.mxu0 %v3610
        %v3716 = vpop.f32.mrf.mxu0
        %v3717 = vadd.f32 0.0, %v3716
        %v3718 = vpop.f32.mrf.mxu0
        %3719 = vmatprep.mubr.f32.mxu0 0.0
        %3720 = vmatmul.mubr.f32.gmra.mxu0 %v3611
        %v3721 = vpop.f32.mrf.mxu0
        %v3722 = vadd.f32 0.0, %v3721
        %v3723 = vpop.f32.mrf.mxu0
        %3724 = vmatprep.mubr.f32.mxu0 0.0
        %3725 = vmatmul.mubr.f32.gmra.mxu0 %v3612
        %v3726 = vpop.f32.mrf.mxu0
        %v3727 = vadd.f32 0.0, %v3726
        %v3728 = vpop.f32.mrf.mxu0
        %3729 = vmatprep.mubr.f32.mxu0 0.0
        %3730 = vmatmul.mubr.f32.gmra.mxu0 %v3613
        %v3731 = vpop.f32.mrf.mxu0
        %v3732 = vadd.f32 0.0, %v3731
        %v3733 = vpop.f32.mrf.mxu0
        %3734 = vmatprep.mubr.f32.mxu0 0.0
        %3735 = vmatmul.mubr.f32.gmra.mxu0 %v3614
        %v3736 = vpop.f32.mrf.mxu0
        %v3737 = vadd.f32 0.0, %v3736
        %v3738 = vpop.f32.mrf.mxu0
        %3739 = vmatprep.mubr.f32.mxu0 0.0
        %3740 = vmatmul.mubr.f32.gmra.mxu0 %v3615
        %v3741 = vpop.f32.mrf.mxu0
        %v3742 = vadd.f32 0.0, %v3741
        %v3743 = vpop.f32.mrf.mxu0
        %3744 = vmatprep.mubr.f32.mxu0 0.0
        %3745 = vmatmul.mubr.f32.gmra.mxu0 %v3616
        %v3746 = vpop.f32.mrf.mxu0
        %v3747 = vadd.f32 0.0, %v3746
        %v3748 = vpop.f32.mrf.mxu0
        %3749 = vmatprep.mubr.f32.mxu0 0.0
        %3750 = vmatmul.mubr.f32.gmra.mxu0 %v3617
        %v3751 = vpop.f32.mrf.mxu0
        %v3752 = vadd.f32 0.0, %v3751
        %v3753 = vpop.f32.mrf.mxu0
        %3754 = vmatprep.mubr.f32.mxu0 0.0
        %3755 = vmatmul.mubr.f32.gmra.mxu0 %v3618
        %v3756 = vpop.f32.mrf.mxu0
        %v3757 = vadd.f32 0.0, %v3756
        %v3758 = vpop.f32.mrf.mxu0
        %3759 = vmatprep.mubr.f32.mxu0 0.0
        %3760 = vmatmul.mubr.f32.gmra.mxu0 %v3619
        %v3761 = vpop.f32.mrf.mxu0
        %v3762 = vadd.f32 0.0, %v3761
        %v3763 = vpop.f32.mrf.mxu0
        %3764 = vmatprep.mubr.f32.mxu0 0.0
        %3765 = vmatmul.mubr.f32.gmra.mxu0 %v3620
        %v3766 = vpop.f32.mrf.mxu0
        %v3767 = vadd.f32 0.0, %v3766
        %v3768 = vpop.f32.mrf.mxu0
        %3769 = vmatprep.mubr.f32.mxu0 0.0
        %3770 = vmatmul.mubr.f32.gmra.mxu0 %v3621
        %v3771 = vpop.f32.mrf.mxu0
        %v3772 = vadd.f32 0.0, %v3771
        %v3773 = vpop.f32.mrf.mxu0
        %3774 = vmatprep.mubr.f32.mxu0 0.0
        %3775 = vmatmul.mubr.f32.gmra.mxu0 %v3622
        %v3776 = vpop.f32.mrf.mxu0
        %v3777 = vadd.f32 0.0, %v3776
        %v3778 = vpop.f32.mrf.mxu0
        %3779 = vmatprep.mubr.f32.mxu0 0.0
        %3780 = vmatmul.mubr.f32.gmra.mxu0 %v3623
        %v3781 = vpop.f32.mrf.mxu0
        %v3782 = vadd.f32 0.0, %v3781
        %v3783 = vpop.f32.mrf.mxu0
        %3784 = vdwg.mxu0
        %v3785 = vadd.f32 %v3592, %v3707
        %v3786 = vadd.f32 %v3593, %v3712
        %v3787 = vadd.f32 %v3594, %v3717
        %v3788 = vadd.f32 %v3595, %v3722
        %v3789 = vadd.f32 %v3596, %v3727
        %v3790 = vadd.f32 %v3597, %v3732
        %v3791 = vadd.f32 %v3598, %v3737
        %v3792 = vadd.f32 %v3599, %v3742
        %v3793 = vadd.f32 %v3600, %v3747
        %v3794 = vadd.f32 %v3601, %v3752
        %v3795 = vadd.f32 %v3602, %v3757
        %v3796 = vadd.f32 %v3603, %v3762
        %v3797 = vadd.f32 %v3604, %v3767
        %v3798 = vadd.f32 %v3605, %v3772
        %v3799 = vadd.f32 %v3606, %v3777
        %v3800 = vadd.f32 %v3607, %v3782
        %v3801 = vld [vmem:[%s3414 + $0x2] sm:$0xff]
        %v3802 = vld [vmem:[%s3414 + $0xa] sm:$0xff]
        %v3803 = vld [vmem:[%s3414 + $0x1a] sm:$0xff]
        %v3804 = vld [vmem:[%s3414 + $0x22] sm:$0xff]
        %v3805 = vld [vmem:[%s3414 + $0x32] sm:$0xff]
        %v3806 = vld [vmem:[%s3414 + $0x3a] sm:$0xff]
        %v3807 = vld [vmem:[%s3414 + $0x4a] sm:$0xff]
        %v3808 = vld [vmem:[%s3414 + $0x52] sm:$0xff]
        %v3809 = vld [vmem:[%s3414 + $0x62] sm:$0xff]
        %v3810 = vld [vmem:[%s3414 + $0x6a] sm:$0xff]
        %v3811 = vld [vmem:[%s3414 + $0x7a] sm:$0xff]
        %v3812 = vld [vmem:[%s3414 + $0x82] sm:$0xff]
        %v3813 = vld [vmem:[%s3414 + $0x92] sm:$0xff]
        %v3814 = vld [vmem:[%s3414 + $0x9a] sm:$0xff]
        %v3815 = vld [vmem:[%s3414 + $0xaa] sm:$0xff]
        %v3816 = vld [vmem:[%s3414 + $0xb2] sm:$0xff]
        %v3817 = vld [vmem:[%s2053] sm:$0xff]
        %v3818 = vld [vmem:[%s2053 + $0x8] sm:$0xff]
        %v3819 = vld [vmem:[%s2053 + $0x10] sm:$0xff]
        %v3820 = vld [vmem:[%s2053 + $0x18] sm:$0xff]
        %v3821 = vld [vmem:[%s2053 + $0x20] sm:$0xff]
        %v3822 = vld [vmem:[%s2053 + $0x28] sm:$0xff]
        %v3823 = vld [vmem:[%s2053 + $0x30] sm:$0xff]
        %v3824 = vld [vmem:[%s2053 + $0x38] sm:$0xff]
        %v3825 = vld [vmem:[%s2053 + $0x40] sm:$0xff]
        %v3826 = vld [vmem:[%s2053 + $0x48] sm:$0xff]
        %v3827 = vld [vmem:[%s2053 + $0x50] sm:$0xff]
        %v3828 = vld [vmem:[%s2053 + $0x58] sm:$0xff]
        %v3829 = vld [vmem:[%s2053 + $0x60] sm:$0xff]
        %v3830 = vld [vmem:[%s2053 + $0x68] sm:$0xff]
        %v3831 = vld [vmem:[%s2053 + $0x70] sm:$0xff]
        %v3832 = vld [vmem:[%s2053 + $0x78] sm:$0xff]
        %3833 = vmatprep.subr.mxu0 0.0
        %3834 = vmatpush1.msra.mxu0 %v3832
        %3835 = vmatprep.subr.mxu0 0.0
        %3836 = vmatpush1.msra.mxu0 %v3831
        %3837 = vmatprep.subr.mxu0 0.0
        %3838 = vmatpush1.msra.mxu0 %v3830
        %3839 = vmatprep.subr.mxu0 0.0
        %3840 = vmatpush1.msra.mxu0 %v3829
        %3841 = vmatprep.subr.mxu0 0.0
        %3842 = vmatpush1.msra.mxu0 %v3828
        %3843 = vmatprep.subr.mxu0 0.0
        %3844 = vmatpush1.msra.mxu0 %v3827
        %3845 = vmatprep.subr.mxu0 0.0
        %3846 = vmatpush1.msra.mxu0 %v3826
        %3847 = vmatprep.subr.mxu0 0.0
        %3848 = vmatpush1.msra.mxu0 %v3825
        %3849 = vmatprep.subr.mxu0 0.0
        %3850 = vmatpush1.msra.mxu0 %v3824
        %3851 = vmatprep.subr.mxu0 0.0
        %3852 = vmatpush1.msra.mxu0 %v3823
        %3853 = vmatprep.subr.mxu0 0.0
        %3854 = vmatpush1.msra.mxu0 %v3822
        %3855 = vmatprep.subr.mxu0 0.0
        %3856 = vmatpush1.msra.mxu0 %v3821
        %3857 = vmatprep.subr.mxu0 0.0
        %3858 = vmatpush1.msra.mxu0 %v3820
        %3859 = vmatprep.subr.mxu0 0.0
        %3860 = vmatpush1.msra.mxu0 %v3819
        %3861 = vmatprep.subr.mxu0 0.0
        %3862 = vmatpush1.msra.mxu0 %v3818
        %3863 = vmatprep.subr.mxu0 0.0
        %3864 = vmatpush1.msra.mxu0 %v3817
        %3865 = vmatprep.subr.mxu0 0.0
        %3866 = vmatpush2.msra.mxu0 0.0
        %3867 = vmatprep.subr.mxu0 0.0
        %3868 = vmatpush2.msra.mxu0 0.0
        %3869 = vmatprep.subr.mxu0 0.0
        %3870 = vmatpush2.msra.mxu0 0.0
        %3871 = vmatprep.subr.mxu0 0.0
        %3872 = vmatpush2.msra.mxu0 0.0
        %3873 = vmatprep.subr.mxu0 0.0
        %3874 = vmatpush2.msra.mxu0 0.0
        %3875 = vmatprep.subr.mxu0 0.0
        %3876 = vmatpush2.msra.mxu0 0.0
        %3877 = vmatprep.subr.mxu0 0.0
        %3878 = vmatpush2.msra.mxu0 0.0
        %3879 = vmatprep.subr.mxu0 0.0
        %3880 = vmatpush2.msra.mxu0 0.0
        %3881 = vmatprep.subr.mxu0 0.0
        %3882 = vmatpush2.msra.mxu0 0.0
        %3883 = vmatprep.subr.mxu0 0.0
        %3884 = vmatpush2.msra.mxu0 0.0
        %3885 = vmatprep.subr.mxu0 0.0
        %3886 = vmatpush2.msra.mxu0 0.0
        %3887 = vmatprep.subr.mxu0 0.0
        %3888 = vmatpush2.msra.mxu0 0.0
        %3889 = vmatprep.subr.mxu0 0.0
        %3890 = vmatpush2.msra.mxu0 0.0
        %3891 = vmatprep.subr.mxu0 0.0
        %3892 = vmatpush2.msra.mxu0 0.0
        %3893 = vmatprep.subr.mxu0 0.0
        %3894 = vmatpush2.msra.mxu0 0.0
        %3895 = vmatprep.subr.mxu0 0.0
        %3896 = vmatpush2.msra.mxu0 0.0
        %3897 = vmatprep.mubr.f32.mxu0 0.0
        %3898 = vmatmul.mubr.f32.gmra.mxu0 %v3801
        %v3899 = vpop.f32.mrf.mxu0
        %v3900 = vadd.f32 0.0, %v3899
        %v3901 = vpop.f32.mrf.mxu0
        %3902 = vmatprep.mubr.f32.mxu0 0.0
        %3903 = vmatmul.mubr.f32.gmra.mxu0 %v3802
        %v3904 = vpop.f32.mrf.mxu0
        %v3905 = vadd.f32 0.0, %v3904
        %v3906 = vpop.f32.mrf.mxu0
        %3907 = vmatprep.mubr.f32.mxu0 0.0
        %3908 = vmatmul.mubr.f32.gmra.mxu0 %v3803
        %v3909 = vpop.f32.mrf.mxu0
        %v3910 = vadd.f32 0.0, %v3909
        %v3911 = vpop.f32.mrf.mxu0
        %3912 = vmatprep.mubr.f32.mxu0 0.0
        %3913 = vmatmul.mubr.f32.gmra.mxu0 %v3804
        %v3914 = vpop.f32.mrf.mxu0
        %v3915 = vadd.f32 0.0, %v3914
        %v3916 = vpop.f32.mrf.mxu0
        %3917 = vmatprep.mubr.f32.mxu0 0.0
        %3918 = vmatmul.mubr.f32.gmra.mxu0 %v3805
        %v3919 = vpop.f32.mrf.mxu0
        %v3920 = vadd.f32 0.0, %v3919
        %v3921 = vpop.f32.mrf.mxu0
        %3922 = vmatprep.mubr.f32.mxu0 0.0
        %3923 = vmatmul.mubr.f32.gmra.mxu0 %v3806
        %v3924 = vpop.f32.mrf.mxu0
        %v3925 = vadd.f32 0.0, %v3924
        %v3926 = vpop.f32.mrf.mxu0
        %3927 = vmatprep.mubr.f32.mxu0 0.0
        %3928 = vmatmul.mubr.f32.gmra.mxu0 %v3807
        %v3929 = vpop.f32.mrf.mxu0
        %v3930 = vadd.f32 0.0, %v3929
        %v3931 = vpop.f32.mrf.mxu0
        %3932 = vmatprep.mubr.f32.mxu0 0.0
        %3933 = vmatmul.mubr.f32.gmra.mxu0 %v3808
        %v3934 = vpop.f32.mrf.mxu0
        %v3935 = vadd.f32 0.0, %v3934
        %v3936 = vpop.f32.mrf.mxu0
        %3937 = vmatprep.mubr.f32.mxu0 0.0
        %3938 = vmatmul.mubr.f32.gmra.mxu0 %v3809
        %v3939 = vpop.f32.mrf.mxu0
        %v3940 = vadd.f32 0.0, %v3939
        %v3941 = vpop.f32.mrf.mxu0
        %3942 = vmatprep.mubr.f32.mxu0 0.0
        %3943 = vmatmul.mubr.f32.gmra.mxu0 %v3810
        %v3944 = vpop.f32.mrf.mxu0
        %v3945 = vadd.f32 0.0, %v3944
        %v3946 = vpop.f32.mrf.mxu0
        %3947 = vmatprep.mubr.f32.mxu0 0.0
        %3948 = vmatmul.mubr.f32.gmra.mxu0 %v3811
        %v3949 = vpop.f32.mrf.mxu0
        %v3950 = vadd.f32 0.0, %v3949
        %v3951 = vpop.f32.mrf.mxu0
        %3952 = vmatprep.mubr.f32.mxu0 0.0
        %3953 = vmatmul.mubr.f32.gmra.mxu0 %v3812
        %v3954 = vpop.f32.mrf.mxu0
        %v3955 = vadd.f32 0.0, %v3954
        %v3956 = vpop.f32.mrf.mxu0
        %3957 = vmatprep.mubr.f32.mxu0 0.0
        %3958 = vmatmul.mubr.f32.gmra.mxu0 %v3813
        %v3959 = vpop.f32.mrf.mxu0
        %v3960 = vadd.f32 0.0, %v3959
        %v3961 = vpop.f32.mrf.mxu0
        %3962 = vmatprep.mubr.f32.mxu0 0.0
        %3963 = vmatmul.mubr.f32.gmra.mxu0 %v3814
        %v3964 = vpop.f32.mrf.mxu0
        %v3965 = vadd.f32 0.0, %v3964
        %v3966 = vpop.f32.mrf.mxu0
        %3967 = vmatprep.mubr.f32.mxu0 0.0
        %3968 = vmatmul.mubr.f32.gmra.mxu0 %v3815
        %v3969 = vpop.f32.mrf.mxu0
        %v3970 = vadd.f32 0.0, %v3969
        %v3971 = vpop.f32.mrf.mxu0
        %3972 = vmatprep.mubr.f32.mxu0 0.0
        %3973 = vmatmul.mubr.f32.gmra.mxu0 %v3816
        %v3974 = vpop.f32.mrf.mxu0
        %v3975 = vadd.f32 0.0, %v3974
        %v3976 = vpop.f32.mrf.mxu0
        %3977 = vdwg.mxu0
        %v3978 = vadd.f32 %v3785, %v3900
        %v3979 = vadd.f32 %v3786, %v3905
        %v3980 = vadd.f32 %v3787, %v3910
        %v3981 = vadd.f32 %v3788, %v3915
        %v3982 = vadd.f32 %v3789, %v3920
        %v3983 = vadd.f32 %v3790, %v3925
        %v3984 = vadd.f32 %v3791, %v3930
        %v3985 = vadd.f32 %v3792, %v3935
        %v3986 = vadd.f32 %v3793, %v3940
        %v3987 = vadd.f32 %v3794, %v3945
        %v3988 = vadd.f32 %v3795, %v3950
        %v3989 = vadd.f32 %v3796, %v3955
        %v3990 = vadd.f32 %v3797, %v3960
        %v3991 = vadd.f32 %v3798, %v3965
        %v3992 = vadd.f32 %v3799, %v3970
        %v3993 = vadd.f32 %v3800, %v3975
        %v3994 = vadd.f32 %v3978, %v2235
        %v3995 = vadd.f32 %v3979, %v2235
        %v3996 = vadd.f32 %v3980, %v2235
        %v3997 = vadd.f32 %v3981, %v2235
        %v3998 = vadd.f32 %v3982, %v2235
        %v3999 = vadd.f32 %v3983, %v2235
        %v4000 = vadd.f32 %v3984, %v2235
        %v4001 = vadd.f32 %v3985, %v2235
        %v4002 = vadd.f32 %v3986, %v2235
        %v4003 = vadd.f32 %v3987, %v2235
        %v4004 = vadd.f32 %v3988, %v2235
        %v4005 = vadd.f32 %v3989, %v2235
        %v4006 = vadd.f32 %v3990, %v2235
        %v4007 = vadd.f32 %v3991, %v2235
        %v4008 = vadd.f32 %v3992, %v2235
        %v4009 = vadd.f32 %v3993, %v2235
        %v4010 = vmax.f32 %v3994, 0.0
        %v4011 = vmax.f32 %v3995, 0.0
        %v4012 = vmax.f32 %v3996, 0.0
        %v4013 = vmax.f32 %v3997, 0.0
        %v4014 = vmax.f32 %v3998, 0.0
        %v4015 = vmax.f32 %v3999, 0.0
        %v4016 = vmax.f32 %v4000, 0.0
        %v4017 = vmax.f32 %v4001, 0.0
        %v4018 = vmax.f32 %v4002, 0.0
        %v4019 = vmax.f32 %v4003, 0.0
        %v4020 = vmax.f32 %v4004, 0.0
        %v4021 = vmax.f32 %v4005, 0.0
        %v4022 = vmax.f32 %v4006, 0.0
        %v4023 = vmax.f32 %v4007, 0.0
        %v4024 = vmax.f32 %v4008, 0.0
        %v4025 = vmax.f32 %v4009, 0.0
        %s4026 = scalar_lea.vmem [#allocation3], 216
        %4027 = vst [vmem:[%s4026 + $0x1] sm:$0xff] %v4010
        %4028 = vst [vmem:[%s4026 + $0x9] sm:$0xff] %v4011
        %4029 = vst [vmem:[%s4026 + $0x19] sm:$0xff] %v4012
        %4030 = vst [vmem:[%s4026 + $0x21] sm:$0xff] %v4013
        %4031 = vst [vmem:[%s4026 + $0x31] sm:$0xff] %v4014
        %4032 = vst [vmem:[%s4026 + $0x39] sm:$0xff] %v4015
        %4033 = vst [vmem:[%s4026 + $0x49] sm:$0xff] %v4016
        %4034 = vst [vmem:[%s4026 + $0x51] sm:$0xff] %v4017
        %4035 = vst [vmem:[%s4026 + $0x61] sm:$0xff] %v4018
        %4036 = vst [vmem:[%s4026 + $0x69] sm:$0xff] %v4019
        %4037 = vst [vmem:[%s4026 + $0x79] sm:$0xff] %v4020
        %4038 = vst [vmem:[%s4026 + $0x81] sm:$0xff] %v4021
        %4039 = vst [vmem:[%s4026 + $0x91] sm:$0xff] %v4022
        %4040 = vst [vmem:[%s4026 + $0x99] sm:$0xff] %v4023
        %4041 = vst [vmem:[%s4026 + $0xa9] sm:$0xff] %v4024
        %4042 = vst [vmem:[%s4026 + $0xb1] sm:$0xff] %v4025
        %v4043 = vld [vmem:[#allocation3] sm:$0xff]
        %v4044 = vld [vmem:[#allocation3 + $0x8] sm:$0xff]
        %v4045 = vld [vmem:[#allocation3 + $0x18] sm:$0xff]
        %v4046 = vld [vmem:[#allocation3 + $0x20] sm:$0xff]
        %v4047 = vld [vmem:[#allocation3 + $0x30] sm:$0xff]
        %v4048 = vld [vmem:[#allocation3 + $0x38] sm:$0xff]
        %v4049 = vld [vmem:[#allocation3 + $0x48] sm:$0xff]
        %v4050 = vld [vmem:[#allocation3 + $0x50] sm:$0xff]
        %v4051 = vld [vmem:[#allocation3 + $0x60] sm:$0xff]
        %v4052 = vld [vmem:[#allocation3 + $0x68] sm:$0xff]
        %v4053 = vld [vmem:[#allocation3 + $0x78] sm:$0xff]
        %v4054 = vld [vmem:[#allocation3 + $0x80] sm:$0xff]
        %v4055 = vld [vmem:[#allocation3 + $0x90] sm:$0xff]
        %v4056 = vld [vmem:[#allocation3 + $0x98] sm:$0xff]
        %v4057 = vld [vmem:[#allocation3 + $0xa8] sm:$0xff]
        %v4058 = vld [vmem:[#allocation3 + $0xb0] sm:$0xff]
        %v4059 = vld [vmem:[#allocation9] sm:$0xff]
        %v4060 = vld [vmem:[#allocation9 + $0x8] sm:$0xff]
        %v4061 = vld [vmem:[#allocation9 + $0x10] sm:$0xff]
        %v4062 = vld [vmem:[#allocation9 + $0x18] sm:$0xff]
        %v4063 = vld [vmem:[#allocation9 + $0x20] sm:$0xff]
        %v4064 = vld [vmem:[#allocation9 + $0x28] sm:$0xff]
        %v4065 = vld [vmem:[#allocation9 + $0x30] sm:$0xff]
        %v4066 = vld [vmem:[#allocation9 + $0x38] sm:$0xff]
        %v4067 = vld [vmem:[#allocation9 + $0x40] sm:$0xff]
        %v4068 = vld [vmem:[#allocation9 + $0x48] sm:$0xff]
        %v4069 = vld [vmem:[#allocation9 + $0x50] sm:$0xff]
        %v4070 = vld [vmem:[#allocation9 + $0x58] sm:$0xff]
        %v4071 = vld [vmem:[#allocation9 + $0x60] sm:$0xff]
        %v4072 = vld [vmem:[#allocation9 + $0x68] sm:$0xff]
        %v4073 = vld [vmem:[#allocation9 + $0x70] sm:$0xff]
        %v4074 = vld [vmem:[#allocation9 + $0x78] sm:$0xff]
        %v4075 = vld [vmem:[#allocation3 + $0x1] sm:$0xff]
        %v4076 = vld [vmem:[#allocation3 + $0x9] sm:$0xff]
        %v4077 = vld [vmem:[#allocation3 + $0x19] sm:$0xff]
        %v4078 = vld [vmem:[#allocation3 + $0x21] sm:$0xff]
        %v4079 = vld [vmem:[#allocation3 + $0x31] sm:$0xff]
        %v4080 = vld [vmem:[#allocation3 + $0x39] sm:$0xff]
        %v4081 = vld [vmem:[#allocation3 + $0x49] sm:$0xff]
        %v4082 = vld [vmem:[#allocation3 + $0x51] sm:$0xff]
        %v4083 = vld [vmem:[#allocation3 + $0x61] sm:$0xff]
        %v4084 = vld [vmem:[#allocation3 + $0x69] sm:$0xff]
        %v4085 = vld [vmem:[#allocation3 + $0x79] sm:$0xff]
        %v4086 = vld [vmem:[#allocation3 + $0x81] sm:$0xff]
        %v4087 = vld [vmem:[#allocation3 + $0x91] sm:$0xff]
        %v4088 = vld [vmem:[#allocation3 + $0x99] sm:$0xff]
        %v4089 = vld [vmem:[#allocation3 + $0xa9] sm:$0xff]
        %v4090 = vld [vmem:[#allocation3 + $0xb1] sm:$0xff]
        %s4091 = scalar_lea.vmem [#allocation9], 128
        %v4092 = vld [vmem:[%s4091] sm:$0xff]
        %v4093 = vld [vmem:[%s4091 + $0x8] sm:$0xff]
        %v4094 = vld [vmem:[%s4091 + $0x10] sm:$0xff]
        %v4095 = vld [vmem:[%s4091 + $0x18] sm:$0xff]
        %v4096 = vld [vmem:[%s4091 + $0x20] sm:$0xff]
        %v4097 = vld [vmem:[%s4091 + $0x28] sm:$0xff]
        %v4098 = vld [vmem:[%s4091 + $0x30] sm:$0xff]
        %v4099 = vld [vmem:[%s4091 + $0x38] sm:$0xff]
        %v4100 = vld [vmem:[%s4091 + $0x40] sm:$0xff]
        %v4101 = vld [vmem:[%s4091 + $0x48] sm:$0xff]
        %v4102 = vld [vmem:[%s4091 + $0x50] sm:$0xff]
        %v4103 = vld [vmem:[%s4091 + $0x58] sm:$0xff]
        %v4104 = vld [vmem:[%s4091 + $0x60] sm:$0xff]
        %v4105 = vld [vmem:[%s4091 + $0x68] sm:$0xff]
        %v4106 = vld [vmem:[%s4091 + $0x70] sm:$0xff]
        %v4107 = vld [vmem:[%s4091 + $0x78] sm:$0xff]
        %4108 = vmatprep.subr.mxu0 0.0
        %4109 = vmatpush1.msra.mxu0 %v4107
        %4110 = vmatprep.subr.mxu0 0.0
        %4111 = vmatpush1.msra.mxu0 %v4106
        %4112 = vmatprep.subr.mxu0 0.0
        %4113 = vmatpush1.msra.mxu0 %v4105
        %4114 = vmatprep.subr.mxu0 0.0
        %4115 = vmatpush1.msra.mxu0 %v4104
        %4116 = vmatprep.subr.mxu0 0.0
        %4117 = vmatpush1.msra.mxu0 %v4103
        %4118 = vmatprep.subr.mxu0 0.0
        %4119 = vmatpush1.msra.mxu0 %v4102
        %4120 = vmatprep.subr.mxu0 0.0
        %4121 = vmatpush1.msra.mxu0 %v4101
        %4122 = vmatprep.subr.mxu0 0.0
        %4123 = vmatpush1.msra.mxu0 %v4100
        %4124 = vmatprep.subr.mxu0 0.0
        %4125 = vmatpush1.msra.mxu0 %v4099
        %4126 = vmatprep.subr.mxu0 0.0
        %4127 = vmatpush1.msra.mxu0 %v4098
        %4128 = vmatprep.subr.mxu0 0.0
        %4129 = vmatpush1.msra.mxu0 %v4097
        %4130 = vmatprep.subr.mxu0 0.0
        %4131 = vmatpush1.msra.mxu0 %v4096
        %4132 = vmatprep.subr.mxu0 0.0
        %4133 = vmatpush1.msra.mxu0 %v4095
        %4134 = vmatprep.subr.mxu0 0.0
        %4135 = vmatpush1.msra.mxu0 %v4094
        %4136 = vmatprep.subr.mxu0 0.0
        %4137 = vmatpush1.msra.mxu0 %v4093
        %4138 = vmatprep.subr.mxu0 0.0
        %4139 = vmatpush1.msra.mxu0 %v4092
        %4140 = vmatprep.subr.mxu0 0.0
        %4141 = vmatpush2.msra.mxu0 0.0
        %4142 = vmatprep.subr.mxu0 0.0
        %4143 = vmatpush2.msra.mxu0 0.0
        %4144 = vmatprep.subr.mxu0 0.0
        %4145 = vmatpush2.msra.mxu0 0.0
        %4146 = vmatprep.subr.mxu0 0.0
        %4147 = vmatpush2.msra.mxu0 0.0
        %4148 = vmatprep.subr.mxu0 0.0
        %4149 = vmatpush2.msra.mxu0 0.0
        %4150 = vmatprep.subr.mxu0 0.0
        %4151 = vmatpush2.msra.mxu0 0.0
        %4152 = vmatprep.subr.mxu0 0.0
        %4153 = vmatpush2.msra.mxu0 0.0
        %4154 = vmatprep.subr.mxu0 0.0
        %4155 = vmatpush2.msra.mxu0 0.0
        %4156 = vmatprep.subr.mxu0 0.0
        %4157 = vmatpush2.msra.mxu0 0.0
        %4158 = vmatprep.subr.mxu0 0.0
        %4159 = vmatpush2.msra.mxu0 0.0
        %4160 = vmatprep.subr.mxu0 0.0
        %4161 = vmatpush2.msra.mxu0 0.0
        %4162 = vmatprep.subr.mxu0 0.0
        %4163 = vmatpush2.msra.mxu0 0.0
        %4164 = vmatprep.subr.mxu0 0.0
        %4165 = vmatpush2.msra.mxu0 0.0
        %4166 = vmatprep.subr.mxu0 0.0
        %4167 = vmatpush2.msra.mxu0 0.0
        %4168 = vmatprep.subr.mxu0 0.0
        %4169 = vmatpush2.msra.mxu0 0.0
        %4170 = vmatprep.subr.mxu0 0.0
        %4171 = vmatpush2.msra.mxu0 0.0
        %4172 = vmatprep.mubr.f32.mxu0 0.0
        %4173 = vmatmul.mubr.f32.gmra.mxu0 %v4075
        %v4174 = vpop.f32.mrf.mxu0
        %v4175 = vadd.f32 0.0, %v4174
        %v4176 = vpop.f32.mrf.mxu0
        %4177 = vmatprep.mubr.f32.mxu0 0.0
        %4178 = vmatmul.mubr.f32.gmra.mxu0 %v4076
        %v4179 = vpop.f32.mrf.mxu0
        %v4180 = vadd.f32 0.0, %v4179
        %v4181 = vpop.f32.mrf.mxu0
        %4182 = vmatprep.mubr.f32.mxu0 0.0
        %4183 = vmatmul.mubr.f32.gmra.mxu0 %v4077
        %v4184 = vpop.f32.mrf.mxu0
        %v4185 = vadd.f32 0.0, %v4184
        %v4186 = vpop.f32.mrf.mxu0
        %4187 = vmatprep.mubr.f32.mxu0 0.0
        %4188 = vmatmul.mubr.f32.gmra.mxu0 %v4078
        %v4189 = vpop.f32.mrf.mxu0
        %v4190 = vadd.f32 0.0, %v4189
        %v4191 = vpop.f32.mrf.mxu0
        %4192 = vmatprep.mubr.f32.mxu0 0.0
        %4193 = vmatmul.mubr.f32.gmra.mxu0 %v4079
        %v4194 = vpop.f32.mrf.mxu0
        %v4195 = vadd.f32 0.0, %v4194
        %v4196 = vpop.f32.mrf.mxu0
        %4197 = vmatprep.mubr.f32.mxu0 0.0
        %4198 = vmatmul.mubr.f32.gmra.mxu0 %v4080
        %v4199 = vpop.f32.mrf.mxu0
        %v4200 = vadd.f32 0.0, %v4199
        %v4201 = vpop.f32.mrf.mxu0
        %4202 = vmatprep.mubr.f32.mxu0 0.0
        %4203 = vmatmul.mubr.f32.gmra.mxu0 %v4081
        %v4204 = vpop.f32.mrf.mxu0
        %v4205 = vadd.f32 0.0, %v4204
        %v4206 = vpop.f32.mrf.mxu0
        %4207 = vmatprep.mubr.f32.mxu0 0.0
        %4208 = vmatmul.mubr.f32.gmra.mxu0 %v4082
        %v4209 = vpop.f32.mrf.mxu0
        %v4210 = vadd.f32 0.0, %v4209
        %v4211 = vpop.f32.mrf.mxu0
        %4212 = vmatprep.mubr.f32.mxu0 0.0
        %4213 = vmatmul.mubr.f32.gmra.mxu0 %v4083
        %v4214 = vpop.f32.mrf.mxu0
        %v4215 = vadd.f32 0.0, %v4214
        %v4216 = vpop.f32.mrf.mxu0
        %4217 = vmatprep.mubr.f32.mxu0 0.0
        %4218 = vmatmul.mubr.f32.gmra.mxu0 %v4084
        %v4219 = vpop.f32.mrf.mxu0
        %v4220 = vadd.f32 0.0, %v4219
        %v4221 = vpop.f32.mrf.mxu0
        %4222 = vmatprep.mubr.f32.mxu0 0.0
        %4223 = vmatmul.mubr.f32.gmra.mxu0 %v4085
        %v4224 = vpop.f32.mrf.mxu0
        %v4225 = vadd.f32 0.0, %v4224
        %v4226 = vpop.f32.mrf.mxu0
        %4227 = vmatprep.mubr.f32.mxu0 0.0
        %4228 = vmatmul.mubr.f32.gmra.mxu0 %v4086
        %v4229 = vpop.f32.mrf.mxu0
        %v4230 = vadd.f32 0.0, %v4229
        %v4231 = vpop.f32.mrf.mxu0
        %4232 = vmatprep.mubr.f32.mxu0 0.0
        %4233 = vmatmul.mubr.f32.gmra.mxu0 %v4087
        %v4234 = vpop.f32.mrf.mxu0
        %v4235 = vadd.f32 0.0, %v4234
        %v4236 = vpop.f32.mrf.mxu0
        %4237 = vmatprep.mubr.f32.mxu0 0.0
        %4238 = vmatmul.mubr.f32.gmra.mxu0 %v4088
        %v4239 = vpop.f32.mrf.mxu0
        %v4240 = vadd.f32 0.0, %v4239
        %v4241 = vpop.f32.mrf.mxu0
        %4242 = vmatprep.mubr.f32.mxu0 0.0
        %4243 = vmatmul.mubr.f32.gmra.mxu0 %v4089
        %v4244 = vpop.f32.mrf.mxu0
        %v4245 = vadd.f32 0.0, %v4244
        %v4246 = vpop.f32.mrf.mxu0
        %4247 = vmatprep.mubr.f32.mxu0 0.0
        %4248 = vmatmul.mubr.f32.gmra.mxu0 %v4090
        %v4249 = vpop.f32.mrf.mxu0
        %v4250 = vadd.f32 0.0, %v4249
        %v4251 = vpop.f32.mrf.mxu0
        %4252 = vdwg.mxu0
        %4253 = vmatprep.subr.mxu0 0.0
        %4254 = vmatpush1.msra.mxu0 %v4074
        %4255 = vmatprep.subr.mxu0 0.0
        %4256 = vmatpush1.msra.mxu0 %v4073
        %4257 = vmatprep.subr.mxu0 0.0
        %4258 = vmatpush1.msra.mxu0 %v4072
        %4259 = vmatprep.subr.mxu0 0.0
        %4260 = vmatpush1.msra.mxu0 %v4071
        %4261 = vmatprep.subr.mxu0 0.0
        %4262 = vmatpush1.msra.mxu0 %v4070
        %4263 = vmatprep.subr.mxu0 0.0
        %4264 = vmatpush1.msra.mxu0 %v4069
        %4265 = vmatprep.subr.mxu0 0.0
        %4266 = vmatpush1.msra.mxu0 %v4068
        %4267 = vmatprep.subr.mxu0 0.0
        %4268 = vmatpush1.msra.mxu0 %v4067
        %4269 = vmatprep.subr.mxu0 0.0
        %4270 = vmatpush1.msra.mxu0 %v4066
        %4271 = vmatprep.subr.mxu0 0.0
        %4272 = vmatpush1.msra.mxu0 %v4065
        %4273 = vmatprep.subr.mxu0 0.0
        %4274 = vmatpush1.msra.mxu0 %v4064
        %4275 = vmatprep.subr.mxu0 0.0
        %4276 = vmatpush1.msra.mxu0 %v4063
        %4277 = vmatprep.subr.mxu0 0.0
        %4278 = vmatpush1.msra.mxu0 %v4062
        %4279 = vmatprep.subr.mxu0 0.0
        %4280 = vmatpush1.msra.mxu0 %v4061
        %4281 = vmatprep.subr.mxu0 0.0
        %4282 = vmatpush1.msra.mxu0 %v4060
        %4283 = vmatprep.subr.mxu0 0.0
        %4284 = vmatpush1.msra.mxu0 %v4059
        %4285 = vmatprep.subr.mxu0 0.0
        %4286 = vmatpush2.msra.mxu0 0.0
        %4287 = vmatprep.subr.mxu0 0.0
        %4288 = vmatpush2.msra.mxu0 0.0
        %4289 = vmatprep.subr.mxu0 0.0
        %4290 = vmatpush2.msra.mxu0 0.0
        %4291 = vmatprep.subr.mxu0 0.0
        %4292 = vmatpush2.msra.mxu0 0.0
        %4293 = vmatprep.subr.mxu0 0.0
        %4294 = vmatpush2.msra.mxu0 0.0
        %4295 = vmatprep.subr.mxu0 0.0
        %4296 = vmatpush2.msra.mxu0 0.0
        %4297 = vmatprep.subr.mxu0 0.0
        %4298 = vmatpush2.msra.mxu0 0.0
        %4299 = vmatprep.subr.mxu0 0.0
        %4300 = vmatpush2.msra.mxu0 0.0
        %4301 = vmatprep.subr.mxu0 0.0
        %4302 = vmatpush2.msra.mxu0 0.0
        %4303 = vmatprep.subr.mxu0 0.0
        %4304 = vmatpush2.msra.mxu0 0.0
        %4305 = vmatprep.subr.mxu0 0.0
        %4306 = vmatpush2.msra.mxu0 0.0
        %4307 = vmatprep.subr.mxu0 0.0
        %4308 = vmatpush2.msra.mxu0 0.0
        %4309 = vmatprep.subr.mxu0 0.0
        %4310 = vmatpush2.msra.mxu0 0.0
        %4311 = vmatprep.subr.mxu0 0.0
        %4312 = vmatpush2.msra.mxu0 0.0
        %4313 = vmatprep.subr.mxu0 0.0
        %4314 = vmatpush2.msra.mxu0 0.0
        %4315 = vmatprep.subr.mxu0 0.0
        %4316 = vmatpush2.msra.mxu0 0.0
        %4317 = vmatprep.mubr.f32.mxu0 0.0
        %4318 = vmatmul.mubr.f32.gmra.mxu0 %v4043
        %v4319 = vpop.f32.mrf.mxu0
        %v4320 = vadd.f32 %v4175, %v4319
        %v4321 = vpop.f32.mrf.mxu0
        %4322 = vmatprep.mubr.f32.mxu0 0.0
        %4323 = vmatmul.mubr.f32.gmra.mxu0 %v4044
        %v4324 = vpop.f32.mrf.mxu0
        %v4325 = vadd.f32 %v4180, %v4324
        %v4326 = vpop.f32.mrf.mxu0
        %4327 = vmatprep.mubr.f32.mxu0 0.0
        %4328 = vmatmul.mubr.f32.gmra.mxu0 %v4045
        %v4329 = vpop.f32.mrf.mxu0
        %v4330 = vadd.f32 %v4185, %v4329
        %v4331 = vpop.f32.mrf.mxu0
        %4332 = vmatprep.mubr.f32.mxu0 0.0
        %4333 = vmatmul.mubr.f32.gmra.mxu0 %v4046
        %v4334 = vpop.f32.mrf.mxu0
        %v4335 = vadd.f32 %v4190, %v4334
        %v4336 = vpop.f32.mrf.mxu0
        %4337 = vmatprep.mubr.f32.mxu0 0.0
        %4338 = vmatmul.mubr.f32.gmra.mxu0 %v4047
        %v4339 = vpop.f32.mrf.mxu0
        %v4340 = vadd.f32 %v4195, %v4339
        %v4341 = vpop.f32.mrf.mxu0
        %4342 = vmatprep.mubr.f32.mxu0 0.0
        %4343 = vmatmul.mubr.f32.gmra.mxu0 %v4048
        %v4344 = vpop.f32.mrf.mxu0
        %v4345 = vadd.f32 %v4200, %v4344
        %v4346 = vpop.f32.mrf.mxu0
        %4347 = vmatprep.mubr.f32.mxu0 0.0
        %4348 = vmatmul.mubr.f32.gmra.mxu0 %v4049
        %v4349 = vpop.f32.mrf.mxu0
        %v4350 = vadd.f32 %v4205, %v4349
        %v4351 = vpop.f32.mrf.mxu0
        %4352 = vmatprep.mubr.f32.mxu0 0.0
        %4353 = vmatmul.mubr.f32.gmra.mxu0 %v4050
        %v4354 = vpop.f32.mrf.mxu0
        %v4355 = vadd.f32 %v4210, %v4354
        %v4356 = vpop.f32.mrf.mxu0
        %4357 = vmatprep.mubr.f32.mxu0 0.0
        %4358 = vmatmul.mubr.f32.gmra.mxu0 %v4051
        %v4359 = vpop.f32.mrf.mxu0
        %v4360 = vadd.f32 %v4215, %v4359
        %v4361 = vpop.f32.mrf.mxu0
        %4362 = vmatprep.mubr.f32.mxu0 0.0
        %4363 = vmatmul.mubr.f32.gmra.mxu0 %v4052
        %v4364 = vpop.f32.mrf.mxu0
        %v4365 = vadd.f32 %v4220, %v4364
        %v4366 = vpop.f32.mrf.mxu0
        %4367 = vmatprep.mubr.f32.mxu0 0.0
        %4368 = vmatmul.mubr.f32.gmra.mxu0 %v4053
        %v4369 = vpop.f32.mrf.mxu0
        %v4370 = vadd.f32 %v4225, %v4369
        %v4371 = vpop.f32.mrf.mxu0
        %4372 = vmatprep.mubr.f32.mxu0 0.0
        %4373 = vmatmul.mubr.f32.gmra.mxu0 %v4054
        %v4374 = vpop.f32.mrf.mxu0
        %v4375 = vadd.f32 %v4230, %v4374
        %v4376 = vpop.f32.mrf.mxu0
        %4377 = vmatprep.mubr.f32.mxu0 0.0
        %4378 = vmatmul.mubr.f32.gmra.mxu0 %v4055
        %v4379 = vpop.f32.mrf.mxu0
        %v4380 = vadd.f32 %v4235, %v4379
        %v4381 = vpop.f32.mrf.mxu0
        %4382 = vmatprep.mubr.f32.mxu0 0.0
        %4383 = vmatmul.mubr.f32.gmra.mxu0 %v4056
        %v4384 = vpop.f32.mrf.mxu0
        %v4385 = vadd.f32 %v4240, %v4384
        %v4386 = vpop.f32.mrf.mxu0
        %4387 = vmatprep.mubr.f32.mxu0 0.0
        %4388 = vmatmul.mubr.f32.gmra.mxu0 %v4057
        %v4389 = vpop.f32.mrf.mxu0
        %v4390 = vadd.f32 %v4245, %v4389
        %v4391 = vpop.f32.mrf.mxu0
        %4392 = vmatprep.mubr.f32.mxu0 0.0
        %4393 = vmatmul.mubr.f32.gmra.mxu0 %v4058
        %v4394 = vpop.f32.mrf.mxu0
        %v4395 = vadd.f32 %v4250, %v4394
        %v4396 = vpop.f32.mrf.mxu0
        %4397 = vdwg.mxu0
        %v4398 = vld [vmem:[#allocation3 + $0x2] sm:$0xff]
        %v4399 = vld [vmem:[#allocation3 + $0xa] sm:$0xff]
        %v4400 = vld [vmem:[#allocation3 + $0x1a] sm:$0xff]
        %v4401 = vld [vmem:[#allocation3 + $0x22] sm:$0xff]
        %v4402 = vld [vmem:[#allocation3 + $0x32] sm:$0xff]
        %v4403 = vld [vmem:[#allocation3 + $0x3a] sm:$0xff]
        %v4404 = vld [vmem:[#allocation3 + $0x4a] sm:$0xff]
        %v4405 = vld [vmem:[#allocation3 + $0x52] sm:$0xff]
        %v4406 = vld [vmem:[#allocation3 + $0x62] sm:$0xff]
        %v4407 = vld [vmem:[#allocation3 + $0x6a] sm:$0xff]
        %v4408 = vld [vmem:[#allocation3 + $0x7a] sm:$0xff]
        %v4409 = vld [vmem:[#allocation3 + $0x82] sm:$0xff]
        %v4410 = vld [vmem:[#allocation3 + $0x92] sm:$0xff]
        %v4411 = vld [vmem:[#allocation3 + $0x9a] sm:$0xff]
        %v4412 = vld [vmem:[#allocation3 + $0xaa] sm:$0xff]
        %v4413 = vld [vmem:[#allocation3 + $0xb2] sm:$0xff]
        %s4414 = scalar_lea.vmem [#allocation9], 256
        %v4415 = vld [vmem:[%s4414] sm:$0xff]
        %v4416 = vld [vmem:[%s4414 + $0x8] sm:$0xff]
        %v4417 = vld [vmem:[%s4414 + $0x10] sm:$0xff]
        %v4418 = vld [vmem:[%s4414 + $0x18] sm:$0xff]
        %v4419 = vld [vmem:[%s4414 + $0x20] sm:$0xff]
        %v4420 = vld [vmem:[%s4414 + $0x28] sm:$0xff]
        %v4421 = vld [vmem:[%s4414 + $0x30] sm:$0xff]
        %v4422 = vld [vmem:[%s4414 + $0x38] sm:$0xff]
        %v4423 = vld [vmem:[%s4414 + $0x40] sm:$0xff]
        %v4424 = vld [vmem:[%s4414 + $0x48] sm:$0xff]
        %v4425 = vld [vmem:[%s4414 + $0x50] sm:$0xff]
        %v4426 = vld [vmem:[%s4414 + $0x58] sm:$0xff]
        %v4427 = vld [vmem:[%s4414 + $0x60] sm:$0xff]
        %v4428 = vld [vmem:[%s4414 + $0x68] sm:$0xff]
        %v4429 = vld [vmem:[%s4414 + $0x70] sm:$0xff]
        %v4430 = vld [vmem:[%s4414 + $0x78] sm:$0xff]
        %4431 = vmatprep.subr.mxu0 0.0
        %4432 = vmatpush1.msra.mxu0 %v4430
        %4433 = vmatprep.subr.mxu0 0.0
        %4434 = vmatpush1.msra.mxu0 %v4429
        %4435 = vmatprep.subr.mxu0 0.0
        %4436 = vmatpush1.msra.mxu0 %v4428
        %4437 = vmatprep.subr.mxu0 0.0
        %4438 = vmatpush1.msra.mxu0 %v4427
        %4439 = vmatprep.subr.mxu0 0.0
        %4440 = vmatpush1.msra.mxu0 %v4426
        %4441 = vmatprep.subr.mxu0 0.0
        %4442 = vmatpush1.msra.mxu0 %v4425
        %4443 = vmatprep.subr.mxu0 0.0
        %4444 = vmatpush1.msra.mxu0 %v4424
        %4445 = vmatprep.subr.mxu0 0.0
        %4446 = vmatpush1.msra.mxu0 %v4423
        %4447 = vmatprep.subr.mxu0 0.0
        %4448 = vmatpush1.msra.mxu0 %v4422
        %4449 = vmatprep.subr.mxu0 0.0
        %4450 = vmatpush1.msra.mxu0 %v4421
        %4451 = vmatprep.subr.mxu0 0.0
        %4452 = vmatpush1.msra.mxu0 %v4420
        %4453 = vmatprep.subr.mxu0 0.0
        %4454 = vmatpush1.msra.mxu0 %v4419
        %4455 = vmatprep.subr.mxu0 0.0
        %4456 = vmatpush1.msra.mxu0 %v4418
        %4457 = vmatprep.subr.mxu0 0.0
        %4458 = vmatpush1.msra.mxu0 %v4417
        %4459 = vmatprep.subr.mxu0 0.0
        %4460 = vmatpush1.msra.mxu0 %v4416
        %4461 = vmatprep.subr.mxu0 0.0
        %4462 = vmatpush1.msra.mxu0 %v4415
        %4463 = vmatprep.subr.mxu0 0.0
        %4464 = vmatpush2.msra.mxu0 0.0
        %4465 = vmatprep.subr.mxu0 0.0
        %4466 = vmatpush2.msra.mxu0 0.0
        %4467 = vmatprep.subr.mxu0 0.0
        %4468 = vmatpush2.msra.mxu0 0.0
        %4469 = vmatprep.subr.mxu0 0.0
        %4470 = vmatpush2.msra.mxu0 0.0
        %4471 = vmatprep.subr.mxu0 0.0
        %4472 = vmatpush2.msra.mxu0 0.0
        %4473 = vmatprep.subr.mxu0 0.0
        %4474 = vmatpush2.msra.mxu0 0.0
        %4475 = vmatprep.subr.mxu0 0.0
        %4476 = vmatpush2.msra.mxu0 0.0
        %4477 = vmatprep.subr.mxu0 0.0
        %4478 = vmatpush2.msra.mxu0 0.0
        %4479 = vmatprep.subr.mxu0 0.0
        %4480 = vmatpush2.msra.mxu0 0.0
        %4481 = vmatprep.subr.mxu0 0.0
        %4482 = vmatpush2.msra.mxu0 0.0
        %4483 = vmatprep.subr.mxu0 0.0
        %4484 = vmatpush2.msra.mxu0 0.0
        %4485 = vmatprep.subr.mxu0 0.0
        %4486 = vmatpush2.msra.mxu0 0.0
        %4487 = vmatprep.subr.mxu0 0.0
        %4488 = vmatpush2.msra.mxu0 0.0
        %4489 = vmatprep.subr.mxu0 0.0
        %4490 = vmatpush2.msra.mxu0 0.0
        %4491 = vmatprep.subr.mxu0 0.0
        %4492 = vmatpush2.msra.mxu0 0.0
        %4493 = vmatprep.subr.mxu0 0.0
        %4494 = vmatpush2.msra.mxu0 0.0
        %4495 = vmatprep.mubr.f32.mxu0 0.0
        %4496 = vmatmul.mubr.f32.gmra.mxu0 %v4398
        %v4497 = vpop.f32.mrf.mxu0
        %v4498 = vadd.f32 0.0, %v4497
        %v4499 = vpop.f32.mrf.mxu0
        %4500 = vmatprep.mubr.f32.mxu0 0.0
        %4501 = vmatmul.mubr.f32.gmra.mxu0 %v4399
        %v4502 = vpop.f32.mrf.mxu0
        %v4503 = vadd.f32 0.0, %v4502
        %v4504 = vpop.f32.mrf.mxu0
        %4505 = vmatprep.mubr.f32.mxu0 0.0
        %4506 = vmatmul.mubr.f32.gmra.mxu0 %v4400
        %v4507 = vpop.f32.mrf.mxu0
        %v4508 = vadd.f32 0.0, %v4507
        %v4509 = vpop.f32.mrf.mxu0
        %4510 = vmatprep.mubr.f32.mxu0 0.0
        %4511 = vmatmul.mubr.f32.gmra.mxu0 %v4401
        %v4512 = vpop.f32.mrf.mxu0
        %v4513 = vadd.f32 0.0, %v4512
        %v4514 = vpop.f32.mrf.mxu0
        %4515 = vmatprep.mubr.f32.mxu0 0.0
        %4516 = vmatmul.mubr.f32.gmra.mxu0 %v4402
        %v4517 = vpop.f32.mrf.mxu0
        %v4518 = vadd.f32 0.0, %v4517
        %v4519 = vpop.f32.mrf.mxu0
        %4520 = vmatprep.mubr.f32.mxu0 0.0
        %4521 = vmatmul.mubr.f32.gmra.mxu0 %v4403
        %v4522 = vpop.f32.mrf.mxu0
        %v4523 = vadd.f32 0.0, %v4522
        %v4524 = vpop.f32.mrf.mxu0
        %4525 = vmatprep.mubr.f32.mxu0 0.0
        %4526 = vmatmul.mubr.f32.gmra.mxu0 %v4404
        %v4527 = vpop.f32.mrf.mxu0
        %v4528 = vadd.f32 0.0, %v4527
        %v4529 = vpop.f32.mrf.mxu0
        %4530 = vmatprep.mubr.f32.mxu0 0.0
        %4531 = vmatmul.mubr.f32.gmra.mxu0 %v4405
        %v4532 = vpop.f32.mrf.mxu0
        %v4533 = vadd.f32 0.0, %v4532
        %v4534 = vpop.f32.mrf.mxu0
        %4535 = vmatprep.mubr.f32.mxu0 0.0
        %4536 = vmatmul.mubr.f32.gmra.mxu0 %v4406
        %v4537 = vpop.f32.mrf.mxu0
        %v4538 = vadd.f32 0.0, %v4537
        %v4539 = vpop.f32.mrf.mxu0
        %4540 = vmatprep.mubr.f32.mxu0 0.0
        %4541 = vmatmul.mubr.f32.gmra.mxu0 %v4407
        %v4542 = vpop.f32.mrf.mxu0
        %v4543 = vadd.f32 0.0, %v4542
        %v4544 = vpop.f32.mrf.mxu0
        %4545 = vmatprep.mubr.f32.mxu0 0.0
        %4546 = vmatmul.mubr.f32.gmra.mxu0 %v4408
        %v4547 = vpop.f32.mrf.mxu0
        %v4548 = vadd.f32 0.0, %v4547
        %v4549 = vpop.f32.mrf.mxu0
        %4550 = vmatprep.mubr.f32.mxu0 0.0
        %4551 = vmatmul.mubr.f32.gmra.mxu0 %v4409
        %v4552 = vpop.f32.mrf.mxu0
        %v4553 = vadd.f32 0.0, %v4552
        %v4554 = vpop.f32.mrf.mxu0
        %4555 = vmatprep.mubr.f32.mxu0 0.0
        %4556 = vmatmul.mubr.f32.gmra.mxu0 %v4410
        %v4557 = vpop.f32.mrf.mxu0
        %v4558 = vadd.f32 0.0, %v4557
        %v4559 = vpop.f32.mrf.mxu0
        %4560 = vmatprep.mubr.f32.mxu0 0.0
        %4561 = vmatmul.mubr.f32.gmra.mxu0 %v4411
        %v4562 = vpop.f32.mrf.mxu0
        %v4563 = vadd.f32 0.0, %v4562
        %v4564 = vpop.f32.mrf.mxu0
        %4565 = vmatprep.mubr.f32.mxu0 0.0
        %4566 = vmatmul.mubr.f32.gmra.mxu0 %v4412
        %v4567 = vpop.f32.mrf.mxu0
        %v4568 = vadd.f32 0.0, %v4567
        %v4569 = vpop.f32.mrf.mxu0
        %4570 = vmatprep.mubr.f32.mxu0 0.0
        %4571 = vmatmul.mubr.f32.gmra.mxu0 %v4413
        %v4572 = vpop.f32.mrf.mxu0
        %v4573 = vadd.f32 0.0, %v4572
        %v4574 = vpop.f32.mrf.mxu0
        %4575 = vdwg.mxu0
        %v4576 = vadd.f32 %v4320, %v4498
        %v4577 = vadd.f32 %v4325, %v4503
        %v4578 = vadd.f32 %v4330, %v4508
        %v4579 = vadd.f32 %v4335, %v4513
        %v4580 = vadd.f32 %v4340, %v4518
        %v4581 = vadd.f32 %v4345, %v4523
        %v4582 = vadd.f32 %v4350, %v4528
        %v4583 = vadd.f32 %v4355, %v4533
        %v4584 = vadd.f32 %v4360, %v4538
        %v4585 = vadd.f32 %v4365, %v4543
        %v4586 = vadd.f32 %v4370, %v4548
        %v4587 = vadd.f32 %v4375, %v4553
        %v4588 = vadd.f32 %v4380, %v4558
        %v4589 = vadd.f32 %v4385, %v4563
        %v4590 = vadd.f32 %v4390, %v4568
        %v4591 = vadd.f32 %v4395, %v4573
        %v4592 = vld [vmem:[%s2269] sm:$0xff]
        %v4593 = vld [vmem:[%s2269 + $0x8] sm:$0xff]
        %v4594 = vld [vmem:[%s2269 + $0x18] sm:$0xff]
        %v4595 = vld [vmem:[%s2269 + $0x20] sm:$0xff]
        %v4596 = vld [vmem:[%s2269 + $0x30] sm:$0xff]
        %v4597 = vld [vmem:[%s2269 + $0x38] sm:$0xff]
        %v4598 = vld [vmem:[%s2269 + $0x48] sm:$0xff]
        %v4599 = vld [vmem:[%s2269 + $0x50] sm:$0xff]
        %v4600 = vld [vmem:[%s2269 + $0x60] sm:$0xff]
        %v4601 = vld [vmem:[%s2269 + $0x68] sm:$0xff]
        %v4602 = vld [vmem:[%s2269 + $0x78] sm:$0xff]
        %v4603 = vld [vmem:[%s2269 + $0x80] sm:$0xff]
        %v4604 = vld [vmem:[%s2269 + $0x90] sm:$0xff]
        %v4605 = vld [vmem:[%s2269 + $0x98] sm:$0xff]
        %v4606 = vld [vmem:[%s2269 + $0xa8] sm:$0xff]
        %v4607 = vld [vmem:[%s2269 + $0xb0] sm:$0xff]
        %s4608 = scalar_lea.vmem [#allocation9], 384
        %v4609 = vld [vmem:[%s4608] sm:$0xff]
        %v4610 = vld [vmem:[%s4608 + $0x8] sm:$0xff]
        %v4611 = vld [vmem:[%s4608 + $0x10] sm:$0xff]
        %v4612 = vld [vmem:[%s4608 + $0x18] sm:$0xff]
        %v4613 = vld [vmem:[%s4608 + $0x20] sm:$0xff]
        %v4614 = vld [vmem:[%s4608 + $0x28] sm:$0xff]
        %v4615 = vld [vmem:[%s4608 + $0x30] sm:$0xff]
        %v4616 = vld [vmem:[%s4608 + $0x38] sm:$0xff]
        %v4617 = vld [vmem:[%s4608 + $0x40] sm:$0xff]
        %v4618 = vld [vmem:[%s4608 + $0x48] sm:$0xff]
        %v4619 = vld [vmem:[%s4608 + $0x50] sm:$0xff]
        %v4620 = vld [vmem:[%s4608 + $0x58] sm:$0xff]
        %v4621 = vld [vmem:[%s4608 + $0x60] sm:$0xff]
        %v4622 = vld [vmem:[%s4608 + $0x68] sm:$0xff]
        %v4623 = vld [vmem:[%s4608 + $0x70] sm:$0xff]
        %v4624 = vld [vmem:[%s4608 + $0x78] sm:$0xff]
        %4625 = vmatprep.subr.mxu0 0.0
        %4626 = vmatpush1.msra.mxu0 %v4624
        %4627 = vmatprep.subr.mxu0 0.0
        %4628 = vmatpush1.msra.mxu0 %v4623
        %4629 = vmatprep.subr.mxu0 0.0
        %4630 = vmatpush1.msra.mxu0 %v4622
        %4631 = vmatprep.subr.mxu0 0.0
        %4632 = vmatpush1.msra.mxu0 %v4621
        %4633 = vmatprep.subr.mxu0 0.0
        %4634 = vmatpush1.msra.mxu0 %v4620
        %4635 = vmatprep.subr.mxu0 0.0
        %4636 = vmatpush1.msra.mxu0 %v4619
        %4637 = vmatprep.subr.mxu0 0.0
        %4638 = vmatpush1.msra.mxu0 %v4618
        %4639 = vmatprep.subr.mxu0 0.0
        %4640 = vmatpush1.msra.mxu0 %v4617
        %4641 = vmatprep.subr.mxu0 0.0
        %4642 = vmatpush1.msra.mxu0 %v4616
        %4643 = vmatprep.subr.mxu0 0.0
        %4644 = vmatpush1.msra.mxu0 %v4615
        %4645 = vmatprep.subr.mxu0 0.0
        %4646 = vmatpush1.msra.mxu0 %v4614
        %4647 = vmatprep.subr.mxu0 0.0
        %4648 = vmatpush1.msra.mxu0 %v4613
        %4649 = vmatprep.subr.mxu0 0.0
        %4650 = vmatpush1.msra.mxu0 %v4612
        %4651 = vmatprep.subr.mxu0 0.0
        %4652 = vmatpush1.msra.mxu0 %v4611
        %4653 = vmatprep.subr.mxu0 0.0
        %4654 = vmatpush1.msra.mxu0 %v4610
        %4655 = vmatprep.subr.mxu0 0.0
        %4656 = vmatpush1.msra.mxu0 %v4609
        %4657 = vmatprep.subr.mxu0 0.0
        %4658 = vmatpush2.msra.mxu0 0.0
        %4659 = vmatprep.subr.mxu0 0.0
        %4660 = vmatpush2.msra.mxu0 0.0
        %4661 = vmatprep.subr.mxu0 0.0
        %4662 = vmatpush2.msra.mxu0 0.0
        %4663 = vmatprep.subr.mxu0 0.0
        %4664 = vmatpush2.msra.mxu0 0.0
        %4665 = vmatprep.subr.mxu0 0.0
        %4666 = vmatpush2.msra.mxu0 0.0
        %4667 = vmatprep.subr.mxu0 0.0
        %4668 = vmatpush2.msra.mxu0 0.0
        %4669 = vmatprep.subr.mxu0 0.0
        %4670 = vmatpush2.msra.mxu0 0.0
        %4671 = vmatprep.subr.mxu0 0.0
        %4672 = vmatpush2.msra.mxu0 0.0
        %4673 = vmatprep.subr.mxu0 0.0
        %4674 = vmatpush2.msra.mxu0 0.0
        %4675 = vmatprep.subr.mxu0 0.0
        %4676 = vmatpush2.msra.mxu0 0.0
        %4677 = vmatprep.subr.mxu0 0.0
        %4678 = vmatpush2.msra.mxu0 0.0
        %4679 = vmatprep.subr.mxu0 0.0
        %4680 = vmatpush2.msra.mxu0 0.0
        %4681 = vmatprep.subr.mxu0 0.0
        %4682 = vmatpush2.msra.mxu0 0.0
        %4683 = vmatprep.subr.mxu0 0.0
        %4684 = vmatpush2.msra.mxu0 0.0
        %4685 = vmatprep.subr.mxu0 0.0
        %4686 = vmatpush2.msra.mxu0 0.0
        %4687 = vmatprep.subr.mxu0 0.0
        %4688 = vmatpush2.msra.mxu0 0.0
        %4689 = vmatprep.mubr.f32.mxu0 0.0
        %4690 = vmatmul.mubr.f32.gmra.mxu0 %v4592
        %v4691 = vpop.f32.mrf.mxu0
        %v4692 = vadd.f32 0.0, %v4691
        %v4693 = vpop.f32.mrf.mxu0
        %4694 = vmatprep.mubr.f32.mxu0 0.0
        %4695 = vmatmul.mubr.f32.gmra.mxu0 %v4593
        %v4696 = vpop.f32.mrf.mxu0
        %v4697 = vadd.f32 0.0, %v4696
        %v4698 = vpop.f32.mrf.mxu0
        %4699 = vmatprep.mubr.f32.mxu0 0.0
        %4700 = vmatmul.mubr.f32.gmra.mxu0 %v4594
        %v4701 = vpop.f32.mrf.mxu0
        %v4702 = vadd.f32 0.0, %v4701
        %v4703 = vpop.f32.mrf.mxu0
        %4704 = vmatprep.mubr.f32.mxu0 0.0
        %4705 = vmatmul.mubr.f32.gmra.mxu0 %v4595
        %v4706 = vpop.f32.mrf.mxu0
        %v4707 = vadd.f32 0.0, %v4706
        %v4708 = vpop.f32.mrf.mxu0
        %4709 = vmatprep.mubr.f32.mxu0 0.0
        %4710 = vmatmul.mubr.f32.gmra.mxu0 %v4596
        %v4711 = vpop.f32.mrf.mxu0
        %v4712 = vadd.f32 0.0, %v4711
        %v4713 = vpop.f32.mrf.mxu0
        %4714 = vmatprep.mubr.f32.mxu0 0.0
        %4715 = vmatmul.mubr.f32.gmra.mxu0 %v4597
        %v4716 = vpop.f32.mrf.mxu0
        %v4717 = vadd.f32 0.0, %v4716
        %v4718 = vpop.f32.mrf.mxu0
        %4719 = vmatprep.mubr.f32.mxu0 0.0
        %4720 = vmatmul.mubr.f32.gmra.mxu0 %v4598
        %v4721 = vpop.f32.mrf.mxu0
        %v4722 = vadd.f32 0.0, %v4721
        %v4723 = vpop.f32.mrf.mxu0
        %4724 = vmatprep.mubr.f32.mxu0 0.0
        %4725 = vmatmul.mubr.f32.gmra.mxu0 %v4599
        %v4726 = vpop.f32.mrf.mxu0
        %v4727 = vadd.f32 0.0, %v4726
        %v4728 = vpop.f32.mrf.mxu0
        %4729 = vmatprep.mubr.f32.mxu0 0.0
        %4730 = vmatmul.mubr.f32.gmra.mxu0 %v4600
        %v4731 = vpop.f32.mrf.mxu0
        %v4732 = vadd.f32 0.0, %v4731
        %v4733 = vpop.f32.mrf.mxu0
        %4734 = vmatprep.mubr.f32.mxu0 0.0
        %4735 = vmatmul.mubr.f32.gmra.mxu0 %v4601
        %v4736 = vpop.f32.mrf.mxu0
        %v4737 = vadd.f32 0.0, %v4736
        %v4738 = vpop.f32.mrf.mxu0
        %4739 = vmatprep.mubr.f32.mxu0 0.0
        %4740 = vmatmul.mubr.f32.gmra.mxu0 %v4602
        %v4741 = vpop.f32.mrf.mxu0
        %v4742 = vadd.f32 0.0, %v4741
        %v4743 = vpop.f32.mrf.mxu0
        %4744 = vmatprep.mubr.f32.mxu0 0.0
        %4745 = vmatmul.mubr.f32.gmra.mxu0 %v4603
        %v4746 = vpop.f32.mrf.mxu0
        %v4747 = vadd.f32 0.0, %v4746
        %v4748 = vpop.f32.mrf.mxu0
        %4749 = vmatprep.mubr.f32.mxu0 0.0
        %4750 = vmatmul.mubr.f32.gmra.mxu0 %v4604
        %v4751 = vpop.f32.mrf.mxu0
        %v4752 = vadd.f32 0.0, %v4751
        %v4753 = vpop.f32.mrf.mxu0
        %4754 = vmatprep.mubr.f32.mxu0 0.0
        %4755 = vmatmul.mubr.f32.gmra.mxu0 %v4605
        %v4756 = vpop.f32.mrf.mxu0
        %v4757 = vadd.f32 0.0, %v4756
        %v4758 = vpop.f32.mrf.mxu0
        %4759 = vmatprep.mubr.f32.mxu0 0.0
        %4760 = vmatmul.mubr.f32.gmra.mxu0 %v4606
        %v4761 = vpop.f32.mrf.mxu0
        %v4762 = vadd.f32 0.0, %v4761
        %v4763 = vpop.f32.mrf.mxu0
        %4764 = vmatprep.mubr.f32.mxu0 0.0
        %4765 = vmatmul.mubr.f32.gmra.mxu0 %v4607
        %v4766 = vpop.f32.mrf.mxu0
        %v4767 = vadd.f32 0.0, %v4766
        %v4768 = vpop.f32.mrf.mxu0
        %4769 = vdwg.mxu0
        %v4770 = vadd.f32 %v4576, %v4692
        %v4771 = vadd.f32 %v4577, %v4697
        %v4772 = vadd.f32 %v4578, %v4702
        %v4773 = vadd.f32 %v4579, %v4707
        %v4774 = vadd.f32 %v4580, %v4712
        %v4775 = vadd.f32 %v4581, %v4717
        %v4776 = vadd.f32 %v4582, %v4722
        %v4777 = vadd.f32 %v4583, %v4727
        %v4778 = vadd.f32 %v4584, %v4732
        %v4779 = vadd.f32 %v4585, %v4737
        %v4780 = vadd.f32 %v4586, %v4742
        %v4781 = vadd.f32 %v4587, %v4747
        %v4782 = vadd.f32 %v4588, %v4752
        %v4783 = vadd.f32 %v4589, %v4757
        %v4784 = vadd.f32 %v4590, %v4762
        %v4785 = vadd.f32 %v4591, %v4767
        %v4786 = vld [vmem:[%s2269 + $0x1] sm:$0xff]
        %v4787 = vld [vmem:[%s2269 + $0x9] sm:$0xff]
        %v4788 = vld [vmem:[%s2269 + $0x19] sm:$0xff]
        %v4789 = vld [vmem:[%s2269 + $0x21] sm:$0xff]
        %v4790 = vld [vmem:[%s2269 + $0x31] sm:$0xff]
        %v4791 = vld [vmem:[%s2269 + $0x39] sm:$0xff]
        %v4792 = vld [vmem:[%s2269 + $0x49] sm:$0xff]
        %v4793 = vld [vmem:[%s2269 + $0x51] sm:$0xff]
        %v4794 = vld [vmem:[%s2269 + $0x61] sm:$0xff]
        %v4795 = vld [vmem:[%s2269 + $0x69] sm:$0xff]
        %v4796 = vld [vmem:[%s2269 + $0x79] sm:$0xff]
        %v4797 = vld [vmem:[%s2269 + $0x81] sm:$0xff]
        %v4798 = vld [vmem:[%s2269 + $0x91] sm:$0xff]
        %v4799 = vld [vmem:[%s2269 + $0x99] sm:$0xff]
        %v4800 = vld [vmem:[%s2269 + $0xa9] sm:$0xff]
        %v4801 = vld [vmem:[%s2269 + $0xb1] sm:$0xff]
        %s4802 = scalar_lea.vmem [#allocation9], 512
        %v4803 = vld [vmem:[%s4802] sm:$0xff]
        %v4804 = vld [vmem:[%s4802 + $0x8] sm:$0xff]
        %v4805 = vld [vmem:[%s4802 + $0x10] sm:$0xff]
        %v4806 = vld [vmem:[%s4802 + $0x18] sm:$0xff]
        %v4807 = vld [vmem:[%s4802 + $0x20] sm:$0xff]
        %v4808 = vld [vmem:[%s4802 + $0x28] sm:$0xff]
        %v4809 = vld [vmem:[%s4802 + $0x30] sm:$0xff]
        %v4810 = vld [vmem:[%s4802 + $0x38] sm:$0xff]
        %v4811 = vld [vmem:[%s4802 + $0x40] sm:$0xff]
        %v4812 = vld [vmem:[%s4802 + $0x48] sm:$0xff]
        %v4813 = vld [vmem:[%s4802 + $0x50] sm:$0xff]
        %v4814 = vld [vmem:[%s4802 + $0x58] sm:$0xff]
        %v4815 = vld [vmem:[%s4802 + $0x60] sm:$0xff]
        %v4816 = vld [vmem:[%s4802 + $0x68] sm:$0xff]
        %v4817 = vld [vmem:[%s4802 + $0x70] sm:$0xff]
        %v4818 = vld [vmem:[%s4802 + $0x78] sm:$0xff]
        %4819 = vmatprep.subr.mxu0 0.0
        %4820 = vmatpush1.msra.mxu0 %v4818
        %4821 = vmatprep.subr.mxu0 0.0
        %4822 = vmatpush1.msra.mxu0 %v4817
        %4823 = vmatprep.subr.mxu0 0.0
        %4824 = vmatpush1.msra.mxu0 %v4816
        %4825 = vmatprep.subr.mxu0 0.0
        %4826 = vmatpush1.msra.mxu0 %v4815
        %4827 = vmatprep.subr.mxu0 0.0
        %4828 = vmatpush1.msra.mxu0 %v4814
        %4829 = vmatprep.subr.mxu0 0.0
        %4830 = vmatpush1.msra.mxu0 %v4813
        %4831 = vmatprep.subr.mxu0 0.0
        %4832 = vmatpush1.msra.mxu0 %v4812
        %4833 = vmatprep.subr.mxu0 0.0
        %4834 = vmatpush1.msra.mxu0 %v4811
        %4835 = vmatprep.subr.mxu0 0.0
        %4836 = vmatpush1.msra.mxu0 %v4810
        %4837 = vmatprep.subr.mxu0 0.0
        %4838 = vmatpush1.msra.mxu0 %v4809
        %4839 = vmatprep.subr.mxu0 0.0
        %4840 = vmatpush1.msra.mxu0 %v4808
        %4841 = vmatprep.subr.mxu0 0.0
        %4842 = vmatpush1.msra.mxu0 %v4807
        %4843 = vmatprep.subr.mxu0 0.0
        %4844 = vmatpush1.msra.mxu0 %v4806
        %4845 = vmatprep.subr.mxu0 0.0
        %4846 = vmatpush1.msra.mxu0 %v4805
        %4847 = vmatprep.subr.mxu0 0.0
        %4848 = vmatpush1.msra.mxu0 %v4804
        %4849 = vmatprep.subr.mxu0 0.0
        %4850 = vmatpush1.msra.mxu0 %v4803
        %4851 = vmatprep.subr.mxu0 0.0
        %4852 = vmatpush2.msra.mxu0 0.0
        %4853 = vmatprep.subr.mxu0 0.0
        %4854 = vmatpush2.msra.mxu0 0.0
        %4855 = vmatprep.subr.mxu0 0.0
        %4856 = vmatpush2.msra.mxu0 0.0
        %4857 = vmatprep.subr.mxu0 0.0
        %4858 = vmatpush2.msra.mxu0 0.0
        %4859 = vmatprep.subr.mxu0 0.0
        %4860 = vmatpush2.msra.mxu0 0.0
        %4861 = vmatprep.subr.mxu0 0.0
        %4862 = vmatpush2.msra.mxu0 0.0
        %4863 = vmatprep.subr.mxu0 0.0
        %4864 = vmatpush2.msra.mxu0 0.0
        %4865 = vmatprep.subr.mxu0 0.0
        %4866 = vmatpush2.msra.mxu0 0.0
        %4867 = vmatprep.subr.mxu0 0.0
        %4868 = vmatpush2.msra.mxu0 0.0
        %4869 = vmatprep.subr.mxu0 0.0
        %4870 = vmatpush2.msra.mxu0 0.0
        %4871 = vmatprep.subr.mxu0 0.0
        %4872 = vmatpush2.msra.mxu0 0.0
        %4873 = vmatprep.subr.mxu0 0.0
        %4874 = vmatpush2.msra.mxu0 0.0
        %4875 = vmatprep.subr.mxu0 0.0
        %4876 = vmatpush2.msra.mxu0 0.0
        %4877 = vmatprep.subr.mxu0 0.0
        %4878 = vmatpush2.msra.mxu0 0.0
        %4879 = vmatprep.subr.mxu0 0.0
        %4880 = vmatpush2.msra.mxu0 0.0
        %4881 = vmatprep.subr.mxu0 0.0
        %4882 = vmatpush2.msra.mxu0 0.0
        %4883 = vmatprep.mubr.f32.mxu0 0.0
        %4884 = vmatmul.mubr.f32.gmra.mxu0 %v4786
        %v4885 = vpop.f32.mrf.mxu0
        %v4886 = vadd.f32 0.0, %v4885
        %v4887 = vpop.f32.mrf.mxu0
        %4888 = vmatprep.mubr.f32.mxu0 0.0
        %4889 = vmatmul.mubr.f32.gmra.mxu0 %v4787
        %v4890 = vpop.f32.mrf.mxu0
        %v4891 = vadd.f32 0.0, %v4890
        %v4892 = vpop.f32.mrf.mxu0
        %4893 = vmatprep.mubr.f32.mxu0 0.0
        %4894 = vmatmul.mubr.f32.gmra.mxu0 %v4788
        %v4895 = vpop.f32.mrf.mxu0
        %v4896 = vadd.f32 0.0, %v4895
        %v4897 = vpop.f32.mrf.mxu0
        %4898 = vmatprep.mubr.f32.mxu0 0.0
        %4899 = vmatmul.mubr.f32.gmra.mxu0 %v4789
        %v4900 = vpop.f32.mrf.mxu0
        %v4901 = vadd.f32 0.0, %v4900
        %v4902 = vpop.f32.mrf.mxu0
        %4903 = vmatprep.mubr.f32.mxu0 0.0
        %4904 = vmatmul.mubr.f32.gmra.mxu0 %v4790
        %v4905 = vpop.f32.mrf.mxu0
        %v4906 = vadd.f32 0.0, %v4905
        %v4907 = vpop.f32.mrf.mxu0
        %4908 = vmatprep.mubr.f32.mxu0 0.0
        %4909 = vmatmul.mubr.f32.gmra.mxu0 %v4791
        %v4910 = vpop.f32.mrf.mxu0
        %v4911 = vadd.f32 0.0, %v4910
        %v4912 = vpop.f32.mrf.mxu0
        %4913 = vmatprep.mubr.f32.mxu0 0.0
        %4914 = vmatmul.mubr.f32.gmra.mxu0 %v4792
        %v4915 = vpop.f32.mrf.mxu0
        %v4916 = vadd.f32 0.0, %v4915
        %v4917 = vpop.f32.mrf.mxu0
        %4918 = vmatprep.mubr.f32.mxu0 0.0
        %4919 = vmatmul.mubr.f32.gmra.mxu0 %v4793
        %v4920 = vpop.f32.mrf.mxu0
        %v4921 = vadd.f32 0.0, %v4920
        %v4922 = vpop.f32.mrf.mxu0
        %4923 = vmatprep.mubr.f32.mxu0 0.0
        %4924 = vmatmul.mubr.f32.gmra.mxu0 %v4794
        %v4925 = vpop.f32.mrf.mxu0
        %v4926 = vadd.f32 0.0, %v4925
        %v4927 = vpop.f32.mrf.mxu0
        %4928 = vmatprep.mubr.f32.mxu0 0.0
        %4929 = vmatmul.mubr.f32.gmra.mxu0 %v4795
        %v4930 = vpop.f32.mrf.mxu0
        %v4931 = vadd.f32 0.0, %v4930
        %v4932 = vpop.f32.mrf.mxu0
        %4933 = vmatprep.mubr.f32.mxu0 0.0
        %4934 = vmatmul.mubr.f32.gmra.mxu0 %v4796
        %v4935 = vpop.f32.mrf.mxu0
        %v4936 = vadd.f32 0.0, %v4935
        %v4937 = vpop.f32.mrf.mxu0
        %4938 = vmatprep.mubr.f32.mxu0 0.0
        %4939 = vmatmul.mubr.f32.gmra.mxu0 %v4797
        %v4940 = vpop.f32.mrf.mxu0
        %v4941 = vadd.f32 0.0, %v4940
        %v4942 = vpop.f32.mrf.mxu0
        %4943 = vmatprep.mubr.f32.mxu0 0.0
        %4944 = vmatmul.mubr.f32.gmra.mxu0 %v4798
        %v4945 = vpop.f32.mrf.mxu0
        %v4946 = vadd.f32 0.0, %v4945
        %v4947 = vpop.f32.mrf.mxu0
        %4948 = vmatprep.mubr.f32.mxu0 0.0
        %4949 = vmatmul.mubr.f32.gmra.mxu0 %v4799
        %v4950 = vpop.f32.mrf.mxu0
        %v4951 = vadd.f32 0.0, %v4950
        %v4952 = vpop.f32.mrf.mxu0
        %4953 = vmatprep.mubr.f32.mxu0 0.0
        %4954 = vmatmul.mubr.f32.gmra.mxu0 %v4800
        %v4955 = vpop.f32.mrf.mxu0
        %v4956 = vadd.f32 0.0, %v4955
        %v4957 = vpop.f32.mrf.mxu0
        %4958 = vmatprep.mubr.f32.mxu0 0.0
        %4959 = vmatmul.mubr.f32.gmra.mxu0 %v4801
        %v4960 = vpop.f32.mrf.mxu0
        %v4961 = vadd.f32 0.0, %v4960
        %v4962 = vpop.f32.mrf.mxu0
        %4963 = vdwg.mxu0
        %v4964 = vadd.f32 %v4770, %v4886
        %v4965 = vadd.f32 %v4771, %v4891
        %v4966 = vadd.f32 %v4772, %v4896
        %v4967 = vadd.f32 %v4773, %v4901
        %v4968 = vadd.f32 %v4774, %v4906
        %v4969 = vadd.f32 %v4775, %v4911
        %v4970 = vadd.f32 %v4776, %v4916
        %v4971 = vadd.f32 %v4777, %v4921
        %v4972 = vadd.f32 %v4778, %v4926
        %v4973 = vadd.f32 %v4779, %v4931
        %v4974 = vadd.f32 %v4780, %v4936
        %v4975 = vadd.f32 %v4781, %v4941
        %v4976 = vadd.f32 %v4782, %v4946
        %v4977 = vadd.f32 %v4783, %v4951
        %v4978 = vadd.f32 %v4784, %v4956
        %v4979 = vadd.f32 %v4785, %v4961
        %v4980 = vld [vmem:[%s2269 + $0x2] sm:$0xff]
        %v4981 = vld [vmem:[%s2269 + $0xa] sm:$0xff]
        %v4982 = vld [vmem:[%s2269 + $0x1a] sm:$0xff]
        %v4983 = vld [vmem:[%s2269 + $0x22] sm:$0xff]
        %v4984 = vld [vmem:[%s2269 + $0x32] sm:$0xff]
        %v4985 = vld [vmem:[%s2269 + $0x3a] sm:$0xff]
        %v4986 = vld [vmem:[%s2269 + $0x4a] sm:$0xff]
        %v4987 = vld [vmem:[%s2269 + $0x52] sm:$0xff]
        %v4988 = vld [vmem:[%s2269 + $0x62] sm:$0xff]
        %v4989 = vld [vmem:[%s2269 + $0x6a] sm:$0xff]
        %v4990 = vld [vmem:[%s2269 + $0x7a] sm:$0xff]
        %v4991 = vld [vmem:[%s2269 + $0x82] sm:$0xff]
        %v4992 = vld [vmem:[%s2269 + $0x92] sm:$0xff]
        %v4993 = vld [vmem:[%s2269 + $0x9a] sm:$0xff]
        %v4994 = vld [vmem:[%s2269 + $0xaa] sm:$0xff]
        %v4995 = vld [vmem:[%s2269 + $0xb2] sm:$0xff]
        %s4996 = scalar_lea.vmem [#allocation9], 640
        %v4997 = vld [vmem:[%s4996] sm:$0xff]
        %v4998 = vld [vmem:[%s4996 + $0x8] sm:$0xff]
        %v4999 = vld [vmem:[%s4996 + $0x10] sm:$0xff]
        %v5000 = vld [vmem:[%s4996 + $0x18] sm:$0xff]
        %v5001 = vld [vmem:[%s4996 + $0x20] sm:$0xff]
        %v5002 = vld [vmem:[%s4996 + $0x28] sm:$0xff]
        %v5003 = vld [vmem:[%s4996 + $0x30] sm:$0xff]
        %v5004 = vld [vmem:[%s4996 + $0x38] sm:$0xff]
        %v5005 = vld [vmem:[%s4996 + $0x40] sm:$0xff]
        %v5006 = vld [vmem:[%s4996 + $0x48] sm:$0xff]
        %v5007 = vld [vmem:[%s4996 + $0x50] sm:$0xff]
        %v5008 = vld [vmem:[%s4996 + $0x58] sm:$0xff]
        %v5009 = vld [vmem:[%s4996 + $0x60] sm:$0xff]
        %v5010 = vld [vmem:[%s4996 + $0x68] sm:$0xff]
        %v5011 = vld [vmem:[%s4996 + $0x70] sm:$0xff]
        %v5012 = vld [vmem:[%s4996 + $0x78] sm:$0xff]
        %5013 = vmatprep.subr.mxu0 0.0
        %5014 = vmatpush1.msra.mxu0 %v5012
        %5015 = vmatprep.subr.mxu0 0.0
        %5016 = vmatpush1.msra.mxu0 %v5011
        %5017 = vmatprep.subr.mxu0 0.0
        %5018 = vmatpush1.msra.mxu0 %v5010
        %5019 = vmatprep.subr.mxu0 0.0
        %5020 = vmatpush1.msra.mxu0 %v5009
        %5021 = vmatprep.subr.mxu0 0.0
        %5022 = vmatpush1.msra.mxu0 %v5008
        %5023 = vmatprep.subr.mxu0 0.0
        %5024 = vmatpush1.msra.mxu0 %v5007
        %5025 = vmatprep.subr.mxu0 0.0
        %5026 = vmatpush1.msra.mxu0 %v5006
        %5027 = vmatprep.subr.mxu0 0.0
        %5028 = vmatpush1.msra.mxu0 %v5005
        %5029 = vmatprep.subr.mxu0 0.0
        %5030 = vmatpush1.msra.mxu0 %v5004
        %5031 = vmatprep.subr.mxu0 0.0
        %5032 = vmatpush1.msra.mxu0 %v5003
        %5033 = vmatprep.subr.mxu0 0.0
        %5034 = vmatpush1.msra.mxu0 %v5002
        %5035 = vmatprep.subr.mxu0 0.0
        %5036 = vmatpush1.msra.mxu0 %v5001
        %5037 = vmatprep.subr.mxu0 0.0
        %5038 = vmatpush1.msra.mxu0 %v5000
        %5039 = vmatprep.subr.mxu0 0.0
        %5040 = vmatpush1.msra.mxu0 %v4999
        %5041 = vmatprep.subr.mxu0 0.0
        %5042 = vmatpush1.msra.mxu0 %v4998
        %5043 = vmatprep.subr.mxu0 0.0
        %5044 = vmatpush1.msra.mxu0 %v4997
        %5045 = vmatprep.subr.mxu0 0.0
        %5046 = vmatpush2.msra.mxu0 0.0
        %5047 = vmatprep.subr.mxu0 0.0
        %5048 = vmatpush2.msra.mxu0 0.0
        %5049 = vmatprep.subr.mxu0 0.0
        %5050 = vmatpush2.msra.mxu0 0.0
        %5051 = vmatprep.subr.mxu0 0.0
        %5052 = vmatpush2.msra.mxu0 0.0
        %5053 = vmatprep.subr.mxu0 0.0
        %5054 = vmatpush2.msra.mxu0 0.0
        %5055 = vmatprep.subr.mxu0 0.0
        %5056 = vmatpush2.msra.mxu0 0.0
        %5057 = vmatprep.subr.mxu0 0.0
        %5058 = vmatpush2.msra.mxu0 0.0
        %5059 = vmatprep.subr.mxu0 0.0
        %5060 = vmatpush2.msra.mxu0 0.0
        %5061 = vmatprep.subr.mxu0 0.0
        %5062 = vmatpush2.msra.mxu0 0.0
        %5063 = vmatprep.subr.mxu0 0.0
        %5064 = vmatpush2.msra.mxu0 0.0
        %5065 = vmatprep.subr.mxu0 0.0
        %5066 = vmatpush2.msra.mxu0 0.0
        %5067 = vmatprep.subr.mxu0 0.0
        %5068 = vmatpush2.msra.mxu0 0.0
        %5069 = vmatprep.subr.mxu0 0.0
        %5070 = vmatpush2.msra.mxu0 0.0
        %5071 = vmatprep.subr.mxu0 0.0
        %5072 = vmatpush2.msra.mxu0 0.0
        %5073 = vmatprep.subr.mxu0 0.0
        %5074 = vmatpush2.msra.mxu0 0.0
        %5075 = vmatprep.subr.mxu0 0.0
        %5076 = vmatpush2.msra.mxu0 0.0
        %5077 = vmatprep.mubr.f32.mxu0 0.0
        %5078 = vmatmul.mubr.f32.gmra.mxu0 %v4980
        %v5079 = vpop.f32.mrf.mxu0
        %v5080 = vadd.f32 0.0, %v5079
        %v5081 = vpop.f32.mrf.mxu0
        %5082 = vmatprep.mubr.f32.mxu0 0.0
        %5083 = vmatmul.mubr.f32.gmra.mxu0 %v4981
        %v5084 = vpop.f32.mrf.mxu0
        %v5085 = vadd.f32 0.0, %v5084
        %v5086 = vpop.f32.mrf.mxu0
        %5087 = vmatprep.mubr.f32.mxu0 0.0
        %5088 = vmatmul.mubr.f32.gmra.mxu0 %v4982
        %v5089 = vpop.f32.mrf.mxu0
        %v5090 = vadd.f32 0.0, %v5089
        %v5091 = vpop.f32.mrf.mxu0
        %5092 = vmatprep.mubr.f32.mxu0 0.0
        %5093 = vmatmul.mubr.f32.gmra.mxu0 %v4983
        %v5094 = vpop.f32.mrf.mxu0
        %v5095 = vadd.f32 0.0, %v5094
        %v5096 = vpop.f32.mrf.mxu0
        %5097 = vmatprep.mubr.f32.mxu0 0.0
        %5098 = vmatmul.mubr.f32.gmra.mxu0 %v4984
        %v5099 = vpop.f32.mrf.mxu0
        %v5100 = vadd.f32 0.0, %v5099
        %v5101 = vpop.f32.mrf.mxu0
        %5102 = vmatprep.mubr.f32.mxu0 0.0
        %5103 = vmatmul.mubr.f32.gmra.mxu0 %v4985
        %v5104 = vpop.f32.mrf.mxu0
        %v5105 = vadd.f32 0.0, %v5104
        %v5106 = vpop.f32.mrf.mxu0
        %5107 = vmatprep.mubr.f32.mxu0 0.0
        %5108 = vmatmul.mubr.f32.gmra.mxu0 %v4986
        %v5109 = vpop.f32.mrf.mxu0
        %v5110 = vadd.f32 0.0, %v5109
        %v5111 = vpop.f32.mrf.mxu0
        %5112 = vmatprep.mubr.f32.mxu0 0.0
        %5113 = vmatmul.mubr.f32.gmra.mxu0 %v4987
        %v5114 = vpop.f32.mrf.mxu0
        %v5115 = vadd.f32 0.0, %v5114
        %v5116 = vpop.f32.mrf.mxu0
        %5117 = vmatprep.mubr.f32.mxu0 0.0
        %5118 = vmatmul.mubr.f32.gmra.mxu0 %v4988
        %v5119 = vpop.f32.mrf.mxu0
        %v5120 = vadd.f32 0.0, %v5119
        %v5121 = vpop.f32.mrf.mxu0
        %5122 = vmatprep.mubr.f32.mxu0 0.0
        %5123 = vmatmul.mubr.f32.gmra.mxu0 %v4989
        %v5124 = vpop.f32.mrf.mxu0
        %v5125 = vadd.f32 0.0, %v5124
        %v5126 = vpop.f32.mrf.mxu0
        %5127 = vmatprep.mubr.f32.mxu0 0.0
        %5128 = vmatmul.mubr.f32.gmra.mxu0 %v4990
        %v5129 = vpop.f32.mrf.mxu0
        %v5130 = vadd.f32 0.0, %v5129
        %v5131 = vpop.f32.mrf.mxu0
        %5132 = vmatprep.mubr.f32.mxu0 0.0
        %5133 = vmatmul.mubr.f32.gmra.mxu0 %v4991
        %v5134 = vpop.f32.mrf.mxu0
        %v5135 = vadd.f32 0.0, %v5134
        %v5136 = vpop.f32.mrf.mxu0
        %5137 = vmatprep.mubr.f32.mxu0 0.0
        %5138 = vmatmul.mubr.f32.gmra.mxu0 %v4992
        %v5139 = vpop.f32.mrf.mxu0
        %v5140 = vadd.f32 0.0, %v5139
        %v5141 = vpop.f32.mrf.mxu0
        %5142 = vmatprep.mubr.f32.mxu0 0.0
        %5143 = vmatmul.mubr.f32.gmra.mxu0 %v4993
        %v5144 = vpop.f32.mrf.mxu0
        %v5145 = vadd.f32 0.0, %v5144
        %v5146 = vpop.f32.mrf.mxu0
        %5147 = vmatprep.mubr.f32.mxu0 0.0
        %5148 = vmatmul.mubr.f32.gmra.mxu0 %v4994
        %v5149 = vpop.f32.mrf.mxu0
        %v5150 = vadd.f32 0.0, %v5149
        %v5151 = vpop.f32.mrf.mxu0
        %5152 = vmatprep.mubr.f32.mxu0 0.0
        %5153 = vmatmul.mubr.f32.gmra.mxu0 %v4995
        %v5154 = vpop.f32.mrf.mxu0
        %v5155 = vadd.f32 0.0, %v5154
        %v5156 = vpop.f32.mrf.mxu0
        %5157 = vdwg.mxu0
        %v5158 = vadd.f32 %v4964, %v5080
        %v5159 = vadd.f32 %v4965, %v5085
        %v5160 = vadd.f32 %v4966, %v5090
        %v5161 = vadd.f32 %v4967, %v5095
        %v5162 = vadd.f32 %v4968, %v5100
        %v5163 = vadd.f32 %v4969, %v5105
        %v5164 = vadd.f32 %v4970, %v5110
        %v5165 = vadd.f32 %v4971, %v5115
        %v5166 = vadd.f32 %v4972, %v5120
        %v5167 = vadd.f32 %v4973, %v5125
        %v5168 = vadd.f32 %v4974, %v5130
        %v5169 = vadd.f32 %v4975, %v5135
        %v5170 = vadd.f32 %v4976, %v5140
        %v5171 = vadd.f32 %v4977, %v5145
        %v5172 = vadd.f32 %v4978, %v5150
        %v5173 = vadd.f32 %v4979, %v5155
        %s5174 = scalar_lea.vmem [#allocation3], 48
        %v5175 = vld [vmem:[%s5174] sm:$0xff]
        %v5176 = vld [vmem:[%s5174 + $0x8] sm:$0xff]
        %v5177 = vld [vmem:[%s5174 + $0x18] sm:$0xff]
        %v5178 = vld [vmem:[%s5174 + $0x20] sm:$0xff]
        %v5179 = vld [vmem:[%s5174 + $0x30] sm:$0xff]
        %v5180 = vld [vmem:[%s5174 + $0x38] sm:$0xff]
        %v5181 = vld [vmem:[%s5174 + $0x48] sm:$0xff]
        %v5182 = vld [vmem:[%s5174 + $0x50] sm:$0xff]
        %v5183 = vld [vmem:[%s5174 + $0x60] sm:$0xff]
        %v5184 = vld [vmem:[%s5174 + $0x68] sm:$0xff]
        %v5185 = vld [vmem:[%s5174 + $0x78] sm:$0xff]
        %v5186 = vld [vmem:[%s5174 + $0x80] sm:$0xff]
        %v5187 = vld [vmem:[%s5174 + $0x90] sm:$0xff]
        %v5188 = vld [vmem:[%s5174 + $0x98] sm:$0xff]
        %v5189 = vld [vmem:[%s5174 + $0xa8] sm:$0xff]
        %v5190 = vld [vmem:[%s5174 + $0xb0] sm:$0xff]
        %s5191 = scalar_lea.vmem [#allocation9], 768
        %v5192 = vld [vmem:[%s5191] sm:$0xff]
        %v5193 = vld [vmem:[%s5191 + $0x8] sm:$0xff]
        %v5194 = vld [vmem:[%s5191 + $0x10] sm:$0xff]
        %v5195 = vld [vmem:[%s5191 + $0x18] sm:$0xff]
        %v5196 = vld [vmem:[%s5191 + $0x20] sm:$0xff]
        %v5197 = vld [vmem:[%s5191 + $0x28] sm:$0xff]
        %v5198 = vld [vmem:[%s5191 + $0x30] sm:$0xff]
        %v5199 = vld [vmem:[%s5191 + $0x38] sm:$0xff]
        %v5200 = vld [vmem:[%s5191 + $0x40] sm:$0xff]
        %v5201 = vld [vmem:[%s5191 + $0x48] sm:$0xff]
        %v5202 = vld [vmem:[%s5191 + $0x50] sm:$0xff]
        %v5203 = vld [vmem:[%s5191 + $0x58] sm:$0xff]
        %v5204 = vld [vmem:[%s5191 + $0x60] sm:$0xff]
        %v5205 = vld [vmem:[%s5191 + $0x68] sm:$0xff]
        %v5206 = vld [vmem:[%s5191 + $0x70] sm:$0xff]
        %v5207 = vld [vmem:[%s5191 + $0x78] sm:$0xff]
        %5208 = vmatprep.subr.mxu0 0.0
        %5209 = vmatpush1.msra.mxu0 %v5207
        %5210 = vmatprep.subr.mxu0 0.0
        %5211 = vmatpush1.msra.mxu0 %v5206
        %5212 = vmatprep.subr.mxu0 0.0
        %5213 = vmatpush1.msra.mxu0 %v5205
        %5214 = vmatprep.subr.mxu0 0.0
        %5215 = vmatpush1.msra.mxu0 %v5204
        %5216 = vmatprep.subr.mxu0 0.0
        %5217 = vmatpush1.msra.mxu0 %v5203
        %5218 = vmatprep.subr.mxu0 0.0
        %5219 = vmatpush1.msra.mxu0 %v5202
        %5220 = vmatprep.subr.mxu0 0.0
        %5221 = vmatpush1.msra.mxu0 %v5201
        %5222 = vmatprep.subr.mxu0 0.0
        %5223 = vmatpush1.msra.mxu0 %v5200
        %5224 = vmatprep.subr.mxu0 0.0
        %5225 = vmatpush1.msra.mxu0 %v5199
        %5226 = vmatprep.subr.mxu0 0.0
        %5227 = vmatpush1.msra.mxu0 %v5198
        %5228 = vmatprep.subr.mxu0 0.0
        %5229 = vmatpush1.msra.mxu0 %v5197
        %5230 = vmatprep.subr.mxu0 0.0
        %5231 = vmatpush1.msra.mxu0 %v5196
        %5232 = vmatprep.subr.mxu0 0.0
        %5233 = vmatpush1.msra.mxu0 %v5195
        %5234 = vmatprep.subr.mxu0 0.0
        %5235 = vmatpush1.msra.mxu0 %v5194
        %5236 = vmatprep.subr.mxu0 0.0
        %5237 = vmatpush1.msra.mxu0 %v5193
        %5238 = vmatprep.subr.mxu0 0.0
        %5239 = vmatpush1.msra.mxu0 %v5192
        %5240 = vmatprep.subr.mxu0 0.0
        %5241 = vmatpush2.msra.mxu0 0.0
        %5242 = vmatprep.subr.mxu0 0.0
        %5243 = vmatpush2.msra.mxu0 0.0
        %5244 = vmatprep.subr.mxu0 0.0
        %5245 = vmatpush2.msra.mxu0 0.0
        %5246 = vmatprep.subr.mxu0 0.0
        %5247 = vmatpush2.msra.mxu0 0.0
        %5248 = vmatprep.subr.mxu0 0.0
        %5249 = vmatpush2.msra.mxu0 0.0
        %5250 = vmatprep.subr.mxu0 0.0
        %5251 = vmatpush2.msra.mxu0 0.0
        %5252 = vmatprep.subr.mxu0 0.0
        %5253 = vmatpush2.msra.mxu0 0.0
        %5254 = vmatprep.subr.mxu0 0.0
        %5255 = vmatpush2.msra.mxu0 0.0
        %5256 = vmatprep.subr.mxu0 0.0
        %5257 = vmatpush2.msra.mxu0 0.0
        %5258 = vmatprep.subr.mxu0 0.0
        %5259 = vmatpush2.msra.mxu0 0.0
        %5260 = vmatprep.subr.mxu0 0.0
        %5261 = vmatpush2.msra.mxu0 0.0
        %5262 = vmatprep.subr.mxu0 0.0
        %5263 = vmatpush2.msra.mxu0 0.0
        %5264 = vmatprep.subr.mxu0 0.0
        %5265 = vmatpush2.msra.mxu0 0.0
        %5266 = vmatprep.subr.mxu0 0.0
        %5267 = vmatpush2.msra.mxu0 0.0
        %5268 = vmatprep.subr.mxu0 0.0
        %5269 = vmatpush2.msra.mxu0 0.0
        %5270 = vmatprep.subr.mxu0 0.0
        %5271 = vmatpush2.msra.mxu0 0.0
        %5272 = vmatprep.mubr.f32.mxu0 0.0
        %5273 = vmatmul.mubr.f32.gmra.mxu0 %v5175
        %v5274 = vpop.f32.mrf.mxu0
        %v5275 = vadd.f32 0.0, %v5274
        %v5276 = vpop.f32.mrf.mxu0
        %5277 = vmatprep.mubr.f32.mxu0 0.0
        %5278 = vmatmul.mubr.f32.gmra.mxu0 %v5176
        %v5279 = vpop.f32.mrf.mxu0
        %v5280 = vadd.f32 0.0, %v5279
        %v5281 = vpop.f32.mrf.mxu0
        %5282 = vmatprep.mubr.f32.mxu0 0.0
        %5283 = vmatmul.mubr.f32.gmra.mxu0 %v5177
        %v5284 = vpop.f32.mrf.mxu0
        %v5285 = vadd.f32 0.0, %v5284
        %v5286 = vpop.f32.mrf.mxu0
        %5287 = vmatprep.mubr.f32.mxu0 0.0
        %5288 = vmatmul.mubr.f32.gmra.mxu0 %v5178
        %v5289 = vpop.f32.mrf.mxu0
        %v5290 = vadd.f32 0.0, %v5289
        %v5291 = vpop.f32.mrf.mxu0
        %5292 = vmatprep.mubr.f32.mxu0 0.0
        %5293 = vmatmul.mubr.f32.gmra.mxu0 %v5179
        %v5294 = vpop.f32.mrf.mxu0
        %v5295 = vadd.f32 0.0, %v5294
        %v5296 = vpop.f32.mrf.mxu0
        %5297 = vmatprep.mubr.f32.mxu0 0.0
        %5298 = vmatmul.mubr.f32.gmra.mxu0 %v5180
        %v5299 = vpop.f32.mrf.mxu0
        %v5300 = vadd.f32 0.0, %v5299
        %v5301 = vpop.f32.mrf.mxu0
        %5302 = vmatprep.mubr.f32.mxu0 0.0
        %5303 = vmatmul.mubr.f32.gmra.mxu0 %v5181
        %v5304 = vpop.f32.mrf.mxu0
        %v5305 = vadd.f32 0.0, %v5304
        %v5306 = vpop.f32.mrf.mxu0
        %5307 = vmatprep.mubr.f32.mxu0 0.0
        %5308 = vmatmul.mubr.f32.gmra.mxu0 %v5182
        %v5309 = vpop.f32.mrf.mxu0
        %v5310 = vadd.f32 0.0, %v5309
        %v5311 = vpop.f32.mrf.mxu0
        %5312 = vmatprep.mubr.f32.mxu0 0.0
        %5313 = vmatmul.mubr.f32.gmra.mxu0 %v5183
        %v5314 = vpop.f32.mrf.mxu0
        %v5315 = vadd.f32 0.0, %v5314
        %v5316 = vpop.f32.mrf.mxu0
        %5317 = vmatprep.mubr.f32.mxu0 0.0
        %5318 = vmatmul.mubr.f32.gmra.mxu0 %v5184
        %v5319 = vpop.f32.mrf.mxu0
        %v5320 = vadd.f32 0.0, %v5319
        %v5321 = vpop.f32.mrf.mxu0
        %5322 = vmatprep.mubr.f32.mxu0 0.0
        %5323 = vmatmul.mubr.f32.gmra.mxu0 %v5185
        %v5324 = vpop.f32.mrf.mxu0
        %v5325 = vadd.f32 0.0, %v5324
        %v5326 = vpop.f32.mrf.mxu0
        %5327 = vmatprep.mubr.f32.mxu0 0.0
        %5328 = vmatmul.mubr.f32.gmra.mxu0 %v5186
        %v5329 = vpop.f32.mrf.mxu0
        %v5330 = vadd.f32 0.0, %v5329
        %v5331 = vpop.f32.mrf.mxu0
        %5332 = vmatprep.mubr.f32.mxu0 0.0
        %5333 = vmatmul.mubr.f32.gmra.mxu0 %v5187
        %v5334 = vpop.f32.mrf.mxu0
        %v5335 = vadd.f32 0.0, %v5334
        %v5336 = vpop.f32.mrf.mxu0
        %5337 = vmatprep.mubr.f32.mxu0 0.0
        %5338 = vmatmul.mubr.f32.gmra.mxu0 %v5188
        %v5339 = vpop.f32.mrf.mxu0
        %v5340 = vadd.f32 0.0, %v5339
        %v5341 = vpop.f32.mrf.mxu0
        %5342 = vmatprep.mubr.f32.mxu0 0.0
        %5343 = vmatmul.mubr.f32.gmra.mxu0 %v5189
        %v5344 = vpop.f32.mrf.mxu0
        %v5345 = vadd.f32 0.0, %v5344
        %v5346 = vpop.f32.mrf.mxu0
        %5347 = vmatprep.mubr.f32.mxu0 0.0
        %5348 = vmatmul.mubr.f32.gmra.mxu0 %v5190
        %v5349 = vpop.f32.mrf.mxu0
        %v5350 = vadd.f32 0.0, %v5349
        %v5351 = vpop.f32.mrf.mxu0
        %5352 = vdwg.mxu0
        %v5353 = vadd.f32 %v5158, %v5275
        %v5354 = vadd.f32 %v5159, %v5280
        %v5355 = vadd.f32 %v5160, %v5285
        %v5356 = vadd.f32 %v5161, %v5290
        %v5357 = vadd.f32 %v5162, %v5295
        %v5358 = vadd.f32 %v5163, %v5300
        %v5359 = vadd.f32 %v5164, %v5305
        %v5360 = vadd.f32 %v5165, %v5310
        %v5361 = vadd.f32 %v5166, %v5315
        %v5362 = vadd.f32 %v5167, %v5320
        %v5363 = vadd.f32 %v5168, %v5325
        %v5364 = vadd.f32 %v5169, %v5330
        %v5365 = vadd.f32 %v5170, %v5335
        %v5366 = vadd.f32 %v5171, %v5340
        %v5367 = vadd.f32 %v5172, %v5345
        %v5368 = vadd.f32 %v5173, %v5350
        %v5369 = vld [vmem:[%s5174 + $0x1] sm:$0xff]
        %v5370 = vld [vmem:[%s5174 + $0x9] sm:$0xff]
        %v5371 = vld [vmem:[%s5174 + $0x19] sm:$0xff]
        %v5372 = vld [vmem:[%s5174 + $0x21] sm:$0xff]
        %v5373 = vld [vmem:[%s5174 + $0x31] sm:$0xff]
        %v5374 = vld [vmem:[%s5174 + $0x39] sm:$0xff]
        %v5375 = vld [vmem:[%s5174 + $0x49] sm:$0xff]
        %v5376 = vld [vmem:[%s5174 + $0x51] sm:$0xff]
        %v5377 = vld [vmem:[%s5174 + $0x61] sm:$0xff]
        %v5378 = vld [vmem:[%s5174 + $0x69] sm:$0xff]
        %v5379 = vld [vmem:[%s5174 + $0x79] sm:$0xff]
        %v5380 = vld [vmem:[%s5174 + $0x81] sm:$0xff]
        %v5381 = vld [vmem:[%s5174 + $0x91] sm:$0xff]
        %v5382 = vld [vmem:[%s5174 + $0x99] sm:$0xff]
        %v5383 = vld [vmem:[%s5174 + $0xa9] sm:$0xff]
        %v5384 = vld [vmem:[%s5174 + $0xb1] sm:$0xff]
        %s5385 = scalar_lea.vmem [#allocation9], 896
        %v5386 = vld [vmem:[%s5385] sm:$0xff]
        %v5387 = vld [vmem:[%s5385 + $0x8] sm:$0xff]
        %v5388 = vld [vmem:[%s5385 + $0x10] sm:$0xff]
        %v5389 = vld [vmem:[%s5385 + $0x18] sm:$0xff]
        %v5390 = vld [vmem:[%s5385 + $0x20] sm:$0xff]
        %v5391 = vld [vmem:[%s5385 + $0x28] sm:$0xff]
        %v5392 = vld [vmem:[%s5385 + $0x30] sm:$0xff]
        %v5393 = vld [vmem:[%s5385 + $0x38] sm:$0xff]
        %v5394 = vld [vmem:[%s5385 + $0x40] sm:$0xff]
        %v5395 = vld [vmem:[%s5385 + $0x48] sm:$0xff]
        %v5396 = vld [vmem:[%s5385 + $0x50] sm:$0xff]
        %v5397 = vld [vmem:[%s5385 + $0x58] sm:$0xff]
        %v5398 = vld [vmem:[%s5385 + $0x60] sm:$0xff]
        %v5399 = vld [vmem:[%s5385 + $0x68] sm:$0xff]
        %v5400 = vld [vmem:[%s5385 + $0x70] sm:$0xff]
        %v5401 = vld [vmem:[%s5385 + $0x78] sm:$0xff]
        %5402 = vmatprep.subr.mxu0 0.0
        %5403 = vmatpush1.msra.mxu0 %v5401
        %5404 = vmatprep.subr.mxu0 0.0
        %5405 = vmatpush1.msra.mxu0 %v5400
        %5406 = vmatprep.subr.mxu0 0.0
        %5407 = vmatpush1.msra.mxu0 %v5399
        %5408 = vmatprep.subr.mxu0 0.0
        %5409 = vmatpush1.msra.mxu0 %v5398
        %5410 = vmatprep.subr.mxu0 0.0
        %5411 = vmatpush1.msra.mxu0 %v5397
        %5412 = vmatprep.subr.mxu0 0.0
        %5413 = vmatpush1.msra.mxu0 %v5396
        %5414 = vmatprep.subr.mxu0 0.0
        %5415 = vmatpush1.msra.mxu0 %v5395
        %5416 = vmatprep.subr.mxu0 0.0
        %5417 = vmatpush1.msra.mxu0 %v5394
        %5418 = vmatprep.subr.mxu0 0.0
        %5419 = vmatpush1.msra.mxu0 %v5393
        %5420 = vmatprep.subr.mxu0 0.0
        %5421 = vmatpush1.msra.mxu0 %v5392
        %5422 = vmatprep.subr.mxu0 0.0
        %5423 = vmatpush1.msra.mxu0 %v5391
        %5424 = vmatprep.subr.mxu0 0.0
        %5425 = vmatpush1.msra.mxu0 %v5390
        %5426 = vmatprep.subr.mxu0 0.0
        %5427 = vmatpush1.msra.mxu0 %v5389
        %5428 = vmatprep.subr.mxu0 0.0
        %5429 = vmatpush1.msra.mxu0 %v5388
        %5430 = vmatprep.subr.mxu0 0.0
        %5431 = vmatpush1.msra.mxu0 %v5387
        %5432 = vmatprep.subr.mxu0 0.0
        %5433 = vmatpush1.msra.mxu0 %v5386
        %5434 = vmatprep.subr.mxu0 0.0
        %5435 = vmatpush2.msra.mxu0 0.0
        %5436 = vmatprep.subr.mxu0 0.0
        %5437 = vmatpush2.msra.mxu0 0.0
        %5438 = vmatprep.subr.mxu0 0.0
        %5439 = vmatpush2.msra.mxu0 0.0
        %5440 = vmatprep.subr.mxu0 0.0
        %5441 = vmatpush2.msra.mxu0 0.0
        %5442 = vmatprep.subr.mxu0 0.0
        %5443 = vmatpush2.msra.mxu0 0.0
        %5444 = vmatprep.subr.mxu0 0.0
        %5445 = vmatpush2.msra.mxu0 0.0
        %5446 = vmatprep.subr.mxu0 0.0
        %5447 = vmatpush2.msra.mxu0 0.0
        %5448 = vmatprep.subr.mxu0 0.0
        %5449 = vmatpush2.msra.mxu0 0.0
        %5450 = vmatprep.subr.mxu0 0.0
        %5451 = vmatpush2.msra.mxu0 0.0
        %5452 = vmatprep.subr.mxu0 0.0
        %5453 = vmatpush2.msra.mxu0 0.0
        %5454 = vmatprep.subr.mxu0 0.0
        %5455 = vmatpush2.msra.mxu0 0.0
        %5456 = vmatprep.subr.mxu0 0.0
        %5457 = vmatpush2.msra.mxu0 0.0
        %5458 = vmatprep.subr.mxu0 0.0
        %5459 = vmatpush2.msra.mxu0 0.0
        %5460 = vmatprep.subr.mxu0 0.0
        %5461 = vmatpush2.msra.mxu0 0.0
        %5462 = vmatprep.subr.mxu0 0.0
        %5463 = vmatpush2.msra.mxu0 0.0
        %5464 = vmatprep.subr.mxu0 0.0
        %5465 = vmatpush2.msra.mxu0 0.0
        %5466 = vmatprep.mubr.f32.mxu0 0.0
        %5467 = vmatmul.mubr.f32.gmra.mxu0 %v5369
        %v5468 = vpop.f32.mrf.mxu0
        %v5469 = vadd.f32 0.0, %v5468
        %v5470 = vpop.f32.mrf.mxu0
        %5471 = vmatprep.mubr.f32.mxu0 0.0
        %5472 = vmatmul.mubr.f32.gmra.mxu0 %v5370
        %v5473 = vpop.f32.mrf.mxu0
        %v5474 = vadd.f32 0.0, %v5473
        %v5475 = vpop.f32.mrf.mxu0
        %5476 = vmatprep.mubr.f32.mxu0 0.0
        %5477 = vmatmul.mubr.f32.gmra.mxu0 %v5371
        %v5478 = vpop.f32.mrf.mxu0
        %v5479 = vadd.f32 0.0, %v5478
        %v5480 = vpop.f32.mrf.mxu0
        %5481 = vmatprep.mubr.f32.mxu0 0.0
        %5482 = vmatmul.mubr.f32.gmra.mxu0 %v5372
        %v5483 = vpop.f32.mrf.mxu0
        %v5484 = vadd.f32 0.0, %v5483
        %v5485 = vpop.f32.mrf.mxu0
        %5486 = vmatprep.mubr.f32.mxu0 0.0
        %5487 = vmatmul.mubr.f32.gmra.mxu0 %v5373
        %v5488 = vpop.f32.mrf.mxu0
        %v5489 = vadd.f32 0.0, %v5488
        %v5490 = vpop.f32.mrf.mxu0
        %5491 = vmatprep.mubr.f32.mxu0 0.0
        %5492 = vmatmul.mubr.f32.gmra.mxu0 %v5374
        %v5493 = vpop.f32.mrf.mxu0
        %v5494 = vadd.f32 0.0, %v5493
        %v5495 = vpop.f32.mrf.mxu0
        %5496 = vmatprep.mubr.f32.mxu0 0.0
        %5497 = vmatmul.mubr.f32.gmra.mxu0 %v5375
        %v5498 = vpop.f32.mrf.mxu0
        %v5499 = vadd.f32 0.0, %v5498
        %v5500 = vpop.f32.mrf.mxu0
        %5501 = vmatprep.mubr.f32.mxu0 0.0
        %5502 = vmatmul.mubr.f32.gmra.mxu0 %v5376
        %v5503 = vpop.f32.mrf.mxu0
        %v5504 = vadd.f32 0.0, %v5503
        %v5505 = vpop.f32.mrf.mxu0
        %5506 = vmatprep.mubr.f32.mxu0 0.0
        %5507 = vmatmul.mubr.f32.gmra.mxu0 %v5377
        %v5508 = vpop.f32.mrf.mxu0
        %v5509 = vadd.f32 0.0, %v5508
        %v5510 = vpop.f32.mrf.mxu0
        %5511 = vmatprep.mubr.f32.mxu0 0.0
        %5512 = vmatmul.mubr.f32.gmra.mxu0 %v5378
        %v5513 = vpop.f32.mrf.mxu0
        %v5514 = vadd.f32 0.0, %v5513
        %v5515 = vpop.f32.mrf.mxu0
        %5516 = vmatprep.mubr.f32.mxu0 0.0
        %5517 = vmatmul.mubr.f32.gmra.mxu0 %v5379
        %v5518 = vpop.f32.mrf.mxu0
        %v5519 = vadd.f32 0.0, %v5518
        %v5520 = vpop.f32.mrf.mxu0
        %5521 = vmatprep.mubr.f32.mxu0 0.0
        %5522 = vmatmul.mubr.f32.gmra.mxu0 %v5380
        %v5523 = vpop.f32.mrf.mxu0
        %v5524 = vadd.f32 0.0, %v5523
        %v5525 = vpop.f32.mrf.mxu0
        %5526 = vmatprep.mubr.f32.mxu0 0.0
        %5527 = vmatmul.mubr.f32.gmra.mxu0 %v5381
        %v5528 = vpop.f32.mrf.mxu0
        %v5529 = vadd.f32 0.0, %v5528
        %v5530 = vpop.f32.mrf.mxu0
        %5531 = vmatprep.mubr.f32.mxu0 0.0
        %5532 = vmatmul.mubr.f32.gmra.mxu0 %v5382
        %v5533 = vpop.f32.mrf.mxu0
        %v5534 = vadd.f32 0.0, %v5533
        %v5535 = vpop.f32.mrf.mxu0
        %5536 = vmatprep.mubr.f32.mxu0 0.0
        %5537 = vmatmul.mubr.f32.gmra.mxu0 %v5383
        %v5538 = vpop.f32.mrf.mxu0
        %v5539 = vadd.f32 0.0, %v5538
        %v5540 = vpop.f32.mrf.mxu0
        %5541 = vmatprep.mubr.f32.mxu0 0.0
        %5542 = vmatmul.mubr.f32.gmra.mxu0 %v5384
        %v5543 = vpop.f32.mrf.mxu0
        %v5544 = vadd.f32 0.0, %v5543
        %v5545 = vpop.f32.mrf.mxu0
        %5546 = vdwg.mxu0
        %v5547 = vadd.f32 %v5353, %v5469
        %v5548 = vadd.f32 %v5354, %v5474
        %v5549 = vadd.f32 %v5355, %v5479
        %v5550 = vadd.f32 %v5356, %v5484
        %v5551 = vadd.f32 %v5357, %v5489
        %v5552 = vadd.f32 %v5358, %v5494
        %v5553 = vadd.f32 %v5359, %v5499
        %v5554 = vadd.f32 %v5360, %v5504
        %v5555 = vadd.f32 %v5361, %v5509
        %v5556 = vadd.f32 %v5362, %v5514
        %v5557 = vadd.f32 %v5363, %v5519
        %v5558 = vadd.f32 %v5364, %v5524
        %v5559 = vadd.f32 %v5365, %v5529
        %v5560 = vadd.f32 %v5366, %v5534
        %v5561 = vadd.f32 %v5367, %v5539
        %v5562 = vadd.f32 %v5368, %v5544
        %v5563 = vld [vmem:[%s5174 + $0x2] sm:$0xff]
        %v5564 = vld [vmem:[%s5174 + $0xa] sm:$0xff]
        %v5565 = vld [vmem:[%s5174 + $0x1a] sm:$0xff]
        %v5566 = vld [vmem:[%s5174 + $0x22] sm:$0xff]
        %v5567 = vld [vmem:[%s5174 + $0x32] sm:$0xff]
        %v5568 = vld [vmem:[%s5174 + $0x3a] sm:$0xff]
        %v5569 = vld [vmem:[%s5174 + $0x4a] sm:$0xff]
        %v5570 = vld [vmem:[%s5174 + $0x52] sm:$0xff]
        %v5571 = vld [vmem:[%s5174 + $0x62] sm:$0xff]
        %v5572 = vld [vmem:[%s5174 + $0x6a] sm:$0xff]
        %v5573 = vld [vmem:[%s5174 + $0x7a] sm:$0xff]
        %v5574 = vld [vmem:[%s5174 + $0x82] sm:$0xff]
        %v5575 = vld [vmem:[%s5174 + $0x92] sm:$0xff]
        %v5576 = vld [vmem:[%s5174 + $0x9a] sm:$0xff]
        %v5577 = vld [vmem:[%s5174 + $0xaa] sm:$0xff]
        %v5578 = vld [vmem:[%s5174 + $0xb2] sm:$0xff]
        %s5579 = scalar_lea.vmem [#allocation9], 1024
        %v5580 = vld [vmem:[%s5579] sm:$0xff]
        %v5581 = vld [vmem:[%s5579 + $0x8] sm:$0xff]
        %v5582 = vld [vmem:[%s5579 + $0x10] sm:$0xff]
        %v5583 = vld [vmem:[%s5579 + $0x18] sm:$0xff]
        %v5584 = vld [vmem:[%s5579 + $0x20] sm:$0xff]
        %v5585 = vld [vmem:[%s5579 + $0x28] sm:$0xff]
        %v5586 = vld [vmem:[%s5579 + $0x30] sm:$0xff]
        %v5587 = vld [vmem:[%s5579 + $0x38] sm:$0xff]
        %v5588 = vld [vmem:[%s5579 + $0x40] sm:$0xff]
        %v5589 = vld [vmem:[%s5579 + $0x48] sm:$0xff]
        %v5590 = vld [vmem:[%s5579 + $0x50] sm:$0xff]
        %v5591 = vld [vmem:[%s5579 + $0x58] sm:$0xff]
        %v5592 = vld [vmem:[%s5579 + $0x60] sm:$0xff]
        %v5593 = vld [vmem:[%s5579 + $0x68] sm:$0xff]
        %v5594 = vld [vmem:[%s5579 + $0x70] sm:$0xff]
        %v5595 = vld [vmem:[%s5579 + $0x78] sm:$0xff]
        %5596 = vmatprep.subr.mxu0 0.0
        %5597 = vmatpush1.msra.mxu0 %v5595
        %5598 = vmatprep.subr.mxu0 0.0
        %5599 = vmatpush1.msra.mxu0 %v5594
        %5600 = vmatprep.subr.mxu0 0.0
        %5601 = vmatpush1.msra.mxu0 %v5593
        %5602 = vmatprep.subr.mxu0 0.0
        %5603 = vmatpush1.msra.mxu0 %v5592
        %5604 = vmatprep.subr.mxu0 0.0
        %5605 = vmatpush1.msra.mxu0 %v5591
        %5606 = vmatprep.subr.mxu0 0.0
        %5607 = vmatpush1.msra.mxu0 %v5590
        %5608 = vmatprep.subr.mxu0 0.0
        %5609 = vmatpush1.msra.mxu0 %v5589
        %5610 = vmatprep.subr.mxu0 0.0
        %5611 = vmatpush1.msra.mxu0 %v5588
        %5612 = vmatprep.subr.mxu0 0.0
        %5613 = vmatpush1.msra.mxu0 %v5587
        %5614 = vmatprep.subr.mxu0 0.0
        %5615 = vmatpush1.msra.mxu0 %v5586
        %5616 = vmatprep.subr.mxu0 0.0
        %5617 = vmatpush1.msra.mxu0 %v5585
        %5618 = vmatprep.subr.mxu0 0.0
        %5619 = vmatpush1.msra.mxu0 %v5584
        %5620 = vmatprep.subr.mxu0 0.0
        %5621 = vmatpush1.msra.mxu0 %v5583
        %5622 = vmatprep.subr.mxu0 0.0
        %5623 = vmatpush1.msra.mxu0 %v5582
        %5624 = vmatprep.subr.mxu0 0.0
        %5625 = vmatpush1.msra.mxu0 %v5581
        %5626 = vmatprep.subr.mxu0 0.0
        %5627 = vmatpush1.msra.mxu0 %v5580
        %5628 = vmatprep.subr.mxu0 0.0
        %5629 = vmatpush2.msra.mxu0 0.0
        %5630 = vmatprep.subr.mxu0 0.0
        %5631 = vmatpush2.msra.mxu0 0.0
        %5632 = vmatprep.subr.mxu0 0.0
        %5633 = vmatpush2.msra.mxu0 0.0
        %5634 = vmatprep.subr.mxu0 0.0
        %5635 = vmatpush2.msra.mxu0 0.0
        %5636 = vmatprep.subr.mxu0 0.0
        %5637 = vmatpush2.msra.mxu0 0.0
        %5638 = vmatprep.subr.mxu0 0.0
        %5639 = vmatpush2.msra.mxu0 0.0
        %5640 = vmatprep.subr.mxu0 0.0
        %5641 = vmatpush2.msra.mxu0 0.0
        %5642 = vmatprep.subr.mxu0 0.0
        %5643 = vmatpush2.msra.mxu0 0.0
        %5644 = vmatprep.subr.mxu0 0.0
        %5645 = vmatpush2.msra.mxu0 0.0
        %5646 = vmatprep.subr.mxu0 0.0
        %5647 = vmatpush2.msra.mxu0 0.0
        %5648 = vmatprep.subr.mxu0 0.0
        %5649 = vmatpush2.msra.mxu0 0.0
        %5650 = vmatprep.subr.mxu0 0.0
        %5651 = vmatpush2.msra.mxu0 0.0
        %5652 = vmatprep.subr.mxu0 0.0
        %5653 = vmatpush2.msra.mxu0 0.0
        %5654 = vmatprep.subr.mxu0 0.0
        %5655 = vmatpush2.msra.mxu0 0.0
        %5656 = vmatprep.subr.mxu0 0.0
        %5657 = vmatpush2.msra.mxu0 0.0
        %5658 = vmatprep.subr.mxu0 0.0
        %5659 = vmatpush2.msra.mxu0 0.0
        %5660 = vmatprep.mubr.f32.mxu0 0.0
        %5661 = vmatmul.mubr.f32.gmra.mxu0 %v5563
        %v5662 = vpop.f32.mrf.mxu0
        %v5663 = vadd.f32 0.0, %v5662
        %v5664 = vpop.f32.mrf.mxu0
        %5665 = vmatprep.mubr.f32.mxu0 0.0
        %5666 = vmatmul.mubr.f32.gmra.mxu0 %v5564
        %v5667 = vpop.f32.mrf.mxu0
        %v5668 = vadd.f32 0.0, %v5667
        %v5669 = vpop.f32.mrf.mxu0
        %5670 = vmatprep.mubr.f32.mxu0 0.0
        %5671 = vmatmul.mubr.f32.gmra.mxu0 %v5565
        %v5672 = vpop.f32.mrf.mxu0
        %v5673 = vadd.f32 0.0, %v5672
        %v5674 = vpop.f32.mrf.mxu0
        %5675 = vmatprep.mubr.f32.mxu0 0.0
        %5676 = vmatmul.mubr.f32.gmra.mxu0 %v5566
        %v5677 = vpop.f32.mrf.mxu0
        %v5678 = vadd.f32 0.0, %v5677
        %v5679 = vpop.f32.mrf.mxu0
        %5680 = vmatprep.mubr.f32.mxu0 0.0
        %5681 = vmatmul.mubr.f32.gmra.mxu0 %v5567
        %v5682 = vpop.f32.mrf.mxu0
        %v5683 = vadd.f32 0.0, %v5682
        %v5684 = vpop.f32.mrf.mxu0
        %5685 = vmatprep.mubr.f32.mxu0 0.0
        %5686 = vmatmul.mubr.f32.gmra.mxu0 %v5568
        %v5687 = vpop.f32.mrf.mxu0
        %v5688 = vadd.f32 0.0, %v5687
        %v5689 = vpop.f32.mrf.mxu0
        %5690 = vmatprep.mubr.f32.mxu0 0.0
        %5691 = vmatmul.mubr.f32.gmra.mxu0 %v5569
        %v5692 = vpop.f32.mrf.mxu0
        %v5693 = vadd.f32 0.0, %v5692
        %v5694 = vpop.f32.mrf.mxu0
        %5695 = vmatprep.mubr.f32.mxu0 0.0
        %5696 = vmatmul.mubr.f32.gmra.mxu0 %v5570
        %v5697 = vpop.f32.mrf.mxu0
        %v5698 = vadd.f32 0.0, %v5697
        %v5699 = vpop.f32.mrf.mxu0
        %5700 = vmatprep.mubr.f32.mxu0 0.0
        %5701 = vmatmul.mubr.f32.gmra.mxu0 %v5571
        %v5702 = vpop.f32.mrf.mxu0
        %v5703 = vadd.f32 0.0, %v5702
        %v5704 = vpop.f32.mrf.mxu0
        %5705 = vmatprep.mubr.f32.mxu0 0.0
        %5706 = vmatmul.mubr.f32.gmra.mxu0 %v5572
        %v5707 = vpop.f32.mrf.mxu0
        %v5708 = vadd.f32 0.0, %v5707
        %v5709 = vpop.f32.mrf.mxu0
        %5710 = vmatprep.mubr.f32.mxu0 0.0
        %5711 = vmatmul.mubr.f32.gmra.mxu0 %v5573
        %v5712 = vpop.f32.mrf.mxu0
        %v5713 = vadd.f32 0.0, %v5712
        %v5714 = vpop.f32.mrf.mxu0
        %5715 = vmatprep.mubr.f32.mxu0 0.0
        %5716 = vmatmul.mubr.f32.gmra.mxu0 %v5574
        %v5717 = vpop.f32.mrf.mxu0
        %v5718 = vadd.f32 0.0, %v5717
        %v5719 = vpop.f32.mrf.mxu0
        %5720 = vmatprep.mubr.f32.mxu0 0.0
        %5721 = vmatmul.mubr.f32.gmra.mxu0 %v5575
        %v5722 = vpop.f32.mrf.mxu0
        %v5723 = vadd.f32 0.0, %v5722
        %v5724 = vpop.f32.mrf.mxu0
        %5725 = vmatprep.mubr.f32.mxu0 0.0
        %5726 = vmatmul.mubr.f32.gmra.mxu0 %v5576
        %v5727 = vpop.f32.mrf.mxu0
        %v5728 = vadd.f32 0.0, %v5727
        %v5729 = vpop.f32.mrf.mxu0
        %5730 = vmatprep.mubr.f32.mxu0 0.0
        %5731 = vmatmul.mubr.f32.gmra.mxu0 %v5577
        %v5732 = vpop.f32.mrf.mxu0
        %v5733 = vadd.f32 0.0, %v5732
        %v5734 = vpop.f32.mrf.mxu0
        %5735 = vmatprep.mubr.f32.mxu0 0.0
        %5736 = vmatmul.mubr.f32.gmra.mxu0 %v5578
        %v5737 = vpop.f32.mrf.mxu0
        %v5738 = vadd.f32 0.0, %v5737
        %v5739 = vpop.f32.mrf.mxu0
        %5740 = vdwg.mxu0
        %v5741 = vadd.f32 %v5547, %v5663
        %v5742 = vadd.f32 %v5548, %v5668
        %v5743 = vadd.f32 %v5549, %v5673
        %v5744 = vadd.f32 %v5550, %v5678
        %v5745 = vadd.f32 %v5551, %v5683
        %v5746 = vadd.f32 %v5552, %v5688
        %v5747 = vadd.f32 %v5553, %v5693
        %v5748 = vadd.f32 %v5554, %v5698
        %v5749 = vadd.f32 %v5555, %v5703
        %v5750 = vadd.f32 %v5556, %v5708
        %v5751 = vadd.f32 %v5557, %v5713
        %v5752 = vadd.f32 %v5558, %v5718
        %v5753 = vadd.f32 %v5559, %v5723
        %v5754 = vadd.f32 %v5560, %v5728
        %v5755 = vadd.f32 %v5561, %v5733
        %v5756 = vadd.f32 %v5562, %v5738
        %v5758 = vlaneseq
        %v5759 = vshrl.u32 %v5758, 7
        %v5760 = vsub.s32 0, %v5759
        %v5761 = vrot.slane %v515, %v5760
        %v5763 = vadd.f32 %v5741, %v5761
        %v5764 = vadd.f32 %v5742, %v5761
        %v5765 = vadd.f32 %v5743, %v5761
        %v5766 = vadd.f32 %v5744, %v5761
        %v5767 = vadd.f32 %v5745, %v5761
        %v5768 = vadd.f32 %v5746, %v5761
        %v5769 = vadd.f32 %v5747, %v5761
        %v5770 = vadd.f32 %v5748, %v5761
        %v5771 = vadd.f32 %v5749, %v5761
        %v5772 = vadd.f32 %v5750, %v5761
        %v5773 = vadd.f32 %v5751, %v5761
        %v5774 = vadd.f32 %v5752, %v5761
        %v5775 = vadd.f32 %v5753, %v5761
        %v5776 = vadd.f32 %v5754, %v5761
        %v5777 = vadd.f32 %v5755, %v5761
        %v5778 = vadd.f32 %v5756, %v5761
        %v5779 = vmax.f32 %v5763, 0.0
        %v5780 = vmax.f32 %v5764, 0.0
        %v5781 = vmax.f32 %v5765, 0.0
        %v5782 = vmax.f32 %v5766, 0.0
        %v5783 = vmax.f32 %v5767, 0.0
        %v5784 = vmax.f32 %v5768, 0.0
        %v5785 = vmax.f32 %v5769, 0.0
        %v5786 = vmax.f32 %v5770, 0.0
        %v5787 = vmax.f32 %v5771, 0.0
        %v5788 = vmax.f32 %v5772, 0.0
        %v5789 = vmax.f32 %v5773, 0.0
        %v5790 = vmax.f32 %v5774, 0.0
        %v5791 = vmax.f32 %v5775, 0.0
        %v5792 = vmax.f32 %v5776, 0.0
        %v5793 = vmax.f32 %v5777, 0.0
        %v5794 = vmax.f32 %v5778, 0.0
        %v5795 = vld [vmem:[%s427 + $0x1] sm:$0xff]
        %v5796 = vld [vmem:[%s427 + $0x9] sm:$0xff]
        %v5797 = vld [vmem:[%s427 + $0x19] sm:$0xff]
        %v5798 = vld [vmem:[%s427 + $0x21] sm:$0xff]
        %v5799 = vld [vmem:[%s427 + $0x31] sm:$0xff]
        %v5800 = vld [vmem:[%s427 + $0x39] sm:$0xff]
        %v5801 = vld [vmem:[%s427 + $0x49] sm:$0xff]
        %v5802 = vld [vmem:[%s427 + $0x51] sm:$0xff]
        %v5803 = vld [vmem:[%s427 + $0x61] sm:$0xff]
        %v5804 = vld [vmem:[%s427 + $0x69] sm:$0xff]
        %v5805 = vld [vmem:[%s427 + $0x79] sm:$0xff]
        %v5806 = vld [vmem:[%s427 + $0x81] sm:$0xff]
        %v5807 = vld [vmem:[%s427 + $0x91] sm:$0xff]
        %v5808 = vld [vmem:[%s427 + $0x99] sm:$0xff]
        %v5809 = vld [vmem:[%s427 + $0xa9] sm:$0xff]
        %v5810 = vld [vmem:[%s427 + $0xb1] sm:$0xff]
        %v5811 = vld [vmem:[#allocation10] sm:$0xff]
        %v5812 = vld [vmem:[#allocation10 + $0x8] sm:$0xff]
        %v5813 = vld [vmem:[#allocation10 + $0x10] sm:$0xff]
        %v5814 = vld [vmem:[#allocation10 + $0x18] sm:$0xff]
        %v5815 = vld [vmem:[#allocation10 + $0x20] sm:$0xff]
        %v5816 = vld [vmem:[#allocation10 + $0x28] sm:$0xff]
        %v5817 = vld [vmem:[#allocation10 + $0x30] sm:$0xff]
        %v5818 = vld [vmem:[#allocation10 + $0x38] sm:$0xff]
        %v5819 = vld [vmem:[#allocation10 + $0x40] sm:$0xff]
        %v5820 = vld [vmem:[#allocation10 + $0x48] sm:$0xff]
        %v5821 = vld [vmem:[#allocation10 + $0x50] sm:$0xff]
        %v5822 = vld [vmem:[#allocation10 + $0x58] sm:$0xff]
        %v5823 = vld [vmem:[#allocation10 + $0x60] sm:$0xff]
        %v5824 = vld [vmem:[#allocation10 + $0x68] sm:$0xff]
        %v5825 = vld [vmem:[#allocation10 + $0x70] sm:$0xff]
        %v5826 = vld [vmem:[#allocation10 + $0x78] sm:$0xff]
        %v5828 = vlaneseq
        %v5829 = vshrl.u32 %v5828, 7
        %v5830 = vsub.s32 0, %v5829
        %v5831 = vrot.slane %v516, %v5830
        %5833 = vmatprep.subr.mxu0 0.0
        %5834 = vmatpush1.msra.mxu0 %v5826
        %5835 = vmatprep.subr.mxu0 0.0
        %5836 = vmatpush1.msra.mxu0 %v5825
        %5837 = vmatprep.subr.mxu0 0.0
        %5838 = vmatpush1.msra.mxu0 %v5824
        %5839 = vmatprep.subr.mxu0 0.0
        %5840 = vmatpush1.msra.mxu0 %v5823
        %5841 = vmatprep.subr.mxu0 0.0
        %5842 = vmatpush1.msra.mxu0 %v5822
        %5843 = vmatprep.subr.mxu0 0.0
        %5844 = vmatpush1.msra.mxu0 %v5821
        %5845 = vmatprep.subr.mxu0 0.0
        %5846 = vmatpush1.msra.mxu0 %v5820
        %5847 = vmatprep.subr.mxu0 0.0
        %5848 = vmatpush1.msra.mxu0 %v5819
        %5849 = vmatprep.subr.mxu0 0.0
        %5850 = vmatpush1.msra.mxu0 %v5818
        %5851 = vmatprep.subr.mxu0 0.0
        %5852 = vmatpush1.msra.mxu0 %v5817
        %5853 = vmatprep.subr.mxu0 0.0
        %5854 = vmatpush1.msra.mxu0 %v5816
        %5855 = vmatprep.subr.mxu0 0.0
        %5856 = vmatpush1.msra.mxu0 %v5815
        %5857 = vmatprep.subr.mxu0 0.0
        %5858 = vmatpush1.msra.mxu0 %v5814
        %5859 = vmatprep.subr.mxu0 0.0
        %5860 = vmatpush1.msra.mxu0 %v5813
        %5861 = vmatprep.subr.mxu0 0.0
        %5862 = vmatpush1.msra.mxu0 %v5812
        %5863 = vmatprep.subr.mxu0 0.0
        %5864 = vmatpush1.msra.mxu0 %v5811
        %5865 = vmatprep.subr.mxu0 0.0
        %5866 = vmatpush2.msra.mxu0 0.0
        %5867 = vmatprep.subr.mxu0 0.0
        %5868 = vmatpush2.msra.mxu0 0.0
        %5869 = vmatprep.subr.mxu0 0.0
        %5870 = vmatpush2.msra.mxu0 0.0
        %5871 = vmatprep.subr.mxu0 0.0
        %5872 = vmatpush2.msra.mxu0 0.0
        %5873 = vmatprep.subr.mxu0 0.0
        %5874 = vmatpush2.msra.mxu0 0.0
        %5875 = vmatprep.subr.mxu0 0.0
        %5876 = vmatpush2.msra.mxu0 0.0
        %5877 = vmatprep.subr.mxu0 0.0
        %5878 = vmatpush2.msra.mxu0 0.0
        %5879 = vmatprep.subr.mxu0 0.0
        %5880 = vmatpush2.msra.mxu0 0.0
        %5881 = vmatprep.subr.mxu0 0.0
        %5882 = vmatpush2.msra.mxu0 0.0
        %5883 = vmatprep.subr.mxu0 0.0
        %5884 = vmatpush2.msra.mxu0 0.0
        %5885 = vmatprep.subr.mxu0 0.0
        %5886 = vmatpush2.msra.mxu0 0.0
        %5887 = vmatprep.subr.mxu0 0.0
        %5888 = vmatpush2.msra.mxu0 0.0
        %5889 = vmatprep.subr.mxu0 0.0
        %5890 = vmatpush2.msra.mxu0 0.0
        %5891 = vmatprep.subr.mxu0 0.0
        %5892 = vmatpush2.msra.mxu0 0.0
        %5893 = vmatprep.subr.mxu0 0.0
        %5894 = vmatpush2.msra.mxu0 0.0
        %5895 = vmatprep.subr.mxu0 0.0
        %5896 = vmatpush2.msra.mxu0 0.0
        %5897 = vmatprep.mubr.f32.mxu0 0.0
        %5898 = vmatmul.mubr.f32.gmra.mxu0 %v5795
        %v5899 = vpop.f32.mrf.mxu0
        %v5900 = vadd.f32 %v5831, %v5899
        %v5901 = vpop.f32.mrf.mxu0
        %5902 = vmatprep.mubr.f32.mxu0 0.0
        %5903 = vmatmul.mubr.f32.gmra.mxu0 %v5796
        %v5904 = vpop.f32.mrf.mxu0
        %v5905 = vadd.f32 %v5831, %v5904
        %v5906 = vpop.f32.mrf.mxu0
        %5907 = vmatprep.mubr.f32.mxu0 0.0
        %5908 = vmatmul.mubr.f32.gmra.mxu0 %v5797
        %v5909 = vpop.f32.mrf.mxu0
        %v5910 = vadd.f32 %v5831, %v5909
        %v5911 = vpop.f32.mrf.mxu0
        %5912 = vmatprep.mubr.f32.mxu0 0.0
        %5913 = vmatmul.mubr.f32.gmra.mxu0 %v5798
        %v5914 = vpop.f32.mrf.mxu0
        %v5915 = vadd.f32 %v5831, %v5914
        %v5916 = vpop.f32.mrf.mxu0
        %5917 = vmatprep.mubr.f32.mxu0 0.0
        %5918 = vmatmul.mubr.f32.gmra.mxu0 %v5799
        %v5919 = vpop.f32.mrf.mxu0
        %v5920 = vadd.f32 %v5831, %v5919
        %v5921 = vpop.f32.mrf.mxu0
        %5922 = vmatprep.mubr.f32.mxu0 0.0
        %5923 = vmatmul.mubr.f32.gmra.mxu0 %v5800
        %v5924 = vpop.f32.mrf.mxu0
        %v5925 = vadd.f32 %v5831, %v5924
        %v5926 = vpop.f32.mrf.mxu0
        %5927 = vmatprep.mubr.f32.mxu0 0.0
        %5928 = vmatmul.mubr.f32.gmra.mxu0 %v5801
        %v5929 = vpop.f32.mrf.mxu0
        %v5930 = vadd.f32 %v5831, %v5929
        %v5931 = vpop.f32.mrf.mxu0
        %5932 = vmatprep.mubr.f32.mxu0 0.0
        %5933 = vmatmul.mubr.f32.gmra.mxu0 %v5802
        %v5934 = vpop.f32.mrf.mxu0
        %v5935 = vadd.f32 %v5831, %v5934
        %v5936 = vpop.f32.mrf.mxu0
        %5937 = vmatprep.mubr.f32.mxu0 0.0
        %5938 = vmatmul.mubr.f32.gmra.mxu0 %v5803
        %v5939 = vpop.f32.mrf.mxu0
        %v5940 = vadd.f32 %v5831, %v5939
        %v5941 = vpop.f32.mrf.mxu0
        %5942 = vmatprep.mubr.f32.mxu0 0.0
        %5943 = vmatmul.mubr.f32.gmra.mxu0 %v5804
        %v5944 = vpop.f32.mrf.mxu0
        %v5945 = vadd.f32 %v5831, %v5944
        %v5946 = vpop.f32.mrf.mxu0
        %5947 = vmatprep.mubr.f32.mxu0 0.0
        %5948 = vmatmul.mubr.f32.gmra.mxu0 %v5805
        %v5949 = vpop.f32.mrf.mxu0
        %v5950 = vadd.f32 %v5831, %v5949
        %v5951 = vpop.f32.mrf.mxu0
        %5952 = vmatprep.mubr.f32.mxu0 0.0
        %5953 = vmatmul.mubr.f32.gmra.mxu0 %v5806
        %v5954 = vpop.f32.mrf.mxu0
        %v5955 = vadd.f32 %v5831, %v5954
        %v5956 = vpop.f32.mrf.mxu0
        %5957 = vmatprep.mubr.f32.mxu0 0.0
        %5958 = vmatmul.mubr.f32.gmra.mxu0 %v5807
        %v5959 = vpop.f32.mrf.mxu0
        %v5960 = vadd.f32 %v5831, %v5959
        %v5961 = vpop.f32.mrf.mxu0
        %5962 = vmatprep.mubr.f32.mxu0 0.0
        %5963 = vmatmul.mubr.f32.gmra.mxu0 %v5808
        %v5964 = vpop.f32.mrf.mxu0
        %v5965 = vadd.f32 %v5831, %v5964
        %v5966 = vpop.f32.mrf.mxu0
        %5967 = vmatprep.mubr.f32.mxu0 0.0
        %5968 = vmatmul.mubr.f32.gmra.mxu0 %v5809
        %v5969 = vpop.f32.mrf.mxu0
        %v5970 = vadd.f32 %v5831, %v5969
        %v5971 = vpop.f32.mrf.mxu0
        %5972 = vmatprep.mubr.f32.mxu0 0.0
        %5973 = vmatmul.mubr.f32.gmra.mxu0 %v5810
        %v5974 = vpop.f32.mrf.mxu0
        %v5975 = vadd.f32 %v5831, %v5974
        %v5976 = vpop.f32.mrf.mxu0
        %5977 = vdwg.mxu0
        %v5978 = vadd.f32 %v5779, %v5900
        %v5979 = vadd.f32 %v5780, %v5905
        %v5980 = vadd.f32 %v5781, %v5910
        %v5981 = vadd.f32 %v5782, %v5915
        %v5982 = vadd.f32 %v5783, %v5920
        %v5983 = vadd.f32 %v5784, %v5925
        %v5984 = vadd.f32 %v5785, %v5930
        %v5985 = vadd.f32 %v5786, %v5935
        %v5986 = vadd.f32 %v5787, %v5940
        %v5987 = vadd.f32 %v5788, %v5945
        %v5988 = vadd.f32 %v5789, %v5950
        %v5989 = vadd.f32 %v5790, %v5955
        %v5990 = vadd.f32 %v5791, %v5960
        %v5991 = vadd.f32 %v5792, %v5965
        %v5992 = vadd.f32 %v5793, %v5970
        %v5993 = vadd.f32 %v5794, %v5975
        %5994 = vst [vmem:[%s340] sm:$0xff] %v5978
        %5995 = vst [vmem:[%s340 + $0x8] sm:$0xff] %v5979
        %5996 = vst [vmem:[%s340 + $0x10] sm:$0xff] %v5980
        %5997 = vst [vmem:[%s340 + $0x18] sm:$0xff] %v5981
        %5998 = vst [vmem:[%s340 + $0x20] sm:$0xff] %v5982
        %5999 = vst [vmem:[%s340 + $0x28] sm:$0xff] %v5983
        %6000 = vst [vmem:[%s340 + $0x30] sm:$0xff] %v5984
        %6001 = vst [vmem:[%s340 + $0x38] sm:$0xff] %v5985
        %6002 = vst [vmem:[%s340 + $0x40] sm:$0xff] %v5986
        %6003 = vst [vmem:[%s340 + $0x48] sm:$0xff] %v5987
        %6004 = vst [vmem:[%s340 + $0x50] sm:$0xff] %v5988
        %6005 = vst [vmem:[%s340 + $0x58] sm:$0xff] %v5989
        %6006 = vst [vmem:[%s340 + $0x60] sm:$0xff] %v5990
        %6007 = vst [vmem:[%s340 + $0x68] sm:$0xff] %v5991
        %6008 = vst [vmem:[%s340 + $0x70] sm:$0xff] %v5992
        %6009 = vst [vmem:[%s340 + $0x78] sm:$0xff] %v5993
        %s6010 = scalar_lea.vmem [#allocation3], 192
        %v6011 = vld [vmem:[%s6010] sm:$0xff]
        %v6012 = vld [vmem:[%s6010 + $0x8] sm:$0xff]
        %v6013 = vld [vmem:[%s6010 + $0x18] sm:$0xff]
        %v6014 = vld [vmem:[%s6010 + $0x20] sm:$0xff]
        %v6015 = vld [vmem:[%s6010 + $0x30] sm:$0xff]
        %v6016 = vld [vmem:[%s6010 + $0x38] sm:$0xff]
        %v6017 = vld [vmem:[%s6010 + $0x48] sm:$0xff]
        %v6018 = vld [vmem:[%s6010 + $0x50] sm:$0xff]
        %v6019 = vld [vmem:[%s6010 + $0x60] sm:$0xff]
        %v6020 = vld [vmem:[%s6010 + $0x68] sm:$0xff]
        %v6021 = vld [vmem:[%s6010 + $0x78] sm:$0xff]
        %v6022 = vld [vmem:[%s6010 + $0x80] sm:$0xff]
        %v6023 = vld [vmem:[%s6010 + $0x90] sm:$0xff]
        %v6024 = vld [vmem:[%s6010 + $0x98] sm:$0xff]
        %v6025 = vld [vmem:[%s6010 + $0xa8] sm:$0xff]
        %v6026 = vld [vmem:[%s6010 + $0xb0] sm:$0xff]
        %v6027 = vld [vmem:[#allocation9] sm:$0xff]
        %v6028 = vld [vmem:[#allocation9 + $0x8] sm:$0xff]
        %v6029 = vld [vmem:[#allocation9 + $0x10] sm:$0xff]
        %v6030 = vld [vmem:[#allocation9 + $0x18] sm:$0xff]
        %v6031 = vld [vmem:[#allocation9 + $0x20] sm:$0xff]
        %v6032 = vld [vmem:[#allocation9 + $0x28] sm:$0xff]
        %v6033 = vld [vmem:[#allocation9 + $0x30] sm:$0xff]
        %v6034 = vld [vmem:[#allocation9 + $0x38] sm:$0xff]
        %v6035 = vld [vmem:[#allocation9 + $0x40] sm:$0xff]
        %v6036 = vld [vmem:[#allocation9 + $0x48] sm:$0xff]
        %v6037 = vld [vmem:[#allocation9 + $0x50] sm:$0xff]
        %v6038 = vld [vmem:[#allocation9 + $0x58] sm:$0xff]
        %v6039 = vld [vmem:[#allocation9 + $0x60] sm:$0xff]
        %v6040 = vld [vmem:[#allocation9 + $0x68] sm:$0xff]
        %v6041 = vld [vmem:[#allocation9 + $0x70] sm:$0xff]
        %v6042 = vld [vmem:[#allocation9 + $0x78] sm:$0xff]
        %v6043 = vld [vmem:[%s6010 + $0x1] sm:$0xff]
        %v6044 = vld [vmem:[%s6010 + $0x9] sm:$0xff]
        %v6045 = vld [vmem:[%s6010 + $0x19] sm:$0xff]
        %v6046 = vld [vmem:[%s6010 + $0x21] sm:$0xff]
        %v6047 = vld [vmem:[%s6010 + $0x31] sm:$0xff]
        %v6048 = vld [vmem:[%s6010 + $0x39] sm:$0xff]
        %v6049 = vld [vmem:[%s6010 + $0x49] sm:$0xff]
        %v6050 = vld [vmem:[%s6010 + $0x51] sm:$0xff]
        %v6051 = vld [vmem:[%s6010 + $0x61] sm:$0xff]
        %v6052 = vld [vmem:[%s6010 + $0x69] sm:$0xff]
        %v6053 = vld [vmem:[%s6010 + $0x79] sm:$0xff]
        %v6054 = vld [vmem:[%s6010 + $0x81] sm:$0xff]
        %v6055 = vld [vmem:[%s6010 + $0x91] sm:$0xff]
        %v6056 = vld [vmem:[%s6010 + $0x99] sm:$0xff]
        %v6057 = vld [vmem:[%s6010 + $0xa9] sm:$0xff]
        %v6058 = vld [vmem:[%s6010 + $0xb1] sm:$0xff]
        %v6059 = vld [vmem:[%s4091] sm:$0xff]
        %v6060 = vld [vmem:[%s4091 + $0x8] sm:$0xff]
        %v6061 = vld [vmem:[%s4091 + $0x10] sm:$0xff]
        %v6062 = vld [vmem:[%s4091 + $0x18] sm:$0xff]
        %v6063 = vld [vmem:[%s4091 + $0x20] sm:$0xff]
        %v6064 = vld [vmem:[%s4091 + $0x28] sm:$0xff]
        %v6065 = vld [vmem:[%s4091 + $0x30] sm:$0xff]
        %v6066 = vld [vmem:[%s4091 + $0x38] sm:$0xff]
        %v6067 = vld [vmem:[%s4091 + $0x40] sm:$0xff]
        %v6068 = vld [vmem:[%s4091 + $0x48] sm:$0xff]
        %v6069 = vld [vmem:[%s4091 + $0x50] sm:$0xff]
        %v6070 = vld [vmem:[%s4091 + $0x58] sm:$0xff]
        %v6071 = vld [vmem:[%s4091 + $0x60] sm:$0xff]
        %v6072 = vld [vmem:[%s4091 + $0x68] sm:$0xff]
        %v6073 = vld [vmem:[%s4091 + $0x70] sm:$0xff]
        %v6074 = vld [vmem:[%s4091 + $0x78] sm:$0xff]
        %6075 = vmatprep.subr.mxu0 0.0
        %6076 = vmatpush1.msra.mxu0 %v6074
        %6077 = vmatprep.subr.mxu0 0.0
        %6078 = vmatpush1.msra.mxu0 %v6073
        %6079 = vmatprep.subr.mxu0 0.0
        %6080 = vmatpush1.msra.mxu0 %v6072
        %6081 = vmatprep.subr.mxu0 0.0
        %6082 = vmatpush1.msra.mxu0 %v6071
        %6083 = vmatprep.subr.mxu0 0.0
        %6084 = vmatpush1.msra.mxu0 %v6070
        %6085 = vmatprep.subr.mxu0 0.0
        %6086 = vmatpush1.msra.mxu0 %v6069
        %6087 = vmatprep.subr.mxu0 0.0
        %6088 = vmatpush1.msra.mxu0 %v6068
        %6089 = vmatprep.subr.mxu0 0.0
        %6090 = vmatpush1.msra.mxu0 %v6067
        %6091 = vmatprep.subr.mxu0 0.0
        %6092 = vmatpush1.msra.mxu0 %v6066
        %6093 = vmatprep.subr.mxu0 0.0
        %6094 = vmatpush1.msra.mxu0 %v6065
        %6095 = vmatprep.subr.mxu0 0.0
        %6096 = vmatpush1.msra.mxu0 %v6064
        %6097 = vmatprep.subr.mxu0 0.0
        %6098 = vmatpush1.msra.mxu0 %v6063
        %6099 = vmatprep.subr.mxu0 0.0
        %6100 = vmatpush1.msra.mxu0 %v6062
        %6101 = vmatprep.subr.mxu0 0.0
        %6102 = vmatpush1.msra.mxu0 %v6061
        %6103 = vmatprep.subr.mxu0 0.0
        %6104 = vmatpush1.msra.mxu0 %v6060
        %6105 = vmatprep.subr.mxu0 0.0
        %6106 = vmatpush1.msra.mxu0 %v6059
        %6107 = vmatprep.subr.mxu0 0.0
        %6108 = vmatpush2.msra.mxu0 0.0
        %6109 = vmatprep.subr.mxu0 0.0
        %6110 = vmatpush2.msra.mxu0 0.0
        %6111 = vmatprep.subr.mxu0 0.0
        %6112 = vmatpush2.msra.mxu0 0.0
        %6113 = vmatprep.subr.mxu0 0.0
        %6114 = vmatpush2.msra.mxu0 0.0
        %6115 = vmatprep.subr.mxu0 0.0
        %6116 = vmatpush2.msra.mxu0 0.0
        %6117 = vmatprep.subr.mxu0 0.0
        %6118 = vmatpush2.msra.mxu0 0.0
        %6119 = vmatprep.subr.mxu0 0.0
        %6120 = vmatpush2.msra.mxu0 0.0
        %6121 = vmatprep.subr.mxu0 0.0
        %6122 = vmatpush2.msra.mxu0 0.0
        %6123 = vmatprep.subr.mxu0 0.0
        %6124 = vmatpush2.msra.mxu0 0.0
        %6125 = vmatprep.subr.mxu0 0.0
        %6126 = vmatpush2.msra.mxu0 0.0
        %6127 = vmatprep.subr.mxu0 0.0
        %6128 = vmatpush2.msra.mxu0 0.0
        %6129 = vmatprep.subr.mxu0 0.0
        %6130 = vmatpush2.msra.mxu0 0.0
        %6131 = vmatprep.subr.mxu0 0.0
        %6132 = vmatpush2.msra.mxu0 0.0
        %6133 = vmatprep.subr.mxu0 0.0
        %6134 = vmatpush2.msra.mxu0 0.0
        %6135 = vmatprep.subr.mxu0 0.0
        %6136 = vmatpush2.msra.mxu0 0.0
        %6137 = vmatprep.subr.mxu0 0.0
        %6138 = vmatpush2.msra.mxu0 0.0
        %6139 = vmatprep.mubr.f32.mxu0 0.0
        %6140 = vmatmul.mubr.f32.gmra.mxu0 %v6043
        %v6141 = vpop.f32.mrf.mxu0
        %v6142 = vadd.f32 0.0, %v6141
        %v6143 = vpop.f32.mrf.mxu0
        %6144 = vmatprep.mubr.f32.mxu0 0.0
        %6145 = vmatmul.mubr.f32.gmra.mxu0 %v6044
        %v6146 = vpop.f32.mrf.mxu0
        %v6147 = vadd.f32 0.0, %v6146
        %v6148 = vpop.f32.mrf.mxu0
        %6149 = vmatprep.mubr.f32.mxu0 0.0
        %6150 = vmatmul.mubr.f32.gmra.mxu0 %v6045
        %v6151 = vpop.f32.mrf.mxu0
        %v6152 = vadd.f32 0.0, %v6151
        %v6153 = vpop.f32.mrf.mxu0
        %6154 = vmatprep.mubr.f32.mxu0 0.0
        %6155 = vmatmul.mubr.f32.gmra.mxu0 %v6046
        %v6156 = vpop.f32.mrf.mxu0
        %v6157 = vadd.f32 0.0, %v6156
        %v6158 = vpop.f32.mrf.mxu0
        %6159 = vmatprep.mubr.f32.mxu0 0.0
        %6160 = vmatmul.mubr.f32.gmra.mxu0 %v6047
        %v6161 = vpop.f32.mrf.mxu0
        %v6162 = vadd.f32 0.0, %v6161
        %v6163 = vpop.f32.mrf.mxu0
        %6164 = vmatprep.mubr.f32.mxu0 0.0
        %6165 = vmatmul.mubr.f32.gmra.mxu0 %v6048
        %v6166 = vpop.f32.mrf.mxu0
        %v6167 = vadd.f32 0.0, %v6166
        %v6168 = vpop.f32.mrf.mxu0
        %6169 = vmatprep.mubr.f32.mxu0 0.0
        %6170 = vmatmul.mubr.f32.gmra.mxu0 %v6049
        %v6171 = vpop.f32.mrf.mxu0
        %v6172 = vadd.f32 0.0, %v6171
        %v6173 = vpop.f32.mrf.mxu0
        %6174 = vmatprep.mubr.f32.mxu0 0.0
        %6175 = vmatmul.mubr.f32.gmra.mxu0 %v6050
        %v6176 = vpop.f32.mrf.mxu0
        %v6177 = vadd.f32 0.0, %v6176
        %v6178 = vpop.f32.mrf.mxu0
        %6179 = vmatprep.mubr.f32.mxu0 0.0
        %6180 = vmatmul.mubr.f32.gmra.mxu0 %v6051
        %v6181 = vpop.f32.mrf.mxu0
        %v6182 = vadd.f32 0.0, %v6181
        %v6183 = vpop.f32.mrf.mxu0
        %6184 = vmatprep.mubr.f32.mxu0 0.0
        %6185 = vmatmul.mubr.f32.gmra.mxu0 %v6052
        %v6186 = vpop.f32.mrf.mxu0
        %v6187 = vadd.f32 0.0, %v6186
        %v6188 = vpop.f32.mrf.mxu0
        %6189 = vmatprep.mubr.f32.mxu0 0.0
        %6190 = vmatmul.mubr.f32.gmra.mxu0 %v6053
        %v6191 = vpop.f32.mrf.mxu0
        %v6192 = vadd.f32 0.0, %v6191
        %v6193 = vpop.f32.mrf.mxu0
        %6194 = vmatprep.mubr.f32.mxu0 0.0
        %6195 = vmatmul.mubr.f32.gmra.mxu0 %v6054
        %v6196 = vpop.f32.mrf.mxu0
        %v6197 = vadd.f32 0.0, %v6196
        %v6198 = vpop.f32.mrf.mxu0
        %6199 = vmatprep.mubr.f32.mxu0 0.0
        %6200 = vmatmul.mubr.f32.gmra.mxu0 %v6055
        %v6201 = vpop.f32.mrf.mxu0
        %v6202 = vadd.f32 0.0, %v6201
        %v6203 = vpop.f32.mrf.mxu0
        %6204 = vmatprep.mubr.f32.mxu0 0.0
        %6205 = vmatmul.mubr.f32.gmra.mxu0 %v6056
        %v6206 = vpop.f32.mrf.mxu0
        %v6207 = vadd.f32 0.0, %v6206
        %v6208 = vpop.f32.mrf.mxu0
        %6209 = vmatprep.mubr.f32.mxu0 0.0
        %6210 = vmatmul.mubr.f32.gmra.mxu0 %v6057
        %v6211 = vpop.f32.mrf.mxu0
        %v6212 = vadd.f32 0.0, %v6211
        %v6213 = vpop.f32.mrf.mxu0
        %6214 = vmatprep.mubr.f32.mxu0 0.0
        %6215 = vmatmul.mubr.f32.gmra.mxu0 %v6058
        %v6216 = vpop.f32.mrf.mxu0
        %v6217 = vadd.f32 0.0, %v6216
        %v6218 = vpop.f32.mrf.mxu0
        %6219 = vdwg.mxu0
        %6220 = vmatprep.subr.mxu0 0.0
        %6221 = vmatpush1.msra.mxu0 %v6042
        %6222 = vmatprep.subr.mxu0 0.0
        %6223 = vmatpush1.msra.mxu0 %v6041
        %6224 = vmatprep.subr.mxu0 0.0
        %6225 = vmatpush1.msra.mxu0 %v6040
        %6226 = vmatprep.subr.mxu0 0.0
        %6227 = vmatpush1.msra.mxu0 %v6039
        %6228 = vmatprep.subr.mxu0 0.0
        %6229 = vmatpush1.msra.mxu0 %v6038
        %6230 = vmatprep.subr.mxu0 0.0
        %6231 = vmatpush1.msra.mxu0 %v6037
        %6232 = vmatprep.subr.mxu0 0.0
        %6233 = vmatpush1.msra.mxu0 %v6036
        %6234 = vmatprep.subr.mxu0 0.0
        %6235 = vmatpush1.msra.mxu0 %v6035
        %6236 = vmatprep.subr.mxu0 0.0
        %6237 = vmatpush1.msra.mxu0 %v6034
        %6238 = vmatprep.subr.mxu0 0.0
        %6239 = vmatpush1.msra.mxu0 %v6033
        %6240 = vmatprep.subr.mxu0 0.0
        %6241 = vmatpush1.msra.mxu0 %v6032
        %6242 = vmatprep.subr.mxu0 0.0
        %6243 = vmatpush1.msra.mxu0 %v6031
        %6244 = vmatprep.subr.mxu0 0.0
        %6245 = vmatpush1.msra.mxu0 %v6030
        %6246 = vmatprep.subr.mxu0 0.0
        %6247 = vmatpush1.msra.mxu0 %v6029
        %6248 = vmatprep.subr.mxu0 0.0
        %6249 = vmatpush1.msra.mxu0 %v6028
        %6250 = vmatprep.subr.mxu0 0.0
        %6251 = vmatpush1.msra.mxu0 %v6027
        %6252 = vmatprep.subr.mxu0 0.0
        %6253 = vmatpush2.msra.mxu0 0.0
        %6254 = vmatprep.subr.mxu0 0.0
        %6255 = vmatpush2.msra.mxu0 0.0
        %6256 = vmatprep.subr.mxu0 0.0
        %6257 = vmatpush2.msra.mxu0 0.0
        %6258 = vmatprep.subr.mxu0 0.0
        %6259 = vmatpush2.msra.mxu0 0.0
        %6260 = vmatprep.subr.mxu0 0.0
        %6261 = vmatpush2.msra.mxu0 0.0
        %6262 = vmatprep.subr.mxu0 0.0
        %6263 = vmatpush2.msra.mxu0 0.0
        %6264 = vmatprep.subr.mxu0 0.0
        %6265 = vmatpush2.msra.mxu0 0.0
        %6266 = vmatprep.subr.mxu0 0.0
        %6267 = vmatpush2.msra.mxu0 0.0
        %6268 = vmatprep.subr.mxu0 0.0
        %6269 = vmatpush2.msra.mxu0 0.0
        %6270 = vmatprep.subr.mxu0 0.0
        %6271 = vmatpush2.msra.mxu0 0.0
        %6272 = vmatprep.subr.mxu0 0.0
        %6273 = vmatpush2.msra.mxu0 0.0
        %6274 = vmatprep.subr.mxu0 0.0
        %6275 = vmatpush2.msra.mxu0 0.0
        %6276 = vmatprep.subr.mxu0 0.0
        %6277 = vmatpush2.msra.mxu0 0.0
        %6278 = vmatprep.subr.mxu0 0.0
        %6279 = vmatpush2.msra.mxu0 0.0
        %6280 = vmatprep.subr.mxu0 0.0
        %6281 = vmatpush2.msra.mxu0 0.0
        %6282 = vmatprep.subr.mxu0 0.0
        %6283 = vmatpush2.msra.mxu0 0.0
        %6284 = vmatprep.mubr.f32.mxu0 0.0
        %6285 = vmatmul.mubr.f32.gmra.mxu0 %v6011
        %v6286 = vpop.f32.mrf.mxu0
        %v6287 = vadd.f32 %v6142, %v6286
        %v6288 = vpop.f32.mrf.mxu0
        %6289 = vmatprep.mubr.f32.mxu0 0.0
        %6290 = vmatmul.mubr.f32.gmra.mxu0 %v6012
        %v6291 = vpop.f32.mrf.mxu0
        %v6292 = vadd.f32 %v6147, %v6291
        %v6293 = vpop.f32.mrf.mxu0
        %6294 = vmatprep.mubr.f32.mxu0 0.0
        %6295 = vmatmul.mubr.f32.gmra.mxu0 %v6013
        %v6296 = vpop.f32.mrf.mxu0
        %v6297 = vadd.f32 %v6152, %v6296
        %v6298 = vpop.f32.mrf.mxu0
        %6299 = vmatprep.mubr.f32.mxu0 0.0
        %6300 = vmatmul.mubr.f32.gmra.mxu0 %v6014
        %v6301 = vpop.f32.mrf.mxu0
        %v6302 = vadd.f32 %v6157, %v6301
        %v6303 = vpop.f32.mrf.mxu0
        %6304 = vmatprep.mubr.f32.mxu0 0.0
        %6305 = vmatmul.mubr.f32.gmra.mxu0 %v6015
        %v6306 = vpop.f32.mrf.mxu0
        %v6307 = vadd.f32 %v6162, %v6306
        %v6308 = vpop.f32.mrf.mxu0
        %6309 = vmatprep.mubr.f32.mxu0 0.0
        %6310 = vmatmul.mubr.f32.gmra.mxu0 %v6016
        %v6311 = vpop.f32.mrf.mxu0
        %v6312 = vadd.f32 %v6167, %v6311
        %v6313 = vpop.f32.mrf.mxu0
        %6314 = vmatprep.mubr.f32.mxu0 0.0
        %6315 = vmatmul.mubr.f32.gmra.mxu0 %v6017
        %v6316 = vpop.f32.mrf.mxu0
        %v6317 = vadd.f32 %v6172, %v6316
        %v6318 = vpop.f32.mrf.mxu0
        %6319 = vmatprep.mubr.f32.mxu0 0.0
        %6320 = vmatmul.mubr.f32.gmra.mxu0 %v6018
        %v6321 = vpop.f32.mrf.mxu0
        %v6322 = vadd.f32 %v6177, %v6321
        %v6323 = vpop.f32.mrf.mxu0
        %6324 = vmatprep.mubr.f32.mxu0 0.0
        %6325 = vmatmul.mubr.f32.gmra.mxu0 %v6019
        %v6326 = vpop.f32.mrf.mxu0
        %v6327 = vadd.f32 %v6182, %v6326
        %v6328 = vpop.f32.mrf.mxu0
        %6329 = vmatprep.mubr.f32.mxu0 0.0
        %6330 = vmatmul.mubr.f32.gmra.mxu0 %v6020
        %v6331 = vpop.f32.mrf.mxu0
        %v6332 = vadd.f32 %v6187, %v6331
        %v6333 = vpop.f32.mrf.mxu0
        %6334 = vmatprep.mubr.f32.mxu0 0.0
        %6335 = vmatmul.mubr.f32.gmra.mxu0 %v6021
        %v6336 = vpop.f32.mrf.mxu0
        %v6337 = vadd.f32 %v6192, %v6336
        %v6338 = vpop.f32.mrf.mxu0
        %6339 = vmatprep.mubr.f32.mxu0 0.0
        %6340 = vmatmul.mubr.f32.gmra.mxu0 %v6022
        %v6341 = vpop.f32.mrf.mxu0
        %v6342 = vadd.f32 %v6197, %v6341
        %v6343 = vpop.f32.mrf.mxu0
        %6344 = vmatprep.mubr.f32.mxu0 0.0
        %6345 = vmatmul.mubr.f32.gmra.mxu0 %v6023
        %v6346 = vpop.f32.mrf.mxu0
        %v6347 = vadd.f32 %v6202, %v6346
        %v6348 = vpop.f32.mrf.mxu0
        %6349 = vmatprep.mubr.f32.mxu0 0.0
        %6350 = vmatmul.mubr.f32.gmra.mxu0 %v6024
        %v6351 = vpop.f32.mrf.mxu0
        %v6352 = vadd.f32 %v6207, %v6351
        %v6353 = vpop.f32.mrf.mxu0
        %6354 = vmatprep.mubr.f32.mxu0 0.0
        %6355 = vmatmul.mubr.f32.gmra.mxu0 %v6025
        %v6356 = vpop.f32.mrf.mxu0
        %v6357 = vadd.f32 %v6212, %v6356
        %v6358 = vpop.f32.mrf.mxu0
        %6359 = vmatprep.mubr.f32.mxu0 0.0
        %6360 = vmatmul.mubr.f32.gmra.mxu0 %v6026
        %v6361 = vpop.f32.mrf.mxu0
        %v6362 = vadd.f32 %v6217, %v6361
        %v6363 = vpop.f32.mrf.mxu0
        %6364 = vdwg.mxu0
        %v6365 = vld [vmem:[%s6010 + $0x2] sm:$0xff]
        %v6366 = vld [vmem:[%s6010 + $0xa] sm:$0xff]
        %v6367 = vld [vmem:[%s6010 + $0x1a] sm:$0xff]
        %v6368 = vld [vmem:[%s6010 + $0x22] sm:$0xff]
        %v6369 = vld [vmem:[%s6010 + $0x32] sm:$0xff]
        %v6370 = vld [vmem:[%s6010 + $0x3a] sm:$0xff]
        %v6371 = vld [vmem:[%s6010 + $0x4a] sm:$0xff]
        %v6372 = vld [vmem:[%s6010 + $0x52] sm:$0xff]
        %v6373 = vld [vmem:[%s6010 + $0x62] sm:$0xff]
        %v6374 = vld [vmem:[%s6010 + $0x6a] sm:$0xff]
        %v6375 = vld [vmem:[%s6010 + $0x7a] sm:$0xff]
        %v6376 = vld [vmem:[%s6010 + $0x82] sm:$0xff]
        %v6377 = vld [vmem:[%s6010 + $0x92] sm:$0xff]
        %v6378 = vld [vmem:[%s6010 + $0x9a] sm:$0xff]
        %v6379 = vld [vmem:[%s6010 + $0xaa] sm:$0xff]
        %v6380 = vld [vmem:[%s6010 + $0xb2] sm:$0xff]
        %v6381 = vld [vmem:[%s4414] sm:$0xff]
        %v6382 = vld [vmem:[%s4414 + $0x8] sm:$0xff]
        %v6383 = vld [vmem:[%s4414 + $0x10] sm:$0xff]
        %v6384 = vld [vmem:[%s4414 + $0x18] sm:$0xff]
        %v6385 = vld [vmem:[%s4414 + $0x20] sm:$0xff]
        %v6386 = vld [vmem:[%s4414 + $0x28] sm:$0xff]
        %v6387 = vld [vmem:[%s4414 + $0x30] sm:$0xff]
        %v6388 = vld [vmem:[%s4414 + $0x38] sm:$0xff]
        %v6389 = vld [vmem:[%s4414 + $0x40] sm:$0xff]
        %v6390 = vld [vmem:[%s4414 + $0x48] sm:$0xff]
        %v6391 = vld [vmem:[%s4414 + $0x50] sm:$0xff]
        %v6392 = vld [vmem:[%s4414 + $0x58] sm:$0xff]
        %v6393 = vld [vmem:[%s4414 + $0x60] sm:$0xff]
        %v6394 = vld [vmem:[%s4414 + $0x68] sm:$0xff]
        %v6395 = vld [vmem:[%s4414 + $0x70] sm:$0xff]
        %v6396 = vld [vmem:[%s4414 + $0x78] sm:$0xff]
        %6397 = vmatprep.subr.mxu0 0.0
        %6398 = vmatpush1.msra.mxu0 %v6396
        %6399 = vmatprep.subr.mxu0 0.0
        %6400 = vmatpush1.msra.mxu0 %v6395
        %6401 = vmatprep.subr.mxu0 0.0
        %6402 = vmatpush1.msra.mxu0 %v6394
        %6403 = vmatprep.subr.mxu0 0.0
        %6404 = vmatpush1.msra.mxu0 %v6393
        %6405 = vmatprep.subr.mxu0 0.0
        %6406 = vmatpush1.msra.mxu0 %v6392
        %6407 = vmatprep.subr.mxu0 0.0
        %6408 = vmatpush1.msra.mxu0 %v6391
        %6409 = vmatprep.subr.mxu0 0.0
        %6410 = vmatpush1.msra.mxu0 %v6390
        %6411 = vmatprep.subr.mxu0 0.0
        %6412 = vmatpush1.msra.mxu0 %v6389
        %6413 = vmatprep.subr.mxu0 0.0
        %6414 = vmatpush1.msra.mxu0 %v6388
        %6415 = vmatprep.subr.mxu0 0.0
        %6416 = vmatpush1.msra.mxu0 %v6387
        %6417 = vmatprep.subr.mxu0 0.0
        %6418 = vmatpush1.msra.mxu0 %v6386
        %6419 = vmatprep.subr.mxu0 0.0
        %6420 = vmatpush1.msra.mxu0 %v6385
        %6421 = vmatprep.subr.mxu0 0.0
        %6422 = vmatpush1.msra.mxu0 %v6384
        %6423 = vmatprep.subr.mxu0 0.0
        %6424 = vmatpush1.msra.mxu0 %v6383
        %6425 = vmatprep.subr.mxu0 0.0
        %6426 = vmatpush1.msra.mxu0 %v6382
        %6427 = vmatprep.subr.mxu0 0.0
        %6428 = vmatpush1.msra.mxu0 %v6381
        %6429 = vmatprep.subr.mxu0 0.0
        %6430 = vmatpush2.msra.mxu0 0.0
        %6431 = vmatprep.subr.mxu0 0.0
        %6432 = vmatpush2.msra.mxu0 0.0
        %6433 = vmatprep.subr.mxu0 0.0
        %6434 = vmatpush2.msra.mxu0 0.0
        %6435 = vmatprep.subr.mxu0 0.0
        %6436 = vmatpush2.msra.mxu0 0.0
        %6437 = vmatprep.subr.mxu0 0.0
        %6438 = vmatpush2.msra.mxu0 0.0
        %6439 = vmatprep.subr.mxu0 0.0
        %6440 = vmatpush2.msra.mxu0 0.0
        %6441 = vmatprep.subr.mxu0 0.0
        %6442 = vmatpush2.msra.mxu0 0.0
        %6443 = vmatprep.subr.mxu0 0.0
        %6444 = vmatpush2.msra.mxu0 0.0
        %6445 = vmatprep.subr.mxu0 0.0
        %6446 = vmatpush2.msra.mxu0 0.0
        %6447 = vmatprep.subr.mxu0 0.0
        %6448 = vmatpush2.msra.mxu0 0.0
        %6449 = vmatprep.subr.mxu0 0.0
        %6450 = vmatpush2.msra.mxu0 0.0
        %6451 = vmatprep.subr.mxu0 0.0
        %6452 = vmatpush2.msra.mxu0 0.0
        %6453 = vmatprep.subr.mxu0 0.0
        %6454 = vmatpush2.msra.mxu0 0.0
        %6455 = vmatprep.subr.mxu0 0.0
        %6456 = vmatpush2.msra.mxu0 0.0
        %6457 = vmatprep.subr.mxu0 0.0
        %6458 = vmatpush2.msra.mxu0 0.0
        %6459 = vmatprep.subr.mxu0 0.0
        %6460 = vmatpush2.msra.mxu0 0.0
        %6461 = vmatprep.mubr.f32.mxu0 0.0
        %6462 = vmatmul.mubr.f32.gmra.mxu0 %v6365
        %v6463 = vpop.f32.mrf.mxu0
        %v6464 = vadd.f32 0.0, %v6463
        %v6465 = vpop.f32.mrf.mxu0
        %6466 = vmatprep.mubr.f32.mxu0 0.0
        %6467 = vmatmul.mubr.f32.gmra.mxu0 %v6366
        %v6468 = vpop.f32.mrf.mxu0
        %v6469 = vadd.f32 0.0, %v6468
        %v6470 = vpop.f32.mrf.mxu0
        %6471 = vmatprep.mubr.f32.mxu0 0.0
        %6472 = vmatmul.mubr.f32.gmra.mxu0 %v6367
        %v6473 = vpop.f32.mrf.mxu0
        %v6474 = vadd.f32 0.0, %v6473
        %v6475 = vpop.f32.mrf.mxu0
        %6476 = vmatprep.mubr.f32.mxu0 0.0
        %6477 = vmatmul.mubr.f32.gmra.mxu0 %v6368
        %v6478 = vpop.f32.mrf.mxu0
        %v6479 = vadd.f32 0.0, %v6478
        %v6480 = vpop.f32.mrf.mxu0
        %6481 = vmatprep.mubr.f32.mxu0 0.0
        %6482 = vmatmul.mubr.f32.gmra.mxu0 %v6369
        %v6483 = vpop.f32.mrf.mxu0
        %v6484 = vadd.f32 0.0, %v6483
        %v6485 = vpop.f32.mrf.mxu0
        %6486 = vmatprep.mubr.f32.mxu0 0.0
        %6487 = vmatmul.mubr.f32.gmra.mxu0 %v6370
        %v6488 = vpop.f32.mrf.mxu0
        %v6489 = vadd.f32 0.0, %v6488
        %v6490 = vpop.f32.mrf.mxu0
        %6491 = vmatprep.mubr.f32.mxu0 0.0
        %6492 = vmatmul.mubr.f32.gmra.mxu0 %v6371
        %v6493 = vpop.f32.mrf.mxu0
        %v6494 = vadd.f32 0.0, %v6493
        %v6495 = vpop.f32.mrf.mxu0
        %6496 = vmatprep.mubr.f32.mxu0 0.0
        %6497 = vmatmul.mubr.f32.gmra.mxu0 %v6372
        %v6498 = vpop.f32.mrf.mxu0
        %v6499 = vadd.f32 0.0, %v6498
        %v6500 = vpop.f32.mrf.mxu0
        %6501 = vmatprep.mubr.f32.mxu0 0.0
        %6502 = vmatmul.mubr.f32.gmra.mxu0 %v6373
        %v6503 = vpop.f32.mrf.mxu0
        %v6504 = vadd.f32 0.0, %v6503
        %v6505 = vpop.f32.mrf.mxu0
        %6506 = vmatprep.mubr.f32.mxu0 0.0
        %6507 = vmatmul.mubr.f32.gmra.mxu0 %v6374
        %v6508 = vpop.f32.mrf.mxu0
        %v6509 = vadd.f32 0.0, %v6508
        %v6510 = vpop.f32.mrf.mxu0
        %6511 = vmatprep.mubr.f32.mxu0 0.0
        %6512 = vmatmul.mubr.f32.gmra.mxu0 %v6375
        %v6513 = vpop.f32.mrf.mxu0
        %v6514 = vadd.f32 0.0, %v6513
        %v6515 = vpop.f32.mrf.mxu0
        %6516 = vmatprep.mubr.f32.mxu0 0.0
        %6517 = vmatmul.mubr.f32.gmra.mxu0 %v6376
        %v6518 = vpop.f32.mrf.mxu0
        %v6519 = vadd.f32 0.0, %v6518
        %v6520 = vpop.f32.mrf.mxu0
        %6521 = vmatprep.mubr.f32.mxu0 0.0
        %6522 = vmatmul.mubr.f32.gmra.mxu0 %v6377
        %v6523 = vpop.f32.mrf.mxu0
        %v6524 = vadd.f32 0.0, %v6523
        %v6525 = vpop.f32.mrf.mxu0
        %6526 = vmatprep.mubr.f32.mxu0 0.0
        %6527 = vmatmul.mubr.f32.gmra.mxu0 %v6378
        %v6528 = vpop.f32.mrf.mxu0
        %v6529 = vadd.f32 0.0, %v6528
        %v6530 = vpop.f32.mrf.mxu0
        %6531 = vmatprep.mubr.f32.mxu0 0.0
        %6532 = vmatmul.mubr.f32.gmra.mxu0 %v6379
        %v6533 = vpop.f32.mrf.mxu0
        %v6534 = vadd.f32 0.0, %v6533
        %v6535 = vpop.f32.mrf.mxu0
        %6536 = vmatprep.mubr.f32.mxu0 0.0
        %6537 = vmatmul.mubr.f32.gmra.mxu0 %v6380
        %v6538 = vpop.f32.mrf.mxu0
        %v6539 = vadd.f32 0.0, %v6538
        %v6540 = vpop.f32.mrf.mxu0
        %6541 = vdwg.mxu0
        %v6542 = vadd.f32 %v6287, %v6464
        %v6543 = vadd.f32 %v6292, %v6469
        %v6544 = vadd.f32 %v6297, %v6474
        %v6545 = vadd.f32 %v6302, %v6479
        %v6546 = vadd.f32 %v6307, %v6484
        %v6547 = vadd.f32 %v6312, %v6489
        %v6548 = vadd.f32 %v6317, %v6494
        %v6549 = vadd.f32 %v6322, %v6499
        %v6550 = vadd.f32 %v6327, %v6504
        %v6551 = vadd.f32 %v6332, %v6509
        %v6552 = vadd.f32 %v6337, %v6514
        %v6553 = vadd.f32 %v6342, %v6519
        %v6554 = vadd.f32 %v6347, %v6524
        %v6555 = vadd.f32 %v6352, %v6529
        %v6556 = vadd.f32 %v6357, %v6534
        %v6557 = vadd.f32 %v6362, %v6539
        %v6558 = vld [vmem:[%s4026] sm:$0xff]
        %v6559 = vld [vmem:[%s4026 + $0x8] sm:$0xff]
        %v6560 = vld [vmem:[%s4026 + $0x18] sm:$0xff]
        %v6561 = vld [vmem:[%s4026 + $0x20] sm:$0xff]
        %v6562 = vld [vmem:[%s4026 + $0x30] sm:$0xff]
        %v6563 = vld [vmem:[%s4026 + $0x38] sm:$0xff]
        %v6564 = vld [vmem:[%s4026 + $0x48] sm:$0xff]
        %v6565 = vld [vmem:[%s4026 + $0x50] sm:$0xff]
        %v6566 = vld [vmem:[%s4026 + $0x60] sm:$0xff]
        %v6567 = vld [vmem:[%s4026 + $0x68] sm:$0xff]
        %v6568 = vld [vmem:[%s4026 + $0x78] sm:$0xff]
        %v6569 = vld [vmem:[%s4026 + $0x80] sm:$0xff]
        %v6570 = vld [vmem:[%s4026 + $0x90] sm:$0xff]
        %v6571 = vld [vmem:[%s4026 + $0x98] sm:$0xff]
        %v6572 = vld [vmem:[%s4026 + $0xa8] sm:$0xff]
        %v6573 = vld [vmem:[%s4026 + $0xb0] sm:$0xff]
        %v6574 = vld [vmem:[%s4608] sm:$0xff]
        %v6575 = vld [vmem:[%s4608 + $0x8] sm:$0xff]
        %v6576 = vld [vmem:[%s4608 + $0x10] sm:$0xff]
        %v6577 = vld [vmem:[%s4608 + $0x18] sm:$0xff]
        %v6578 = vld [vmem:[%s4608 + $0x20] sm:$0xff]
        %v6579 = vld [vmem:[%s4608 + $0x28] sm:$0xff]
        %v6580 = vld [vmem:[%s4608 + $0x30] sm:$0xff]
        %v6581 = vld [vmem:[%s4608 + $0x38] sm:$0xff]
        %v6582 = vld [vmem:[%s4608 + $0x40] sm:$0xff]
        %v6583 = vld [vmem:[%s4608 + $0x48] sm:$0xff]
        %v6584 = vld [vmem:[%s4608 + $0x50] sm:$0xff]
        %v6585 = vld [vmem:[%s4608 + $0x58] sm:$0xff]
        %v6586 = vld [vmem:[%s4608 + $0x60] sm:$0xff]
        %v6587 = vld [vmem:[%s4608 + $0x68] sm:$0xff]
        %v6588 = vld [vmem:[%s4608 + $0x70] sm:$0xff]
        %v6589 = vld [vmem:[%s4608 + $0x78] sm:$0xff]
        %6590 = vmatprep.subr.mxu0 0.0
        %6591 = vmatpush1.msra.mxu0 %v6589
        %6592 = vmatprep.subr.mxu0 0.0
        %6593 = vmatpush1.msra.mxu0 %v6588
        %6594 = vmatprep.subr.mxu0 0.0
        %6595 = vmatpush1.msra.mxu0 %v6587
        %6596 = vmatprep.subr.mxu0 0.0
        %6597 = vmatpush1.msra.mxu0 %v6586
        %6598 = vmatprep.subr.mxu0 0.0
        %6599 = vmatpush1.msra.mxu0 %v6585
        %6600 = vmatprep.subr.mxu0 0.0
        %6601 = vmatpush1.msra.mxu0 %v6584
        %6602 = vmatprep.subr.mxu0 0.0
        %6603 = vmatpush1.msra.mxu0 %v6583
        %6604 = vmatprep.subr.mxu0 0.0
        %6605 = vmatpush1.msra.mxu0 %v6582
        %6606 = vmatprep.subr.mxu0 0.0
        %6607 = vmatpush1.msra.mxu0 %v6581
        %6608 = vmatprep.subr.mxu0 0.0
        %6609 = vmatpush1.msra.mxu0 %v6580
        %6610 = vmatprep.subr.mxu0 0.0
        %6611 = vmatpush1.msra.mxu0 %v6579
        %6612 = vmatprep.subr.mxu0 0.0
        %6613 = vmatpush1.msra.mxu0 %v6578
        %6614 = vmatprep.subr.mxu0 0.0
        %6615 = vmatpush1.msra.mxu0 %v6577
        %6616 = vmatprep.subr.mxu0 0.0
        %6617 = vmatpush1.msra.mxu0 %v6576
        %6618 = vmatprep.subr.mxu0 0.0
        %6619 = vmatpush1.msra.mxu0 %v6575
        %6620 = vmatprep.subr.mxu0 0.0
        %6621 = vmatpush1.msra.mxu0 %v6574
        %6622 = vmatprep.subr.mxu0 0.0
        %6623 = vmatpush2.msra.mxu0 0.0
        %6624 = vmatprep.subr.mxu0 0.0
        %6625 = vmatpush2.msra.mxu0 0.0
        %6626 = vmatprep.subr.mxu0 0.0
        %6627 = vmatpush2.msra.mxu0 0.0
        %6628 = vmatprep.subr.mxu0 0.0
        %6629 = vmatpush2.msra.mxu0 0.0
        %6630 = vmatprep.subr.mxu0 0.0
        %6631 = vmatpush2.msra.mxu0 0.0
        %6632 = vmatprep.subr.mxu0 0.0
        %6633 = vmatpush2.msra.mxu0 0.0
        %6634 = vmatprep.subr.mxu0 0.0
        %6635 = vmatpush2.msra.mxu0 0.0
        %6636 = vmatprep.subr.mxu0 0.0
        %6637 = vmatpush2.msra.mxu0 0.0
        %6638 = vmatprep.subr.mxu0 0.0
        %6639 = vmatpush2.msra.mxu0 0.0
        %6640 = vmatprep.subr.mxu0 0.0
        %6641 = vmatpush2.msra.mxu0 0.0
        %6642 = vmatprep.subr.mxu0 0.0
        %6643 = vmatpush2.msra.mxu0 0.0
        %6644 = vmatprep.subr.mxu0 0.0
        %6645 = vmatpush2.msra.mxu0 0.0
        %6646 = vmatprep.subr.mxu0 0.0
        %6647 = vmatpush2.msra.mxu0 0.0
        %6648 = vmatprep.subr.mxu0 0.0
        %6649 = vmatpush2.msra.mxu0 0.0
        %6650 = vmatprep.subr.mxu0 0.0
        %6651 = vmatpush2.msra.mxu0 0.0
        %6652 = vmatprep.subr.mxu0 0.0
        %6653 = vmatpush2.msra.mxu0 0.0
        %6654 = vmatprep.mubr.f32.mxu0 0.0
        %6655 = vmatmul.mubr.f32.gmra.mxu0 %v6558
        %v6656 = vpop.f32.mrf.mxu0
        %v6657 = vadd.f32 0.0, %v6656
        %v6658 = vpop.f32.mrf.mxu0
        %6659 = vmatprep.mubr.f32.mxu0 0.0
        %6660 = vmatmul.mubr.f32.gmra.mxu0 %v6559
        %v6661 = vpop.f32.mrf.mxu0
        %v6662 = vadd.f32 0.0, %v6661
        %v6663 = vpop.f32.mrf.mxu0
        %6664 = vmatprep.mubr.f32.mxu0 0.0
        %6665 = vmatmul.mubr.f32.gmra.mxu0 %v6560
        %v6666 = vpop.f32.mrf.mxu0
        %v6667 = vadd.f32 0.0, %v6666
        %v6668 = vpop.f32.mrf.mxu0
        %6669 = vmatprep.mubr.f32.mxu0 0.0
        %6670 = vmatmul.mubr.f32.gmra.mxu0 %v6561
        %v6671 = vpop.f32.mrf.mxu0
        %v6672 = vadd.f32 0.0, %v6671
        %v6673 = vpop.f32.mrf.mxu0
        %6674 = vmatprep.mubr.f32.mxu0 0.0
        %6675 = vmatmul.mubr.f32.gmra.mxu0 %v6562
        %v6676 = vpop.f32.mrf.mxu0
        %v6677 = vadd.f32 0.0, %v6676
        %v6678 = vpop.f32.mrf.mxu0
        %6679 = vmatprep.mubr.f32.mxu0 0.0
        %6680 = vmatmul.mubr.f32.gmra.mxu0 %v6563
        %v6681 = vpop.f32.mrf.mxu0
        %v6682 = vadd.f32 0.0, %v6681
        %v6683 = vpop.f32.mrf.mxu0
        %6684 = vmatprep.mubr.f32.mxu0 0.0
        %6685 = vmatmul.mubr.f32.gmra.mxu0 %v6564
        %v6686 = vpop.f32.mrf.mxu0
        %v6687 = vadd.f32 0.0, %v6686
        %v6688 = vpop.f32.mrf.mxu0
        %6689 = vmatprep.mubr.f32.mxu0 0.0
        %6690 = vmatmul.mubr.f32.gmra.mxu0 %v6565
        %v6691 = vpop.f32.mrf.mxu0
        %v6692 = vadd.f32 0.0, %v6691
        %v6693 = vpop.f32.mrf.mxu0
        %6694 = vmatprep.mubr.f32.mxu0 0.0
        %6695 = vmatmul.mubr.f32.gmra.mxu0 %v6566
        %v6696 = vpop.f32.mrf.mxu0
        %v6697 = vadd.f32 0.0, %v6696
        %v6698 = vpop.f32.mrf.mxu0
        %6699 = vmatprep.mubr.f32.mxu0 0.0
        %6700 = vmatmul.mubr.f32.gmra.mxu0 %v6567
        %v6701 = vpop.f32.mrf.mxu0
        %v6702 = vadd.f32 0.0, %v6701
        %v6703 = vpop.f32.mrf.mxu0
        %6704 = vmatprep.mubr.f32.mxu0 0.0
        %6705 = vmatmul.mubr.f32.gmra.mxu0 %v6568
        %v6706 = vpop.f32.mrf.mxu0
        %v6707 = vadd.f32 0.0, %v6706
        %v6708 = vpop.f32.mrf.mxu0
        %6709 = vmatprep.mubr.f32.mxu0 0.0
        %6710 = vmatmul.mubr.f32.gmra.mxu0 %v6569
        %v6711 = vpop.f32.mrf.mxu0
        %v6712 = vadd.f32 0.0, %v6711
        %v6713 = vpop.f32.mrf.mxu0
        %6714 = vmatprep.mubr.f32.mxu0 0.0
        %6715 = vmatmul.mubr.f32.gmra.mxu0 %v6570
        %v6716 = vpop.f32.mrf.mxu0
        %v6717 = vadd.f32 0.0, %v6716
        %v6718 = vpop.f32.mrf.mxu0
        %6719 = vmatprep.mubr.f32.mxu0 0.0
        %6720 = vmatmul.mubr.f32.gmra.mxu0 %v6571
        %v6721 = vpop.f32.mrf.mxu0
        %v6722 = vadd.f32 0.0, %v6721
        %v6723 = vpop.f32.mrf.mxu0
        %6724 = vmatprep.mubr.f32.mxu0 0.0
        %6725 = vmatmul.mubr.f32.gmra.mxu0 %v6572
        %v6726 = vpop.f32.mrf.mxu0
        %v6727 = vadd.f32 0.0, %v6726
        %v6728 = vpop.f32.mrf.mxu0
        %6729 = vmatprep.mubr.f32.mxu0 0.0
        %6730 = vmatmul.mubr.f32.gmra.mxu0 %v6573
        %v6731 = vpop.f32.mrf.mxu0
        %v6732 = vadd.f32 0.0, %v6731
        %v6733 = vpop.f32.mrf.mxu0
        %6734 = vdwg.mxu0
        %v6735 = vadd.f32 %v6542, %v6657
        %v6736 = vadd.f32 %v6543, %v6662
        %v6737 = vadd.f32 %v6544, %v6667
        %v6738 = vadd.f32 %v6545, %v6672
        %v6739 = vadd.f32 %v6546, %v6677
        %v6740 = vadd.f32 %v6547, %v6682
        %v6741 = vadd.f32 %v6548, %v6687
        %v6742 = vadd.f32 %v6549, %v6692
        %v6743 = vadd.f32 %v6550, %v6697
        %v6744 = vadd.f32 %v6551, %v6702
        %v6745 = vadd.f32 %v6552, %v6707
        %v6746 = vadd.f32 %v6553, %v6712
        %v6747 = vadd.f32 %v6554, %v6717
        %v6748 = vadd.f32 %v6555, %v6722
        %v6749 = vadd.f32 %v6556, %v6727
        %v6750 = vadd.f32 %v6557, %v6732
        %v6751 = vld [vmem:[%s4026 + $0x1] sm:$0xff]
        %v6752 = vld [vmem:[%s4026 + $0x9] sm:$0xff]
        %v6753 = vld [vmem:[%s4026 + $0x19] sm:$0xff]
        %v6754 = vld [vmem:[%s4026 + $0x21] sm:$0xff]
        %v6755 = vld [vmem:[%s4026 + $0x31] sm:$0xff]
        %v6756 = vld [vmem:[%s4026 + $0x39] sm:$0xff]
        %v6757 = vld [vmem:[%s4026 + $0x49] sm:$0xff]
        %v6758 = vld [vmem:[%s4026 + $0x51] sm:$0xff]
        %v6759 = vld [vmem:[%s4026 + $0x61] sm:$0xff]
        %v6760 = vld [vmem:[%s4026 + $0x69] sm:$0xff]
        %v6761 = vld [vmem:[%s4026 + $0x79] sm:$0xff]
        %v6762 = vld [vmem:[%s4026 + $0x81] sm:$0xff]
        %v6763 = vld [vmem:[%s4026 + $0x91] sm:$0xff]
        %v6764 = vld [vmem:[%s4026 + $0x99] sm:$0xff]
        %v6765 = vld [vmem:[%s4026 + $0xa9] sm:$0xff]
        %v6766 = vld [vmem:[%s4026 + $0xb1] sm:$0xff]
        %v6767 = vld [vmem:[%s4802] sm:$0xff]
        %v6768 = vld [vmem:[%s4802 + $0x8] sm:$0xff]
        %v6769 = vld [vmem:[%s4802 + $0x10] sm:$0xff]
        %v6770 = vld [vmem:[%s4802 + $0x18] sm:$0xff]
        %v6771 = vld [vmem:[%s4802 + $0x20] sm:$0xff]
        %v6772 = vld [vmem:[%s4802 + $0x28] sm:$0xff]
        %v6773 = vld [vmem:[%s4802 + $0x30] sm:$0xff]
        %v6774 = vld [vmem:[%s4802 + $0x38] sm:$0xff]
        %v6775 = vld [vmem:[%s4802 + $0x40] sm:$0xff]
        %v6776 = vld [vmem:[%s4802 + $0x48] sm:$0xff]
        %v6777 = vld [vmem:[%s4802 + $0x50] sm:$0xff]
        %v6778 = vld [vmem:[%s4802 + $0x58] sm:$0xff]
        %v6779 = vld [vmem:[%s4802 + $0x60] sm:$0xff]
        %v6780 = vld [vmem:[%s4802 + $0x68] sm:$0xff]
        %v6781 = vld [vmem:[%s4802 + $0x70] sm:$0xff]
        %v6782 = vld [vmem:[%s4802 + $0x78] sm:$0xff]
        %6783 = vmatprep.subr.mxu0 0.0
        %6784 = vmatpush1.msra.mxu0 %v6782
        %6785 = vmatprep.subr.mxu0 0.0
        %6786 = vmatpush1.msra.mxu0 %v6781
        %6787 = vmatprep.subr.mxu0 0.0
        %6788 = vmatpush1.msra.mxu0 %v6780
        %6789 = vmatprep.subr.mxu0 0.0
        %6790 = vmatpush1.msra.mxu0 %v6779
        %6791 = vmatprep.subr.mxu0 0.0
        %6792 = vmatpush1.msra.mxu0 %v6778
        %6793 = vmatprep.subr.mxu0 0.0
        %6794 = vmatpush1.msra.mxu0 %v6777
        %6795 = vmatprep.subr.mxu0 0.0
        %6796 = vmatpush1.msra.mxu0 %v6776
        %6797 = vmatprep.subr.mxu0 0.0
        %6798 = vmatpush1.msra.mxu0 %v6775
        %6799 = vmatprep.subr.mxu0 0.0
        %6800 = vmatpush1.msra.mxu0 %v6774
        %6801 = vmatprep.subr.mxu0 0.0
        %6802 = vmatpush1.msra.mxu0 %v6773
        %6803 = vmatprep.subr.mxu0 0.0
        %6804 = vmatpush1.msra.mxu0 %v6772
        %6805 = vmatprep.subr.mxu0 0.0
        %6806 = vmatpush1.msra.mxu0 %v6771
        %6807 = vmatprep.subr.mxu0 0.0
        %6808 = vmatpush1.msra.mxu0 %v6770
        %6809 = vmatprep.subr.mxu0 0.0
        %6810 = vmatpush1.msra.mxu0 %v6769
        %6811 = vmatprep.subr.mxu0 0.0
        %6812 = vmatpush1.msra.mxu0 %v6768
        %6813 = vmatprep.subr.mxu0 0.0
        %6814 = vmatpush1.msra.mxu0 %v6767
        %6815 = vmatprep.subr.mxu0 0.0
        %6816 = vmatpush2.msra.mxu0 0.0
        %6817 = vmatprep.subr.mxu0 0.0
        %6818 = vmatpush2.msra.mxu0 0.0
        %6819 = vmatprep.subr.mxu0 0.0
        %6820 = vmatpush2.msra.mxu0 0.0
        %6821 = vmatprep.subr.mxu0 0.0
        %6822 = vmatpush2.msra.mxu0 0.0
        %6823 = vmatprep.subr.mxu0 0.0
        %6824 = vmatpush2.msra.mxu0 0.0
        %6825 = vmatprep.subr.mxu0 0.0
        %6826 = vmatpush2.msra.mxu0 0.0
        %6827 = vmatprep.subr.mxu0 0.0
        %6828 = vmatpush2.msra.mxu0 0.0
        %6829 = vmatprep.subr.mxu0 0.0
        %6830 = vmatpush2.msra.mxu0 0.0
        %6831 = vmatprep.subr.mxu0 0.0
        %6832 = vmatpush2.msra.mxu0 0.0
        %6833 = vmatprep.subr.mxu0 0.0
        %6834 = vmatpush2.msra.mxu0 0.0
        %6835 = vmatprep.subr.mxu0 0.0
        %6836 = vmatpush2.msra.mxu0 0.0
        %6837 = vmatprep.subr.mxu0 0.0
        %6838 = vmatpush2.msra.mxu0 0.0
        %6839 = vmatprep.subr.mxu0 0.0
        %6840 = vmatpush2.msra.mxu0 0.0
        %6841 = vmatprep.subr.mxu0 0.0
        %6842 = vmatpush2.msra.mxu0 0.0
        %6843 = vmatprep.subr.mxu0 0.0
        %6844 = vmatpush2.msra.mxu0 0.0
        %6845 = vmatprep.subr.mxu0 0.0
        %6846 = vmatpush2.msra.mxu0 0.0
        %6847 = vmatprep.mubr.f32.mxu0 0.0
        %6848 = vmatmul.mubr.f32.gmra.mxu0 %v6751
        %v6849 = vpop.f32.mrf.mxu0
        %v6850 = vadd.f32 0.0, %v6849
        %v6851 = vpop.f32.mrf.mxu0
        %6852 = vmatprep.mubr.f32.mxu0 0.0
        %6853 = vmatmul.mubr.f32.gmra.mxu0 %v6752
        %v6854 = vpop.f32.mrf.mxu0
        %v6855 = vadd.f32 0.0, %v6854
        %v6856 = vpop.f32.mrf.mxu0
        %6857 = vmatprep.mubr.f32.mxu0 0.0
        %6858 = vmatmul.mubr.f32.gmra.mxu0 %v6753
        %v6859 = vpop.f32.mrf.mxu0
        %v6860 = vadd.f32 0.0, %v6859
        %v6861 = vpop.f32.mrf.mxu0
        %6862 = vmatprep.mubr.f32.mxu0 0.0
        %6863 = vmatmul.mubr.f32.gmra.mxu0 %v6754
        %v6864 = vpop.f32.mrf.mxu0
        %v6865 = vadd.f32 0.0, %v6864
        %v6866 = vpop.f32.mrf.mxu0
        %6867 = vmatprep.mubr.f32.mxu0 0.0
        %6868 = vmatmul.mubr.f32.gmra.mxu0 %v6755
        %v6869 = vpop.f32.mrf.mxu0
        %v6870 = vadd.f32 0.0, %v6869
        %v6871 = vpop.f32.mrf.mxu0
        %6872 = vmatprep.mubr.f32.mxu0 0.0
        %6873 = vmatmul.mubr.f32.gmra.mxu0 %v6756
        %v6874 = vpop.f32.mrf.mxu0
        %v6875 = vadd.f32 0.0, %v6874
        %v6876 = vpop.f32.mrf.mxu0
        %6877 = vmatprep.mubr.f32.mxu0 0.0
        %6878 = vmatmul.mubr.f32.gmra.mxu0 %v6757
        %v6879 = vpop.f32.mrf.mxu0
        %v6880 = vadd.f32 0.0, %v6879
        %v6881 = vpop.f32.mrf.mxu0
        %6882 = vmatprep.mubr.f32.mxu0 0.0
        %6883 = vmatmul.mubr.f32.gmra.mxu0 %v6758
        %v6884 = vpop.f32.mrf.mxu0
        %v6885 = vadd.f32 0.0, %v6884
        %v6886 = vpop.f32.mrf.mxu0
        %6887 = vmatprep.mubr.f32.mxu0 0.0
        %6888 = vmatmul.mubr.f32.gmra.mxu0 %v6759
        %v6889 = vpop.f32.mrf.mxu0
        %v6890 = vadd.f32 0.0, %v6889
        %v6891 = vpop.f32.mrf.mxu0
        %6892 = vmatprep.mubr.f32.mxu0 0.0
        %6893 = vmatmul.mubr.f32.gmra.mxu0 %v6760
        %v6894 = vpop.f32.mrf.mxu0
        %v6895 = vadd.f32 0.0, %v6894
        %v6896 = vpop.f32.mrf.mxu0
        %6897 = vmatprep.mubr.f32.mxu0 0.0
        %6898 = vmatmul.mubr.f32.gmra.mxu0 %v6761
        %v6899 = vpop.f32.mrf.mxu0
        %v6900 = vadd.f32 0.0, %v6899
        %v6901 = vpop.f32.mrf.mxu0
        %6902 = vmatprep.mubr.f32.mxu0 0.0
        %6903 = vmatmul.mubr.f32.gmra.mxu0 %v6762
        %v6904 = vpop.f32.mrf.mxu0
        %v6905 = vadd.f32 0.0, %v6904
        %v6906 = vpop.f32.mrf.mxu0
        %6907 = vmatprep.mubr.f32.mxu0 0.0
        %6908 = vmatmul.mubr.f32.gmra.mxu0 %v6763
        %v6909 = vpop.f32.mrf.mxu0
        %v6910 = vadd.f32 0.0, %v6909
        %v6911 = vpop.f32.mrf.mxu0
        %6912 = vmatprep.mubr.f32.mxu0 0.0
        %6913 = vmatmul.mubr.f32.gmra.mxu0 %v6764
        %v6914 = vpop.f32.mrf.mxu0
        %v6915 = vadd.f32 0.0, %v6914
        %v6916 = vpop.f32.mrf.mxu0
        %6917 = vmatprep.mubr.f32.mxu0 0.0
        %6918 = vmatmul.mubr.f32.gmra.mxu0 %v6765
        %v6919 = vpop.f32.mrf.mxu0
        %v6920 = vadd.f32 0.0, %v6919
        %v6921 = vpop.f32.mrf.mxu0
        %6922 = vmatprep.mubr.f32.mxu0 0.0
        %6923 = vmatmul.mubr.f32.gmra.mxu0 %v6766
        %v6924 = vpop.f32.mrf.mxu0
        %v6925 = vadd.f32 0.0, %v6924
        %v6926 = vpop.f32.mrf.mxu0
        %6927 = vdwg.mxu0
        %v6928 = vadd.f32 %v6735, %v6850
        %v6929 = vadd.f32 %v6736, %v6855
        %v6930 = vadd.f32 %v6737, %v6860
        %v6931 = vadd.f32 %v6738, %v6865
        %v6932 = vadd.f32 %v6739, %v6870
        %v6933 = vadd.f32 %v6740, %v6875
        %v6934 = vadd.f32 %v6741, %v6880
        %v6935 = vadd.f32 %v6742, %v6885
        %v6936 = vadd.f32 %v6743, %v6890
        %v6937 = vadd.f32 %v6744, %v6895
        %v6938 = vadd.f32 %v6745, %v6900
        %v6939 = vadd.f32 %v6746, %v6905
        %v6940 = vadd.f32 %v6747, %v6910
        %v6941 = vadd.f32 %v6748, %v6915
        %v6942 = vadd.f32 %v6749, %v6920
        %v6943 = vadd.f32 %v6750, %v6925
        %v6944 = vld [vmem:[%s4026 + $0x2] sm:$0xff]
        %v6945 = vld [vmem:[%s4026 + $0xa] sm:$0xff]
        %v6946 = vld [vmem:[%s4026 + $0x1a] sm:$0xff]
        %v6947 = vld [vmem:[%s4026 + $0x22] sm:$0xff]
        %v6948 = vld [vmem:[%s4026 + $0x32] sm:$0xff]
        %v6949 = vld [vmem:[%s4026 + $0x3a] sm:$0xff]
        %v6950 = vld [vmem:[%s4026 + $0x4a] sm:$0xff]
        %v6951 = vld [vmem:[%s4026 + $0x52] sm:$0xff]
        %v6952 = vld [vmem:[%s4026 + $0x62] sm:$0xff]
        %v6953 = vld [vmem:[%s4026 + $0x6a] sm:$0xff]
        %v6954 = vld [vmem:[%s4026 + $0x7a] sm:$0xff]
        %v6955 = vld [vmem:[%s4026 + $0x82] sm:$0xff]
        %v6956 = vld [vmem:[%s4026 + $0x92] sm:$0xff]
        %v6957 = vld [vmem:[%s4026 + $0x9a] sm:$0xff]
        %v6958 = vld [vmem:[%s4026 + $0xaa] sm:$0xff]
        %v6959 = vld [vmem:[%s4026 + $0xb2] sm:$0xff]
        %v6960 = vld [vmem:[%s4996] sm:$0xff]
        %v6961 = vld [vmem:[%s4996 + $0x8] sm:$0xff]
        %v6962 = vld [vmem:[%s4996 + $0x10] sm:$0xff]
        %v6963 = vld [vmem:[%s4996 + $0x18] sm:$0xff]
        %v6964 = vld [vmem:[%s4996 + $0x20] sm:$0xff]
        %v6965 = vld [vmem:[%s4996 + $0x28] sm:$0xff]
        %v6966 = vld [vmem:[%s4996 + $0x30] sm:$0xff]
        %v6967 = vld [vmem:[%s4996 + $0x38] sm:$0xff]
        %v6968 = vld [vmem:[%s4996 + $0x40] sm:$0xff]
        %v6969 = vld [vmem:[%s4996 + $0x48] sm:$0xff]
        %v6970 = vld [vmem:[%s4996 + $0x50] sm:$0xff]
        %v6971 = vld [vmem:[%s4996 + $0x58] sm:$0xff]
        %v6972 = vld [vmem:[%s4996 + $0x60] sm:$0xff]
        %v6973 = vld [vmem:[%s4996 + $0x68] sm:$0xff]
        %v6974 = vld [vmem:[%s4996 + $0x70] sm:$0xff]
        %v6975 = vld [vmem:[%s4996 + $0x78] sm:$0xff]
        %6976 = vmatprep.subr.mxu0 0.0
        %6977 = vmatpush1.msra.mxu0 %v6975
        %6978 = vmatprep.subr.mxu0 0.0
        %6979 = vmatpush1.msra.mxu0 %v6974
        %6980 = vmatprep.subr.mxu0 0.0
        %6981 = vmatpush1.msra.mxu0 %v6973
        %6982 = vmatprep.subr.mxu0 0.0
        %6983 = vmatpush1.msra.mxu0 %v6972
        %6984 = vmatprep.subr.mxu0 0.0
        %6985 = vmatpush1.msra.mxu0 %v6971
        %6986 = vmatprep.subr.mxu0 0.0
        %6987 = vmatpush1.msra.mxu0 %v6970
        %6988 = vmatprep.subr.mxu0 0.0
        %6989 = vmatpush1.msra.mxu0 %v6969
        %6990 = vmatprep.subr.mxu0 0.0
        %6991 = vmatpush1.msra.mxu0 %v6968
        %6992 = vmatprep.subr.mxu0 0.0
        %6993 = vmatpush1.msra.mxu0 %v6967
        %6994 = vmatprep.subr.mxu0 0.0
        %6995 = vmatpush1.msra.mxu0 %v6966
        %6996 = vmatprep.subr.mxu0 0.0
        %6997 = vmatpush1.msra.mxu0 %v6965
        %6998 = vmatprep.subr.mxu0 0.0
        %6999 = vmatpush1.msra.mxu0 %v6964
        %7000 = vmatprep.subr.mxu0 0.0
        %7001 = vmatpush1.msra.mxu0 %v6963
        %7002 = vmatprep.subr.mxu0 0.0
        %7003 = vmatpush1.msra.mxu0 %v6962
        %7004 = vmatprep.subr.mxu0 0.0
        %7005 = vmatpush1.msra.mxu0 %v6961
        %7006 = vmatprep.subr.mxu0 0.0
        %7007 = vmatpush1.msra.mxu0 %v6960
        %7008 = vmatprep.subr.mxu0 0.0
        %7009 = vmatpush2.msra.mxu0 0.0
        %7010 = vmatprep.subr.mxu0 0.0
        %7011 = vmatpush2.msra.mxu0 0.0
        %7012 = vmatprep.subr.mxu0 0.0
        %7013 = vmatpush2.msra.mxu0 0.0
        %7014 = vmatprep.subr.mxu0 0.0
        %7015 = vmatpush2.msra.mxu0 0.0
        %7016 = vmatprep.subr.mxu0 0.0
        %7017 = vmatpush2.msra.mxu0 0.0
        %7018 = vmatprep.subr.mxu0 0.0
        %7019 = vmatpush2.msra.mxu0 0.0
        %7020 = vmatprep.subr.mxu0 0.0
        %7021 = vmatpush2.msra.mxu0 0.0
        %7022 = vmatprep.subr.mxu0 0.0
        %7023 = vmatpush2.msra.mxu0 0.0
        %7024 = vmatprep.subr.mxu0 0.0
        %7025 = vmatpush2.msra.mxu0 0.0
        %7026 = vmatprep.subr.mxu0 0.0
        %7027 = vmatpush2.msra.mxu0 0.0
        %7028 = vmatprep.subr.mxu0 0.0
        %7029 = vmatpush2.msra.mxu0 0.0
        %7030 = vmatprep.subr.mxu0 0.0
        %7031 = vmatpush2.msra.mxu0 0.0
        %7032 = vmatprep.subr.mxu0 0.0
        %7033 = vmatpush2.msra.mxu0 0.0
        %7034 = vmatprep.subr.mxu0 0.0
        %7035 = vmatpush2.msra.mxu0 0.0
        %7036 = vmatprep.subr.mxu0 0.0
        %7037 = vmatpush2.msra.mxu0 0.0
        %7038 = vmatprep.subr.mxu0 0.0
        %7039 = vmatpush2.msra.mxu0 0.0
        %7040 = vmatprep.mubr.f32.mxu0 0.0
        %7041 = vmatmul.mubr.f32.gmra.mxu0 %v6944
        %v7042 = vpop.f32.mrf.mxu0
        %v7043 = vadd.f32 0.0, %v7042
        %v7044 = vpop.f32.mrf.mxu0
        %7045 = vmatprep.mubr.f32.mxu0 0.0
        %7046 = vmatmul.mubr.f32.gmra.mxu0 %v6945
        %v7047 = vpop.f32.mrf.mxu0
        %v7048 = vadd.f32 0.0, %v7047
        %v7049 = vpop.f32.mrf.mxu0
        %7050 = vmatprep.mubr.f32.mxu0 0.0
        %7051 = vmatmul.mubr.f32.gmra.mxu0 %v6946
        %v7052 = vpop.f32.mrf.mxu0
        %v7053 = vadd.f32 0.0, %v7052
        %v7054 = vpop.f32.mrf.mxu0
        %7055 = vmatprep.mubr.f32.mxu0 0.0
        %7056 = vmatmul.mubr.f32.gmra.mxu0 %v6947
        %v7057 = vpop.f32.mrf.mxu0
        %v7058 = vadd.f32 0.0, %v7057
        %v7059 = vpop.f32.mrf.mxu0
        %7060 = vmatprep.mubr.f32.mxu0 0.0
        %7061 = vmatmul.mubr.f32.gmra.mxu0 %v6948
        %v7062 = vpop.f32.mrf.mxu0
        %v7063 = vadd.f32 0.0, %v7062
        %v7064 = vpop.f32.mrf.mxu0
        %7065 = vmatprep.mubr.f32.mxu0 0.0
        %7066 = vmatmul.mubr.f32.gmra.mxu0 %v6949
        %v7067 = vpop.f32.mrf.mxu0
        %v7068 = vadd.f32 0.0, %v7067
        %v7069 = vpop.f32.mrf.mxu0
        %7070 = vmatprep.mubr.f32.mxu0 0.0
        %7071 = vmatmul.mubr.f32.gmra.mxu0 %v6950
        %v7072 = vpop.f32.mrf.mxu0
        %v7073 = vadd.f32 0.0, %v7072
        %v7074 = vpop.f32.mrf.mxu0
        %7075 = vmatprep.mubr.f32.mxu0 0.0
        %7076 = vmatmul.mubr.f32.gmra.mxu0 %v6951
        %v7077 = vpop.f32.mrf.mxu0
        %v7078 = vadd.f32 0.0, %v7077
        %v7079 = vpop.f32.mrf.mxu0
        %7080 = vmatprep.mubr.f32.mxu0 0.0
        %7081 = vmatmul.mubr.f32.gmra.mxu0 %v6952
        %v7082 = vpop.f32.mrf.mxu0
        %v7083 = vadd.f32 0.0, %v7082
        %v7084 = vpop.f32.mrf.mxu0
        %7085 = vmatprep.mubr.f32.mxu0 0.0
        %7086 = vmatmul.mubr.f32.gmra.mxu0 %v6953
        %v7087 = vpop.f32.mrf.mxu0
        %v7088 = vadd.f32 0.0, %v7087
        %v7089 = vpop.f32.mrf.mxu0
        %7090 = vmatprep.mubr.f32.mxu0 0.0
        %7091 = vmatmul.mubr.f32.gmra.mxu0 %v6954
        %v7092 = vpop.f32.mrf.mxu0
        %v7093 = vadd.f32 0.0, %v7092
        %v7094 = vpop.f32.mrf.mxu0
        %7095 = vmatprep.mubr.f32.mxu0 0.0
        %7096 = vmatmul.mubr.f32.gmra.mxu0 %v6955
        %v7097 = vpop.f32.mrf.mxu0
        %v7098 = vadd.f32 0.0, %v7097
        %v7099 = vpop.f32.mrf.mxu0
        %7100 = vmatprep.mubr.f32.mxu0 0.0
        %7101 = vmatmul.mubr.f32.gmra.mxu0 %v6956
        %v7102 = vpop.f32.mrf.mxu0
        %v7103 = vadd.f32 0.0, %v7102
        %v7104 = vpop.f32.mrf.mxu0
        %7105 = vmatprep.mubr.f32.mxu0 0.0
        %7106 = vmatmul.mubr.f32.gmra.mxu0 %v6957
        %v7107 = vpop.f32.mrf.mxu0
        %v7108 = vadd.f32 0.0, %v7107
        %v7109 = vpop.f32.mrf.mxu0
        %7110 = vmatprep.mubr.f32.mxu0 0.0
        %7111 = vmatmul.mubr.f32.gmra.mxu0 %v6958
        %v7112 = vpop.f32.mrf.mxu0
        %v7113 = vadd.f32 0.0, %v7112
        %v7114 = vpop.f32.mrf.mxu0
        %7115 = vmatprep.mubr.f32.mxu0 0.0
        %7116 = vmatmul.mubr.f32.gmra.mxu0 %v6959
        %v7117 = vpop.f32.mrf.mxu0
        %v7118 = vadd.f32 0.0, %v7117
        %v7119 = vpop.f32.mrf.mxu0
        %7120 = vdwg.mxu0
        %v7121 = vadd.f32 %v6928, %v7043
        %v7122 = vadd.f32 %v6929, %v7048
        %v7123 = vadd.f32 %v6930, %v7053
        %v7124 = vadd.f32 %v6931, %v7058
        %v7125 = vadd.f32 %v6932, %v7063
        %v7126 = vadd.f32 %v6933, %v7068
        %v7127 = vadd.f32 %v6934, %v7073
        %v7128 = vadd.f32 %v6935, %v7078
        %v7129 = vadd.f32 %v6936, %v7083
        %v7130 = vadd.f32 %v6937, %v7088
        %v7131 = vadd.f32 %v6938, %v7093
        %v7132 = vadd.f32 %v6939, %v7098
        %v7133 = vadd.f32 %v6940, %v7103
        %v7134 = vadd.f32 %v6941, %v7108
        %v7135 = vadd.f32 %v6942, %v7113
        %v7136 = vadd.f32 %v6943, %v7118
        %s7137 = scalar_lea.vmem [#allocation3], 240
        %v7138 = vld [vmem:[%s7137] sm:$0xff]
        %v7139 = vld [vmem:[%s7137 + $0x8] sm:$0xff]
        %v7140 = vld [vmem:[%s7137 + $0x18] sm:$0xff]
        %v7141 = vld [vmem:[%s7137 + $0x20] sm:$0xff]
        %v7142 = vld [vmem:[%s7137 + $0x30] sm:$0xff]
        %v7143 = vld [vmem:[%s7137 + $0x38] sm:$0xff]
        %v7144 = vld [vmem:[%s7137 + $0x48] sm:$0xff]
        %v7145 = vld [vmem:[%s7137 + $0x50] sm:$0xff]
        %v7146 = vld [vmem:[%s7137 + $0x60] sm:$0xff]
        %v7147 = vld [vmem:[%s7137 + $0x68] sm:$0xff]
        %v7148 = vld [vmem:[%s7137 + $0x78] sm:$0xff]
        %v7149 = vld [vmem:[%s7137 + $0x80] sm:$0xff]
        %v7150 = vld [vmem:[%s7137 + $0x90] sm:$0xff]
        %v7151 = vld [vmem:[%s7137 + $0x98] sm:$0xff]
        %v7152 = vld [vmem:[%s7137 + $0xa8] sm:$0xff]
        %v7153 = vld [vmem:[%s7137 + $0xb0] sm:$0xff]
        %v7154 = vld [vmem:[%s5191] sm:$0xff]
        %v7155 = vld [vmem:[%s5191 + $0x8] sm:$0xff]
        %v7156 = vld [vmem:[%s5191 + $0x10] sm:$0xff]
        %v7157 = vld [vmem:[%s5191 + $0x18] sm:$0xff]
        %v7158 = vld [vmem:[%s5191 + $0x20] sm:$0xff]
        %v7159 = vld [vmem:[%s5191 + $0x28] sm:$0xff]
        %v7160 = vld [vmem:[%s5191 + $0x30] sm:$0xff]
        %v7161 = vld [vmem:[%s5191 + $0x38] sm:$0xff]
        %v7162 = vld [vmem:[%s5191 + $0x40] sm:$0xff]
        %v7163 = vld [vmem:[%s5191 + $0x48] sm:$0xff]
        %v7164 = vld [vmem:[%s5191 + $0x50] sm:$0xff]
        %v7165 = vld [vmem:[%s5191 + $0x58] sm:$0xff]
        %v7166 = vld [vmem:[%s5191 + $0x60] sm:$0xff]
        %v7167 = vld [vmem:[%s5191 + $0x68] sm:$0xff]
        %v7168 = vld [vmem:[%s5191 + $0x70] sm:$0xff]
        %v7169 = vld [vmem:[%s5191 + $0x78] sm:$0xff]
        %7170 = vmatprep.subr.mxu0 0.0
        %7171 = vmatpush1.msra.mxu0 %v7169
        %7172 = vmatprep.subr.mxu0 0.0
        %7173 = vmatpush1.msra.mxu0 %v7168
        %7174 = vmatprep.subr.mxu0 0.0
        %7175 = vmatpush1.msra.mxu0 %v7167
        %7176 = vmatprep.subr.mxu0 0.0
        %7177 = vmatpush1.msra.mxu0 %v7166
        %7178 = vmatprep.subr.mxu0 0.0
        %7179 = vmatpush1.msra.mxu0 %v7165
        %7180 = vmatprep.subr.mxu0 0.0
        %7181 = vmatpush1.msra.mxu0 %v7164
        %7182 = vmatprep.subr.mxu0 0.0
        %7183 = vmatpush1.msra.mxu0 %v7163
        %7184 = vmatprep.subr.mxu0 0.0
        %7185 = vmatpush1.msra.mxu0 %v7162
        %7186 = vmatprep.subr.mxu0 0.0
        %7187 = vmatpush1.msra.mxu0 %v7161
        %7188 = vmatprep.subr.mxu0 0.0
        %7189 = vmatpush1.msra.mxu0 %v7160
        %7190 = vmatprep.subr.mxu0 0.0
        %7191 = vmatpush1.msra.mxu0 %v7159
        %7192 = vmatprep.subr.mxu0 0.0
        %7193 = vmatpush1.msra.mxu0 %v7158
        %7194 = vmatprep.subr.mxu0 0.0
        %7195 = vmatpush1.msra.mxu0 %v7157
        %7196 = vmatprep.subr.mxu0 0.0
        %7197 = vmatpush1.msra.mxu0 %v7156
        %7198 = vmatprep.subr.mxu0 0.0
        %7199 = vmatpush1.msra.mxu0 %v7155
        %7200 = vmatprep.subr.mxu0 0.0
        %7201 = vmatpush1.msra.mxu0 %v7154
        %7202 = vmatprep.subr.mxu0 0.0
        %7203 = vmatpush2.msra.mxu0 0.0
        %7204 = vmatprep.subr.mxu0 0.0
        %7205 = vmatpush2.msra.mxu0 0.0
        %7206 = vmatprep.subr.mxu0 0.0
        %7207 = vmatpush2.msra.mxu0 0.0
        %7208 = vmatprep.subr.mxu0 0.0
        %7209 = vmatpush2.msra.mxu0 0.0
        %7210 = vmatprep.subr.mxu0 0.0
        %7211 = vmatpush2.msra.mxu0 0.0
        %7212 = vmatprep.subr.mxu0 0.0
        %7213 = vmatpush2.msra.mxu0 0.0
        %7214 = vmatprep.subr.mxu0 0.0
        %7215 = vmatpush2.msra.mxu0 0.0
        %7216 = vmatprep.subr.mxu0 0.0
        %7217 = vmatpush2.msra.mxu0 0.0
        %7218 = vmatprep.subr.mxu0 0.0
        %7219 = vmatpush2.msra.mxu0 0.0
        %7220 = vmatprep.subr.mxu0 0.0
        %7221 = vmatpush2.msra.mxu0 0.0
        %7222 = vmatprep.subr.mxu0 0.0
        %7223 = vmatpush2.msra.mxu0 0.0
        %7224 = vmatprep.subr.mxu0 0.0
        %7225 = vmatpush2.msra.mxu0 0.0
        %7226 = vmatprep.subr.mxu0 0.0
        %7227 = vmatpush2.msra.mxu0 0.0
        %7228 = vmatprep.subr.mxu0 0.0
        %7229 = vmatpush2.msra.mxu0 0.0
        %7230 = vmatprep.subr.mxu0 0.0
        %7231 = vmatpush2.msra.mxu0 0.0
        %7232 = vmatprep.subr.mxu0 0.0
        %7233 = vmatpush2.msra.mxu0 0.0
        %7234 = vmatprep.mubr.f32.mxu0 0.0
        %7235 = vmatmul.mubr.f32.gmra.mxu0 %v7138
        %v7236 = vpop.f32.mrf.mxu0
        %v7237 = vadd.f32 0.0, %v7236
        %v7238 = vpop.f32.mrf.mxu0
        %7239 = vmatprep.mubr.f32.mxu0 0.0
        %7240 = vmatmul.mubr.f32.gmra.mxu0 %v7139
        %v7241 = vpop.f32.mrf.mxu0
        %v7242 = vadd.f32 0.0, %v7241
        %v7243 = vpop.f32.mrf.mxu0
        %7244 = vmatprep.mubr.f32.mxu0 0.0
        %7245 = vmatmul.mubr.f32.gmra.mxu0 %v7140
        %v7246 = vpop.f32.mrf.mxu0
        %v7247 = vadd.f32 0.0, %v7246
        %v7248 = vpop.f32.mrf.mxu0
        %7249 = vmatprep.mubr.f32.mxu0 0.0
        %7250 = vmatmul.mubr.f32.gmra.mxu0 %v7141
        %v7251 = vpop.f32.mrf.mxu0
        %v7252 = vadd.f32 0.0, %v7251
        %v7253 = vpop.f32.mrf.mxu0
        %7254 = vmatprep.mubr.f32.mxu0 0.0
        %7255 = vmatmul.mubr.f32.gmra.mxu0 %v7142
        %v7256 = vpop.f32.mrf.mxu0
        %v7257 = vadd.f32 0.0, %v7256
        %v7258 = vpop.f32.mrf.mxu0
        %7259 = vmatprep.mubr.f32.mxu0 0.0
        %7260 = vmatmul.mubr.f32.gmra.mxu0 %v7143
        %v7261 = vpop.f32.mrf.mxu0
        %v7262 = vadd.f32 0.0, %v7261
        %v7263 = vpop.f32.mrf.mxu0
        %7264 = vmatprep.mubr.f32.mxu0 0.0
        %7265 = vmatmul.mubr.f32.gmra.mxu0 %v7144
        %v7266 = vpop.f32.mrf.mxu0
        %v7267 = vadd.f32 0.0, %v7266
        %v7268 = vpop.f32.mrf.mxu0
        %7269 = vmatprep.mubr.f32.mxu0 0.0
        %7270 = vmatmul.mubr.f32.gmra.mxu0 %v7145
        %v7271 = vpop.f32.mrf.mxu0
        %v7272 = vadd.f32 0.0, %v7271
        %v7273 = vpop.f32.mrf.mxu0
        %7274 = vmatprep.mubr.f32.mxu0 0.0
        %7275 = vmatmul.mubr.f32.gmra.mxu0 %v7146
        %v7276 = vpop.f32.mrf.mxu0
        %v7277 = vadd.f32 0.0, %v7276
        %v7278 = vpop.f32.mrf.mxu0
        %7279 = vmatprep.mubr.f32.mxu0 0.0
        %7280 = vmatmul.mubr.f32.gmra.mxu0 %v7147
        %v7281 = vpop.f32.mrf.mxu0
        %v7282 = vadd.f32 0.0, %v7281
        %v7283 = vpop.f32.mrf.mxu0
        %7284 = vmatprep.mubr.f32.mxu0 0.0
        %7285 = vmatmul.mubr.f32.gmra.mxu0 %v7148
        %v7286 = vpop.f32.mrf.mxu0
        %v7287 = vadd.f32 0.0, %v7286
        %v7288 = vpop.f32.mrf.mxu0
        %7289 = vmatprep.mubr.f32.mxu0 0.0
        %7290 = vmatmul.mubr.f32.gmra.mxu0 %v7149
        %v7291 = vpop.f32.mrf.mxu0
        %v7292 = vadd.f32 0.0, %v7291
        %v7293 = vpop.f32.mrf.mxu0
        %7294 = vmatprep.mubr.f32.mxu0 0.0
        %7295 = vmatmul.mubr.f32.gmra.mxu0 %v7150
        %v7296 = vpop.f32.mrf.mxu0
        %v7297 = vadd.f32 0.0, %v7296
        %v7298 = vpop.f32.mrf.mxu0
        %7299 = vmatprep.mubr.f32.mxu0 0.0
        %7300 = vmatmul.mubr.f32.gmra.mxu0 %v7151
        %v7301 = vpop.f32.mrf.mxu0
        %v7302 = vadd.f32 0.0, %v7301
        %v7303 = vpop.f32.mrf.mxu0
        %7304 = vmatprep.mubr.f32.mxu0 0.0
        %7305 = vmatmul.mubr.f32.gmra.mxu0 %v7152
        %v7306 = vpop.f32.mrf.mxu0
        %v7307 = vadd.f32 0.0, %v7306
        %v7308 = vpop.f32.mrf.mxu0
        %7309 = vmatprep.mubr.f32.mxu0 0.0
        %7310 = vmatmul.mubr.f32.gmra.mxu0 %v7153
        %v7311 = vpop.f32.mrf.mxu0
        %v7312 = vadd.f32 0.0, %v7311
        %v7313 = vpop.f32.mrf.mxu0
        %7314 = vdwg.mxu0
        %v7315 = vadd.f32 %v7121, %v7237
        %v7316 = vadd.f32 %v7122, %v7242
        %v7317 = vadd.f32 %v7123, %v7247
        %v7318 = vadd.f32 %v7124, %v7252
        %v7319 = vadd.f32 %v7125, %v7257
        %v7320 = vadd.f32 %v7126, %v7262
        %v7321 = vadd.f32 %v7127, %v7267
        %v7322 = vadd.f32 %v7128, %v7272
        %v7323 = vadd.f32 %v7129, %v7277
        %v7324 = vadd.f32 %v7130, %v7282
        %v7325 = vadd.f32 %v7131, %v7287
        %v7326 = vadd.f32 %v7132, %v7292
        %v7327 = vadd.f32 %v7133, %v7297
        %v7328 = vadd.f32 %v7134, %v7302
        %v7329 = vadd.f32 %v7135, %v7307
        %v7330 = vadd.f32 %v7136, %v7312
        %v7331 = vld [vmem:[%s7137 + $0x1] sm:$0xff]
        %v7332 = vld [vmem:[%s7137 + $0x9] sm:$0xff]
        %v7333 = vld [vmem:[%s7137 + $0x19] sm:$0xff]
        %v7334 = vld [vmem:[%s7137 + $0x21] sm:$0xff]
        %v7335 = vld [vmem:[%s7137 + $0x31] sm:$0xff]
        %v7336 = vld [vmem:[%s7137 + $0x39] sm:$0xff]
        %v7337 = vld [vmem:[%s7137 + $0x49] sm:$0xff]
        %v7338 = vld [vmem:[%s7137 + $0x51] sm:$0xff]
        %v7339 = vld [vmem:[%s7137 + $0x61] sm:$0xff]
        %v7340 = vld [vmem:[%s7137 + $0x69] sm:$0xff]
        %v7341 = vld [vmem:[%s7137 + $0x79] sm:$0xff]
        %v7342 = vld [vmem:[%s7137 + $0x81] sm:$0xff]
        %v7343 = vld [vmem:[%s7137 + $0x91] sm:$0xff]
        %v7344 = vld [vmem:[%s7137 + $0x99] sm:$0xff]
        %v7345 = vld [vmem:[%s7137 + $0xa9] sm:$0xff]
        %v7346 = vld [vmem:[%s7137 + $0xb1] sm:$0xff]
        %v7347 = vld [vmem:[%s5385] sm:$0xff]
        %v7348 = vld [vmem:[%s5385 + $0x8] sm:$0xff]
        %v7349 = vld [vmem:[%s5385 + $0x10] sm:$0xff]
        %v7350 = vld [vmem:[%s5385 + $0x18] sm:$0xff]
        %v7351 = vld [vmem:[%s5385 + $0x20] sm:$0xff]
        %v7352 = vld [vmem:[%s5385 + $0x28] sm:$0xff]
        %v7353 = vld [vmem:[%s5385 + $0x30] sm:$0xff]
        %v7354 = vld [vmem:[%s5385 + $0x38] sm:$0xff]
        %v7355 = vld [vmem:[%s5385 + $0x40] sm:$0xff]
        %v7356 = vld [vmem:[%s5385 + $0x48] sm:$0xff]
        %v7357 = vld [vmem:[%s5385 + $0x50] sm:$0xff]
        %v7358 = vld [vmem:[%s5385 + $0x58] sm:$0xff]
        %v7359 = vld [vmem:[%s5385 + $0x60] sm:$0xff]
        %v7360 = vld [vmem:[%s5385 + $0x68] sm:$0xff]
        %v7361 = vld [vmem:[%s5385 + $0x70] sm:$0xff]
        %v7362 = vld [vmem:[%s5385 + $0x78] sm:$0xff]
        %7363 = vmatprep.subr.mxu0 0.0
        %7364 = vmatpush1.msra.mxu0 %v7362
        %7365 = vmatprep.subr.mxu0 0.0
        %7366 = vmatpush1.msra.mxu0 %v7361
        %7367 = vmatprep.subr.mxu0 0.0
        %7368 = vmatpush1.msra.mxu0 %v7360
        %7369 = vmatprep.subr.mxu0 0.0
        %7370 = vmatpush1.msra.mxu0 %v7359
        %7371 = vmatprep.subr.mxu0 0.0
        %7372 = vmatpush1.msra.mxu0 %v7358
        %7373 = vmatprep.subr.mxu0 0.0
        %7374 = vmatpush1.msra.mxu0 %v7357
        %7375 = vmatprep.subr.mxu0 0.0
        %7376 = vmatpush1.msra.mxu0 %v7356
        %7377 = vmatprep.subr.mxu0 0.0
        %7378 = vmatpush1.msra.mxu0 %v7355
        %7379 = vmatprep.subr.mxu0 0.0
        %7380 = vmatpush1.msra.mxu0 %v7354
        %7381 = vmatprep.subr.mxu0 0.0
        %7382 = vmatpush1.msra.mxu0 %v7353
        %7383 = vmatprep.subr.mxu0 0.0
        %7384 = vmatpush1.msra.mxu0 %v7352
        %7385 = vmatprep.subr.mxu0 0.0
        %7386 = vmatpush1.msra.mxu0 %v7351
        %7387 = vmatprep.subr.mxu0 0.0
        %7388 = vmatpush1.msra.mxu0 %v7350
        %7389 = vmatprep.subr.mxu0 0.0
        %7390 = vmatpush1.msra.mxu0 %v7349
        %7391 = vmatprep.subr.mxu0 0.0
        %7392 = vmatpush1.msra.mxu0 %v7348
        %7393 = vmatprep.subr.mxu0 0.0
        %7394 = vmatpush1.msra.mxu0 %v7347
        %7395 = vmatprep.subr.mxu0 0.0
        %7396 = vmatpush2.msra.mxu0 0.0
        %7397 = vmatprep.subr.mxu0 0.0
        %7398 = vmatpush2.msra.mxu0 0.0
        %7399 = vmatprep.subr.mxu0 0.0
        %7400 = vmatpush2.msra.mxu0 0.0
        %7401 = vmatprep.subr.mxu0 0.0
        %7402 = vmatpush2.msra.mxu0 0.0
        %7403 = vmatprep.subr.mxu0 0.0
        %7404 = vmatpush2.msra.mxu0 0.0
        %7405 = vmatprep.subr.mxu0 0.0
        %7406 = vmatpush2.msra.mxu0 0.0
        %7407 = vmatprep.subr.mxu0 0.0
        %7408 = vmatpush2.msra.mxu0 0.0
        %7409 = vmatprep.subr.mxu0 0.0
        %7410 = vmatpush2.msra.mxu0 0.0
        %7411 = vmatprep.subr.mxu0 0.0
        %7412 = vmatpush2.msra.mxu0 0.0
        %7413 = vmatprep.subr.mxu0 0.0
        %7414 = vmatpush2.msra.mxu0 0.0
        %7415 = vmatprep.subr.mxu0 0.0
        %7416 = vmatpush2.msra.mxu0 0.0
        %7417 = vmatprep.subr.mxu0 0.0
        %7418 = vmatpush2.msra.mxu0 0.0
        %7419 = vmatprep.subr.mxu0 0.0
        %7420 = vmatpush2.msra.mxu0 0.0
        %7421 = vmatprep.subr.mxu0 0.0
        %7422 = vmatpush2.msra.mxu0 0.0
        %7423 = vmatprep.subr.mxu0 0.0
        %7424 = vmatpush2.msra.mxu0 0.0
        %7425 = vmatprep.subr.mxu0 0.0
        %7426 = vmatpush2.msra.mxu0 0.0
        %7427 = vmatprep.mubr.f32.mxu0 0.0
        %7428 = vmatmul.mubr.f32.gmra.mxu0 %v7331
        %v7429 = vpop.f32.mrf.mxu0
        %v7430 = vadd.f32 0.0, %v7429
        %v7431 = vpop.f32.mrf.mxu0
        %7432 = vmatprep.mubr.f32.mxu0 0.0
        %7433 = vmatmul.mubr.f32.gmra.mxu0 %v7332
        %v7434 = vpop.f32.mrf.mxu0
        %v7435 = vadd.f32 0.0, %v7434
        %v7436 = vpop.f32.mrf.mxu0
        %7437 = vmatprep.mubr.f32.mxu0 0.0
        %7438 = vmatmul.mubr.f32.gmra.mxu0 %v7333
        %v7439 = vpop.f32.mrf.mxu0
        %v7440 = vadd.f32 0.0, %v7439
        %v7441 = vpop.f32.mrf.mxu0
        %7442 = vmatprep.mubr.f32.mxu0 0.0
        %7443 = vmatmul.mubr.f32.gmra.mxu0 %v7334
        %v7444 = vpop.f32.mrf.mxu0
        %v7445 = vadd.f32 0.0, %v7444
        %v7446 = vpop.f32.mrf.mxu0
        %7447 = vmatprep.mubr.f32.mxu0 0.0
        %7448 = vmatmul.mubr.f32.gmra.mxu0 %v7335
        %v7449 = vpop.f32.mrf.mxu0
        %v7450 = vadd.f32 0.0, %v7449
        %v7451 = vpop.f32.mrf.mxu0
        %7452 = vmatprep.mubr.f32.mxu0 0.0
        %7453 = vmatmul.mubr.f32.gmra.mxu0 %v7336
        %v7454 = vpop.f32.mrf.mxu0
        %v7455 = vadd.f32 0.0, %v7454
        %v7456 = vpop.f32.mrf.mxu0
        %7457 = vmatprep.mubr.f32.mxu0 0.0
        %7458 = vmatmul.mubr.f32.gmra.mxu0 %v7337
        %v7459 = vpop.f32.mrf.mxu0
        %v7460 = vadd.f32 0.0, %v7459
        %v7461 = vpop.f32.mrf.mxu0
        %7462 = vmatprep.mubr.f32.mxu0 0.0
        %7463 = vmatmul.mubr.f32.gmra.mxu0 %v7338
        %v7464 = vpop.f32.mrf.mxu0
        %v7465 = vadd.f32 0.0, %v7464
        %v7466 = vpop.f32.mrf.mxu0
        %7467 = vmatprep.mubr.f32.mxu0 0.0
        %7468 = vmatmul.mubr.f32.gmra.mxu0 %v7339
        %v7469 = vpop.f32.mrf.mxu0
        %v7470 = vadd.f32 0.0, %v7469
        %v7471 = vpop.f32.mrf.mxu0
        %7472 = vmatprep.mubr.f32.mxu0 0.0
        %7473 = vmatmul.mubr.f32.gmra.mxu0 %v7340
        %v7474 = vpop.f32.mrf.mxu0
        %v7475 = vadd.f32 0.0, %v7474
        %v7476 = vpop.f32.mrf.mxu0
        %7477 = vmatprep.mubr.f32.mxu0 0.0
        %7478 = vmatmul.mubr.f32.gmra.mxu0 %v7341
        %v7479 = vpop.f32.mrf.mxu0
        %v7480 = vadd.f32 0.0, %v7479
        %v7481 = vpop.f32.mrf.mxu0
        %7482 = vmatprep.mubr.f32.mxu0 0.0
        %7483 = vmatmul.mubr.f32.gmra.mxu0 %v7342
        %v7484 = vpop.f32.mrf.mxu0
        %v7485 = vadd.f32 0.0, %v7484
        %v7486 = vpop.f32.mrf.mxu0
        %7487 = vmatprep.mubr.f32.mxu0 0.0
        %7488 = vmatmul.mubr.f32.gmra.mxu0 %v7343
        %v7489 = vpop.f32.mrf.mxu0
        %v7490 = vadd.f32 0.0, %v7489
        %v7491 = vpop.f32.mrf.mxu0
        %7492 = vmatprep.mubr.f32.mxu0 0.0
        %7493 = vmatmul.mubr.f32.gmra.mxu0 %v7344
        %v7494 = vpop.f32.mrf.mxu0
        %v7495 = vadd.f32 0.0, %v7494
        %v7496 = vpop.f32.mrf.mxu0
        %7497 = vmatprep.mubr.f32.mxu0 0.0
        %7498 = vmatmul.mubr.f32.gmra.mxu0 %v7345
        %v7499 = vpop.f32.mrf.mxu0
        %v7500 = vadd.f32 0.0, %v7499
        %v7501 = vpop.f32.mrf.mxu0
        %7502 = vmatprep.mubr.f32.mxu0 0.0
        %7503 = vmatmul.mubr.f32.gmra.mxu0 %v7346
        %v7504 = vpop.f32.mrf.mxu0
        %v7505 = vadd.f32 0.0, %v7504
        %v7506 = vpop.f32.mrf.mxu0
        %7507 = vdwg.mxu0
        %v7508 = vadd.f32 %v7315, %v7430
        %v7509 = vadd.f32 %v7316, %v7435
        %v7510 = vadd.f32 %v7317, %v7440
        %v7511 = vadd.f32 %v7318, %v7445
        %v7512 = vadd.f32 %v7319, %v7450
        %v7513 = vadd.f32 %v7320, %v7455
        %v7514 = vadd.f32 %v7321, %v7460
        %v7515 = vadd.f32 %v7322, %v7465
        %v7516 = vadd.f32 %v7323, %v7470
        %v7517 = vadd.f32 %v7324, %v7475
        %v7518 = vadd.f32 %v7325, %v7480
        %v7519 = vadd.f32 %v7326, %v7485
        %v7520 = vadd.f32 %v7327, %v7490
        %v7521 = vadd.f32 %v7328, %v7495
        %v7522 = vadd.f32 %v7329, %v7500
        %v7523 = vadd.f32 %v7330, %v7505
        %v7524 = vld [vmem:[%s7137 + $0x2] sm:$0xff]
        %v7525 = vld [vmem:[%s7137 + $0xa] sm:$0xff]
        %v7526 = vld [vmem:[%s7137 + $0x1a] sm:$0xff]
        %v7527 = vld [vmem:[%s7137 + $0x22] sm:$0xff]
        %v7528 = vld [vmem:[%s7137 + $0x32] sm:$0xff]
        %v7529 = vld [vmem:[%s7137 + $0x3a] sm:$0xff]
        %v7530 = vld [vmem:[%s7137 + $0x4a] sm:$0xff]
        %v7531 = vld [vmem:[%s7137 + $0x52] sm:$0xff]
        %v7532 = vld [vmem:[%s7137 + $0x62] sm:$0xff]
        %v7533 = vld [vmem:[%s7137 + $0x6a] sm:$0xff]
        %v7534 = vld [vmem:[%s7137 + $0x7a] sm:$0xff]
        %v7535 = vld [vmem:[%s7137 + $0x82] sm:$0xff]
        %v7536 = vld [vmem:[%s7137 + $0x92] sm:$0xff]
        %v7537 = vld [vmem:[%s7137 + $0x9a] sm:$0xff]
        %v7538 = vld [vmem:[%s7137 + $0xaa] sm:$0xff]
        %v7539 = vld [vmem:[%s7137 + $0xb2] sm:$0xff]
        %v7540 = vld [vmem:[%s5579] sm:$0xff]
        %v7541 = vld [vmem:[%s5579 + $0x8] sm:$0xff]
        %v7542 = vld [vmem:[%s5579 + $0x10] sm:$0xff]
        %v7543 = vld [vmem:[%s5579 + $0x18] sm:$0xff]
        %v7544 = vld [vmem:[%s5579 + $0x20] sm:$0xff]
        %v7545 = vld [vmem:[%s5579 + $0x28] sm:$0xff]
        %v7546 = vld [vmem:[%s5579 + $0x30] sm:$0xff]
        %v7547 = vld [vmem:[%s5579 + $0x38] sm:$0xff]
        %v7548 = vld [vmem:[%s5579 + $0x40] sm:$0xff]
        %v7549 = vld [vmem:[%s5579 + $0x48] sm:$0xff]
        %v7550 = vld [vmem:[%s5579 + $0x50] sm:$0xff]
        %v7551 = vld [vmem:[%s5579 + $0x58] sm:$0xff]
        %v7552 = vld [vmem:[%s5579 + $0x60] sm:$0xff]
        %v7553 = vld [vmem:[%s5579 + $0x68] sm:$0xff]
        %v7554 = vld [vmem:[%s5579 + $0x70] sm:$0xff]
        %v7555 = vld [vmem:[%s5579 + $0x78] sm:$0xff]
        %7556 = vmatprep.subr.mxu0 0.0
        %7557 = vmatpush1.msra.mxu0 %v7555
        %7558 = vmatprep.subr.mxu0 0.0
        %7559 = vmatpush1.msra.mxu0 %v7554
        %7560 = vmatprep.subr.mxu0 0.0
        %7561 = vmatpush1.msra.mxu0 %v7553
        %7562 = vmatprep.subr.mxu0 0.0
        %7563 = vmatpush1.msra.mxu0 %v7552
        %7564 = vmatprep.subr.mxu0 0.0
        %7565 = vmatpush1.msra.mxu0 %v7551
        %7566 = vmatprep.subr.mxu0 0.0
        %7567 = vmatpush1.msra.mxu0 %v7550
        %7568 = vmatprep.subr.mxu0 0.0
        %7569 = vmatpush1.msra.mxu0 %v7549
        %7570 = vmatprep.subr.mxu0 0.0
        %7571 = vmatpush1.msra.mxu0 %v7548
        %7572 = vmatprep.subr.mxu0 0.0
        %7573 = vmatpush1.msra.mxu0 %v7547
        %7574 = vmatprep.subr.mxu0 0.0
        %7575 = vmatpush1.msra.mxu0 %v7546
        %7576 = vmatprep.subr.mxu0 0.0
        %7577 = vmatpush1.msra.mxu0 %v7545
        %7578 = vmatprep.subr.mxu0 0.0
        %7579 = vmatpush1.msra.mxu0 %v7544
        %7580 = vmatprep.subr.mxu0 0.0
        %7581 = vmatpush1.msra.mxu0 %v7543
        %7582 = vmatprep.subr.mxu0 0.0
        %7583 = vmatpush1.msra.mxu0 %v7542
        %7584 = vmatprep.subr.mxu0 0.0
        %7585 = vmatpush1.msra.mxu0 %v7541
        %7586 = vmatprep.subr.mxu0 0.0
        %7587 = vmatpush1.msra.mxu0 %v7540
        %7588 = vmatprep.subr.mxu0 0.0
        %7589 = vmatpush2.msra.mxu0 0.0
        %7590 = vmatprep.subr.mxu0 0.0
        %7591 = vmatpush2.msra.mxu0 0.0
        %7592 = vmatprep.subr.mxu0 0.0
        %7593 = vmatpush2.msra.mxu0 0.0
        %7594 = vmatprep.subr.mxu0 0.0
        %7595 = vmatpush2.msra.mxu0 0.0
        %7596 = vmatprep.subr.mxu0 0.0
        %7597 = vmatpush2.msra.mxu0 0.0
        %7598 = vmatprep.subr.mxu0 0.0
        %7599 = vmatpush2.msra.mxu0 0.0
        %7600 = vmatprep.subr.mxu0 0.0
        %7601 = vmatpush2.msra.mxu0 0.0
        %7602 = vmatprep.subr.mxu0 0.0
        %7603 = vmatpush2.msra.mxu0 0.0
        %7604 = vmatprep.subr.mxu0 0.0
        %7605 = vmatpush2.msra.mxu0 0.0
        %7606 = vmatprep.subr.mxu0 0.0
        %7607 = vmatpush2.msra.mxu0 0.0
        %7608 = vmatprep.subr.mxu0 0.0
        %7609 = vmatpush2.msra.mxu0 0.0
        %7610 = vmatprep.subr.mxu0 0.0
        %7611 = vmatpush2.msra.mxu0 0.0
        %7612 = vmatprep.subr.mxu0 0.0
        %7613 = vmatpush2.msra.mxu0 0.0
        %7614 = vmatprep.subr.mxu0 0.0
        %7615 = vmatpush2.msra.mxu0 0.0
        %7616 = vmatprep.subr.mxu0 0.0
        %7617 = vmatpush2.msra.mxu0 0.0
        %7618 = vmatprep.subr.mxu0 0.0
        %7619 = vmatpush2.msra.mxu0 0.0
        %7620 = vmatprep.mubr.f32.mxu0 0.0
        %7621 = vmatmul.mubr.f32.gmra.mxu0 %v7524
        %v7622 = vpop.f32.mrf.mxu0
        %v7623 = vadd.f32 0.0, %v7622
        %v7624 = vpop.f32.mrf.mxu0
        %7625 = vmatprep.mubr.f32.mxu0 0.0
        %7626 = vmatmul.mubr.f32.gmra.mxu0 %v7525
        %v7627 = vpop.f32.mrf.mxu0
        %v7628 = vadd.f32 0.0, %v7627
        %v7629 = vpop.f32.mrf.mxu0
        %7630 = vmatprep.mubr.f32.mxu0 0.0
        %7631 = vmatmul.mubr.f32.gmra.mxu0 %v7526
        %v7632 = vpop.f32.mrf.mxu0
        %v7633 = vadd.f32 0.0, %v7632
        %v7634 = vpop.f32.mrf.mxu0
        %7635 = vmatprep.mubr.f32.mxu0 0.0
        %7636 = vmatmul.mubr.f32.gmra.mxu0 %v7527
        %v7637 = vpop.f32.mrf.mxu0
        %v7638 = vadd.f32 0.0, %v7637
        %v7639 = vpop.f32.mrf.mxu0
        %7640 = vmatprep.mubr.f32.mxu0 0.0
        %7641 = vmatmul.mubr.f32.gmra.mxu0 %v7528
        %v7642 = vpop.f32.mrf.mxu0
        %v7643 = vadd.f32 0.0, %v7642
        %v7644 = vpop.f32.mrf.mxu0
        %7645 = vmatprep.mubr.f32.mxu0 0.0
        %7646 = vmatmul.mubr.f32.gmra.mxu0 %v7529
        %v7647 = vpop.f32.mrf.mxu0
        %v7648 = vadd.f32 0.0, %v7647
        %v7649 = vpop.f32.mrf.mxu0
        %7650 = vmatprep.mubr.f32.mxu0 0.0
        %7651 = vmatmul.mubr.f32.gmra.mxu0 %v7530
        %v7652 = vpop.f32.mrf.mxu0
        %v7653 = vadd.f32 0.0, %v7652
        %v7654 = vpop.f32.mrf.mxu0
        %7655 = vmatprep.mubr.f32.mxu0 0.0
        %7656 = vmatmul.mubr.f32.gmra.mxu0 %v7531
        %v7657 = vpop.f32.mrf.mxu0
        %v7658 = vadd.f32 0.0, %v7657
        %v7659 = vpop.f32.mrf.mxu0
        %7660 = vmatprep.mubr.f32.mxu0 0.0
        %7661 = vmatmul.mubr.f32.gmra.mxu0 %v7532
        %v7662 = vpop.f32.mrf.mxu0
        %v7663 = vadd.f32 0.0, %v7662
        %v7664 = vpop.f32.mrf.mxu0
        %7665 = vmatprep.mubr.f32.mxu0 0.0
        %7666 = vmatmul.mubr.f32.gmra.mxu0 %v7533
        %v7667 = vpop.f32.mrf.mxu0
        %v7668 = vadd.f32 0.0, %v7667
        %v7669 = vpop.f32.mrf.mxu0
        %7670 = vmatprep.mubr.f32.mxu0 0.0
        %7671 = vmatmul.mubr.f32.gmra.mxu0 %v7534
        %v7672 = vpop.f32.mrf.mxu0
        %v7673 = vadd.f32 0.0, %v7672
        %v7674 = vpop.f32.mrf.mxu0
        %7675 = vmatprep.mubr.f32.mxu0 0.0
        %7676 = vmatmul.mubr.f32.gmra.mxu0 %v7535
        %v7677 = vpop.f32.mrf.mxu0
        %v7678 = vadd.f32 0.0, %v7677
        %v7679 = vpop.f32.mrf.mxu0
        %7680 = vmatprep.mubr.f32.mxu0 0.0
        %7681 = vmatmul.mubr.f32.gmra.mxu0 %v7536
        %v7682 = vpop.f32.mrf.mxu0
        %v7683 = vadd.f32 0.0, %v7682
        %v7684 = vpop.f32.mrf.mxu0
        %7685 = vmatprep.mubr.f32.mxu0 0.0
        %7686 = vmatmul.mubr.f32.gmra.mxu0 %v7537
        %v7687 = vpop.f32.mrf.mxu0
        %v7688 = vadd.f32 0.0, %v7687
        %v7689 = vpop.f32.mrf.mxu0
        %7690 = vmatprep.mubr.f32.mxu0 0.0
        %7691 = vmatmul.mubr.f32.gmra.mxu0 %v7538
        %v7692 = vpop.f32.mrf.mxu0
        %v7693 = vadd.f32 0.0, %v7692
        %v7694 = vpop.f32.mrf.mxu0
        %7695 = vmatprep.mubr.f32.mxu0 0.0
        %7696 = vmatmul.mubr.f32.gmra.mxu0 %v7539
        %v7697 = vpop.f32.mrf.mxu0
        %v7698 = vadd.f32 0.0, %v7697
        %v7699 = vpop.f32.mrf.mxu0
        %7700 = vdwg.mxu0
        %v7701 = vadd.f32 %v7508, %v7623
        %v7702 = vadd.f32 %v7509, %v7628
        %v7703 = vadd.f32 %v7510, %v7633
        %v7704 = vadd.f32 %v7511, %v7638
        %v7705 = vadd.f32 %v7512, %v7643
        %v7706 = vadd.f32 %v7513, %v7648
        %v7707 = vadd.f32 %v7514, %v7653
        %v7708 = vadd.f32 %v7515, %v7658
        %v7709 = vadd.f32 %v7516, %v7663
        %v7710 = vadd.f32 %v7517, %v7668
        %v7711 = vadd.f32 %v7518, %v7673
        %v7712 = vadd.f32 %v7519, %v7678
        %v7713 = vadd.f32 %v7520, %v7683
        %v7714 = vadd.f32 %v7521, %v7688
        %v7715 = vadd.f32 %v7522, %v7693
        %v7716 = vadd.f32 %v7523, %v7698
        %v7717 = vadd.f32 %v7701, %v5761
        %v7718 = vadd.f32 %v7702, %v5761
        %v7719 = vadd.f32 %v7703, %v5761
        %v7720 = vadd.f32 %v7704, %v5761
        %v7721 = vadd.f32 %v7705, %v5761
        %v7722 = vadd.f32 %v7706, %v5761
        %v7723 = vadd.f32 %v7707, %v5761
        %v7724 = vadd.f32 %v7708, %v5761
        %v7725 = vadd.f32 %v7709, %v5761
        %v7726 = vadd.f32 %v7710, %v5761
        %v7727 = vadd.f32 %v7711, %v5761
        %v7728 = vadd.f32 %v7712, %v5761
        %v7729 = vadd.f32 %v7713, %v5761
        %v7730 = vadd.f32 %v7714, %v5761
        %v7731 = vadd.f32 %v7715, %v5761
        %v7732 = vadd.f32 %v7716, %v5761
        %v7733 = vmax.f32 %v7717, 0.0
        %v7734 = vmax.f32 %v7718, 0.0
        %v7735 = vmax.f32 %v7719, 0.0
        %v7736 = vmax.f32 %v7720, 0.0
        %v7737 = vmax.f32 %v7721, 0.0
        %v7738 = vmax.f32 %v7722, 0.0
        %v7739 = vmax.f32 %v7723, 0.0
        %v7740 = vmax.f32 %v7724, 0.0
        %v7741 = vmax.f32 %v7725, 0.0
        %v7742 = vmax.f32 %v7726, 0.0
        %v7743 = vmax.f32 %v7727, 0.0
        %v7744 = vmax.f32 %v7728, 0.0
        %v7745 = vmax.f32 %v7729, 0.0
        %v7746 = vmax.f32 %v7730, 0.0
        %v7747 = vmax.f32 %v7731, 0.0
        %v7748 = vmax.f32 %v7732, 0.0
        %v7749 = vld [vmem:[%s2834 + $0x1] sm:$0xff]
        %v7750 = vld [vmem:[%s2834 + $0x9] sm:$0xff]
        %v7751 = vld [vmem:[%s2834 + $0x19] sm:$0xff]
        %v7752 = vld [vmem:[%s2834 + $0x21] sm:$0xff]
        %v7753 = vld [vmem:[%s2834 + $0x31] sm:$0xff]
        %v7754 = vld [vmem:[%s2834 + $0x39] sm:$0xff]
        %v7755 = vld [vmem:[%s2834 + $0x49] sm:$0xff]
        %v7756 = vld [vmem:[%s2834 + $0x51] sm:$0xff]
        %v7757 = vld [vmem:[%s2834 + $0x61] sm:$0xff]
        %v7758 = vld [vmem:[%s2834 + $0x69] sm:$0xff]
        %v7759 = vld [vmem:[%s2834 + $0x79] sm:$0xff]
        %v7760 = vld [vmem:[%s2834 + $0x81] sm:$0xff]
        %v7761 = vld [vmem:[%s2834 + $0x91] sm:$0xff]
        %v7762 = vld [vmem:[%s2834 + $0x99] sm:$0xff]
        %v7763 = vld [vmem:[%s2834 + $0xa9] sm:$0xff]
        %v7764 = vld [vmem:[%s2834 + $0xb1] sm:$0xff]
        %v7765 = vld [vmem:[#allocation10] sm:$0xff]
        %v7766 = vld [vmem:[#allocation10 + $0x8] sm:$0xff]
        %v7767 = vld [vmem:[#allocation10 + $0x10] sm:$0xff]
        %v7768 = vld [vmem:[#allocation10 + $0x18] sm:$0xff]
        %v7769 = vld [vmem:[#allocation10 + $0x20] sm:$0xff]
        %v7770 = vld [vmem:[#allocation10 + $0x28] sm:$0xff]
        %v7771 = vld [vmem:[#allocation10 + $0x30] sm:$0xff]
        %v7772 = vld [vmem:[#allocation10 + $0x38] sm:$0xff]
        %v7773 = vld [vmem:[#allocation10 + $0x40] sm:$0xff]
        %v7774 = vld [vmem:[#allocation10 + $0x48] sm:$0xff]
        %v7775 = vld [vmem:[#allocation10 + $0x50] sm:$0xff]
        %v7776 = vld [vmem:[#allocation10 + $0x58] sm:$0xff]
        %v7777 = vld [vmem:[#allocation10 + $0x60] sm:$0xff]
        %v7778 = vld [vmem:[#allocation10 + $0x68] sm:$0xff]
        %v7779 = vld [vmem:[#allocation10 + $0x70] sm:$0xff]
        %v7780 = vld [vmem:[#allocation10 + $0x78] sm:$0xff]
        %7781 = vmatprep.subr.mxu0 0.0
        %7782 = vmatpush1.msra.mxu0 %v7780
        %7783 = vmatprep.subr.mxu0 0.0
        %7784 = vmatpush1.msra.mxu0 %v7779
        %7785 = vmatprep.subr.mxu0 0.0
        %7786 = vmatpush1.msra.mxu0 %v7778
        %7787 = vmatprep.subr.mxu0 0.0
        %7788 = vmatpush1.msra.mxu0 %v7777
        %7789 = vmatprep.subr.mxu0 0.0
        %7790 = vmatpush1.msra.mxu0 %v7776
        %7791 = vmatprep.subr.mxu0 0.0
        %7792 = vmatpush1.msra.mxu0 %v7775
        %7793 = vmatprep.subr.mxu0 0.0
        %7794 = vmatpush1.msra.mxu0 %v7774
        %7795 = vmatprep.subr.mxu0 0.0
        %7796 = vmatpush1.msra.mxu0 %v7773
        %7797 = vmatprep.subr.mxu0 0.0
        %7798 = vmatpush1.msra.mxu0 %v7772
        %7799 = vmatprep.subr.mxu0 0.0
        %7800 = vmatpush1.msra.mxu0 %v7771
        %7801 = vmatprep.subr.mxu0 0.0
        %7802 = vmatpush1.msra.mxu0 %v7770
        %7803 = vmatprep.subr.mxu0 0.0
        %7804 = vmatpush1.msra.mxu0 %v7769
        %7805 = vmatprep.subr.mxu0 0.0
        %7806 = vmatpush1.msra.mxu0 %v7768
        %7807 = vmatprep.subr.mxu0 0.0
        %7808 = vmatpush1.msra.mxu0 %v7767
        %7809 = vmatprep.subr.mxu0 0.0
        %7810 = vmatpush1.msra.mxu0 %v7766
        %7811 = vmatprep.subr.mxu0 0.0
        %7812 = vmatpush1.msra.mxu0 %v7765
        %7813 = vmatprep.subr.mxu0 0.0
        %7814 = vmatpush2.msra.mxu0 0.0
        %7815 = vmatprep.subr.mxu0 0.0
        %7816 = vmatpush2.msra.mxu0 0.0
        %7817 = vmatprep.subr.mxu0 0.0
        %7818 = vmatpush2.msra.mxu0 0.0
        %7819 = vmatprep.subr.mxu0 0.0
        %7820 = vmatpush2.msra.mxu0 0.0
        %7821 = vmatprep.subr.mxu0 0.0
        %7822 = vmatpush2.msra.mxu0 0.0
        %7823 = vmatprep.subr.mxu0 0.0
        %7824 = vmatpush2.msra.mxu0 0.0
        %7825 = vmatprep.subr.mxu0 0.0
        %7826 = vmatpush2.msra.mxu0 0.0
        %7827 = vmatprep.subr.mxu0 0.0
        %7828 = vmatpush2.msra.mxu0 0.0
        %7829 = vmatprep.subr.mxu0 0.0
        %7830 = vmatpush2.msra.mxu0 0.0
        %7831 = vmatprep.subr.mxu0 0.0
        %7832 = vmatpush2.msra.mxu0 0.0
        %7833 = vmatprep.subr.mxu0 0.0
        %7834 = vmatpush2.msra.mxu0 0.0
        %7835 = vmatprep.subr.mxu0 0.0
        %7836 = vmatpush2.msra.mxu0 0.0
        %7837 = vmatprep.subr.mxu0 0.0
        %7838 = vmatpush2.msra.mxu0 0.0
        %7839 = vmatprep.subr.mxu0 0.0
        %7840 = vmatpush2.msra.mxu0 0.0
        %7841 = vmatprep.subr.mxu0 0.0
        %7842 = vmatpush2.msra.mxu0 0.0
        %7843 = vmatprep.subr.mxu0 0.0
        %7844 = vmatpush2.msra.mxu0 0.0
        %7845 = vmatprep.mubr.f32.mxu0 0.0
        %7846 = vmatmul.mubr.f32.gmra.mxu0 %v7749
        %v7847 = vpop.f32.mrf.mxu0
        %v7848 = vadd.f32 %v5831, %v7847
        %v7849 = vpop.f32.mrf.mxu0
        %7850 = vmatprep.mubr.f32.mxu0 0.0
        %7851 = vmatmul.mubr.f32.gmra.mxu0 %v7750
        %v7852 = vpop.f32.mrf.mxu0
        %v7853 = vadd.f32 %v5831, %v7852
        %v7854 = vpop.f32.mrf.mxu0
        %7855 = vmatprep.mubr.f32.mxu0 0.0
        %7856 = vmatmul.mubr.f32.gmra.mxu0 %v7751
        %v7857 = vpop.f32.mrf.mxu0
        %v7858 = vadd.f32 %v5831, %v7857
        %v7859 = vpop.f32.mrf.mxu0
        %7860 = vmatprep.mubr.f32.mxu0 0.0
        %7861 = vmatmul.mubr.f32.gmra.mxu0 %v7752
        %v7862 = vpop.f32.mrf.mxu0
        %v7863 = vadd.f32 %v5831, %v7862
        %v7864 = vpop.f32.mrf.mxu0
        %7865 = vmatprep.mubr.f32.mxu0 0.0
        %7866 = vmatmul.mubr.f32.gmra.mxu0 %v7753
        %v7867 = vpop.f32.mrf.mxu0
        %v7868 = vadd.f32 %v5831, %v7867
        %v7869 = vpop.f32.mrf.mxu0
        %7870 = vmatprep.mubr.f32.mxu0 0.0
        %7871 = vmatmul.mubr.f32.gmra.mxu0 %v7754
        %v7872 = vpop.f32.mrf.mxu0
        %v7873 = vadd.f32 %v5831, %v7872
        %v7874 = vpop.f32.mrf.mxu0
        %7875 = vmatprep.mubr.f32.mxu0 0.0
        %7876 = vmatmul.mubr.f32.gmra.mxu0 %v7755
        %v7877 = vpop.f32.mrf.mxu0
        %v7878 = vadd.f32 %v5831, %v7877
        %v7879 = vpop.f32.mrf.mxu0
        %7880 = vmatprep.mubr.f32.mxu0 0.0
        %7881 = vmatmul.mubr.f32.gmra.mxu0 %v7756
        %v7882 = vpop.f32.mrf.mxu0
        %v7883 = vadd.f32 %v5831, %v7882
        %v7884 = vpop.f32.mrf.mxu0
        %7885 = vmatprep.mubr.f32.mxu0 0.0
        %7886 = vmatmul.mubr.f32.gmra.mxu0 %v7757
        %v7887 = vpop.f32.mrf.mxu0
        %v7888 = vadd.f32 %v5831, %v7887
        %v7889 = vpop.f32.mrf.mxu0
        %7890 = vmatprep.mubr.f32.mxu0 0.0
        %7891 = vmatmul.mubr.f32.gmra.mxu0 %v7758
        %v7892 = vpop.f32.mrf.mxu0
        %v7893 = vadd.f32 %v5831, %v7892
        %v7894 = vpop.f32.mrf.mxu0
        %7895 = vmatprep.mubr.f32.mxu0 0.0
        %7896 = vmatmul.mubr.f32.gmra.mxu0 %v7759
        %v7897 = vpop.f32.mrf.mxu0
        %v7898 = vadd.f32 %v5831, %v7897
        %v7899 = vpop.f32.mrf.mxu0
        %7900 = vmatprep.mubr.f32.mxu0 0.0
        %7901 = vmatmul.mubr.f32.gmra.mxu0 %v7760
        %v7902 = vpop.f32.mrf.mxu0
        %v7903 = vadd.f32 %v5831, %v7902
        %v7904 = vpop.f32.mrf.mxu0
        %7905 = vmatprep.mubr.f32.mxu0 0.0
        %7906 = vmatmul.mubr.f32.gmra.mxu0 %v7761
        %v7907 = vpop.f32.mrf.mxu0
        %v7908 = vadd.f32 %v5831, %v7907
        %v7909 = vpop.f32.mrf.mxu0
        %7910 = vmatprep.mubr.f32.mxu0 0.0
        %7911 = vmatmul.mubr.f32.gmra.mxu0 %v7762
        %v7912 = vpop.f32.mrf.mxu0
        %v7913 = vadd.f32 %v5831, %v7912
        %v7914 = vpop.f32.mrf.mxu0
        %7915 = vmatprep.mubr.f32.mxu0 0.0
        %7916 = vmatmul.mubr.f32.gmra.mxu0 %v7763
        %v7917 = vpop.f32.mrf.mxu0
        %v7918 = vadd.f32 %v5831, %v7917
        %v7919 = vpop.f32.mrf.mxu0
        %7920 = vmatprep.mubr.f32.mxu0 0.0
        %7921 = vmatmul.mubr.f32.gmra.mxu0 %v7764
        %v7922 = vpop.f32.mrf.mxu0
        %v7923 = vadd.f32 %v5831, %v7922
        %v7924 = vpop.f32.mrf.mxu0
        %7925 = vdwg.mxu0
        %v7926 = vadd.f32 %v7733, %v7848
        %v7927 = vadd.f32 %v7734, %v7853
        %v7928 = vadd.f32 %v7735, %v7858
        %v7929 = vadd.f32 %v7736, %v7863
        %v7930 = vadd.f32 %v7737, %v7868
        %v7931 = vadd.f32 %v7738, %v7873
        %v7932 = vadd.f32 %v7739, %v7878
        %v7933 = vadd.f32 %v7740, %v7883
        %v7934 = vadd.f32 %v7741, %v7888
        %v7935 = vadd.f32 %v7742, %v7893
        %v7936 = vadd.f32 %v7743, %v7898
        %v7937 = vadd.f32 %v7744, %v7903
        %v7938 = vadd.f32 %v7745, %v7908
        %v7939 = vadd.f32 %v7746, %v7913
        %v7940 = vadd.f32 %v7747, %v7918
        %v7941 = vadd.f32 %v7748, %v7923
        %s7942 = scalar_lea.vmem %s340, 128 [#allocation12]
        %7943 = vst [vmem:[%s7942] sm:$0xff] %v7926
        %7944 = vst [vmem:[%s7942 + $0x8] sm:$0xff] %v7927
        %7945 = vst [vmem:[%s7942 + $0x10] sm:$0xff] %v7928
        %7946 = vst [vmem:[%s7942 + $0x18] sm:$0xff] %v7929
        %7947 = vst [vmem:[%s7942 + $0x20] sm:$0xff] %v7930
        %7948 = vst [vmem:[%s7942 + $0x28] sm:$0xff] %v7931
        %7949 = vst [vmem:[%s7942 + $0x30] sm:$0xff] %v7932
        %7950 = vst [vmem:[%s7942 + $0x38] sm:$0xff] %v7933
        %7951 = vst [vmem:[%s7942 + $0x40] sm:$0xff] %v7934
        %7952 = vst [vmem:[%s7942 + $0x48] sm:$0xff] %v7935
        %7953 = vst [vmem:[%s7942 + $0x50] sm:$0xff] %v7936
        %7954 = vst [vmem:[%s7942 + $0x58] sm:$0xff] %v7937
        %7955 = vst [vmem:[%s7942 + $0x60] sm:$0xff] %v7938
        %7956 = vst [vmem:[%s7942 + $0x68] sm:$0xff] %v7939
        %7957 = vst [vmem:[%s7942 + $0x70] sm:$0xff] %v7940
        %7958 = vst [vmem:[%s7942 + $0x78] sm:$0xff] %v7941
        %s7959 = sand.u32 %s186, 1
        %s7960 = scalar_lea.sflag [#allocation6], %s7959
        %s7961 = sand.u32 %s186, 1
        %s7962 = smul.addr %s7961, 256
        %s7963 = scalar_lea.vmem [#allocation12], %s7962
        // Predicated region
        $region65: #{tpu_custom_call.1} parent=47 // pred_check
          %p7964 = pneg %p196
        $region66: #{tpu_custom_call.1} parent=47 // pred_check_branch
          %7966 = sbr.rel (%p7964) target = $region68
        $region67: #{tpu_custom_call.1} parent=47 // pred_region
          %s7968 = ssub.s32 4096, 4096
          %7969 = vsyncadd %s7960, %s7968
          %s7970 = smul.addr %s26, 32
          %s7971 = smul.addr %s7970, 128
          %s7972 = scalar_lea.hbm %s7, %s7971
          %s7973 = sshll.u32 %s7963, 4
          %s7974 = int_to_ptr.vmem [resolvable:$true] %s7973
          %7979 = dma.vmem_to_hbm [thread:$0]  %s7974, 4096, %s7972, %s7960, 128, 128, 8
        $region68: #{tpu_custom_call.1} parent=47 // pred_fallthru
          _
      $region48: #{tpu_custom_call.1} parent=5 // pred_fallthru
        _
      %p7980 = scmp.le.s32.totalorder 2, %s21
      // Predicated region
      $region69: #{tpu_custom_call.1} parent=5 // pred_check
        %p7981 = pneg %p7980
      $region70: #{tpu_custom_call.1} parent=5 // pred_check_branch
        %7983 = sbr.rel (%p7981) target = $region72
      $region71: #{tpu_custom_call.1} parent=5 // pred_region
        %s7984 = ssub.s32 %s21, 2
        // Predicated region
        $region73: #{tpu_custom_call.1} parent=71 // pred_check
          %p7985 = pneg %p202
        $region74: #{tpu_custom_call.1} parent=71 // pred_check_branch
          %7987 = sbr.rel (%p7985) target = $region76
        $region75: #{tpu_custom_call.1} parent=71 // pred_region
          %s7988 = sand.u32 %s187, 1
          %s7989 = scalar_lea.sflag [#allocation6], %s7988
          %s7990 = sand.u32 %s187, 1
          %s7991 = smul.addr %s7990, 256
          %s7992 = scalar_lea.vmem [#allocation12], %s7991
          %7993 = dma.done %s7989, 4096
        $region76: #{tpu_custom_call.1} parent=71 // pred_fallthru
          _
      $region72: #{tpu_custom_call.1} parent=5 // pred_fallthru
        _
    $region6: #{tpu_custom_call.1} parent=1 // loop_footer
      %s25 = sadd.s32 1, %s21
    $region7: #{tpu_custom_call.1} parent=1 // loop_footer_branch
      %20 = sbr.rel target = $region3
    $region8: #{tpu_custom_call.1} parent=1 // loop_exit
      _
    %7994 = vsyncpa [#allocation5], 1
    %s7995 = scalar_lea.sflag [#allocation5], 1
    %7996 = vsyncpa %s7995, 1
    %7997 = vsyncpa [#allocation8], 1
    %7998 = vsyncpa [#allocation11], 1
    %7999 = vsyncpa [#allocation6], 1
    %s8000 = scalar_lea.sflag [#allocation6], 1
    %8001 = vsyncpa %s8000, 1

</llo_original>
